<compile_context>
chip_gen: v7x
topology: tpu7x:2x2x1
jax: 0.10.0
libtpu: 0.0.40
codegen_flags: <defaults>
</compile_context>

<pallas_src>
import jax
import jax.numpy as jnp
import numpy as np
from jax.experimental import pallas as pl
from jax.experimental.pallas import tpu as pltpu

BN_EPS = 1e-5


def _bn_scale_shift(y, gamma, beta):
    """Training-mode BatchNorm over rows, folded into y*scale + shift (exact).

    One-pass statistics: sum and sum-of-squares computed in parallel,
    var = E[y^2] - mean^2 (f32 accumulation; cancellation is negligible at
    these magnitudes).  rsqrt runs on the otherwise-idle EUP slot.
    """
    inv_n = 1.0 / y.shape[0]
    mu = jnp.sum(y, axis=0, keepdims=True) * inv_n
    ex2 = jnp.sum(y * y, axis=0, keepdims=True) * inv_n
    var = jnp.maximum(ex2 - mu * mu, 0.0)
    scale = gamma * jax.lax.rsqrt(var + BN_EPS)
    shift = beta - mu * scale
    return scale, shift


def _conv_bn_hpool(x, w, gamma, beta, ksize, pad):
    """conv(ksize, stride 1, zero-pad, NO bias) + training-BN scale/shift
    + maxpool along H only.

    x: (B, H, W, Cin) value.  w: (ksize*ksize*Cin, Cout), rows ordered (kh, kw, ci).
    Returns (B*(H//2)*W, Cout) with rows ordered (b, h_pooled, w).
    The caller does the W-direction pool + ReLU (ReLU commutes with max).
    """
    B, H, W, Cin = x.shape
    Cout = w.shape[1]
    BHW = B * H * W

    # spatial zero-pad built from zero border strips (no padded-scratch fill)
    zw = jnp.zeros((B, H, pad, Cin), jnp.float32)
    xp = jnp.concatenate([zw, x, zw], axis=2)
    zh = jnp.zeros((B, pad, W + 2 * pad, Cin), jnp.float32)
    xp = jnp.concatenate([zh, xp, zh], axis=1)              # (B, H+2p, W+2p, Cin)

    # full im2col once (lane-concat of ALL k*k taps), then ONE MXU matmul.
    # Conv bias omitted: exactly canceled by the BN mean subtraction.
    taps = [xp[:, kh:kh + H, kw:kw + W, :].reshape(BHW, Cin)
            for kh in range(ksize) for kw in range(ksize)]
    patches = jnp.concatenate(taps, axis=1)                 # (BHW, k*k*Cin)
    y = jnp.dot(patches, w, preferred_element_type=jnp.float32)   # (BHW, Cout)

    # training-mode BN folded into a single scale/shift (one-pass stats)
    sc, sh = _bn_scale_shift(y, gamma, beta)
    y = y * sc + sh

    # maxpool along H: rows at distance W pair up -> aligned sublane slices
    z = y.reshape(B * (H // 2), 2 * W, Cout)
    return jnp.maximum(z[:, :W, :], z[:, W:, :]).reshape(B * (H // 2) * W, Cout)


def _cnn_digits4_kernel(x_ref,
                        w1_ref, g1_ref, be1_ref,
                        w2_ref, g2_ref, be2_ref,
                        wfc1_ref, gl1_ref, bel1_ref,
                        wfc2_ref, bfc2_ref,
                        out_ref,
                        pool1_ref, pool2_ref):
    B, H, W, _ = x_ref.shape                                 # (B, 16, 16, ch_in)
    C1 = w1_ref.shape[1]

    # ---- layer 1: conv 5x5 pad 2 + BN(train) + maxpool 2x2 + ReLU ----
    y1 = _conv_bn_hpool(x_ref[...], w1_ref[...], g1_ref[...], be1_ref[...],
                        ksize=5, pad=2)                      # (B*(H//2)*W, C1)
    pool1_ref[...] = y1
    n1 = B * (H // 2) * (W // 2)
    h1 = jnp.maximum(pool1_ref[pl.ds(0, n1, stride=2), :],   # W-direction pool
                     pool1_ref[pl.ds(1, n1, stride=2), :])
    h1 = jnp.maximum(h1, 0.0)                                # ReLU after pool
    h1 = h1.reshape(B, H // 2, W // 2, C1)                   # (B, 8, 8, C1)

    # ---- layer 2: conv 3x3 pad 1 + BN(train) + maxpool 2x2 + ReLU,
    #      with the W-direction pool fused into the (h, w, c) flatten gather ----
    H2, W2 = H // 2, W // 2
    y2 = _conv_bn_hpool(h1, w2_ref[...], g2_ref[...], be2_ref[...],
                        ksize=3, pad=1)                      # (B*(H2//2)*W2, C2)
    pool2_ref[...] = y2                                      # rows (b, h_pooled, w)
    stride_b = (H2 // 2) * W2                                # rows per image
    feats = []
    for hh in range(H2 // 2):
        for ww in range(W2 // 2):
            a = pool2_ref[pl.ds(hh * W2 + 2 * ww, B, stride=stride_b), :]
            c = pool2_ref[pl.ds(hh * W2 + 2 * ww + 1, B, stride=stride_b), :]
            feats.append(jnp.maximum(a, c))                  # (B, C2) per position
    xf = jnp.maximum(jnp.concatenate(feats, axis=1), 0.0)    # (B, 256), ReLU after pool

    # ---- fc1 (no bias: canceled by BN) + BN1d(train) + ReLU + fc2, all on MXU ----
    hfc = jnp.dot(xf, wfc1_ref[...], preferred_element_type=jnp.float32)
    sc, sh = _bn_scale_shift(hfc, gl1_ref[...], bel1_ref[...])
    hfc = jnp.maximum(hfc * sc + sh, 0.0)
    out_ref[...] = (jnp.dot(hfc, wfc2_ref[...],
                            preferred_element_type=jnp.float32) + bfc2_ref[...])


def cnn_digits4_forward(x_nchw, p):
    B, _, H, W = x_nchw.shape
    x = jnp.transpose(x_nchw, (0, 2, 3, 1)).astype(jnp.float32)    # NCHW -> NHWC

    C1 = p['w1'].shape[-1]
    C2 = p['w2'].shape[-1]
    Cin = p['w1'].shape[-2]
    d_hid = p['wfc1'].shape[0]
    d_out = p['wfc2'].shape[0]
    Hp, Wp = H // 4, W // 4
    lane_pad = 128

    row = lambda v: v.reshape(1, -1)

    # conv weights: HWIO -> (k*k*Cin, Cout), rows ordered (kh, kw, ci)
    w1 = p['w1'].reshape(-1, C1)
    w2 = p['w2'].reshape(-1, C2)

    # fc1: permute input features from PyTorch's (C,H,W) flatten order to the
    # kernel's (H,W,C) flatten order (done once on parameters, free at runtime)
    wfc1 = (p['wfc1'].reshape(d_hid, C2, Hp, Wp)
            .transpose(2, 3, 1, 0).reshape(Hp * Wp * C2, d_hid))

    # fc2: pad to a full 128-lane slab so the kernel's final store is lane dense
    wfc2 = jnp.zeros((d_hid, lane_pad), jnp.float32).at[:, :d_out].set(p['wfc2'].T)
    bfc2 = jnp.zeros((1, lane_pad), jnp.float32).at[:, :d_out].set(row(p['bfc2']))

    flops = int(2 * (B * H * W * (25 * Cin) * C1
                     + B * (H // 2) * (W // 2) * (9 * C1) * C2
                     + B * (Hp * Wp * C2) * d_hid
                     + B * d_hid * lane_pad))
    bytes_accessed = int(4 * (x.size + w1.size + w2.size + wfc1.size + wfc2.size
                              + bfc2.size + 6 * (C1 + C2 + d_hid) + B * lane_pad))

    out = pl.pallas_call(
        _cnn_digits4_kernel,
        out_shape=jax.ShapeDtypeStruct((B, lane_pad), jnp.float32),
        in_specs=[pl.BlockSpec(memory_space=pltpu.MemorySpace.VMEM)] * 12,
        out_specs=pl.BlockSpec(memory_space=pltpu.MemorySpace.VMEM),
        scratch_shapes=[
            pltpu.VMEM((B * (H // 2) * W, C1), jnp.float32),         # layer-1 W-pool
            pltpu.VMEM((B * (H // 4) * (W // 2), C2), jnp.float32),  # layer-2 pool+flatten
        ],
        cost_estimate=pl.CostEstimate(flops=flops,
                                      transcendentals=C1 + C2 + d_hid,
                                      bytes_accessed=bytes_accessed),
    )(x, w1, row(p['g1']), row(p['be1']),
      w2, row(p['g2']), row(p['be2']),
      wfc1, row(p['gl1']), row(p['bel1']),
      wfc2, bfc2)
    return out[:, :d_out]


def reference_forward(x_nchw, p):
    """Pure-JAX reference (includes the conv/fc1 biases -> proves they cancel)."""
    x = jnp.transpose(x_nchw, (0, 2, 3, 1))

    def conv(x, w, b, pad):
        y = jax.lax.conv_general_dilated(
            x, w, window_strides=(1, 1), padding=[(pad, pad), (pad, pad)],
            dimension_numbers=('NHWC', 'HWIO', 'NHWC'))
        return y + b

    def bn(y, g, be, axes):
        mu = jnp.mean(y, axis=axes, keepdims=True)
        var = jnp.mean((y - mu) ** 2, axis=axes, keepdims=True)
        return (y - mu) * jax.lax.rsqrt(var + BN_EPS) * g + be

    def pool(y):
        B, H, W, C = y.shape
        return jnp.max(y.reshape(B, H // 2, 2, W // 2, 2, C), axis=(2, 4))

    h = pool(jnp.maximum(bn(conv(x, p['w1'], p['b1'], 2),
                            p['g1'], p['be1'], (0, 1, 2)), 0.0))
    h = pool(jnp.maximum(bn(conv(h, p['w2'], p['b2'], 1),
                            p['g2'], p['be2'], (0, 1, 2)), 0.0))
    B = x.shape[0]
    xf = jnp.transpose(h, (0, 3, 1, 2)).reshape(B, -1)
    z = xf @ p['wfc1'].T + p['bfc1']
    z = jnp.maximum(bn(z, p['gl1'], p['bel1'], (0,)), 0.0)
    return z @ p['wfc2'].T + p['bfc2']


if __name__ == "__main__":
    key = jax.random.PRNGKey(0)
    ks = jax.random.split(key, 16)
    f = jnp.float32
    # deterministic synthetic parameters (shapes from CnnDigits4.__init__ defaults)
    params = {
        'w1': 0.2 * jax.random.normal(ks[0], (5, 5, 1, 6), f),      # conv1, HWIO
        'b1': 0.1 * jax.random.normal(ks[1], (6,), f),
        'g1': 1.0 + 0.1 * jax.random.normal(ks[2], (6,), f),        # batchnorm1
        'be1': 0.1 * jax.random.normal(ks[3], (6,), f),
        'w2': 0.2 * jax.random.normal(ks[4], (3, 3, 6, 16), f),     # conv2, HWIO
        'b2': 0.1 * jax.random.normal(ks[5], (16,), f),
        'g2': 1.0 + 0.1 * jax.random.normal(ks[6], (16,), f),       # batchnorm2
        'be2': 0.1 * jax.random.normal(ks[7], (16,), f),
        'wfc1': 0.05 * jax.random.normal(ks[8], (32, 256), f),      # fc1
        'bfc1': 0.1 * jax.random.normal(ks[9], (32,), f),
        'gl1': 1.0 + 0.1 * jax.random.normal(ks[10], (32,), f),     # batchnorm_l1
        'bel1': 0.1 * jax.random.normal(ks[11], (32,), f),
        'wfc2': 0.05 * jax.random.normal(ks[12], (10, 32), f),      # fc2
        'bfc2': 0.1 * jax.random.normal(ks[13], (10,), f),
    }
    # example input, PyTorch-style NCHW: (batch=2, ch_in=1, 16, 16)
    x = jax.random.normal(ks[14], (2, 1, 16, 16), f)

    fwd = jax.jit(cnn_digits4_forward)
    out = jax.block_until_ready(fwd(x, params))

    ref = reference_forward(x, params)
    np.testing.assert_allclose(np.asarray(out), np.asarray(ref),
                               rtol=2e-3, atol=2e-3)
    print("KERNEL_OK")
</pallas_src>

<mosaic_0001>
module attributes {stable_mosaic.version = 11 : i64} {
  func.func @_cnn_digits4_kernel(%arg0: memref<2x16x16x1xf32, #tpu.memory_space<vmem>>, %arg1: memref<25x6xf32, #tpu.memory_space<vmem>>, %arg2: memref<1x6xf32, #tpu.memory_space<vmem>>, %arg3: memref<1x6xf32, #tpu.memory_space<vmem>>, %arg4: memref<54x16xf32, #tpu.memory_space<vmem>>, %arg5: memref<1x16xf32, #tpu.memory_space<vmem>>, %arg6: memref<1x16xf32, #tpu.memory_space<vmem>>, %arg7: memref<256x32xf32, #tpu.memory_space<vmem>>, %arg8: memref<1x32xf32, #tpu.memory_space<vmem>>, %arg9: memref<1x32xf32, #tpu.memory_space<vmem>>, %arg10: memref<32x128xf32, #tpu.memory_space<vmem>>, %arg11: memref<1x128xf32, #tpu.memory_space<vmem>>, %arg12: memref<2x128xf32, #tpu.memory_space<vmem>>, %arg13: memref<256x6xf32, #tpu.memory_space<vmem>>, %arg14: memref<64x16xf32, #tpu.memory_space<vmem>>) attributes {dimension_semantics = [], scalar_prefetch = 0 : i64, scratch_operands = 2 : i64, tpu.core_type = #tpu.core_type<tc>} {
    %c0 = arith.constant 0 : index
    %c0_0 = arith.constant 0 : index
    %c0_1 = arith.constant 0 : index
    %c0_2 = arith.constant 0 : index
    %0 = vector.load %arg0[%c0, %c0_0, %c0_1, %c0_2] : memref<2x16x16x1xf32, #tpu.memory_space<vmem>>, vector<2x16x16x1xf32>
    %c0_3 = arith.constant 0 : index
    %c0_4 = arith.constant 0 : index
    %1 = vector.load %arg1[%c0_3, %c0_4] : memref<25x6xf32, #tpu.memory_space<vmem>>, vector<25x6xf32>
    %c0_5 = arith.constant 0 : index
    %c0_6 = arith.constant 0 : index
    %2 = vector.load %arg2[%c0_5, %c0_6] : memref<1x6xf32, #tpu.memory_space<vmem>>, vector<1x6xf32>
    %c0_7 = arith.constant 0 : index
    %c0_8 = arith.constant 0 : index
    %3 = vector.load %arg3[%c0_7, %c0_8] : memref<1x6xf32, #tpu.memory_space<vmem>>, vector<1x6xf32>
    %cst = arith.constant 0.000000e+00 : f32
    %4 = vector.broadcast %cst : f32 to vector<2x16x2x1xf32>
    %5 = tpu.concatenate %4, %0, %4 in 2 : vector<2x16x2x1xf32>, vector<2x16x16x1xf32>, vector<2x16x2x1xf32> -> vector<2x16x20x1xf32>
    %cst_9 = arith.constant 0.000000e+00 : f32
    %6 = vector.broadcast %cst_9 : f32 to vector<2x2x20x1xf32>
    %7 = tpu.concatenate %6, %5, %6 in 1 : vector<2x2x20x1xf32>, vector<2x16x20x1xf32>, vector<2x2x20x1xf32> -> vector<2x20x20x1xf32>
    %8 = vector.extract_strided_slice %7 {offsets = [0, 0, 0, 0], sizes = [2, 16, 16, 1], strides = [1, 1, 1, 1]} : vector<2x20x20x1xf32> to vector<2x16x16x1xf32>
    %9 = vector.shape_cast %8 : vector<2x16x16x1xf32> to vector<512x1xf32>
    %10 = vector.extract_strided_slice %7 {offsets = [0, 0, 1, 0], sizes = [2, 16, 16, 1], strides = [1, 1, 1, 1]} : vector<2x20x20x1xf32> to vector<2x16x16x1xf32>
    %11 = vector.shape_cast %10 : vector<2x16x16x1xf32> to vector<512x1xf32>
    %12 = vector.extract_strided_slice %7 {offsets = [0, 0, 2, 0], sizes = [2, 16, 16, 1], strides = [1, 1, 1, 1]} : vector<2x20x20x1xf32> to vector<2x16x16x1xf32>
    %13 = vector.shape_cast %12 : vector<2x16x16x1xf32> to vector<512x1xf32>
    %14 = vector.extract_strided_slice %7 {offsets = [0, 0, 3, 0], sizes = [2, 16, 16, 1], strides = [1, 1, 1, 1]} : vector<2x20x20x1xf32> to vector<2x16x16x1xf32>
    %15 = vector.shape_cast %14 : vector<2x16x16x1xf32> to vector<512x1xf32>
    %16 = vector.extract_strided_slice %7 {offsets = [0, 0, 4, 0], sizes = [2, 16, 16, 1], strides = [1, 1, 1, 1]} : vector<2x20x20x1xf32> to vector<2x16x16x1xf32>
    %17 = vector.shape_cast %16 : vector<2x16x16x1xf32> to vector<512x1xf32>
    %18 = vector.extract_strided_slice %7 {offsets = [0, 1, 0, 0], sizes = [2, 16, 16, 1], strides = [1, 1, 1, 1]} : vector<2x20x20x1xf32> to vector<2x16x16x1xf32>
    %19 = vector.shape_cast %18 : vector<2x16x16x1xf32> to vector<512x1xf32>
    %20 = vector.extract_strided_slice %7 {offsets = [0, 1, 1, 0], sizes = [2, 16, 16, 1], strides = [1, 1, 1, 1]} : vector<2x20x20x1xf32> to vector<2x16x16x1xf32>
    %21 = vector.shape_cast %20 : vector<2x16x16x1xf32> to vector<512x1xf32>
    %22 = vector.extract_strided_slice %7 {offsets = [0, 1, 2, 0], sizes = [2, 16, 16, 1], strides = [1, 1, 1, 1]} : vector<2x20x20x1xf32> to vector<2x16x16x1xf32>
    %23 = vector.shape_cast %22 : vector<2x16x16x1xf32> to vector<512x1xf32>
    %24 = vector.extract_strided_slice %7 {offsets = [0, 1, 3, 0], sizes = [2, 16, 16, 1], strides = [1, 1, 1, 1]} : vector<2x20x20x1xf32> to vector<2x16x16x1xf32>
    %25 = vector.shape_cast %24 : vector<2x16x16x1xf32> to vector<512x1xf32>
    %26 = vector.extract_strided_slice %7 {offsets = [0, 1, 4, 0], sizes = [2, 16, 16, 1], strides = [1, 1, 1, 1]} : vector<2x20x20x1xf32> to vector<2x16x16x1xf32>
    %27 = vector.shape_cast %26 : vector<2x16x16x1xf32> to vector<512x1xf32>
    %28 = vector.extract_strided_slice %7 {offsets = [0, 2, 0, 0], sizes = [2, 16, 16, 1], strides = [1, 1, 1, 1]} : vector<2x20x20x1xf32> to vector<2x16x16x1xf32>
    %29 = vector.shape_cast %28 : vector<2x16x16x1xf32> to vector<512x1xf32>
    %30 = vector.extract_strided_slice %7 {offsets = [0, 2, 1, 0], sizes = [2, 16, 16, 1], strides = [1, 1, 1, 1]} : vector<2x20x20x1xf32> to vector<2x16x16x1xf32>
    %31 = vector.shape_cast %30 : vector<2x16x16x1xf32> to vector<512x1xf32>
    %32 = vector.extract_strided_slice %7 {offsets = [0, 2, 2, 0], sizes = [2, 16, 16, 1], strides = [1, 1, 1, 1]} : vector<2x20x20x1xf32> to vector<2x16x16x1xf32>
    %33 = vector.shape_cast %32 : vector<2x16x16x1xf32> to vector<512x1xf32>
    %34 = vector.extract_strided_slice %7 {offsets = [0, 2, 3, 0], sizes = [2, 16, 16, 1], strides = [1, 1, 1, 1]} : vector<2x20x20x1xf32> to vector<2x16x16x1xf32>
    %35 = vector.shape_cast %34 : vector<2x16x16x1xf32> to vector<512x1xf32>
    %36 = vector.extract_strided_slice %7 {offsets = [0, 2, 4, 0], sizes = [2, 16, 16, 1], strides = [1, 1, 1, 1]} : vector<2x20x20x1xf32> to vector<2x16x16x1xf32>
    %37 = vector.shape_cast %36 : vector<2x16x16x1xf32> to vector<512x1xf32>
    %38 = vector.extract_strided_slice %7 {offsets = [0, 3, 0, 0], sizes = [2, 16, 16, 1], strides = [1, 1, 1, 1]} : vector<2x20x20x1xf32> to vector<2x16x16x1xf32>
    %39 = vector.shape_cast %38 : vector<2x16x16x1xf32> to vector<512x1xf32>
    %40 = vector.extract_strided_slice %7 {offsets = [0, 3, 1, 0], sizes = [2, 16, 16, 1], strides = [1, 1, 1, 1]} : vector<2x20x20x1xf32> to vector<2x16x16x1xf32>
    %41 = vector.shape_cast %40 : vector<2x16x16x1xf32> to vector<512x1xf32>
    %42 = vector.extract_strided_slice %7 {offsets = [0, 3, 2, 0], sizes = [2, 16, 16, 1], strides = [1, 1, 1, 1]} : vector<2x20x20x1xf32> to vector<2x16x16x1xf32>
    %43 = vector.shape_cast %42 : vector<2x16x16x1xf32> to vector<512x1xf32>
    %44 = vector.extract_strided_slice %7 {offsets = [0, 3, 3, 0], sizes = [2, 16, 16, 1], strides = [1, 1, 1, 1]} : vector<2x20x20x1xf32> to vector<2x16x16x1xf32>
    %45 = vector.shape_cast %44 : vector<2x16x16x1xf32> to vector<512x1xf32>
    %46 = vector.extract_strided_slice %7 {offsets = [0, 3, 4, 0], sizes = [2, 16, 16, 1], strides = [1, 1, 1, 1]} : vector<2x20x20x1xf32> to vector<2x16x16x1xf32>
    %47 = vector.shape_cast %46 : vector<2x16x16x1xf32> to vector<512x1xf32>
    %48 = vector.extract_strided_slice %7 {offsets = [0, 4, 0, 0], sizes = [2, 16, 16, 1], strides = [1, 1, 1, 1]} : vector<2x20x20x1xf32> to vector<2x16x16x1xf32>
    %49 = vector.shape_cast %48 : vector<2x16x16x1xf32> to vector<512x1xf32>
    %50 = vector.extract_strided_slice %7 {offsets = [0, 4, 1, 0], sizes = [2, 16, 16, 1], strides = [1, 1, 1, 1]} : vector<2x20x20x1xf32> to vector<2x16x16x1xf32>
    %51 = vector.shape_cast %50 : vector<2x16x16x1xf32> to vector<512x1xf32>
    %52 = vector.extract_strided_slice %7 {offsets = [0, 4, 2, 0], sizes = [2, 16, 16, 1], strides = [1, 1, 1, 1]} : vector<2x20x20x1xf32> to vector<2x16x16x1xf32>
    %53 = vector.shape_cast %52 : vector<2x16x16x1xf32> to vector<512x1xf32>
    %54 = vector.extract_strided_slice %7 {offsets = [0, 4, 3, 0], sizes = [2, 16, 16, 1], strides = [1, 1, 1, 1]} : vector<2x20x20x1xf32> to vector<2x16x16x1xf32>
    %55 = vector.shape_cast %54 : vector<2x16x16x1xf32> to vector<512x1xf32>
    %56 = vector.extract_strided_slice %7 {offsets = [0, 4, 4, 0], sizes = [2, 16, 16, 1], strides = [1, 1, 1, 1]} : vector<2x20x20x1xf32> to vector<2x16x16x1xf32>
    %57 = vector.shape_cast %56 : vector<2x16x16x1xf32> to vector<512x1xf32>
    %58 = tpu.concatenate %9, %11, %13, %15, %17, %19, %21, %23, %25, %27, %29, %31, %33, %35, %37, %39 in 1 : vector<512x1xf32>, vector<512x1xf32>, vector<512x1xf32>, vector<512x1xf32>, vector<512x1xf32>, vector<512x1xf32>, vector<512x1xf32>, vector<512x1xf32>, vector<512x1xf32>, vector<512x1xf32>, vector<512x1xf32>, vector<512x1xf32>, vector<512x1xf32>, vector<512x1xf32>, vector<512x1xf32>, vector<512x1xf32> -> vector<512x16xf32>
    %59 = tpu.concatenate %41, %43, %45, %47, %49, %51, %53, %55, %57 in 1 : vector<512x1xf32>, vector<512x1xf32>, vector<512x1xf32>, vector<512x1xf32>, vector<512x1xf32>, vector<512x1xf32>, vector<512x1xf32>, vector<512x1xf32>, vector<512x1xf32> -> vector<512x9xf32>
    %60 = tpu.concatenate %58, %59 in 1 : vector<512x16xf32>, vector<512x9xf32> -> vector<512x25xf32>
    %cst_10 = arith.constant dense<0.000000e+00> : vector<512x6xf32>
    %61 = tpu.matmul %60, %1, %cst_10 {dimension_numbers = #tpu.dot_dimension_numbers<[1], [0], [0], [1], [0, 0, 1, 1], [], []>} : vector<512x25xf32>, vector<25x6xf32>, vector<512x6xf32> -> vector<512x6xf32>
    %cst_11 = arith.constant dense<0.000000e+00> : vector<6xf32>
    %62 = vector.multi_reduction <add>, %61, %cst_11 [0] : vector<512x6xf32> to vector<6xf32>
    %63 = vector.shape_cast %62 : vector<6xf32> to vector<1x6xf32>
    %cst_12 = arith.constant 0.001953125 : f32
    %64 = vector.broadcast %cst_12 : f32 to vector<1x6xf32>
    %65 = arith.mulf %63, %64 : vector<1x6xf32>
    %66 = arith.mulf %61, %61 : vector<512x6xf32>
    %cst_13 = arith.constant dense<0.000000e+00> : vector<6xf32>
    %67 = vector.multi_reduction <add>, %66, %cst_13 [0] : vector<512x6xf32> to vector<6xf32>
    %68 = vector.shape_cast %67 : vector<6xf32> to vector<1x6xf32>
    %cst_14 = arith.constant 0.001953125 : f32
    %69 = vector.broadcast %cst_14 : f32 to vector<1x6xf32>
    %70 = arith.mulf %68, %69 : vector<1x6xf32>
    %71 = arith.mulf %65, %65 : vector<1x6xf32>
    %72 = arith.subf %70, %71 : vector<1x6xf32>
    %cst_15 = arith.constant 0.000000e+00 : f32
    %73 = vector.broadcast %cst_15 : f32 to vector<1x6xf32>
    %74 = arith.maximumf %72, %73 : vector<1x6xf32>
    %cst_16 = arith.constant 9.99999974E-6 : f32
    %75 = vector.broadcast %cst_16 : f32 to vector<1x6xf32>
    %76 = arith.addf %74, %75 : vector<1x6xf32>
    %77 = math.rsqrt %76 : vector<1x6xf32>
    %78 = arith.mulf %2, %77 : vector<1x6xf32>
    %79 = arith.mulf %65, %78 : vector<1x6xf32>
    %80 = arith.subf %3, %79 : vector<1x6xf32>
    %81 = vector.broadcast %78 : vector<1x6xf32> to vector<512x6xf32>
    %82 = arith.mulf %61, %81 : vector<512x6xf32>
    %83 = vector.broadcast %80 : vector<1x6xf32> to vector<512x6xf32>
    %84 = arith.addf %82, %83 : vector<512x6xf32>
    %85 = vector.shape_cast %84 : vector<512x6xf32> to vector<16x32x6xf32>
    %86 = vector.extract_strided_slice %85 {offsets = [0, 0, 0], sizes = [16, 16, 6], strides = [1, 1, 1]} : vector<16x32x6xf32> to vector<16x16x6xf32>
    %87 = vector.extract_strided_slice %85 {offsets = [0, 16, 0], sizes = [16, 16, 6], strides = [1, 1, 1]} : vector<16x32x6xf32> to vector<16x16x6xf32>
    %88 = arith.maximumf %86, %87 : vector<16x16x6xf32>
    %89 = vector.shape_cast %88 : vector<16x16x6xf32> to vector<256x6xf32>
    %c0_17 = arith.constant 0 : index
    %c0_18 = arith.constant 0 : index
    %90 = vector.load %arg13[%c0_17, %c0_18] : memref<256x6xf32, #tpu.memory_space<vmem>>, vector<256x6xf32>
    tpu.vector_store %arg13[%c0_17, %c0_18], %89 {strides = array<i32>} : memref<256x6xf32, #tpu.memory_space<vmem>>, vector<256x6xf32>,
    %c0_19 = arith.constant 0 : index
    %c0_20 = arith.constant 0 : index
    %91 = tpu.strided_load %arg13[%c0_19, %c0_20] {strides = array<i32: 2, 1>} : memref<256x6xf32, #tpu.memory_space<vmem>>, vector<128x6xf32>
    %c1 = arith.constant 1 : index
    %c0_21 = arith.constant 0 : index
    %92 = tpu.strided_load %arg13[%c1, %c0_21] {strides = array<i32: 2, 1>} : memref<256x6xf32, #tpu.memory_space<vmem>>, vector<128x6xf32>
    %93 = arith.maximumf %91, %92 : vector<128x6xf32>
    %cst_22 = arith.constant 0.000000e+00 : f32
    %94 = vector.broadcast %cst_22 : f32 to vector<128x6xf32>
    %95 = arith.maximumf %93, %94 : vector<128x6xf32>
    %96 = vector.shape_cast %95 : vector<128x6xf32> to vector<2x8x8x6xf32>
    %c0_23 = arith.constant 0 : index
    %c0_24 = arith.constant 0 : index
    %97 = vector.load %arg4[%c0_23, %c0_24] : memref<54x16xf32, #tpu.memory_space<vmem>>, vector<54x16xf32>
    %c0_25 = arith.constant 0 : index
    %c0_26 = arith.constant 0 : index
    %98 = vector.load %arg5[%c0_25, %c0_26] : memref<1x16xf32, #tpu.memory_space<vmem>>, vector<1x16xf32>
    %c0_27 = arith.constant 0 : index
    %c0_28 = arith.constant 0 : index
    %99 = vector.load %arg6[%c0_27, %c0_28] : memref<1x16xf32, #tpu.memory_space<vmem>>, vector<1x16xf32>
    %cst_29 = arith.constant 0.000000e+00 : f32
    %100 = vector.broadcast %cst_29 : f32 to vector<2x8x1x6xf32>
    %101 = tpu.concatenate %100, %96, %100 in 2 : vector<2x8x1x6xf32>, vector<2x8x8x6xf32>, vector<2x8x1x6xf32> -> vector<2x8x10x6xf32>
    %cst_30 = arith.constant 0.000000e+00 : f32
    %102 = vector.broadcast %cst_30 : f32 to vector<2x1x10x6xf32>
    %103 = tpu.concatenate %102, %101, %102 in 1 : vector<2x1x10x6xf32>, vector<2x8x10x6xf32>, vector<2x1x10x6xf32> -> vector<2x10x10x6xf32>
    %104 = vector.extract_strided_slice %103 {offsets = [0, 0, 0, 0], sizes = [2, 8, 8, 6], strides = [1, 1, 1, 1]} : vector<2x10x10x6xf32> to vector<2x8x8x6xf32>
    %105 = vector.shape_cast %104 : vector<2x8x8x6xf32> to vector<128x6xf32>
    %106 = vector.extract_strided_slice %103 {offsets = [0, 0, 1, 0], sizes = [2, 8, 8, 6], strides = [1, 1, 1, 1]} : vector<2x10x10x6xf32> to vector<2x8x8x6xf32>
    %107 = vector.shape_cast %106 : vector<2x8x8x6xf32> to vector<128x6xf32>
    %108 = vector.extract_strided_slice %103 {offsets = [0, 0, 2, 0], sizes = [2, 8, 8, 6], strides = [1, 1, 1, 1]} : vector<2x10x10x6xf32> to vector<2x8x8x6xf32>
    %109 = vector.shape_cast %108 : vector<2x8x8x6xf32> to vector<128x6xf32>
    %110 = vector.extract_strided_slice %103 {offsets = [0, 1, 0, 0], sizes = [2, 8, 8, 6], strides = [1, 1, 1, 1]} : vector<2x10x10x6xf32> to vector<2x8x8x6xf32>
    %111 = vector.shape_cast %110 : vector<2x8x8x6xf32> to vector<128x6xf32>
    %112 = vector.extract_strided_slice %103 {offsets = [0, 1, 1, 0], sizes = [2, 8, 8, 6], strides = [1, 1, 1, 1]} : vector<2x10x10x6xf32> to vector<2x8x8x6xf32>
    %113 = vector.shape_cast %112 : vector<2x8x8x6xf32> to vector<128x6xf32>
    %114 = vector.extract_strided_slice %103 {offsets = [0, 1, 2, 0], sizes = [2, 8, 8, 6], strides = [1, 1, 1, 1]} : vector<2x10x10x6xf32> to vector<2x8x8x6xf32>
    %115 = vector.shape_cast %114 : vector<2x8x8x6xf32> to vector<128x6xf32>
    %116 = vector.extract_strided_slice %103 {offsets = [0, 2, 0, 0], sizes = [2, 8, 8, 6], strides = [1, 1, 1, 1]} : vector<2x10x10x6xf32> to vector<2x8x8x6xf32>
    %117 = vector.shape_cast %116 : vector<2x8x8x6xf32> to vector<128x6xf32>
    %118 = vector.extract_strided_slice %103 {offsets = [0, 2, 1, 0], sizes = [2, 8, 8, 6], strides = [1, 1, 1, 1]} : vector<2x10x10x6xf32> to vector<2x8x8x6xf32>
    %119 = vector.shape_cast %118 : vector<2x8x8x6xf32> to vector<128x6xf32>
    %120 = vector.extract_strided_slice %103 {offsets = [0, 2, 2, 0], sizes = [2, 8, 8, 6], strides = [1, 1, 1, 1]} : vector<2x10x10x6xf32> to vector<2x8x8x6xf32>
    %121 = vector.shape_cast %120 : vector<2x8x8x6xf32> to vector<128x6xf32>
    %122 = tpu.concatenate %105, %107, %109, %111, %113, %115, %117, %119, %121 in 1 : vector<128x6xf32>, vector<128x6xf32>, vector<128x6xf32>, vector<128x6xf32>, vector<128x6xf32>, vector<128x6xf32>, vector<128x6xf32>, vector<128x6xf32>, vector<128x6xf32> -> vector<128x54xf32>
    %cst_31 = arith.constant dense<0.000000e+00> : vector<128x16xf32>
    %123 = tpu.matmul %122, %97, %cst_31 {dimension_numbers = #tpu.dot_dimension_numbers<[1], [0], [0], [1], [0, 0, 1, 1], [], []>} : vector<128x54xf32>, vector<54x16xf32>, vector<128x16xf32> -> vector<128x16xf32>
    %cst_32 = arith.constant dense<0.000000e+00> : vector<16xf32>
    %124 = vector.multi_reduction <add>, %123, %cst_32 [0] : vector<128x16xf32> to vector<16xf32>
    %125 = vector.shape_cast %124 : vector<16xf32> to vector<1x16xf32>
    %cst_33 = arith.constant 7.812500e-03 : f32
    %126 = vector.broadcast %cst_33 : f32 to vector<1x16xf32>
    %127 = arith.mulf %125, %126 : vector<1x16xf32>
    %128 = arith.mulf %123, %123 : vector<128x16xf32>
    %cst_34 = arith.constant dense<0.000000e+00> : vector<16xf32>
    %129 = vector.multi_reduction <add>, %128, %cst_34 [0] : vector<128x16xf32> to vector<16xf32>
    %130 = vector.shape_cast %129 : vector<16xf32> to vector<1x16xf32>
    %cst_35 = arith.constant 7.812500e-03 : f32
    %131 = vector.broadcast %cst_35 : f32 to vector<1x16xf32>
    %132 = arith.mulf %130, %131 : vector<1x16xf32>
    %133 = arith.mulf %127, %127 : vector<1x16xf32>
    %134 = arith.subf %132, %133 : vector<1x16xf32>
    %cst_36 = arith.constant 0.000000e+00 : f32
    %135 = vector.broadcast %cst_36 : f32 to vector<1x16xf32>
    %136 = arith.maximumf %134, %135 : vector<1x16xf32>
    %cst_37 = arith.constant 9.99999974E-6 : f32
    %137 = vector.broadcast %cst_37 : f32 to vector<1x16xf32>
    %138 = arith.addf %136, %137 : vector<1x16xf32>
    %139 = math.rsqrt %138 : vector<1x16xf32>
    %140 = arith.mulf %98, %139 : vector<1x16xf32>
    %141 = arith.mulf %127, %140 : vector<1x16xf32>
    %142 = arith.subf %99, %141 : vector<1x16xf32>
    %143 = vector.broadcast %140 : vector<1x16xf32> to vector<128x16xf32>
    %144 = arith.mulf %123, %143 : vector<128x16xf32>
    %145 = vector.broadcast %142 : vector<1x16xf32> to vector<128x16xf32>
    %146 = arith.addf %144, %145 : vector<128x16xf32>
    %147 = vector.shape_cast %146 : vector<128x16xf32> to vector<8x16x16xf32>
    %148 = vector.extract_strided_slice %147 {offsets = [0, 0, 0], sizes = [8, 8, 16], strides = [1, 1, 1]} : vector<8x16x16xf32> to vector<8x8x16xf32>
    %149 = vector.extract_strided_slice %147 {offsets = [0, 8, 0], sizes = [8, 8, 16], strides = [1, 1, 1]} : vector<8x16x16xf32> to vector<8x8x16xf32>
    %150 = arith.maximumf %148, %149 : vector<8x8x16xf32>
    %151 = vector.shape_cast %150 : vector<8x8x16xf32> to vector<64x16xf32>
    %c0_38 = arith.constant 0 : index
    %c0_39 = arith.constant 0 : index
    %152 = vector.load %arg14[%c0_38, %c0_39] : memref<64x16xf32, #tpu.memory_space<vmem>>, vector<64x16xf32>
    tpu.vector_store %arg14[%c0_38, %c0_39], %151 {strides = array<i32>} : memref<64x16xf32, #tpu.memory_space<vmem>>, vector<64x16xf32>,
    %c0_40 = arith.constant 0 : index
    %c0_41 = arith.constant 0 : index
    %153 = tpu.strided_load %arg14[%c0_40, %c0_41] {strides = array<i32: 32, 1>} : memref<64x16xf32, #tpu.memory_space<vmem>>, vector<2x16xf32>
    %c1_42 = arith.constant 1 : index
    %c0_43 = arith.constant 0 : index
    %154 = tpu.strided_load %arg14[%c1_42, %c0_43] {strides = array<i32: 32, 1>} : memref<64x16xf32, #tpu.memory_space<vmem>>, vector<2x16xf32>
    %155 = arith.maximumf %153, %154 : vector<2x16xf32>
    %c2 = arith.constant 2 : index
    %c0_44 = arith.constant 0 : index
    %156 = tpu.strided_load %arg14[%c2, %c0_44] {strides = array<i32: 32, 1>} : memref<64x16xf32, #tpu.memory_space<vmem>>, vector<2x16xf32>
    %c3 = arith.constant 3 : index
    %c0_45 = arith.constant 0 : index
    %157 = tpu.strided_load %arg14[%c3, %c0_45] {strides = array<i32: 32, 1>} : memref<64x16xf32, #tpu.memory_space<vmem>>, vector<2x16xf32>
    %158 = arith.maximumf %156, %157 : vector<2x16xf32>
    %c4 = arith.constant 4 : index
    %c0_46 = arith.constant 0 : index
    %159 = tpu.strided_load %arg14[%c4, %c0_46] {strides = array<i32: 32, 1>} : memref<64x16xf32, #tpu.memory_space<vmem>>, vector<2x16xf32>
    %c5 = arith.constant 5 : index
    %c0_47 = arith.constant 0 : index
    %160 = tpu.strided_load %arg14[%c5, %c0_47] {strides = array<i32: 32, 1>} : memref<64x16xf32, #tpu.memory_space<vmem>>, vector<2x16xf32>
    %161 = arith.maximumf %159, %160 : vector<2x16xf32>
    %c6 = arith.constant 6 : index
    %c0_48 = arith.constant 0 : index
    %162 = tpu.strided_load %arg14[%c6, %c0_48] {strides = array<i32: 32, 1>} : memref<64x16xf32, #tpu.memory_space<vmem>>, vector<2x16xf32>
    %c7 = arith.constant 7 : index
    %c0_49 = arith.constant 0 : index
    %163 = tpu.strided_load %arg14[%c7, %c0_49] {strides = array<i32: 32, 1>} : memref<64x16xf32, #tpu.memory_space<vmem>>, vector<2x16xf32>
    %164 = arith.maximumf %162, %163 : vector<2x16xf32>
    %c8 = arith.constant 8 : index
    %c0_50 = arith.constant 0 : index
    %165 = tpu.strided_load %arg14[%c8, %c0_50] {strides = array<i32: 32, 1>} : memref<64x16xf32, #tpu.memory_space<vmem>>, vector<2x16xf32>
    %c9 = arith.constant 9 : index
    %c0_51 = arith.constant 0 : index
    %166 = tpu.strided_load %arg14[%c9, %c0_51] {strides = array<i32: 32, 1>} : memref<64x16xf32, #tpu.memory_space<vmem>>, vector<2x16xf32>
    %167 = arith.maximumf %165, %166 : vector<2x16xf32>
    %c10 = arith.constant 10 : index
    %c0_52 = arith.constant 0 : index
    %168 = tpu.strided_load %arg14[%c10, %c0_52] {strides = array<i32: 32, 1>} : memref<64x16xf32, #tpu.memory_space<vmem>>, vector<2x16xf32>
    %c11 = arith.constant 11 : index
    %c0_53 = arith.constant 0 : index
    %169 = tpu.strided_load %arg14[%c11, %c0_53] {strides = array<i32: 32, 1>} : memref<64x16xf32, #tpu.memory_space<vmem>>, vector<2x16xf32>
    %170 = arith.maximumf %168, %169 : vector<2x16xf32>
    %c12 = arith.constant 12 : index
    %c0_54 = arith.constant 0 : index
    %171 = tpu.strided_load %arg14[%c12, %c0_54] {strides = array<i32: 32, 1>} : memref<64x16xf32, #tpu.memory_space<vmem>>, vector<2x16xf32>
    %c13 = arith.constant 13 : index
    %c0_55 = arith.constant 0 : index
    %172 = tpu.strided_load %arg14[%c13, %c0_55] {strides = array<i32: 32, 1>} : memref<64x16xf32, #tpu.memory_space<vmem>>, vector<2x16xf32>
    %173 = arith.maximumf %171, %172 : vector<2x16xf32>
    %c14 = arith.constant 14 : index
    %c0_56 = arith.constant 0 : index
    %174 = tpu.strided_load %arg14[%c14, %c0_56] {strides = array<i32: 32, 1>} : memref<64x16xf32, #tpu.memory_space<vmem>>, vector<2x16xf32>
    %c15 = arith.constant 15 : index
    %c0_57 = arith.constant 0 : index
    %175 = tpu.strided_load %arg14[%c15, %c0_57] {strides = array<i32: 32, 1>} : memref<64x16xf32, #tpu.memory_space<vmem>>, vector<2x16xf32>
    %176 = arith.maximumf %174, %175 : vector<2x16xf32>
    %c16 = arith.constant 16 : index
    %c0_58 = arith.constant 0 : index
    %177 = tpu.strided_load %arg14[%c16, %c0_58] {strides = array<i32: 32, 1>} : memref<64x16xf32, #tpu.memory_space<vmem>>, vector<2x16xf32>
    %c17 = arith.constant 17 : index
    %c0_59 = arith.constant 0 : index
    %178 = tpu.strided_load %arg14[%c17, %c0_59] {strides = array<i32: 32, 1>} : memref<64x16xf32, #tpu.memory_space<vmem>>, vector<2x16xf32>
    %179 = arith.maximumf %177, %178 : vector<2x16xf32>
    %c18 = arith.constant 18 : index
    %c0_60 = arith.constant 0 : index
    %180 = tpu.strided_load %arg14[%c18, %c0_60] {strides = array<i32: 32, 1>} : memref<64x16xf32, #tpu.memory_space<vmem>>, vector<2x16xf32>
    %c19 = arith.constant 19 : index
    %c0_61 = arith.constant 0 : index
    %181 = tpu.strided_load %arg14[%c19, %c0_61] {strides = array<i32: 32, 1>} : memref<64x16xf32, #tpu.memory_space<vmem>>, vector<2x16xf32>
    %182 = arith.maximumf %180, %181 : vector<2x16xf32>
    %c20 = arith.constant 20 : index
    %c0_62 = arith.constant 0 : index
    %183 = tpu.strided_load %arg14[%c20, %c0_62] {strides = array<i32: 32, 1>} : memref<64x16xf32, #tpu.memory_space<vmem>>, vector<2x16xf32>
    %c21 = arith.constant 21 : index
    %c0_63 = arith.constant 0 : index
    %184 = tpu.strided_load %arg14[%c21, %c0_63] {strides = array<i32: 32, 1>} : memref<64x16xf32, #tpu.memory_space<vmem>>, vector<2x16xf32>
    %185 = arith.maximumf %183, %184 : vector<2x16xf32>
    %c22 = arith.constant 22 : index
    %c0_64 = arith.constant 0 : index
    %186 = tpu.strided_load %arg14[%c22, %c0_64] {strides = array<i32: 32, 1>} : memref<64x16xf32, #tpu.memory_space<vmem>>, vector<2x16xf32>
    %c23 = arith.constant 23 : index
    %c0_65 = arith.constant 0 : index
    %187 = tpu.strided_load %arg14[%c23, %c0_65] {strides = array<i32: 32, 1>} : memref<64x16xf32, #tpu.memory_space<vmem>>, vector<2x16xf32>
    %188 = arith.maximumf %186, %187 : vector<2x16xf32>
    %c24 = arith.constant 24 : index
    %c0_66 = arith.constant 0 : index
    %189 = tpu.strided_load %arg14[%c24, %c0_66] {strides = array<i32: 32, 1>} : memref<64x16xf32, #tpu.memory_space<vmem>>, vector<2x16xf32>
    %c25 = arith.constant 25 : index
    %c0_67 = arith.constant 0 : index
    %190 = tpu.strided_load %arg14[%c25, %c0_67] {strides = array<i32: 32, 1>} : memref<64x16xf32, #tpu.memory_space<vmem>>, vector<2x16xf32>
    %191 = arith.maximumf %189, %190 : vector<2x16xf32>
    %c26 = arith.constant 26 : index
    %c0_68 = arith.constant 0 : index
    %192 = tpu.strided_load %arg14[%c26, %c0_68] {strides = array<i32: 32, 1>} : memref<64x16xf32, #tpu.memory_space<vmem>>, vector<2x16xf32>
    %c27 = arith.constant 27 : index
    %c0_69 = arith.constant 0 : index
    %193 = tpu.strided_load %arg14[%c27, %c0_69] {strides = array<i32: 32, 1>} : memref<64x16xf32, #tpu.memory_space<vmem>>, vector<2x16xf32>
    %194 = arith.maximumf %192, %193 : vector<2x16xf32>
    %c28 = arith.constant 28 : index
    %c0_70 = arith.constant 0 : index
    %195 = tpu.strided_load %arg14[%c28, %c0_70] {strides = array<i32: 32, 1>} : memref<64x16xf32, #tpu.memory_space<vmem>>, vector<2x16xf32>
    %c29 = arith.constant 29 : index
    %c0_71 = arith.constant 0 : index
    %196 = tpu.strided_load %arg14[%c29, %c0_71] {strides = array<i32: 32, 1>} : memref<64x16xf32, #tpu.memory_space<vmem>>, vector<2x16xf32>
    %197 = arith.maximumf %195, %196 : vector<2x16xf32>
    %c30 = arith.constant 30 : index
    %c0_72 = arith.constant 0 : index
    %198 = tpu.strided_load %arg14[%c30, %c0_72] {strides = array<i32: 32, 1>} : memref<64x16xf32, #tpu.memory_space<vmem>>, vector<2x16xf32>
    %c31 = arith.constant 31 : index
    %c0_73 = arith.constant 0 : index
    %199 = tpu.strided_load %arg14[%c31, %c0_73] {strides = array<i32: 32, 1>} : memref<64x16xf32, #tpu.memory_space<vmem>>, vector<2x16xf32>
    %200 = arith.maximumf %198, %199 : vector<2x16xf32>
    %201 = tpu.concatenate %155, %158, %161, %164, %167, %170, %173, %176, %179, %182, %185, %188, %191, %194, %197, %200 in 1 : vector<2x16xf32>, vector<2x16xf32>, vector<2x16xf32>, vector<2x16xf32>, vector<2x16xf32>, vector<2x16xf32>, vector<2x16xf32>, vector<2x16xf32>, vector<2x16xf32>, vector<2x16xf32>, vector<2x16xf32>, vector<2x16xf32>, vector<2x16xf32>, vector<2x16xf32>, vector<2x16xf32>, vector<2x16xf32> -> vector<2x256xf32>
    %cst_74 = arith.constant 0.000000e+00 : f32
    %202 = vector.broadcast %cst_74 : f32 to vector<2x256xf32>
    %203 = arith.maximumf %201, %202 : vector<2x256xf32>
    %c0_75 = arith.constant 0 : index
    %c0_76 = arith.constant 0 : index
    %204 = vector.load %arg7[%c0_75, %c0_76] : memref<256x32xf32, #tpu.memory_space<vmem>>, vector<256x32xf32>
    %cst_77 = arith.constant dense<0.000000e+00> : vector<2x32xf32>
    %205 = tpu.matmul %203, %204, %cst_77 {dimension_numbers = #tpu.dot_dimension_numbers<[1], [0], [0], [1], [0, 0, 1, 1], [], []>} : vector<2x256xf32>, vector<256x32xf32>, vector<2x32xf32> -> vector<2x32xf32>
    %c0_78 = arith.constant 0 : index
    %c0_79 = arith.constant 0 : index
    %206 = vector.load %arg8[%c0_78, %c0_79] : memref<1x32xf32, #tpu.memory_space<vmem>>, vector<1x32xf32>
    %c0_80 = arith.constant 0 : index
    %c0_81 = arith.constant 0 : index
    %207 = vector.load %arg9[%c0_80, %c0_81] : memref<1x32xf32, #tpu.memory_space<vmem>>, vector<1x32xf32>
    %cst_82 = arith.constant dense<0.000000e+00> : vector<32xf32>
    %208 = vector.multi_reduction <add>, %205, %cst_82 [0] : vector<2x32xf32> to vector<32xf32>
    %209 = vector.shape_cast %208 : vector<32xf32> to vector<1x32xf32>
    %cst_83 = arith.constant 5.000000e-01 : f32
    %210 = vector.broadcast %cst_83 : f32 to vector<1x32xf32>
    %211 = arith.mulf %209, %210 : vector<1x32xf32>
    %212 = arith.mulf %205, %205 : vector<2x32xf32>
    %cst_84 = arith.constant dense<0.000000e+00> : vector<32xf32>
    %213 = vector.multi_reduction <add>, %212, %cst_84 [0] : vector<2x32xf32> to vector<32xf32>
    %214 = vector.shape_cast %213 : vector<32xf32> to vector<1x32xf32>
    %cst_85 = arith.constant 5.000000e-01 : f32
    %215 = vector.broadcast %cst_85 : f32 to vector<1x32xf32>
    %216 = arith.mulf %214, %215 : vector<1x32xf32>
    %217 = arith.mulf %211, %211 : vector<1x32xf32>
    %218 = arith.subf %216, %217 : vector<1x32xf32>
    %cst_86 = arith.constant 0.000000e+00 : f32
    %219 = vector.broadcast %cst_86 : f32 to vector<1x32xf32>
    %220 = arith.maximumf %218, %219 : vector<1x32xf32>
    %cst_87 = arith.constant 9.99999974E-6 : f32
    %221 = vector.broadcast %cst_87 : f32 to vector<1x32xf32>
    %222 = arith.addf %220, %221 : vector<1x32xf32>
    %223 = math.rsqrt %222 : vector<1x32xf32>
    %224 = arith.mulf %206, %223 : vector<1x32xf32>
    %225 = arith.mulf %211, %224 : vector<1x32xf32>
    %226 = arith.subf %207, %225 : vector<1x32xf32>
    %227 = vector.broadcast %224 : vector<1x32xf32> to vector<2x32xf32>
    %228 = arith.mulf %205, %227 : vector<2x32xf32>
    %229 = vector.broadcast %226 : vector<1x32xf32> to vector<2x32xf32>
    %230 = arith.addf %228, %229 : vector<2x32xf32>
    %cst_88 = arith.constant 0.000000e+00 : f32
    %231 = vector.broadcast %cst_88 : f32 to vector<2x32xf32>
    %232 = arith.maximumf %230, %231 : vector<2x32xf32>
    %c0_89 = arith.constant 0 : index
    %c0_90 = arith.constant 0 : index
    %233 = vector.load %arg10[%c0_89, %c0_90] : memref<32x128xf32, #tpu.memory_space<vmem>>, vector<32x128xf32>
    %cst_91 = arith.constant dense<0.000000e+00> : vector<2x128xf32>
    %234 = tpu.matmul %232, %233, %cst_91 {dimension_numbers = #tpu.dot_dimension_numbers<[1], [0], [0], [1], [0, 0, 1, 1], [], []>} : vector<2x32xf32>, vector<32x128xf32>, vector<2x128xf32> -> vector<2x128xf32>
    %c0_92 = arith.constant 0 : index
    %c0_93 = arith.constant 0 : index
    %235 = vector.load %arg11[%c0_92, %c0_93] : memref<1x128xf32, #tpu.memory_space<vmem>>, vector<1x128xf32>
    %236 = vector.broadcast %235 : vector<1x128xf32> to vector<2x128xf32>
    %237 = arith.addf %234, %236 : vector<2x128xf32>
    %c0_94 = arith.constant 0 : index
    %c0_95 = arith.constant 0 : index
    %238 = vector.load %arg12[%c0_94, %c0_95] : memref<2x128xf32, #tpu.memory_space<vmem>>, vector<2x128xf32>
    tpu.vector_store %arg12[%c0_94, %c0_95], %237 {strides = array<i32>} : memref<2x128xf32, #tpu.memory_space<vmem>>, vector<2x128xf32>,
    return
  }
}

</mosaic_0001>

<llo_original>
// kernel: cnn_digits4_forward.1
$region0: #{cnn_digits4_forward.1}
  #allocation0 [shape = 'u32[]', space=smem, size = 0x4, offset = 0x4, fixed_abs, tag = 'smem constant byte address 0x4 - core index']
  #allocation1 [shape = 'u32[144,128]{1,0:T(1,128)}', space=vmem, size = 0x12000, scoped, tag = 'internal scratch']
  #allocation2 [shape = 'f32[256,6]{1,0:T(8,128)}', space=vmem, size = 0x20000, scoped, tag = 'scratch operand']
  #allocation3 [shape = 'f32[64,16]{1,0:T(8,128)}', space=vmem, size = 0x8000, scoped, tag = 'scratch operand']
  %s0 = inlined_call_operand.vmem [shape: f32[2,16,16,1], index: 0, kind: input, shape index: {}]
  %s1 = inlined_call_operand.vmem [shape: f32[25,6], index: 1, kind: input, shape index: {}]
  %s2 = inlined_call_operand.vmem [shape: f32[1,6], index: 2, kind: input, shape index: {}]
  %s3 = inlined_call_operand.vmem [shape: f32[1,6], index: 3, kind: input, shape index: {}]
  %s4 = inlined_call_operand.vmem [shape: f32[54,16], index: 4, kind: input, shape index: {}]
  %s5 = inlined_call_operand.vmem [shape: f32[1,16], index: 5, kind: input, shape index: {}]
  %s6 = inlined_call_operand.vmem [shape: f32[1,16], index: 6, kind: input, shape index: {}]
  %s7 = inlined_call_operand.vmem [shape: f32[256,32], index: 7, kind: input, shape index: {}]
  %s8 = inlined_call_operand.vmem [shape: f32[1,32], index: 8, kind: input, shape index: {}]
  %s9 = inlined_call_operand.vmem [shape: f32[1,32], index: 9, kind: input, shape index: {}]
  %s10 = inlined_call_operand.vmem [shape: f32[32,128], index: 10, kind: input, shape index: {}]
  %s11 = inlined_call_operand.vmem [shape: f32[1,128], index: 11, kind: input, shape index: {}]
  %s12 = inlined_call_operand.hbm [shape: f32[2,128], index: 12, kind: output, shape index: {}]
  %s13 = sld [smem:[#allocation0]]
  $region58: #{cnn_digits4_forward.1} parent=0
    _
  %s15 = ssub.s32 1, %s13
  %s16 = scalar_select 0, %s15, %s13
  $region1: #{cnn_digits4_forward.1} parent=0
    #allocation4 [shape = 'u8[1024]{0}', space=vmem, size = 0x400, scoped, tag = 'output window, operand 0, single buffered']
    #allocation5 [shape = 's32[1]{0}', space=sflag, size = 0x4, scoped, tag = 'scoped memory for cnn_digits4_forward.1']
    %17 = vsyncpa [#allocation5], 0
    // Predicated region
    $region2: #{cnn_digits4_forward.1} parent=1 // pred_check
      _
    $region3: #{cnn_digits4_forward.1} parent=1 // pred_check_branch
      %19 = sbr.rel (0) target = $region5
    $region4: #{cnn_digits4_forward.1} parent=1 // pred_region
      _
    $region5: #{cnn_digits4_forward.1} parent=1 // pred_fallthru
      _
    // Predicated region
    $region6: #{cnn_digits4_forward.1} parent=1 // pred_check
      _
    $region7: #{cnn_digits4_forward.1} parent=1 // pred_check_branch
      %21 = sbr.rel (0) target = $region9
    $region8: #{cnn_digits4_forward.1} parent=1 // pred_region
      _
    $region9: #{cnn_digits4_forward.1} parent=1 // pred_fallthru
      _
    // Predicated region
    $region10: #{cnn_digits4_forward.1} parent=1 // pred_check
      _
    $region11: #{cnn_digits4_forward.1} parent=1 // pred_check_branch
      %23 = sbr.rel (0) target = $region13
    $region12: #{cnn_digits4_forward.1} parent=1 // pred_region
      _
    $region13: #{cnn_digits4_forward.1} parent=1 // pred_fallthru
      _
    // Predicated region
    $region14: #{cnn_digits4_forward.1} parent=1 // pred_check
      _
    $region15: #{cnn_digits4_forward.1} parent=1 // pred_check_branch
      %25 = sbr.rel (0) target = $region17
    $region16: #{cnn_digits4_forward.1} parent=1 // pred_region
      _
    $region17: #{cnn_digits4_forward.1} parent=1 // pred_fallthru
      _
    // Predicated region
    $region18: #{cnn_digits4_forward.1} parent=1 // pred_check
      _
    $region19: #{cnn_digits4_forward.1} parent=1 // pred_check_branch
      %27 = sbr.rel (0) target = $region21
    $region20: #{cnn_digits4_forward.1} parent=1 // pred_region
      _
    $region21: #{cnn_digits4_forward.1} parent=1 // pred_fallthru
      _
    // Predicated region
    $region22: #{cnn_digits4_forward.1} parent=1 // pred_check
      _
    $region23: #{cnn_digits4_forward.1} parent=1 // pred_check_branch
      %29 = sbr.rel (0) target = $region25
    $region24: #{cnn_digits4_forward.1} parent=1 // pred_region
      _
    $region25: #{cnn_digits4_forward.1} parent=1 // pred_fallthru
      _
    // Predicated region
    $region26: #{cnn_digits4_forward.1} parent=1 // pred_check
      _
    $region27: #{cnn_digits4_forward.1} parent=1 // pred_check_branch
      %31 = sbr.rel (0) target = $region29
    $region28: #{cnn_digits4_forward.1} parent=1 // pred_region
      _
    $region29: #{cnn_digits4_forward.1} parent=1 // pred_fallthru
      _
    // Predicated region
    $region30: #{cnn_digits4_forward.1} parent=1 // pred_check
      _
    $region31: #{cnn_digits4_forward.1} parent=1 // pred_check_branch
      %33 = sbr.rel (0) target = $region33
    $region32: #{cnn_digits4_forward.1} parent=1 // pred_region
      _
    $region33: #{cnn_digits4_forward.1} parent=1 // pred_fallthru
      _
    // Predicated region
    $region34: #{cnn_digits4_forward.1} parent=1 // pred_check
      _
    $region35: #{cnn_digits4_forward.1} parent=1 // pred_check_branch
      %35 = sbr.rel (0) target = $region37
    $region36: #{cnn_digits4_forward.1} parent=1 // pred_region
      _
    $region37: #{cnn_digits4_forward.1} parent=1 // pred_fallthru
      _
    // Predicated region
    $region38: #{cnn_digits4_forward.1} parent=1 // pred_check
      _
    $region39: #{cnn_digits4_forward.1} parent=1 // pred_check_branch
      %37 = sbr.rel (0) target = $region41
    $region40: #{cnn_digits4_forward.1} parent=1 // pred_region
      _
    $region41: #{cnn_digits4_forward.1} parent=1 // pred_fallthru
      _
    // Predicated region
    $region42: #{cnn_digits4_forward.1} parent=1 // pred_check
      _
    $region43: #{cnn_digits4_forward.1} parent=1 // pred_check_branch
      %39 = sbr.rel (0) target = $region45
    $region44: #{cnn_digits4_forward.1} parent=1 // pred_region
      _
    $region45: #{cnn_digits4_forward.1} parent=1 // pred_fallthru
      _
    // Predicated region
    $region46: #{cnn_digits4_forward.1} parent=1 // pred_check
      _
    $region47: #{cnn_digits4_forward.1} parent=1 // pred_check_branch
      %41 = sbr.rel (0) target = $region49
    $region48: #{cnn_digits4_forward.1} parent=1 // pred_region
      _
    $region49: #{cnn_digits4_forward.1} parent=1 // pred_fallthru
      _
    %v42 = vld [vmem:[%s0] sm:$0xff]
    %v43 = vld [vmem:[%s0 + $0x8] sm:$0xff]
    %v44 = vld [vmem:[%s0 + $0x10] sm:$0xff]
    %v45 = vld [vmem:[%s0 + $0x18] sm:$0xff]
    %v46 = vld [vmem:[%s0 + $0x20] sm:$0xff]
    %v47 = vld [vmem:[%s0 + $0x28] sm:$0xff]
    %v48 = vld [vmem:[%s0 + $0x30] sm:$0xff]
    %v49 = vld [vmem:[%s0 + $0x38] sm:$0xff]
    %v50 = vld [vmem:[%s0 + $0x40] sm:$0xff]
    %v51 = vld [vmem:[%s0 + $0x48] sm:$0xff]
    %v52 = vld [vmem:[%s0 + $0x50] sm:$0xff]
    %v53 = vld [vmem:[%s0 + $0x58] sm:$0xff]
    %v54 = vld [vmem:[%s0 + $0x60] sm:$0xff]
    %v55 = vld [vmem:[%s0 + $0x68] sm:$0xff]
    %v56 = vld [vmem:[%s0 + $0x70] sm:$0xff]
    %v57 = vld [vmem:[%s0 + $0x78] sm:$0xff]
    %v58 = vld [vmem:[%s0 + $0x80] sm:$0xff]
    %v59 = vld [vmem:[%s0 + $0x88] sm:$0xff]
    %v60 = vld [vmem:[%s0 + $0x90] sm:$0xff]
    %v61 = vld [vmem:[%s0 + $0x98] sm:$0xff]
    %v62 = vld [vmem:[%s0 + $0xa0] sm:$0xff]
    %v63 = vld [vmem:[%s0 + $0xa8] sm:$0xff]
    %v64 = vld [vmem:[%s0 + $0xb0] sm:$0xff]
    %v65 = vld [vmem:[%s0 + $0xb8] sm:$0xff]
    %v66 = vld [vmem:[%s0 + $0xc0] sm:$0xff]
    %v67 = vld [vmem:[%s0 + $0xc8] sm:$0xff]
    %v68 = vld [vmem:[%s0 + $0xd0] sm:$0xff]
    %v69 = vld [vmem:[%s0 + $0xd8] sm:$0xff]
    %v70 = vld [vmem:[%s0 + $0xe0] sm:$0xff]
    %v71 = vld [vmem:[%s0 + $0xe8] sm:$0xff]
    %v72 = vld [vmem:[%s0 + $0xf0] sm:$0xff]
    %v73 = vld [vmem:[%s0 + $0xf8] sm:$0xff]
    %v74 = vld [vmem:[%s0 + $0x100] sm:$0xff]
    %v75 = vld [vmem:[%s0 + $0x108] sm:$0xff]
    %v76 = vld [vmem:[%s0 + $0x110] sm:$0xff]
    %v77 = vld [vmem:[%s0 + $0x118] sm:$0xff]
    %v78 = vld [vmem:[%s0 + $0x120] sm:$0xff]
    %v79 = vld [vmem:[%s0 + $0x128] sm:$0xff]
    %v80 = vld [vmem:[%s0 + $0x130] sm:$0xff]
    %v81 = vld [vmem:[%s0 + $0x138] sm:$0xff]
    %v82 = vld [vmem:[%s0 + $0x140] sm:$0xff]
    %v83 = vld [vmem:[%s0 + $0x148] sm:$0xff]
    %v84 = vld [vmem:[%s0 + $0x150] sm:$0xff]
    %v85 = vld [vmem:[%s0 + $0x158] sm:$0xff]
    %v86 = vld [vmem:[%s0 + $0x160] sm:$0xff]
    %v87 = vld [vmem:[%s0 + $0x168] sm:$0xff]
    %v88 = vld [vmem:[%s0 + $0x170] sm:$0xff]
    %v89 = vld [vmem:[%s0 + $0x178] sm:$0xff]
    %v90 = vld [vmem:[%s0 + $0x180] sm:$0xff]
    %v91 = vld [vmem:[%s0 + $0x188] sm:$0xff]
    %v92 = vld [vmem:[%s0 + $0x190] sm:$0xff]
    %v93 = vld [vmem:[%s0 + $0x198] sm:$0xff]
    %v94 = vld [vmem:[%s0 + $0x1a0] sm:$0xff]
    %v95 = vld [vmem:[%s0 + $0x1a8] sm:$0xff]
    %v96 = vld [vmem:[%s0 + $0x1b0] sm:$0xff]
    %v97 = vld [vmem:[%s0 + $0x1b8] sm:$0xff]
    %v98 = vld [vmem:[%s0 + $0x1c0] sm:$0xff]
    %v99 = vld [vmem:[%s0 + $0x1c8] sm:$0xff]
    %v100 = vld [vmem:[%s0 + $0x1d0] sm:$0xff]
    %v101 = vld [vmem:[%s0 + $0x1d8] sm:$0xff]
    %v102 = vld [vmem:[%s0 + $0x1e0] sm:$0xff]
    %v103 = vld [vmem:[%s0 + $0x1e8] sm:$0xff]
    %v104 = vld [vmem:[%s0 + $0x1f0] sm:$0xff]
    %v105 = vld [vmem:[%s0 + $0x1f8] sm:$0xff]
    %v106 = vld [vmem:[%s1] sm:$0xff]
    %v107 = vld [vmem:[%s1 + $0x8] sm:$0xff]
    %v108 = vld [vmem:[%s1 + $0x10] sm:$0xff]
    %v109 = vld [vmem:[%s1 + $0x18] sm:$0x1]
    %v110 = vld [vmem:[%s2] sm:$0x1]
    %v111 = vld [vmem:[%s3] sm:$0x1]
    %vm176 = vcmask 1041408
    %v177 = vrot.slane %v42, 6
    %v178 = vrot.slane %v43, 6
    %v179 = vsel %vm176, %v177, %v178
    %v180 = vrot.slane %v44, 6
    %v181 = vrot.slane %v45, 6
    %v182 = vsel %vm176, %v180, %v181
    %v183 = vrot.slane %v46, 6
    %v184 = vrot.slane %v47, 6
    %v185 = vsel %vm176, %v183, %v184
    %v186 = vrot.slane %v48, 6
    %v187 = vrot.slane %v49, 6
    %v188 = vsel %vm176, %v186, %v187
    %v189 = vrot.slane %v50, 6
    %v190 = vrot.slane %v51, 6
    %v191 = vsel %vm176, %v189, %v190
    %v192 = vrot.slane %v52, 6
    %v193 = vrot.slane %v53, 6
    %v194 = vsel %vm176, %v192, %v193
    %v195 = vrot.slane %v54, 6
    %v196 = vrot.slane %v55, 6
    %v197 = vsel %vm176, %v195, %v196
    %v198 = vrot.slane %v56, 6
    %v199 = vrot.slane %v57, 6
    %v200 = vsel %vm176, %v198, %v199
    %v201 = vrot.slane %v58, 6
    %v202 = vrot.slane %v59, 6
    %v203 = vsel %vm176, %v201, %v202
    %v204 = vrot.slane %v60, 6
    %v205 = vrot.slane %v61, 6
    %v206 = vsel %vm176, %v204, %v205
    %v207 = vrot.slane %v62, 6
    %v208 = vrot.slane %v63, 6
    %v209 = vsel %vm176, %v207, %v208
    %v210 = vrot.slane %v64, 6
    %v211 = vrot.slane %v65, 6
    %v212 = vsel %vm176, %v210, %v211
    %v213 = vrot.slane %v66, 6
    %v214 = vrot.slane %v67, 6
    %v215 = vsel %vm176, %v213, %v214
    %v216 = vrot.slane %v68, 6
    %v217 = vrot.slane %v69, 6
    %v218 = vsel %vm176, %v216, %v217
    %v219 = vrot.slane %v70, 6
    %v220 = vrot.slane %v71, 6
    %v221 = vsel %vm176, %v219, %v220
    %v222 = vrot.slane %v72, 6
    %v223 = vrot.slane %v73, 6
    %v224 = vsel %vm176, %v222, %v223
    %v225 = vrot.slane %v74, 6
    %v226 = vrot.slane %v75, 6
    %v227 = vsel %vm176, %v225, %v226
    %v228 = vrot.slane %v76, 6
    %v229 = vrot.slane %v77, 6
    %v230 = vsel %vm176, %v228, %v229
    %v231 = vrot.slane %v78, 6
    %v232 = vrot.slane %v79, 6
    %v233 = vsel %vm176, %v231, %v232
    %v234 = vrot.slane %v80, 6
    %v235 = vrot.slane %v81, 6
    %v236 = vsel %vm176, %v234, %v235
    %v237 = vrot.slane %v82, 6
    %v238 = vrot.slane %v83, 6
    %v239 = vsel %vm176, %v237, %v238
    %v240 = vrot.slane %v84, 6
    %v241 = vrot.slane %v85, 6
    %v242 = vsel %vm176, %v240, %v241
    %v243 = vrot.slane %v86, 6
    %v244 = vrot.slane %v87, 6
    %v245 = vsel %vm176, %v243, %v244
    %v246 = vrot.slane %v88, 6
    %v247 = vrot.slane %v89, 6
    %v248 = vsel %vm176, %v246, %v247
    %v249 = vrot.slane %v90, 6
    %v250 = vrot.slane %v91, 6
    %v251 = vsel %vm176, %v249, %v250
    %v252 = vrot.slane %v92, 6
    %v253 = vrot.slane %v93, 6
    %v254 = vsel %vm176, %v252, %v253
    %v255 = vrot.slane %v94, 6
    %v256 = vrot.slane %v95, 6
    %v257 = vsel %vm176, %v255, %v256
    %v258 = vrot.slane %v96, 6
    %v259 = vrot.slane %v97, 6
    %v260 = vsel %vm176, %v258, %v259
    %v261 = vrot.slane %v98, 6
    %v262 = vrot.slane %v99, 6
    %v263 = vsel %vm176, %v261, %v262
    %v264 = vrot.slane %v100, 6
    %v265 = vrot.slane %v101, 6
    %v266 = vsel %vm176, %v264, %v265
    %v267 = vrot.slane %v102, 6
    %v268 = vrot.slane %v103, 6
    %v269 = vsel %vm176, %v267, %v268
    %v270 = vrot.slane %v104, 6
    %v271 = vrot.slane %v105, 6
    %v272 = vsel %vm176, %v270, %v271
    %v365 = vsel %vm176, 0.0, %v177
    %v366 = vsel %vm176, 0.0, %v180
    %v367 = vsel %vm176, 0.0, %v183
    %v368 = vsel %vm176, 0.0, %v186
    %v369 = vsel %vm176, 0.0, %v189
    %v370 = vsel %vm176, 0.0, %v192
    %v371 = vsel %vm176, 0.0, %v195
    %v372 = vsel %vm176, 0.0, %v198
    %v373 = vsel %vm176, 0.0, %v201
    %v374 = vsel %vm176, 0.0, %v204
    %v375 = vsel %vm176, 0.0, %v207
    %v376 = vsel %vm176, 0.0, %v210
    %v377 = vsel %vm176, 0.0, %v213
    %v378 = vsel %vm176, 0.0, %v216
    %v379 = vsel %vm176, 0.0, %v219
    %v380 = vsel %vm176, 0.0, %v222
    %v381 = vsel %vm176, 0.0, %v225
    %v382 = vsel %vm176, 0.0, %v228
    %v383 = vsel %vm176, 0.0, %v231
    %v384 = vsel %vm176, 0.0, %v234
    %v385 = vsel %vm176, 0.0, %v237
    %v386 = vsel %vm176, 0.0, %v240
    %v387 = vsel %vm176, 0.0, %v243
    %v388 = vsel %vm176, 0.0, %v246
    %v389 = vsel %vm176, 0.0, %v249
    %v390 = vsel %vm176, 0.0, %v252
    %v391 = vsel %vm176, 0.0, %v255
    %v392 = vsel %vm176, 0.0, %v258
    %v393 = vsel %vm176, 0.0, %v261
    %v394 = vsel %vm176, 0.0, %v264
    %v395 = vsel %vm176, 0.0, %v267
    %v396 = vsel %vm176, 0.0, %v270
    %v397 = vsel %vm176, %v178, 0.0
    %v398 = vsel %vm176, %v181, 0.0
    %v399 = vsel %vm176, %v184, 0.0
    %v400 = vsel %vm176, %v187, 0.0
    %v401 = vsel %vm176, %v190, 0.0
    %v402 = vsel %vm176, %v193, 0.0
    %v403 = vsel %vm176, %v196, 0.0
    %v404 = vsel %vm176, %v199, 0.0
    %v405 = vsel %vm176, %v202, 0.0
    %v406 = vsel %vm176, %v205, 0.0
    %v407 = vsel %vm176, %v208, 0.0
    %v408 = vsel %vm176, %v211, 0.0
    %v409 = vsel %vm176, %v214, 0.0
    %v410 = vsel %vm176, %v217, 0.0
    %v411 = vsel %vm176, %v220, 0.0
    %v412 = vsel %vm176, %v223, 0.0
    %v413 = vsel %vm176, %v226, 0.0
    %v414 = vsel %vm176, %v229, 0.0
    %v415 = vsel %vm176, %v232, 0.0
    %v416 = vsel %vm176, %v235, 0.0
    %v417 = vsel %vm176, %v238, 0.0
    %v418 = vsel %vm176, %v241, 0.0
    %v419 = vsel %vm176, %v244, 0.0
    %v420 = vsel %vm176, %v247, 0.0
    %v421 = vsel %vm176, %v250, 0.0
    %v422 = vsel %vm176, %v253, 0.0
    %v423 = vsel %vm176, %v256, 0.0
    %v424 = vsel %vm176, %v259, 0.0
    %v425 = vsel %vm176, %v262, 0.0
    %v426 = vsel %vm176, %v265, 0.0
    %v427 = vsel %vm176, %v268, 0.0
    %v428 = vsel %vm176, %v271, 0.0
    %vm486 = vcmask 1046528
    %v487 = vrot.slane 0.0, 1
    %v488 = vsel %vm486, %v487, %v487
    %v489 = vrot.slane %v365, 1
    %v490 = vrot.slane %v179, 1
    %v491 = vsel %vm486, %v489, %v490
    %v492 = vrot.slane %v397, 1
    %v493 = vsel %vm486, %v490, %v492
    %v494 = vrot.slane %v366, 1
    %v495 = vrot.slane %v182, 1
    %v496 = vsel %vm486, %v494, %v495
    %v497 = vrot.slane %v398, 1
    %v498 = vsel %vm486, %v495, %v497
    %v499 = vrot.slane %v367, 1
    %v500 = vrot.slane %v185, 1
    %v501 = vsel %vm486, %v499, %v500
    %v502 = vrot.slane %v399, 1
    %v503 = vsel %vm486, %v500, %v502
    %v504 = vrot.slane %v368, 1
    %v505 = vrot.slane %v188, 1
    %v506 = vsel %vm486, %v504, %v505
    %v507 = vrot.slane %v400, 1
    %v508 = vsel %vm486, %v505, %v507
    %v509 = vrot.slane %v369, 1
    %v510 = vrot.slane %v191, 1
    %v511 = vsel %vm486, %v509, %v510
    %v512 = vrot.slane %v401, 1
    %v513 = vsel %vm486, %v510, %v512
    %v514 = vrot.slane %v370, 1
    %v515 = vrot.slane %v194, 1
    %v516 = vsel %vm486, %v514, %v515
    %v517 = vrot.slane %v402, 1
    %v518 = vsel %vm486, %v515, %v517
    %v519 = vrot.slane %v371, 1
    %v520 = vrot.slane %v197, 1
    %v521 = vsel %vm486, %v519, %v520
    %v522 = vrot.slane %v403, 1
    %v523 = vsel %vm486, %v520, %v522
    %v524 = vrot.slane %v372, 1
    %v525 = vrot.slane %v200, 1
    %v526 = vsel %vm486, %v524, %v525
    %v527 = vrot.slane %v404, 1
    %v528 = vsel %vm486, %v525, %v527
    %v529 = vrot.slane %v373, 1
    %v530 = vrot.slane %v203, 1
    %v531 = vsel %vm486, %v529, %v530
    %v532 = vrot.slane %v405, 1
    %v533 = vsel %vm486, %v530, %v532
    %v534 = vrot.slane %v374, 1
    %v535 = vrot.slane %v206, 1
    %v536 = vsel %vm486, %v534, %v535
    %v537 = vrot.slane %v406, 1
    %v538 = vsel %vm486, %v535, %v537
    %v539 = vrot.slane %v375, 1
    %v540 = vrot.slane %v209, 1
    %v541 = vsel %vm486, %v539, %v540
    %v542 = vrot.slane %v407, 1
    %v543 = vsel %vm486, %v540, %v542
    %v544 = vrot.slane %v376, 1
    %v545 = vrot.slane %v212, 1
    %v546 = vsel %vm486, %v544, %v545
    %v547 = vrot.slane %v408, 1
    %v548 = vsel %vm486, %v545, %v547
    %v549 = vrot.slane %v377, 1
    %v550 = vrot.slane %v215, 1
    %v551 = vsel %vm486, %v549, %v550
    %v552 = vrot.slane %v409, 1
    %v553 = vsel %vm486, %v550, %v552
    %v554 = vrot.slane %v378, 1
    %v555 = vrot.slane %v218, 1
    %v556 = vsel %vm486, %v554, %v555
    %v557 = vrot.slane %v410, 1
    %v558 = vsel %vm486, %v555, %v557
    %v559 = vrot.slane %v381, 1
    %v560 = vrot.slane %v227, 1
    %v561 = vsel %vm486, %v559, %v560
    %v562 = vrot.slane %v413, 1
    %v563 = vsel %vm486, %v560, %v562
    %v564 = vrot.slane %v382, 1
    %v565 = vrot.slane %v230, 1
    %v566 = vsel %vm486, %v564, %v565
    %v567 = vrot.slane %v414, 1
    %v568 = vsel %vm486, %v565, %v567
    %v569 = vrot.slane %v383, 1
    %v570 = vrot.slane %v233, 1
    %v571 = vsel %vm486, %v569, %v570
    %v572 = vrot.slane %v415, 1
    %v573 = vsel %vm486, %v570, %v572
    %v574 = vrot.slane %v384, 1
    %v575 = vrot.slane %v236, 1
    %v576 = vsel %vm486, %v574, %v575
    %v577 = vrot.slane %v416, 1
    %v578 = vsel %vm486, %v575, %v577
    %v579 = vrot.slane %v385, 1
    %v580 = vrot.slane %v239, 1
    %v581 = vsel %vm486, %v579, %v580
    %v582 = vrot.slane %v417, 1
    %v583 = vsel %vm486, %v580, %v582
    %v584 = vrot.slane %v386, 1
    %v585 = vrot.slane %v242, 1
    %v586 = vsel %vm486, %v584, %v585
    %v587 = vrot.slane %v418, 1
    %v588 = vsel %vm486, %v585, %v587
    %v589 = vrot.slane %v387, 1
    %v590 = vrot.slane %v245, 1
    %v591 = vsel %vm486, %v589, %v590
    %v592 = vrot.slane %v419, 1
    %v593 = vsel %vm486, %v590, %v592
    %v594 = vrot.slane %v388, 1
    %v595 = vrot.slane %v248, 1
    %v596 = vsel %vm486, %v594, %v595
    %v597 = vrot.slane %v420, 1
    %v598 = vsel %vm486, %v595, %v597
    %v599 = vrot.slane %v389, 1
    %v600 = vrot.slane %v251, 1
    %v601 = vsel %vm486, %v599, %v600
    %v602 = vrot.slane %v421, 1
    %v603 = vsel %vm486, %v600, %v602
    %v604 = vrot.slane %v390, 1
    %v605 = vrot.slane %v254, 1
    %v606 = vsel %vm486, %v604, %v605
    %v607 = vrot.slane %v422, 1
    %v608 = vsel %vm486, %v605, %v607
    %v609 = vrot.slane %v391, 1
    %v610 = vrot.slane %v257, 1
    %v611 = vsel %vm486, %v609, %v610
    %v612 = vrot.slane %v423, 1
    %v613 = vsel %vm486, %v610, %v612
    %v614 = vrot.slane %v392, 1
    %v615 = vrot.slane %v260, 1
    %v616 = vsel %vm486, %v614, %v615
    %v617 = vrot.slane %v424, 1
    %v618 = vsel %vm486, %v615, %v617
    %v619 = vrot.slane %v393, 1
    %v620 = vrot.slane %v263, 1
    %v621 = vsel %vm486, %v619, %v620
    %v622 = vrot.slane %v425, 1
    %v623 = vsel %vm486, %v620, %v622
    %v624 = vrot.slane %v394, 1
    %v625 = vrot.slane %v266, 1
    %v626 = vsel %vm486, %v624, %v625
    %v627 = vrot.slane %v426, 1
    %v628 = vsel %vm486, %v625, %v627
    %vm629 = vcmask 1045504
    %v630 = vrot.slane 0.0, 2
    %v631 = vsel %vm629, %v630, %v630
    %v632 = vrot.slane %v365, 2
    %v633 = vrot.slane %v179, 2
    %v634 = vsel %vm629, %v632, %v633
    %v635 = vrot.slane %v397, 2
    %v636 = vsel %vm629, %v633, %v635
    %v637 = vrot.slane %v366, 2
    %v638 = vrot.slane %v182, 2
    %v639 = vsel %vm629, %v637, %v638
    %v640 = vrot.slane %v398, 2
    %v641 = vsel %vm629, %v638, %v640
    %v642 = vrot.slane %v367, 2
    %v643 = vrot.slane %v185, 2
    %v644 = vsel %vm629, %v642, %v643
    %v645 = vrot.slane %v399, 2
    %v646 = vsel %vm629, %v643, %v645
    %v647 = vrot.slane %v368, 2
    %v648 = vrot.slane %v188, 2
    %v649 = vsel %vm629, %v647, %v648
    %v650 = vrot.slane %v400, 2
    %v651 = vsel %vm629, %v648, %v650
    %v652 = vrot.slane %v369, 2
    %v653 = vrot.slane %v191, 2
    %v654 = vsel %vm629, %v652, %v653
    %v655 = vrot.slane %v401, 2
    %v656 = vsel %vm629, %v653, %v655
    %v657 = vrot.slane %v370, 2
    %v658 = vrot.slane %v194, 2
    %v659 = vsel %vm629, %v657, %v658
    %v660 = vrot.slane %v402, 2
    %v661 = vsel %vm629, %v658, %v660
    %v662 = vrot.slane %v371, 2
    %v663 = vrot.slane %v197, 2
    %v664 = vsel %vm629, %v662, %v663
    %v665 = vrot.slane %v403, 2
    %v666 = vsel %vm629, %v663, %v665
    %v667 = vrot.slane %v372, 2
    %v668 = vrot.slane %v200, 2
    %v669 = vsel %vm629, %v667, %v668
    %v670 = vrot.slane %v404, 2
    %v671 = vsel %vm629, %v668, %v670
    %v672 = vrot.slane %v373, 2
    %v673 = vrot.slane %v203, 2
    %v674 = vsel %vm629, %v672, %v673
    %v675 = vrot.slane %v405, 2
    %v676 = vsel %vm629, %v673, %v675
    %v677 = vrot.slane %v374, 2
    %v678 = vrot.slane %v206, 2
    %v679 = vsel %vm629, %v677, %v678
    %v680 = vrot.slane %v406, 2
    %v681 = vsel %vm629, %v678, %v680
    %v682 = vrot.slane %v375, 2
    %v683 = vrot.slane %v209, 2
    %v684 = vsel %vm629, %v682, %v683
    %v685 = vrot.slane %v407, 2
    %v686 = vsel %vm629, %v683, %v685
    %v687 = vrot.slane %v376, 2
    %v688 = vrot.slane %v212, 2
    %v689 = vsel %vm629, %v687, %v688
    %v690 = vrot.slane %v408, 2
    %v691 = vsel %vm629, %v688, %v690
    %v692 = vrot.slane %v377, 2
    %v693 = vrot.slane %v215, 2
    %v694 = vsel %vm629, %v692, %v693
    %v695 = vrot.slane %v409, 2
    %v696 = vsel %vm629, %v693, %v695
    %v697 = vrot.slane %v378, 2
    %v698 = vrot.slane %v218, 2
    %v699 = vsel %vm629, %v697, %v698
    %v700 = vrot.slane %v410, 2
    %v701 = vsel %vm629, %v698, %v700
    %v702 = vrot.slane %v381, 2
    %v703 = vrot.slane %v227, 2
    %v704 = vsel %vm629, %v702, %v703
    %v705 = vrot.slane %v413, 2
    %v706 = vsel %vm629, %v703, %v705
    %v707 = vrot.slane %v382, 2
    %v708 = vrot.slane %v230, 2
    %v709 = vsel %vm629, %v707, %v708
    %v710 = vrot.slane %v414, 2
    %v711 = vsel %vm629, %v708, %v710
    %v712 = vrot.slane %v383, 2
    %v713 = vrot.slane %v233, 2
    %v714 = vsel %vm629, %v712, %v713
    %v715 = vrot.slane %v415, 2
    %v716 = vsel %vm629, %v713, %v715
    %v717 = vrot.slane %v384, 2
    %v718 = vrot.slane %v236, 2
    %v719 = vsel %vm629, %v717, %v718
    %v720 = vrot.slane %v416, 2
    %v721 = vsel %vm629, %v718, %v720
    %v722 = vrot.slane %v385, 2
    %v723 = vrot.slane %v239, 2
    %v724 = vsel %vm629, %v722, %v723
    %v725 = vrot.slane %v417, 2
    %v726 = vsel %vm629, %v723, %v725
    %v727 = vrot.slane %v386, 2
    %v728 = vrot.slane %v242, 2
    %v729 = vsel %vm629, %v727, %v728
    %v730 = vrot.slane %v418, 2
    %v731 = vsel %vm629, %v728, %v730
    %v732 = vrot.slane %v387, 2
    %v733 = vrot.slane %v245, 2
    %v734 = vsel %vm629, %v732, %v733
    %v735 = vrot.slane %v419, 2
    %v736 = vsel %vm629, %v733, %v735
    %v737 = vrot.slane %v388, 2
    %v738 = vrot.slane %v248, 2
    %v739 = vsel %vm629, %v737, %v738
    %v740 = vrot.slane %v420, 2
    %v741 = vsel %vm629, %v738, %v740
    %v742 = vrot.slane %v389, 2
    %v743 = vrot.slane %v251, 2
    %v744 = vsel %vm629, %v742, %v743
    %v745 = vrot.slane %v421, 2
    %v746 = vsel %vm629, %v743, %v745
    %v747 = vrot.slane %v390, 2
    %v748 = vrot.slane %v254, 2
    %v749 = vsel %vm629, %v747, %v748
    %v750 = vrot.slane %v422, 2
    %v751 = vsel %vm629, %v748, %v750
    %v752 = vrot.slane %v391, 2
    %v753 = vrot.slane %v257, 2
    %v754 = vsel %vm629, %v752, %v753
    %v755 = vrot.slane %v423, 2
    %v756 = vsel %vm629, %v753, %v755
    %v757 = vrot.slane %v392, 2
    %v758 = vrot.slane %v260, 2
    %v759 = vsel %vm629, %v757, %v758
    %v760 = vrot.slane %v424, 2
    %v761 = vsel %vm629, %v758, %v760
    %v762 = vrot.slane %v393, 2
    %v763 = vrot.slane %v263, 2
    %v764 = vsel %vm629, %v762, %v763
    %v765 = vrot.slane %v425, 2
    %v766 = vsel %vm629, %v763, %v765
    %v767 = vrot.slane %v394, 2
    %v768 = vrot.slane %v266, 2
    %v769 = vsel %vm629, %v767, %v768
    %v770 = vrot.slane %v426, 2
    %v771 = vsel %vm629, %v768, %v770
    %vm772 = vcmask 1044480
    %v773 = vrot.slane 0.0, 3
    %v774 = vsel %vm772, %v773, %v773
    %v775 = vrot.slane %v365, 3
    %v776 = vrot.slane %v179, 3
    %v777 = vsel %vm772, %v775, %v776
    %v778 = vrot.slane %v397, 3
    %v779 = vsel %vm772, %v776, %v778
    %v780 = vrot.slane %v366, 3
    %v781 = vrot.slane %v182, 3
    %v782 = vsel %vm772, %v780, %v781
    %v783 = vrot.slane %v398, 3
    %v784 = vsel %vm772, %v781, %v783
    %v785 = vrot.slane %v367, 3
    %v786 = vrot.slane %v185, 3
    %v787 = vsel %vm772, %v785, %v786
    %v788 = vrot.slane %v399, 3
    %v789 = vsel %vm772, %v786, %v788
    %v790 = vrot.slane %v368, 3
    %v791 = vrot.slane %v188, 3
    %v792 = vsel %vm772, %v790, %v791
    %v793 = vrot.slane %v400, 3
    %v794 = vsel %vm772, %v791, %v793
    %v795 = vrot.slane %v369, 3
    %v796 = vrot.slane %v191, 3
    %v797 = vsel %vm772, %v795, %v796
    %v798 = vrot.slane %v401, 3
    %v799 = vsel %vm772, %v796, %v798
    %v800 = vrot.slane %v370, 3
    %v801 = vrot.slane %v194, 3
    %v802 = vsel %vm772, %v800, %v801
    %v803 = vrot.slane %v402, 3
    %v804 = vsel %vm772, %v801, %v803
    %v805 = vrot.slane %v371, 3
    %v806 = vrot.slane %v197, 3
    %v807 = vsel %vm772, %v805, %v806
    %v808 = vrot.slane %v403, 3
    %v809 = vsel %vm772, %v806, %v808
    %v810 = vrot.slane %v372, 3
    %v811 = vrot.slane %v200, 3
    %v812 = vsel %vm772, %v810, %v811
    %v813 = vrot.slane %v404, 3
    %v814 = vsel %vm772, %v811, %v813
    %v815 = vrot.slane %v373, 3
    %v816 = vrot.slane %v203, 3
    %v817 = vsel %vm772, %v815, %v816
    %v818 = vrot.slane %v405, 3
    %v819 = vsel %vm772, %v816, %v818
    %v820 = vrot.slane %v374, 3
    %v821 = vrot.slane %v206, 3
    %v822 = vsel %vm772, %v820, %v821
    %v823 = vrot.slane %v406, 3
    %v824 = vsel %vm772, %v821, %v823
    %v825 = vrot.slane %v375, 3
    %v826 = vrot.slane %v209, 3
    %v827 = vsel %vm772, %v825, %v826
    %v828 = vrot.slane %v407, 3
    %v829 = vsel %vm772, %v826, %v828
    %v830 = vrot.slane %v376, 3
    %v831 = vrot.slane %v212, 3
    %v832 = vsel %vm772, %v830, %v831
    %v833 = vrot.slane %v408, 3
    %v834 = vsel %vm772, %v831, %v833
    %v835 = vrot.slane %v377, 3
    %v836 = vrot.slane %v215, 3
    %v837 = vsel %vm772, %v835, %v836
    %v838 = vrot.slane %v409, 3
    %v839 = vsel %vm772, %v836, %v838
    %v840 = vrot.slane %v378, 3
    %v841 = vrot.slane %v218, 3
    %v842 = vsel %vm772, %v840, %v841
    %v843 = vrot.slane %v410, 3
    %v844 = vsel %vm772, %v841, %v843
    %v845 = vrot.slane %v381, 3
    %v846 = vrot.slane %v227, 3
    %v847 = vsel %vm772, %v845, %v846
    %v848 = vrot.slane %v413, 3
    %v849 = vsel %vm772, %v846, %v848
    %v850 = vrot.slane %v382, 3
    %v851 = vrot.slane %v230, 3
    %v852 = vsel %vm772, %v850, %v851
    %v853 = vrot.slane %v414, 3
    %v854 = vsel %vm772, %v851, %v853
    %v855 = vrot.slane %v383, 3
    %v856 = vrot.slane %v233, 3
    %v857 = vsel %vm772, %v855, %v856
    %v858 = vrot.slane %v415, 3
    %v859 = vsel %vm772, %v856, %v858
    %v860 = vrot.slane %v384, 3
    %v861 = vrot.slane %v236, 3
    %v862 = vsel %vm772, %v860, %v861
    %v863 = vrot.slane %v416, 3
    %v864 = vsel %vm772, %v861, %v863
    %v865 = vrot.slane %v385, 3
    %v866 = vrot.slane %v239, 3
    %v867 = vsel %vm772, %v865, %v866
    %v868 = vrot.slane %v417, 3
    %v869 = vsel %vm772, %v866, %v868
    %v870 = vrot.slane %v386, 3
    %v871 = vrot.slane %v242, 3
    %v872 = vsel %vm772, %v870, %v871
    %v873 = vrot.slane %v418, 3
    %v874 = vsel %vm772, %v871, %v873
    %v875 = vrot.slane %v387, 3
    %v876 = vrot.slane %v245, 3
    %v877 = vsel %vm772, %v875, %v876
    %v878 = vrot.slane %v419, 3
    %v879 = vsel %vm772, %v876, %v878
    %v880 = vrot.slane %v388, 3
    %v881 = vrot.slane %v248, 3
    %v882 = vsel %vm772, %v880, %v881
    %v883 = vrot.slane %v420, 3
    %v884 = vsel %vm772, %v881, %v883
    %v885 = vrot.slane %v389, 3
    %v886 = vrot.slane %v251, 3
    %v887 = vsel %vm772, %v885, %v886
    %v888 = vrot.slane %v421, 3
    %v889 = vsel %vm772, %v886, %v888
    %v890 = vrot.slane %v390, 3
    %v891 = vrot.slane %v254, 3
    %v892 = vsel %vm772, %v890, %v891
    %v893 = vrot.slane %v422, 3
    %v894 = vsel %vm772, %v891, %v893
    %v895 = vrot.slane %v391, 3
    %v896 = vrot.slane %v257, 3
    %v897 = vsel %vm772, %v895, %v896
    %v898 = vrot.slane %v423, 3
    %v899 = vsel %vm772, %v896, %v898
    %v900 = vrot.slane %v392, 3
    %v901 = vrot.slane %v260, 3
    %v902 = vsel %vm772, %v900, %v901
    %v903 = vrot.slane %v424, 3
    %v904 = vsel %vm772, %v901, %v903
    %v905 = vrot.slane %v393, 3
    %v906 = vrot.slane %v263, 3
    %v907 = vsel %vm772, %v905, %v906
    %v908 = vrot.slane %v425, 3
    %v909 = vsel %vm772, %v906, %v908
    %v910 = vrot.slane %v394, 3
    %v911 = vrot.slane %v266, 3
    %v912 = vsel %vm772, %v910, %v911
    %v913 = vrot.slane %v426, 3
    %v914 = vsel %vm772, %v911, %v913
    %vm915 = vcmask 1043456
    %v916 = vrot.slane 0.0, 4
    %v917 = vsel %vm915, %v916, %v916
    %v918 = vrot.slane %v365, 4
    %v919 = vrot.slane %v179, 4
    %v920 = vsel %vm915, %v918, %v919
    %v921 = vrot.slane %v397, 4
    %v922 = vsel %vm915, %v919, %v921
    %v923 = vrot.slane %v366, 4
    %v924 = vrot.slane %v182, 4
    %v925 = vsel %vm915, %v923, %v924
    %v926 = vrot.slane %v398, 4
    %v927 = vsel %vm915, %v924, %v926
    %v928 = vrot.slane %v367, 4
    %v929 = vrot.slane %v185, 4
    %v930 = vsel %vm915, %v928, %v929
    %v931 = vrot.slane %v399, 4
    %v932 = vsel %vm915, %v929, %v931
    %v933 = vrot.slane %v368, 4
    %v934 = vrot.slane %v188, 4
    %v935 = vsel %vm915, %v933, %v934
    %v936 = vrot.slane %v400, 4
    %v937 = vsel %vm915, %v934, %v936
    %v938 = vrot.slane %v369, 4
    %v939 = vrot.slane %v191, 4
    %v940 = vsel %vm915, %v938, %v939
    %v941 = vrot.slane %v401, 4
    %v942 = vsel %vm915, %v939, %v941
    %v943 = vrot.slane %v370, 4
    %v944 = vrot.slane %v194, 4
    %v945 = vsel %vm915, %v943, %v944
    %v946 = vrot.slane %v402, 4
    %v947 = vsel %vm915, %v944, %v946
    %v948 = vrot.slane %v371, 4
    %v949 = vrot.slane %v197, 4
    %v950 = vsel %vm915, %v948, %v949
    %v951 = vrot.slane %v403, 4
    %v952 = vsel %vm915, %v949, %v951
    %v953 = vrot.slane %v372, 4
    %v954 = vrot.slane %v200, 4
    %v955 = vsel %vm915, %v953, %v954
    %v956 = vrot.slane %v404, 4
    %v957 = vsel %vm915, %v954, %v956
    %v958 = vrot.slane %v373, 4
    %v959 = vrot.slane %v203, 4
    %v960 = vsel %vm915, %v958, %v959
    %v961 = vrot.slane %v405, 4
    %v962 = vsel %vm915, %v959, %v961
    %v963 = vrot.slane %v374, 4
    %v964 = vrot.slane %v206, 4
    %v965 = vsel %vm915, %v963, %v964
    %v966 = vrot.slane %v406, 4
    %v967 = vsel %vm915, %v964, %v966
    %v968 = vrot.slane %v375, 4
    %v969 = vrot.slane %v209, 4
    %v970 = vsel %vm915, %v968, %v969
    %v971 = vrot.slane %v407, 4
    %v972 = vsel %vm915, %v969, %v971
    %v973 = vrot.slane %v376, 4
    %v974 = vrot.slane %v212, 4
    %v975 = vsel %vm915, %v973, %v974
    %v976 = vrot.slane %v408, 4
    %v977 = vsel %vm915, %v974, %v976
    %v978 = vrot.slane %v377, 4
    %v979 = vrot.slane %v215, 4
    %v980 = vsel %vm915, %v978, %v979
    %v981 = vrot.slane %v409, 4
    %v982 = vsel %vm915, %v979, %v981
    %v983 = vrot.slane %v378, 4
    %v984 = vrot.slane %v218, 4
    %v985 = vsel %vm915, %v983, %v984
    %v986 = vrot.slane %v410, 4
    %v987 = vsel %vm915, %v984, %v986
    %v988 = vrot.slane %v381, 4
    %v989 = vrot.slane %v227, 4
    %v990 = vsel %vm915, %v988, %v989
    %v991 = vrot.slane %v413, 4
    %v992 = vsel %vm915, %v989, %v991
    %v993 = vrot.slane %v382, 4
    %v994 = vrot.slane %v230, 4
    %v995 = vsel %vm915, %v993, %v994
    %v996 = vrot.slane %v414, 4
    %v997 = vsel %vm915, %v994, %v996
    %v998 = vrot.slane %v383, 4
    %v999 = vrot.slane %v233, 4
    %v1000 = vsel %vm915, %v998, %v999
    %v1001 = vrot.slane %v415, 4
    %v1002 = vsel %vm915, %v999, %v1001
    %v1003 = vrot.slane %v384, 4
    %v1004 = vrot.slane %v236, 4
    %v1005 = vsel %vm915, %v1003, %v1004
    %v1006 = vrot.slane %v416, 4
    %v1007 = vsel %vm915, %v1004, %v1006
    %v1008 = vrot.slane %v385, 4
    %v1009 = vrot.slane %v239, 4
    %v1010 = vsel %vm915, %v1008, %v1009
    %v1011 = vrot.slane %v417, 4
    %v1012 = vsel %vm915, %v1009, %v1011
    %v1013 = vrot.slane %v386, 4
    %v1014 = vrot.slane %v242, 4
    %v1015 = vsel %vm915, %v1013, %v1014
    %v1016 = vrot.slane %v418, 4
    %v1017 = vsel %vm915, %v1014, %v1016
    %v1018 = vrot.slane %v387, 4
    %v1019 = vrot.slane %v245, 4
    %v1020 = vsel %vm915, %v1018, %v1019
    %v1021 = vrot.slane %v419, 4
    %v1022 = vsel %vm915, %v1019, %v1021
    %v1023 = vrot.slane %v388, 4
    %v1024 = vrot.slane %v248, 4
    %v1025 = vsel %vm915, %v1023, %v1024
    %v1026 = vrot.slane %v420, 4
    %v1027 = vsel %vm915, %v1024, %v1026
    %v1028 = vrot.slane %v389, 4
    %v1029 = vrot.slane %v251, 4
    %v1030 = vsel %vm915, %v1028, %v1029
    %v1031 = vrot.slane %v421, 4
    %v1032 = vsel %vm915, %v1029, %v1031
    %v1033 = vrot.slane %v390, 4
    %v1034 = vrot.slane %v254, 4
    %v1035 = vsel %vm915, %v1033, %v1034
    %v1036 = vrot.slane %v422, 4
    %v1037 = vsel %vm915, %v1034, %v1036
    %v1038 = vrot.slane %v391, 4
    %v1039 = vrot.slane %v257, 4
    %v1040 = vsel %vm915, %v1038, %v1039
    %v1041 = vrot.slane %v423, 4
    %v1042 = vsel %vm915, %v1039, %v1041
    %v1043 = vrot.slane %v392, 4
    %v1044 = vrot.slane %v260, 4
    %v1045 = vsel %vm915, %v1043, %v1044
    %v1046 = vrot.slane %v424, 4
    %v1047 = vsel %vm915, %v1044, %v1046
    %v1048 = vrot.slane %v393, 4
    %v1049 = vrot.slane %v263, 4
    %v1050 = vsel %vm915, %v1048, %v1049
    %v1051 = vrot.slane %v425, 4
    %v1052 = vsel %vm915, %v1049, %v1051
    %v1053 = vrot.slane %v394, 4
    %v1054 = vrot.slane %v266, 4
    %v1055 = vsel %vm915, %v1053, %v1054
    %v1056 = vrot.slane %v426, 4
    %v1057 = vsel %vm915, %v1054, %v1056
    %v1062 = vrot.slane %v379, 1
    %v1063 = vrot.slane %v221, 1
    %v1064 = vsel %vm486, %v1062, %v1063
    %v1065 = vrot.slane %v411, 1
    %v1066 = vsel %vm486, %v1063, %v1065
    %v1067 = vrot.slane %v395, 1
    %v1068 = vrot.slane %v269, 1
    %v1069 = vsel %vm486, %v1067, %v1068
    %v1070 = vrot.slane %v427, 1
    %v1071 = vsel %vm486, %v1068, %v1070
    %v1072 = vrot.slane %v379, 2
    %v1073 = vrot.slane %v221, 2
    %v1074 = vsel %vm629, %v1072, %v1073
    %v1075 = vrot.slane %v411, 2
    %v1076 = vsel %vm629, %v1073, %v1075
    %v1077 = vrot.slane %v395, 2
    %v1078 = vrot.slane %v269, 2
    %v1079 = vsel %vm629, %v1077, %v1078
    %v1080 = vrot.slane %v427, 2
    %v1081 = vsel %vm629, %v1078, %v1080
    %v1082 = vrot.slane %v379, 3
    %v1083 = vrot.slane %v221, 3
    %v1084 = vsel %vm772, %v1082, %v1083
    %v1085 = vrot.slane %v411, 3
    %v1086 = vsel %vm772, %v1083, %v1085
    %v1087 = vrot.slane %v395, 3
    %v1088 = vrot.slane %v269, 3
    %v1089 = vsel %vm772, %v1087, %v1088
    %v1090 = vrot.slane %v427, 3
    %v1091 = vsel %vm772, %v1088, %v1090
    %v1092 = vrot.slane %v379, 4
    %v1093 = vrot.slane %v221, 4
    %v1094 = vsel %vm915, %v1092, %v1093
    %v1095 = vrot.slane %v411, 4
    %v1096 = vsel %vm915, %v1093, %v1095
    %v1097 = vrot.slane %v395, 4
    %v1098 = vrot.slane %v269, 4
    %v1099 = vsel %vm915, %v1097, %v1098
    %v1100 = vrot.slane %v427, 4
    %v1101 = vsel %vm915, %v1098, %v1100
    %v1106 = vrot.slane %v380, 1
    %v1107 = vrot.slane %v224, 1
    %v1108 = vsel %vm486, %v1106, %v1107
    %v1109 = vrot.slane %v412, 1
    %v1110 = vsel %vm486, %v1107, %v1109
    %v1111 = vrot.slane %v396, 1
    %v1112 = vrot.slane %v272, 1
    %v1113 = vsel %vm486, %v1111, %v1112
    %v1114 = vrot.slane %v428, 1
    %v1115 = vsel %vm486, %v1112, %v1114
    %v1116 = vrot.slane %v380, 2
    %v1117 = vrot.slane %v224, 2
    %v1118 = vsel %vm629, %v1116, %v1117
    %v1119 = vrot.slane %v412, 2
    %v1120 = vsel %vm629, %v1117, %v1119
    %v1121 = vrot.slane %v396, 2
    %v1122 = vrot.slane %v272, 2
    %v1123 = vsel %vm629, %v1121, %v1122
    %v1124 = vrot.slane %v428, 2
    %v1125 = vsel %vm629, %v1122, %v1124
    %v1126 = vrot.slane %v380, 3
    %v1127 = vrot.slane %v224, 3
    %v1128 = vsel %vm772, %v1126, %v1127
    %v1129 = vrot.slane %v412, 3
    %v1130 = vsel %vm772, %v1127, %v1129
    %v1131 = vrot.slane %v396, 3
    %v1132 = vrot.slane %v272, 3
    %v1133 = vsel %vm772, %v1131, %v1132
    %v1134 = vrot.slane %v428, 3
    %v1135 = vsel %vm772, %v1132, %v1134
    %v1136 = vrot.slane %v380, 4
    %v1137 = vrot.slane %v224, 4
    %v1138 = vsel %vm915, %v1136, %v1137
    %v1139 = vrot.slane %v412, 4
    %v1140 = vsel %vm915, %v1137, %v1139
    %v1141 = vrot.slane %v396, 4
    %v1142 = vrot.slane %v272, 4
    %v1143 = vsel %vm915, %v1141, %v1142
    %v1144 = vrot.slane %v428, 4
    %v1145 = vsel %vm915, %v1142, %v1144
    %1207 = vrot.lane.b32.xlu0 %v488, 1
    %v1208 = vpop.permute.xlu0 %1207
    %1209 = vrot.lane.b32.xlu0 %v491, 1
    %v1210 = vpop.permute.xlu0 %1209
    %1211 = vrot.lane.b32.xlu0 %v493, 1
    %v1212 = vpop.permute.xlu0 %1211
    %1213 = vrot.lane.b32.xlu0 %v496, 1
    %v1214 = vpop.permute.xlu0 %1213
    %1215 = vrot.lane.b32.xlu0 %v498, 1
    %v1216 = vpop.permute.xlu0 %1215
    %1217 = vrot.lane.b32.xlu0 %v501, 1
    %v1218 = vpop.permute.xlu0 %1217
    %1219 = vrot.lane.b32.xlu0 %v503, 1
    %v1220 = vpop.permute.xlu0 %1219
    %1221 = vrot.lane.b32.xlu0 %v506, 1
    %v1222 = vpop.permute.xlu0 %1221
    %1223 = vrot.lane.b32.xlu0 %v508, 1
    %v1224 = vpop.permute.xlu0 %1223
    %1225 = vrot.lane.b32.xlu0 %v511, 1
    %v1226 = vpop.permute.xlu0 %1225
    %1227 = vrot.lane.b32.xlu0 %v513, 1
    %v1228 = vpop.permute.xlu0 %1227
    %1229 = vrot.lane.b32.xlu0 %v516, 1
    %v1230 = vpop.permute.xlu0 %1229
    %1231 = vrot.lane.b32.xlu0 %v518, 1
    %v1232 = vpop.permute.xlu0 %1231
    %1233 = vrot.lane.b32.xlu0 %v521, 1
    %v1234 = vpop.permute.xlu0 %1233
    %1235 = vrot.lane.b32.xlu0 %v523, 1
    %v1236 = vpop.permute.xlu0 %1235
    %1237 = vrot.lane.b32.xlu0 %v526, 1
    %v1238 = vpop.permute.xlu0 %1237
    %1239 = vrot.lane.b32.xlu0 %v528, 1
    %v1240 = vpop.permute.xlu0 %1239
    %1241 = vrot.lane.b32.xlu0 %v531, 1
    %v1242 = vpop.permute.xlu0 %1241
    %1243 = vrot.lane.b32.xlu0 %v533, 1
    %v1244 = vpop.permute.xlu0 %1243
    %1245 = vrot.lane.b32.xlu0 %v536, 1
    %v1246 = vpop.permute.xlu0 %1245
    %1247 = vrot.lane.b32.xlu0 %v538, 1
    %v1248 = vpop.permute.xlu0 %1247
    %1249 = vrot.lane.b32.xlu0 %v541, 1
    %v1250 = vpop.permute.xlu0 %1249
    %1251 = vrot.lane.b32.xlu0 %v543, 1
    %v1252 = vpop.permute.xlu0 %1251
    %1253 = vrot.lane.b32.xlu0 %v546, 1
    %v1254 = vpop.permute.xlu0 %1253
    %1255 = vrot.lane.b32.xlu0 %v548, 1
    %v1256 = vpop.permute.xlu0 %1255
    %1257 = vrot.lane.b32.xlu0 %v551, 1
    %v1258 = vpop.permute.xlu0 %1257
    %1259 = vrot.lane.b32.xlu0 %v553, 1
    %v1260 = vpop.permute.xlu0 %1259
    %1261 = vrot.lane.b32.xlu0 %v556, 1
    %v1262 = vpop.permute.xlu0 %1261
    %1263 = vrot.lane.b32.xlu0 %v558, 1
    %v1264 = vpop.permute.xlu0 %1263
    %1265 = vrot.lane.b32.xlu0 %v561, 1
    %v1266 = vpop.permute.xlu0 %1265
    %1267 = vrot.lane.b32.xlu0 %v563, 1
    %v1268 = vpop.permute.xlu0 %1267
    %1269 = vrot.lane.b32.xlu0 %v566, 1
    %v1270 = vpop.permute.xlu0 %1269
    %1271 = vrot.lane.b32.xlu0 %v568, 1
    %v1272 = vpop.permute.xlu0 %1271
    %1273 = vrot.lane.b32.xlu0 %v571, 1
    %v1274 = vpop.permute.xlu0 %1273
    %1275 = vrot.lane.b32.xlu0 %v573, 1
    %v1276 = vpop.permute.xlu0 %1275
    %1277 = vrot.lane.b32.xlu0 %v576, 1
    %v1278 = vpop.permute.xlu0 %1277
    %1279 = vrot.lane.b32.xlu0 %v578, 1
    %v1280 = vpop.permute.xlu0 %1279
    %1281 = vrot.lane.b32.xlu0 %v581, 1
    %v1282 = vpop.permute.xlu0 %1281
    %1283 = vrot.lane.b32.xlu0 %v583, 1
    %v1284 = vpop.permute.xlu0 %1283
    %1285 = vrot.lane.b32.xlu0 %v586, 1
    %v1286 = vpop.permute.xlu0 %1285
    %1287 = vrot.lane.b32.xlu0 %v588, 1
    %v1288 = vpop.permute.xlu0 %1287
    %1289 = vrot.lane.b32.xlu0 %v591, 1
    %v1290 = vpop.permute.xlu0 %1289
    %1291 = vrot.lane.b32.xlu0 %v593, 1
    %v1292 = vpop.permute.xlu0 %1291
    %1293 = vrot.lane.b32.xlu0 %v596, 1
    %v1294 = vpop.permute.xlu0 %1293
    %1295 = vrot.lane.b32.xlu0 %v598, 1
    %v1296 = vpop.permute.xlu0 %1295
    %1297 = vrot.lane.b32.xlu0 %v601, 1
    %v1298 = vpop.permute.xlu0 %1297
    %1299 = vrot.lane.b32.xlu0 %v603, 1
    %v1300 = vpop.permute.xlu0 %1299
    %1301 = vrot.lane.b32.xlu0 %v606, 1
    %v1302 = vpop.permute.xlu0 %1301
    %1303 = vrot.lane.b32.xlu0 %v608, 1
    %v1304 = vpop.permute.xlu0 %1303
    %1305 = vrot.lane.b32.xlu0 %v611, 1
    %v1306 = vpop.permute.xlu0 %1305
    %1307 = vrot.lane.b32.xlu0 %v613, 1
    %v1308 = vpop.permute.xlu0 %1307
    %1309 = vrot.lane.b32.xlu0 %v616, 1
    %v1310 = vpop.permute.xlu0 %1309
    %1311 = vrot.lane.b32.xlu0 %v618, 1
    %v1312 = vpop.permute.xlu0 %1311
    %1313 = vrot.lane.b32.xlu0 %v621, 1
    %v1314 = vpop.permute.xlu0 %1313
    %1315 = vrot.lane.b32.xlu0 %v623, 1
    %v1316 = vpop.permute.xlu0 %1315
    %1317 = vrot.lane.b32.xlu0 %v626, 1
    %v1318 = vpop.permute.xlu0 %1317
    %1319 = vrot.lane.b32.xlu0 %v628, 1
    %v1320 = vpop.permute.xlu0 %1319
    %1378 = vrot.lane.b32.xlu0 %v631, 2
    %v1379 = vpop.permute.xlu0 %1378
    %1380 = vrot.lane.b32.xlu0 %v634, 2
    %v1381 = vpop.permute.xlu0 %1380
    %1382 = vrot.lane.b32.xlu0 %v636, 2
    %v1383 = vpop.permute.xlu0 %1382
    %1384 = vrot.lane.b32.xlu0 %v639, 2
    %v1385 = vpop.permute.xlu0 %1384
    %1386 = vrot.lane.b32.xlu0 %v641, 2
    %v1387 = vpop.permute.xlu0 %1386
    %1388 = vrot.lane.b32.xlu0 %v644, 2
    %v1389 = vpop.permute.xlu0 %1388
    %1390 = vrot.lane.b32.xlu0 %v646, 2
    %v1391 = vpop.permute.xlu0 %1390
    %1392 = vrot.lane.b32.xlu0 %v649, 2
    %v1393 = vpop.permute.xlu0 %1392
    %1394 = vrot.lane.b32.xlu0 %v651, 2
    %v1395 = vpop.permute.xlu0 %1394
    %1396 = vrot.lane.b32.xlu0 %v654, 2
    %v1397 = vpop.permute.xlu0 %1396
    %1398 = vrot.lane.b32.xlu0 %v656, 2
    %v1399 = vpop.permute.xlu0 %1398
    %1400 = vrot.lane.b32.xlu0 %v659, 2
    %v1401 = vpop.permute.xlu0 %1400
    %1402 = vrot.lane.b32.xlu0 %v661, 2
    %v1403 = vpop.permute.xlu0 %1402
    %1404 = vrot.lane.b32.xlu0 %v664, 2
    %v1405 = vpop.permute.xlu0 %1404
    %1406 = vrot.lane.b32.xlu0 %v666, 2
    %v1407 = vpop.permute.xlu0 %1406
    %1408 = vrot.lane.b32.xlu0 %v669, 2
    %v1409 = vpop.permute.xlu0 %1408
    %1410 = vrot.lane.b32.xlu0 %v671, 2
    %v1411 = vpop.permute.xlu0 %1410
    %1412 = vrot.lane.b32.xlu0 %v674, 2
    %v1413 = vpop.permute.xlu0 %1412
    %1414 = vrot.lane.b32.xlu0 %v676, 2
    %v1415 = vpop.permute.xlu0 %1414
    %1416 = vrot.lane.b32.xlu0 %v679, 2
    %v1417 = vpop.permute.xlu0 %1416
    %1418 = vrot.lane.b32.xlu0 %v681, 2
    %v1419 = vpop.permute.xlu0 %1418
    %1420 = vrot.lane.b32.xlu0 %v684, 2
    %v1421 = vpop.permute.xlu0 %1420
    %1422 = vrot.lane.b32.xlu0 %v686, 2
    %v1423 = vpop.permute.xlu0 %1422
    %1424 = vrot.lane.b32.xlu0 %v689, 2
    %v1425 = vpop.permute.xlu0 %1424
    %1426 = vrot.lane.b32.xlu0 %v691, 2
    %v1427 = vpop.permute.xlu0 %1426
    %1428 = vrot.lane.b32.xlu0 %v694, 2
    %v1429 = vpop.permute.xlu0 %1428
    %1430 = vrot.lane.b32.xlu0 %v696, 2
    %v1431 = vpop.permute.xlu0 %1430
    %1432 = vrot.lane.b32.xlu0 %v699, 2
    %v1433 = vpop.permute.xlu0 %1432
    %1434 = vrot.lane.b32.xlu0 %v701, 2
    %v1435 = vpop.permute.xlu0 %1434
    %1436 = vrot.lane.b32.xlu0 %v704, 2
    %v1437 = vpop.permute.xlu0 %1436
    %1438 = vrot.lane.b32.xlu0 %v706, 2
    %v1439 = vpop.permute.xlu0 %1438
    %1440 = vrot.lane.b32.xlu0 %v709, 2
    %v1441 = vpop.permute.xlu0 %1440
    %1442 = vrot.lane.b32.xlu0 %v711, 2
    %v1443 = vpop.permute.xlu0 %1442
    %1444 = vrot.lane.b32.xlu0 %v714, 2
    %v1445 = vpop.permute.xlu0 %1444
    %1446 = vrot.lane.b32.xlu0 %v716, 2
    %v1447 = vpop.permute.xlu0 %1446
    %1448 = vrot.lane.b32.xlu0 %v719, 2
    %v1449 = vpop.permute.xlu0 %1448
    %1450 = vrot.lane.b32.xlu0 %v721, 2
    %v1451 = vpop.permute.xlu0 %1450
    %1452 = vrot.lane.b32.xlu0 %v724, 2
    %v1453 = vpop.permute.xlu0 %1452
    %1454 = vrot.lane.b32.xlu0 %v726, 2
    %v1455 = vpop.permute.xlu0 %1454
    %1456 = vrot.lane.b32.xlu0 %v729, 2
    %v1457 = vpop.permute.xlu0 %1456
    %1458 = vrot.lane.b32.xlu0 %v731, 2
    %v1459 = vpop.permute.xlu0 %1458
    %1460 = vrot.lane.b32.xlu0 %v734, 2
    %v1461 = vpop.permute.xlu0 %1460
    %1462 = vrot.lane.b32.xlu0 %v736, 2
    %v1463 = vpop.permute.xlu0 %1462
    %1464 = vrot.lane.b32.xlu0 %v739, 2
    %v1465 = vpop.permute.xlu0 %1464
    %1466 = vrot.lane.b32.xlu0 %v741, 2
    %v1467 = vpop.permute.xlu0 %1466
    %1468 = vrot.lane.b32.xlu0 %v744, 2
    %v1469 = vpop.permute.xlu0 %1468
    %1470 = vrot.lane.b32.xlu0 %v746, 2
    %v1471 = vpop.permute.xlu0 %1470
    %1472 = vrot.lane.b32.xlu0 %v749, 2
    %v1473 = vpop.permute.xlu0 %1472
    %1474 = vrot.lane.b32.xlu0 %v751, 2
    %v1475 = vpop.permute.xlu0 %1474
    %1476 = vrot.lane.b32.xlu0 %v754, 2
    %v1477 = vpop.permute.xlu0 %1476
    %1478 = vrot.lane.b32.xlu0 %v756, 2
    %v1479 = vpop.permute.xlu0 %1478
    %1480 = vrot.lane.b32.xlu0 %v759, 2
    %v1481 = vpop.permute.xlu0 %1480
    %1482 = vrot.lane.b32.xlu0 %v761, 2
    %v1483 = vpop.permute.xlu0 %1482
    %1484 = vrot.lane.b32.xlu0 %v764, 2
    %v1485 = vpop.permute.xlu0 %1484
    %1486 = vrot.lane.b32.xlu0 %v766, 2
    %v1487 = vpop.permute.xlu0 %1486
    %1488 = vrot.lane.b32.xlu0 %v769, 2
    %v1489 = vpop.permute.xlu0 %1488
    %1490 = vrot.lane.b32.xlu0 %v771, 2
    %v1491 = vpop.permute.xlu0 %1490
    %1549 = vrot.lane.b32.xlu0 %v774, 3
    %v1550 = vpop.permute.xlu0 %1549
    %1551 = vrot.lane.b32.xlu0 %v777, 3
    %v1552 = vpop.permute.xlu0 %1551
    %1553 = vrot.lane.b32.xlu0 %v779, 3
    %v1554 = vpop.permute.xlu0 %1553
    %1555 = vrot.lane.b32.xlu0 %v782, 3
    %v1556 = vpop.permute.xlu0 %1555
    %1557 = vrot.lane.b32.xlu0 %v784, 3
    %v1558 = vpop.permute.xlu0 %1557
    %1559 = vrot.lane.b32.xlu0 %v787, 3
    %v1560 = vpop.permute.xlu0 %1559
    %1561 = vrot.lane.b32.xlu0 %v789, 3
    %v1562 = vpop.permute.xlu0 %1561
    %1563 = vrot.lane.b32.xlu0 %v792, 3
    %v1564 = vpop.permute.xlu0 %1563
    %1565 = vrot.lane.b32.xlu0 %v794, 3
    %v1566 = vpop.permute.xlu0 %1565
    %1567 = vrot.lane.b32.xlu0 %v797, 3
    %v1568 = vpop.permute.xlu0 %1567
    %1569 = vrot.lane.b32.xlu0 %v799, 3
    %v1570 = vpop.permute.xlu0 %1569
    %1571 = vrot.lane.b32.xlu0 %v802, 3
    %v1572 = vpop.permute.xlu0 %1571
    %1573 = vrot.lane.b32.xlu0 %v804, 3
    %v1574 = vpop.permute.xlu0 %1573
    %1575 = vrot.lane.b32.xlu0 %v807, 3
    %v1576 = vpop.permute.xlu0 %1575
    %1577 = vrot.lane.b32.xlu0 %v809, 3
    %v1578 = vpop.permute.xlu0 %1577
    %1579 = vrot.lane.b32.xlu0 %v812, 3
    %v1580 = vpop.permute.xlu0 %1579
    %1581 = vrot.lane.b32.xlu0 %v814, 3
    %v1582 = vpop.permute.xlu0 %1581
    %1583 = vrot.lane.b32.xlu0 %v817, 3
    %v1584 = vpop.permute.xlu0 %1583
    %1585 = vrot.lane.b32.xlu0 %v819, 3
    %v1586 = vpop.permute.xlu0 %1585
    %1587 = vrot.lane.b32.xlu0 %v822, 3
    %v1588 = vpop.permute.xlu0 %1587
    %1589 = vrot.lane.b32.xlu0 %v824, 3
    %v1590 = vpop.permute.xlu0 %1589
    %1591 = vrot.lane.b32.xlu0 %v827, 3
    %v1592 = vpop.permute.xlu0 %1591
    %1593 = vrot.lane.b32.xlu0 %v829, 3
    %v1594 = vpop.permute.xlu0 %1593
    %1595 = vrot.lane.b32.xlu0 %v832, 3
    %v1596 = vpop.permute.xlu0 %1595
    %1597 = vrot.lane.b32.xlu0 %v834, 3
    %v1598 = vpop.permute.xlu0 %1597
    %1599 = vrot.lane.b32.xlu0 %v837, 3
    %v1600 = vpop.permute.xlu0 %1599
    %1601 = vrot.lane.b32.xlu0 %v839, 3
    %v1602 = vpop.permute.xlu0 %1601
    %1603 = vrot.lane.b32.xlu0 %v842, 3
    %v1604 = vpop.permute.xlu0 %1603
    %1605 = vrot.lane.b32.xlu0 %v844, 3
    %v1606 = vpop.permute.xlu0 %1605
    %1607 = vrot.lane.b32.xlu0 %v847, 3
    %v1608 = vpop.permute.xlu0 %1607
    %1609 = vrot.lane.b32.xlu0 %v849, 3
    %v1610 = vpop.permute.xlu0 %1609
    %1611 = vrot.lane.b32.xlu0 %v852, 3
    %v1612 = vpop.permute.xlu0 %1611
    %1613 = vrot.lane.b32.xlu0 %v854, 3
    %v1614 = vpop.permute.xlu0 %1613
    %1615 = vrot.lane.b32.xlu0 %v857, 3
    %v1616 = vpop.permute.xlu0 %1615
    %1617 = vrot.lane.b32.xlu0 %v859, 3
    %v1618 = vpop.permute.xlu0 %1617
    %1619 = vrot.lane.b32.xlu0 %v862, 3
    %v1620 = vpop.permute.xlu0 %1619
    %1621 = vrot.lane.b32.xlu0 %v864, 3
    %v1622 = vpop.permute.xlu0 %1621
    %1623 = vrot.lane.b32.xlu0 %v867, 3
    %v1624 = vpop.permute.xlu0 %1623
    %1625 = vrot.lane.b32.xlu0 %v869, 3
    %v1626 = vpop.permute.xlu0 %1625
    %1627 = vrot.lane.b32.xlu0 %v872, 3
    %v1628 = vpop.permute.xlu0 %1627
    %1629 = vrot.lane.b32.xlu0 %v874, 3
    %v1630 = vpop.permute.xlu0 %1629
    %1631 = vrot.lane.b32.xlu0 %v877, 3
    %v1632 = vpop.permute.xlu0 %1631
    %1633 = vrot.lane.b32.xlu0 %v879, 3
    %v1634 = vpop.permute.xlu0 %1633
    %1635 = vrot.lane.b32.xlu0 %v882, 3
    %v1636 = vpop.permute.xlu0 %1635
    %1637 = vrot.lane.b32.xlu0 %v884, 3
    %v1638 = vpop.permute.xlu0 %1637
    %1639 = vrot.lane.b32.xlu0 %v887, 3
    %v1640 = vpop.permute.xlu0 %1639
    %1641 = vrot.lane.b32.xlu0 %v889, 3
    %v1642 = vpop.permute.xlu0 %1641
    %1643 = vrot.lane.b32.xlu0 %v892, 3
    %v1644 = vpop.permute.xlu0 %1643
    %1645 = vrot.lane.b32.xlu0 %v894, 3
    %v1646 = vpop.permute.xlu0 %1645
    %1647 = vrot.lane.b32.xlu0 %v897, 3
    %v1648 = vpop.permute.xlu0 %1647
    %1649 = vrot.lane.b32.xlu0 %v899, 3
    %v1650 = vpop.permute.xlu0 %1649
    %1651 = vrot.lane.b32.xlu0 %v902, 3
    %v1652 = vpop.permute.xlu0 %1651
    %1653 = vrot.lane.b32.xlu0 %v904, 3
    %v1654 = vpop.permute.xlu0 %1653
    %1655 = vrot.lane.b32.xlu0 %v907, 3
    %v1656 = vpop.permute.xlu0 %1655
    %1657 = vrot.lane.b32.xlu0 %v909, 3
    %v1658 = vpop.permute.xlu0 %1657
    %1659 = vrot.lane.b32.xlu0 %v912, 3
    %v1660 = vpop.permute.xlu0 %1659
    %1661 = vrot.lane.b32.xlu0 %v914, 3
    %v1662 = vpop.permute.xlu0 %1661
    %1720 = vrot.lane.b32.xlu0 %v917, 4
    %v1721 = vpop.permute.xlu0 %1720
    %1722 = vrot.lane.b32.xlu0 %v920, 4
    %v1723 = vpop.permute.xlu0 %1722
    %1724 = vrot.lane.b32.xlu0 %v922, 4
    %v1725 = vpop.permute.xlu0 %1724
    %1726 = vrot.lane.b32.xlu0 %v925, 4
    %v1727 = vpop.permute.xlu0 %1726
    %1728 = vrot.lane.b32.xlu0 %v927, 4
    %v1729 = vpop.permute.xlu0 %1728
    %1730 = vrot.lane.b32.xlu0 %v930, 4
    %v1731 = vpop.permute.xlu0 %1730
    %1732 = vrot.lane.b32.xlu0 %v932, 4
    %v1733 = vpop.permute.xlu0 %1732
    %1734 = vrot.lane.b32.xlu0 %v935, 4
    %v1735 = vpop.permute.xlu0 %1734
    %1736 = vrot.lane.b32.xlu0 %v937, 4
    %v1737 = vpop.permute.xlu0 %1736
    %1738 = vrot.lane.b32.xlu0 %v940, 4
    %v1739 = vpop.permute.xlu0 %1738
    %1740 = vrot.lane.b32.xlu0 %v942, 4
    %v1741 = vpop.permute.xlu0 %1740
    %1742 = vrot.lane.b32.xlu0 %v945, 4
    %v1743 = vpop.permute.xlu0 %1742
    %1744 = vrot.lane.b32.xlu0 %v947, 4
    %v1745 = vpop.permute.xlu0 %1744
    %1746 = vrot.lane.b32.xlu0 %v950, 4
    %v1747 = vpop.permute.xlu0 %1746
    %1748 = vrot.lane.b32.xlu0 %v952, 4
    %v1749 = vpop.permute.xlu0 %1748
    %1750 = vrot.lane.b32.xlu0 %v955, 4
    %v1751 = vpop.permute.xlu0 %1750
    %1752 = vrot.lane.b32.xlu0 %v957, 4
    %v1753 = vpop.permute.xlu0 %1752
    %1754 = vrot.lane.b32.xlu0 %v960, 4
    %v1755 = vpop.permute.xlu0 %1754
    %1756 = vrot.lane.b32.xlu0 %v962, 4
    %v1757 = vpop.permute.xlu0 %1756
    %1758 = vrot.lane.b32.xlu0 %v965, 4
    %v1759 = vpop.permute.xlu0 %1758
    %1760 = vrot.lane.b32.xlu0 %v967, 4
    %v1761 = vpop.permute.xlu0 %1760
    %1762 = vrot.lane.b32.xlu0 %v970, 4
    %v1763 = vpop.permute.xlu0 %1762
    %1764 = vrot.lane.b32.xlu0 %v972, 4
    %v1765 = vpop.permute.xlu0 %1764
    %1766 = vrot.lane.b32.xlu0 %v975, 4
    %v1767 = vpop.permute.xlu0 %1766
    %1768 = vrot.lane.b32.xlu0 %v977, 4
    %v1769 = vpop.permute.xlu0 %1768
    %1770 = vrot.lane.b32.xlu0 %v980, 4
    %v1771 = vpop.permute.xlu0 %1770
    %1772 = vrot.lane.b32.xlu0 %v982, 4
    %v1773 = vpop.permute.xlu0 %1772
    %1774 = vrot.lane.b32.xlu0 %v985, 4
    %v1775 = vpop.permute.xlu0 %1774
    %1776 = vrot.lane.b32.xlu0 %v987, 4
    %v1777 = vpop.permute.xlu0 %1776
    %1778 = vrot.lane.b32.xlu0 %v990, 4
    %v1779 = vpop.permute.xlu0 %1778
    %1780 = vrot.lane.b32.xlu0 %v992, 4
    %v1781 = vpop.permute.xlu0 %1780
    %1782 = vrot.lane.b32.xlu0 %v995, 4
    %v1783 = vpop.permute.xlu0 %1782
    %1784 = vrot.lane.b32.xlu0 %v997, 4
    %v1785 = vpop.permute.xlu0 %1784
    %1786 = vrot.lane.b32.xlu0 %v1000, 4
    %v1787 = vpop.permute.xlu0 %1786
    %1788 = vrot.lane.b32.xlu0 %v1002, 4
    %v1789 = vpop.permute.xlu0 %1788
    %1790 = vrot.lane.b32.xlu0 %v1005, 4
    %v1791 = vpop.permute.xlu0 %1790
    %1792 = vrot.lane.b32.xlu0 %v1007, 4
    %v1793 = vpop.permute.xlu0 %1792
    %1794 = vrot.lane.b32.xlu0 %v1010, 4
    %v1795 = vpop.permute.xlu0 %1794
    %1796 = vrot.lane.b32.xlu0 %v1012, 4
    %v1797 = vpop.permute.xlu0 %1796
    %1798 = vrot.lane.b32.xlu0 %v1015, 4
    %v1799 = vpop.permute.xlu0 %1798
    %1800 = vrot.lane.b32.xlu0 %v1017, 4
    %v1801 = vpop.permute.xlu0 %1800
    %1802 = vrot.lane.b32.xlu0 %v1020, 4
    %v1803 = vpop.permute.xlu0 %1802
    %1804 = vrot.lane.b32.xlu0 %v1022, 4
    %v1805 = vpop.permute.xlu0 %1804
    %1806 = vrot.lane.b32.xlu0 %v1025, 4
    %v1807 = vpop.permute.xlu0 %1806
    %1808 = vrot.lane.b32.xlu0 %v1027, 4
    %v1809 = vpop.permute.xlu0 %1808
    %1810 = vrot.lane.b32.xlu0 %v1030, 4
    %v1811 = vpop.permute.xlu0 %1810
    %1812 = vrot.lane.b32.xlu0 %v1032, 4
    %v1813 = vpop.permute.xlu0 %1812
    %1814 = vrot.lane.b32.xlu0 %v1035, 4
    %v1815 = vpop.permute.xlu0 %1814
    %1816 = vrot.lane.b32.xlu0 %v1037, 4
    %v1817 = vpop.permute.xlu0 %1816
    %1818 = vrot.lane.b32.xlu0 %v1040, 4
    %v1819 = vpop.permute.xlu0 %1818
    %1820 = vrot.lane.b32.xlu0 %v1042, 4
    %v1821 = vpop.permute.xlu0 %1820
    %1822 = vrot.lane.b32.xlu0 %v1045, 4
    %v1823 = vpop.permute.xlu0 %1822
    %1824 = vrot.lane.b32.xlu0 %v1047, 4
    %v1825 = vpop.permute.xlu0 %1824
    %1826 = vrot.lane.b32.xlu0 %v1050, 4
    %v1827 = vpop.permute.xlu0 %1826
    %1828 = vrot.lane.b32.xlu0 %v1052, 4
    %v1829 = vpop.permute.xlu0 %1828
    %1830 = vrot.lane.b32.xlu0 %v1055, 4
    %v1831 = vpop.permute.xlu0 %1830
    %1832 = vrot.lane.b32.xlu0 %v1057, 4
    %v1833 = vpop.permute.xlu0 %1832
    %1891 = vrot.lane.b32.xlu0 0.0, 5
    %v1892 = vpop.permute.xlu0 %1891
    %1893 = vrot.lane.b32.xlu0 %v365, 5
    %v1894 = vpop.permute.xlu0 %1893
    %1895 = vrot.lane.b32.xlu0 %v179, 5
    %v1896 = vpop.permute.xlu0 %1895
    %1897 = vrot.lane.b32.xlu0 %v366, 5
    %v1898 = vpop.permute.xlu0 %1897
    %1899 = vrot.lane.b32.xlu0 %v182, 5
    %v1900 = vpop.permute.xlu0 %1899
    %1901 = vrot.lane.b32.xlu0 %v367, 5
    %v1902 = vpop.permute.xlu0 %1901
    %1903 = vrot.lane.b32.xlu0 %v185, 5
    %v1904 = vpop.permute.xlu0 %1903
    %1905 = vrot.lane.b32.xlu0 %v368, 5
    %v1906 = vpop.permute.xlu0 %1905
    %1907 = vrot.lane.b32.xlu0 %v188, 5
    %v1908 = vpop.permute.xlu0 %1907
    %1909 = vrot.lane.b32.xlu0 %v369, 5
    %v1910 = vpop.permute.xlu0 %1909
    %1911 = vrot.lane.b32.xlu0 %v191, 5
    %v1912 = vpop.permute.xlu0 %1911
    %1913 = vrot.lane.b32.xlu0 %v370, 5
    %v1914 = vpop.permute.xlu0 %1913
    %1915 = vrot.lane.b32.xlu0 %v194, 5
    %v1916 = vpop.permute.xlu0 %1915
    %1917 = vrot.lane.b32.xlu0 %v371, 5
    %v1918 = vpop.permute.xlu0 %1917
    %1919 = vrot.lane.b32.xlu0 %v197, 5
    %v1920 = vpop.permute.xlu0 %1919
    %1921 = vrot.lane.b32.xlu0 %v372, 5
    %v1922 = vpop.permute.xlu0 %1921
    %1923 = vrot.lane.b32.xlu0 %v200, 5
    %v1924 = vpop.permute.xlu0 %1923
    %1925 = vrot.lane.b32.xlu0 %v373, 5
    %v1926 = vpop.permute.xlu0 %1925
    %1927 = vrot.lane.b32.xlu0 %v203, 5
    %v1928 = vpop.permute.xlu0 %1927
    %1929 = vrot.lane.b32.xlu0 %v374, 5
    %v1930 = vpop.permute.xlu0 %1929
    %1931 = vrot.lane.b32.xlu0 %v206, 5
    %v1932 = vpop.permute.xlu0 %1931
    %1933 = vrot.lane.b32.xlu0 %v375, 5
    %v1934 = vpop.permute.xlu0 %1933
    %1935 = vrot.lane.b32.xlu0 %v209, 5
    %v1936 = vpop.permute.xlu0 %1935
    %1937 = vrot.lane.b32.xlu0 %v376, 5
    %v1938 = vpop.permute.xlu0 %1937
    %1939 = vrot.lane.b32.xlu0 %v212, 5
    %v1940 = vpop.permute.xlu0 %1939
    %1941 = vrot.lane.b32.xlu0 %v377, 5
    %v1942 = vpop.permute.xlu0 %1941
    %1943 = vrot.lane.b32.xlu0 %v215, 5
    %v1944 = vpop.permute.xlu0 %1943
    %1945 = vrot.lane.b32.xlu0 %v378, 5
    %v1946 = vpop.permute.xlu0 %1945
    %1947 = vrot.lane.b32.xlu0 %v218, 5
    %v1948 = vpop.permute.xlu0 %1947
    %1949 = vrot.lane.b32.xlu0 %v379, 5
    %v1950 = vpop.permute.xlu0 %1949
    %1951 = vrot.lane.b32.xlu0 %v221, 5
    %v1952 = vpop.permute.xlu0 %1951
    %1953 = vrot.lane.b32.xlu0 %v381, 5
    %v1954 = vpop.permute.xlu0 %1953
    %1955 = vrot.lane.b32.xlu0 %v227, 5
    %v1956 = vpop.permute.xlu0 %1955
    %1957 = vrot.lane.b32.xlu0 %v382, 5
    %v1958 = vpop.permute.xlu0 %1957
    %1959 = vrot.lane.b32.xlu0 %v230, 5
    %v1960 = vpop.permute.xlu0 %1959
    %1961 = vrot.lane.b32.xlu0 %v383, 5
    %v1962 = vpop.permute.xlu0 %1961
    %1963 = vrot.lane.b32.xlu0 %v233, 5
    %v1964 = vpop.permute.xlu0 %1963
    %1965 = vrot.lane.b32.xlu0 %v384, 5
    %v1966 = vpop.permute.xlu0 %1965
    %1967 = vrot.lane.b32.xlu0 %v236, 5
    %v1968 = vpop.permute.xlu0 %1967
    %1969 = vrot.lane.b32.xlu0 %v385, 5
    %v1970 = vpop.permute.xlu0 %1969
    %1971 = vrot.lane.b32.xlu0 %v239, 5
    %v1972 = vpop.permute.xlu0 %1971
    %1973 = vrot.lane.b32.xlu0 %v386, 5
    %v1974 = vpop.permute.xlu0 %1973
    %1975 = vrot.lane.b32.xlu0 %v242, 5
    %v1976 = vpop.permute.xlu0 %1975
    %1977 = vrot.lane.b32.xlu0 %v387, 5
    %v1978 = vpop.permute.xlu0 %1977
    %1979 = vrot.lane.b32.xlu0 %v245, 5
    %v1980 = vpop.permute.xlu0 %1979
    %1981 = vrot.lane.b32.xlu0 %v388, 5
    %v1982 = vpop.permute.xlu0 %1981
    %1983 = vrot.lane.b32.xlu0 %v248, 5
    %v1984 = vpop.permute.xlu0 %1983
    %1985 = vrot.lane.b32.xlu0 %v389, 5
    %v1986 = vpop.permute.xlu0 %1985
    %1987 = vrot.lane.b32.xlu0 %v251, 5
    %v1988 = vpop.permute.xlu0 %1987
    %1989 = vrot.lane.b32.xlu0 %v390, 5
    %v1990 = vpop.permute.xlu0 %1989
    %1991 = vrot.lane.b32.xlu0 %v254, 5
    %v1992 = vpop.permute.xlu0 %1991
    %1993 = vrot.lane.b32.xlu0 %v391, 5
    %v1994 = vpop.permute.xlu0 %1993
    %1995 = vrot.lane.b32.xlu0 %v257, 5
    %v1996 = vpop.permute.xlu0 %1995
    %1997 = vrot.lane.b32.xlu0 %v392, 5
    %v1998 = vpop.permute.xlu0 %1997
    %1999 = vrot.lane.b32.xlu0 %v260, 5
    %v2000 = vpop.permute.xlu0 %1999
    %2001 = vrot.lane.b32.xlu0 %v393, 5
    %v2002 = vpop.permute.xlu0 %2001
    %2003 = vrot.lane.b32.xlu0 %v263, 5
    %v2004 = vpop.permute.xlu0 %2003
    %2005 = vrot.lane.b32.xlu0 %v394, 5
    %v2006 = vpop.permute.xlu0 %2005
    %2007 = vrot.lane.b32.xlu0 %v266, 5
    %v2008 = vpop.permute.xlu0 %2007
    %2009 = vrot.lane.b32.xlu0 %v395, 5
    %v2010 = vpop.permute.xlu0 %2009
    %2011 = vrot.lane.b32.xlu0 %v269, 5
    %v2012 = vpop.permute.xlu0 %2011
    %2074 = vrot.lane.b32.xlu0 %v488, 6
    %v2075 = vpop.permute.xlu0 %2074
    %2076 = vrot.lane.b32.xlu0 %v491, 6
    %v2077 = vpop.permute.xlu0 %2076
    %2078 = vrot.lane.b32.xlu0 %v493, 6
    %v2079 = vpop.permute.xlu0 %2078
    %2080 = vrot.lane.b32.xlu0 %v496, 6
    %v2081 = vpop.permute.xlu0 %2080
    %2082 = vrot.lane.b32.xlu0 %v498, 6
    %v2083 = vpop.permute.xlu0 %2082
    %2084 = vrot.lane.b32.xlu0 %v501, 6
    %v2085 = vpop.permute.xlu0 %2084
    %2086 = vrot.lane.b32.xlu0 %v503, 6
    %v2087 = vpop.permute.xlu0 %2086
    %2088 = vrot.lane.b32.xlu0 %v506, 6
    %v2089 = vpop.permute.xlu0 %2088
    %2090 = vrot.lane.b32.xlu0 %v508, 6
    %v2091 = vpop.permute.xlu0 %2090
    %2092 = vrot.lane.b32.xlu0 %v511, 6
    %v2093 = vpop.permute.xlu0 %2092
    %2094 = vrot.lane.b32.xlu0 %v513, 6
    %v2095 = vpop.permute.xlu0 %2094
    %2096 = vrot.lane.b32.xlu0 %v516, 6
    %v2097 = vpop.permute.xlu0 %2096
    %2098 = vrot.lane.b32.xlu0 %v518, 6
    %v2099 = vpop.permute.xlu0 %2098
    %2100 = vrot.lane.b32.xlu0 %v521, 6
    %v2101 = vpop.permute.xlu0 %2100
    %2102 = vrot.lane.b32.xlu0 %v523, 6
    %v2103 = vpop.permute.xlu0 %2102
    %2104 = vrot.lane.b32.xlu0 %v526, 6
    %v2105 = vpop.permute.xlu0 %2104
    %2106 = vrot.lane.b32.xlu0 %v528, 6
    %v2107 = vpop.permute.xlu0 %2106
    %2108 = vrot.lane.b32.xlu0 %v531, 6
    %v2109 = vpop.permute.xlu0 %2108
    %2110 = vrot.lane.b32.xlu0 %v533, 6
    %v2111 = vpop.permute.xlu0 %2110
    %2112 = vrot.lane.b32.xlu0 %v536, 6
    %v2113 = vpop.permute.xlu0 %2112
    %2114 = vrot.lane.b32.xlu0 %v538, 6
    %v2115 = vpop.permute.xlu0 %2114
    %2116 = vrot.lane.b32.xlu0 %v541, 6
    %v2117 = vpop.permute.xlu0 %2116
    %2118 = vrot.lane.b32.xlu0 %v543, 6
    %v2119 = vpop.permute.xlu0 %2118
    %2120 = vrot.lane.b32.xlu0 %v546, 6
    %v2121 = vpop.permute.xlu0 %2120
    %2122 = vrot.lane.b32.xlu0 %v548, 6
    %v2123 = vpop.permute.xlu0 %2122
    %2124 = vrot.lane.b32.xlu0 %v551, 6
    %v2125 = vpop.permute.xlu0 %2124
    %2126 = vrot.lane.b32.xlu0 %v553, 6
    %v2127 = vpop.permute.xlu0 %2126
    %2128 = vrot.lane.b32.xlu0 %v556, 6
    %v2129 = vpop.permute.xlu0 %2128
    %2130 = vrot.lane.b32.xlu0 %v558, 6
    %v2131 = vpop.permute.xlu0 %2130
    %2132 = vrot.lane.b32.xlu0 %v1064, 6
    %v2133 = vpop.permute.xlu0 %2132
    %2134 = vrot.lane.b32.xlu0 %v1066, 6
    %v2135 = vpop.permute.xlu0 %2134
    %2136 = vrot.lane.b32.xlu0 %v561, 6
    %v2137 = vpop.permute.xlu0 %2136
    %2138 = vrot.lane.b32.xlu0 %v563, 6
    %v2139 = vpop.permute.xlu0 %2138
    %2140 = vrot.lane.b32.xlu0 %v566, 6
    %v2141 = vpop.permute.xlu0 %2140
    %2142 = vrot.lane.b32.xlu0 %v568, 6
    %v2143 = vpop.permute.xlu0 %2142
    %2144 = vrot.lane.b32.xlu0 %v571, 6
    %v2145 = vpop.permute.xlu0 %2144
    %2146 = vrot.lane.b32.xlu0 %v573, 6
    %v2147 = vpop.permute.xlu0 %2146
    %2148 = vrot.lane.b32.xlu0 %v576, 6
    %v2149 = vpop.permute.xlu0 %2148
    %2150 = vrot.lane.b32.xlu0 %v578, 6
    %v2151 = vpop.permute.xlu0 %2150
    %2152 = vrot.lane.b32.xlu0 %v581, 6
    %v2153 = vpop.permute.xlu0 %2152
    %2154 = vrot.lane.b32.xlu0 %v583, 6
    %v2155 = vpop.permute.xlu0 %2154
    %2156 = vrot.lane.b32.xlu0 %v586, 6
    %v2157 = vpop.permute.xlu0 %2156
    %2158 = vrot.lane.b32.xlu0 %v588, 6
    %v2159 = vpop.permute.xlu0 %2158
    %2160 = vrot.lane.b32.xlu0 %v591, 6
    %v2161 = vpop.permute.xlu0 %2160
    %2162 = vrot.lane.b32.xlu0 %v593, 6
    %v2163 = vpop.permute.xlu0 %2162
    %2164 = vrot.lane.b32.xlu0 %v596, 6
    %v2165 = vpop.permute.xlu0 %2164
    %2166 = vrot.lane.b32.xlu0 %v598, 6
    %v2167 = vpop.permute.xlu0 %2166
    %2168 = vrot.lane.b32.xlu0 %v601, 6
    %v2169 = vpop.permute.xlu0 %2168
    %2170 = vrot.lane.b32.xlu0 %v603, 6
    %v2171 = vpop.permute.xlu0 %2170
    %2172 = vrot.lane.b32.xlu0 %v606, 6
    %v2173 = vpop.permute.xlu0 %2172
    %2174 = vrot.lane.b32.xlu0 %v608, 6
    %v2175 = vpop.permute.xlu0 %2174
    %2176 = vrot.lane.b32.xlu0 %v611, 6
    %v2177 = vpop.permute.xlu0 %2176
    %2178 = vrot.lane.b32.xlu0 %v613, 6
    %v2179 = vpop.permute.xlu0 %2178
    %2180 = vrot.lane.b32.xlu0 %v616, 6
    %v2181 = vpop.permute.xlu0 %2180
    %2182 = vrot.lane.b32.xlu0 %v618, 6
    %v2183 = vpop.permute.xlu0 %2182
    %2184 = vrot.lane.b32.xlu0 %v621, 6
    %v2185 = vpop.permute.xlu0 %2184
    %2186 = vrot.lane.b32.xlu0 %v623, 6
    %v2187 = vpop.permute.xlu0 %2186
    %2188 = vrot.lane.b32.xlu0 %v626, 6
    %v2189 = vpop.permute.xlu0 %2188
    %2190 = vrot.lane.b32.xlu0 %v628, 6
    %v2191 = vpop.permute.xlu0 %2190
    %2192 = vrot.lane.b32.xlu0 %v1069, 6
    %v2193 = vpop.permute.xlu0 %2192
    %2194 = vrot.lane.b32.xlu0 %v1071, 6
    %v2195 = vpop.permute.xlu0 %2194
    %2257 = vrot.lane.b32.xlu0 %v631, 7
    %v2258 = vpop.permute.xlu0 %2257
    %2259 = vrot.lane.b32.xlu0 %v634, 7
    %v2260 = vpop.permute.xlu0 %2259
    %2261 = vrot.lane.b32.xlu0 %v636, 7
    %v2262 = vpop.permute.xlu0 %2261
    %2263 = vrot.lane.b32.xlu0 %v639, 7
    %v2264 = vpop.permute.xlu0 %2263
    %2265 = vrot.lane.b32.xlu0 %v641, 7
    %v2266 = vpop.permute.xlu0 %2265
    %2267 = vrot.lane.b32.xlu0 %v644, 7
    %v2268 = vpop.permute.xlu0 %2267
    %2269 = vrot.lane.b32.xlu0 %v646, 7
    %v2270 = vpop.permute.xlu0 %2269
    %2271 = vrot.lane.b32.xlu0 %v649, 7
    %v2272 = vpop.permute.xlu0 %2271
    %2273 = vrot.lane.b32.xlu0 %v651, 7
    %v2274 = vpop.permute.xlu0 %2273
    %2275 = vrot.lane.b32.xlu0 %v654, 7
    %v2276 = vpop.permute.xlu0 %2275
    %2277 = vrot.lane.b32.xlu0 %v656, 7
    %v2278 = vpop.permute.xlu0 %2277
    %2279 = vrot.lane.b32.xlu0 %v659, 7
    %v2280 = vpop.permute.xlu0 %2279
    %2281 = vrot.lane.b32.xlu0 %v661, 7
    %v2282 = vpop.permute.xlu0 %2281
    %2283 = vrot.lane.b32.xlu0 %v664, 7
    %v2284 = vpop.permute.xlu0 %2283
    %2285 = vrot.lane.b32.xlu0 %v666, 7
    %v2286 = vpop.permute.xlu0 %2285
    %2287 = vrot.lane.b32.xlu0 %v669, 7
    %v2288 = vpop.permute.xlu0 %2287
    %2289 = vrot.lane.b32.xlu0 %v671, 7
    %v2290 = vpop.permute.xlu0 %2289
    %2291 = vrot.lane.b32.xlu0 %v674, 7
    %v2292 = vpop.permute.xlu0 %2291
    %2293 = vrot.lane.b32.xlu0 %v676, 7
    %v2294 = vpop.permute.xlu0 %2293
    %2295 = vrot.lane.b32.xlu0 %v679, 7
    %v2296 = vpop.permute.xlu0 %2295
    %2297 = vrot.lane.b32.xlu0 %v681, 7
    %v2298 = vpop.permute.xlu0 %2297
    %2299 = vrot.lane.b32.xlu0 %v684, 7
    %v2300 = vpop.permute.xlu0 %2299
    %2301 = vrot.lane.b32.xlu0 %v686, 7
    %v2302 = vpop.permute.xlu0 %2301
    %2303 = vrot.lane.b32.xlu0 %v689, 7
    %v2304 = vpop.permute.xlu0 %2303
    %2305 = vrot.lane.b32.xlu0 %v691, 7
    %v2306 = vpop.permute.xlu0 %2305
    %2307 = vrot.lane.b32.xlu0 %v694, 7
    %v2308 = vpop.permute.xlu0 %2307
    %2309 = vrot.lane.b32.xlu0 %v696, 7
    %v2310 = vpop.permute.xlu0 %2309
    %2311 = vrot.lane.b32.xlu0 %v699, 7
    %v2312 = vpop.permute.xlu0 %2311
    %2313 = vrot.lane.b32.xlu0 %v701, 7
    %v2314 = vpop.permute.xlu0 %2313
    %2315 = vrot.lane.b32.xlu0 %v1074, 7
    %v2316 = vpop.permute.xlu0 %2315
    %2317 = vrot.lane.b32.xlu0 %v1076, 7
    %v2318 = vpop.permute.xlu0 %2317
    %2319 = vrot.lane.b32.xlu0 %v704, 7
    %v2320 = vpop.permute.xlu0 %2319
    %2321 = vrot.lane.b32.xlu0 %v706, 7
    %v2322 = vpop.permute.xlu0 %2321
    %2323 = vrot.lane.b32.xlu0 %v709, 7
    %v2324 = vpop.permute.xlu0 %2323
    %2325 = vrot.lane.b32.xlu0 %v711, 7
    %v2326 = vpop.permute.xlu0 %2325
    %2327 = vrot.lane.b32.xlu0 %v714, 7
    %v2328 = vpop.permute.xlu0 %2327
    %2329 = vrot.lane.b32.xlu0 %v716, 7
    %v2330 = vpop.permute.xlu0 %2329
    %2331 = vrot.lane.b32.xlu0 %v719, 7
    %v2332 = vpop.permute.xlu0 %2331
    %2333 = vrot.lane.b32.xlu0 %v721, 7
    %v2334 = vpop.permute.xlu0 %2333
    %2335 = vrot.lane.b32.xlu0 %v724, 7
    %v2336 = vpop.permute.xlu0 %2335
    %2337 = vrot.lane.b32.xlu0 %v726, 7
    %v2338 = vpop.permute.xlu0 %2337
    %2339 = vrot.lane.b32.xlu0 %v729, 7
    %v2340 = vpop.permute.xlu0 %2339
    %2341 = vrot.lane.b32.xlu0 %v731, 7
    %v2342 = vpop.permute.xlu0 %2341
    %2343 = vrot.lane.b32.xlu0 %v734, 7
    %v2344 = vpop.permute.xlu0 %2343
    %2345 = vrot.lane.b32.xlu0 %v736, 7
    %v2346 = vpop.permute.xlu0 %2345
    %2347 = vrot.lane.b32.xlu0 %v739, 7
    %v2348 = vpop.permute.xlu0 %2347
    %2349 = vrot.lane.b32.xlu0 %v741, 7
    %v2350 = vpop.permute.xlu0 %2349
    %2351 = vrot.lane.b32.xlu0 %v744, 7
    %v2352 = vpop.permute.xlu0 %2351
    %2353 = vrot.lane.b32.xlu0 %v746, 7
    %v2354 = vpop.permute.xlu0 %2353
    %2355 = vrot.lane.b32.xlu0 %v749, 7
    %v2356 = vpop.permute.xlu0 %2355
    %2357 = vrot.lane.b32.xlu0 %v751, 7
    %v2358 = vpop.permute.xlu0 %2357
    %2359 = vrot.lane.b32.xlu0 %v754, 7
    %v2360 = vpop.permute.xlu0 %2359
    %2361 = vrot.lane.b32.xlu0 %v756, 7
    %v2362 = vpop.permute.xlu0 %2361
    %2363 = vrot.lane.b32.xlu0 %v759, 7
    %v2364 = vpop.permute.xlu0 %2363
    %2365 = vrot.lane.b32.xlu0 %v761, 7
    %v2366 = vpop.permute.xlu0 %2365
    %2367 = vrot.lane.b32.xlu0 %v764, 7
    %v2368 = vpop.permute.xlu0 %2367
    %2369 = vrot.lane.b32.xlu0 %v766, 7
    %v2370 = vpop.permute.xlu0 %2369
    %2371 = vrot.lane.b32.xlu0 %v769, 7
    %v2372 = vpop.permute.xlu0 %2371
    %2373 = vrot.lane.b32.xlu0 %v771, 7
    %v2374 = vpop.permute.xlu0 %2373
    %2375 = vrot.lane.b32.xlu0 %v1079, 7
    %v2376 = vpop.permute.xlu0 %2375
    %2377 = vrot.lane.b32.xlu0 %v1081, 7
    %v2378 = vpop.permute.xlu0 %2377
    %2440 = vrot.lane.b32.xlu0 %v774, 8
    %v2441 = vpop.permute.xlu0 %2440
    %2442 = vrot.lane.b32.xlu0 %v777, 8
    %v2443 = vpop.permute.xlu0 %2442
    %2444 = vrot.lane.b32.xlu0 %v779, 8
    %v2445 = vpop.permute.xlu0 %2444
    %2446 = vrot.lane.b32.xlu0 %v782, 8
    %v2447 = vpop.permute.xlu0 %2446
    %2448 = vrot.lane.b32.xlu0 %v784, 8
    %v2449 = vpop.permute.xlu0 %2448
    %2450 = vrot.lane.b32.xlu0 %v787, 8
    %v2451 = vpop.permute.xlu0 %2450
    %2452 = vrot.lane.b32.xlu0 %v789, 8
    %v2453 = vpop.permute.xlu0 %2452
    %2454 = vrot.lane.b32.xlu0 %v792, 8
    %v2455 = vpop.permute.xlu0 %2454
    %2456 = vrot.lane.b32.xlu0 %v794, 8
    %v2457 = vpop.permute.xlu0 %2456
    %2458 = vrot.lane.b32.xlu0 %v797, 8
    %v2459 = vpop.permute.xlu0 %2458
    %2460 = vrot.lane.b32.xlu0 %v799, 8
    %v2461 = vpop.permute.xlu0 %2460
    %2462 = vrot.lane.b32.xlu0 %v802, 8
    %v2463 = vpop.permute.xlu0 %2462
    %2464 = vrot.lane.b32.xlu0 %v804, 8
    %v2465 = vpop.permute.xlu0 %2464
    %2466 = vrot.lane.b32.xlu0 %v807, 8
    %v2467 = vpop.permute.xlu0 %2466
    %2468 = vrot.lane.b32.xlu0 %v809, 8
    %v2469 = vpop.permute.xlu0 %2468
    %2470 = vrot.lane.b32.xlu0 %v812, 8
    %v2471 = vpop.permute.xlu0 %2470
    %2472 = vrot.lane.b32.xlu0 %v814, 8
    %v2473 = vpop.permute.xlu0 %2472
    %2474 = vrot.lane.b32.xlu0 %v817, 8
    %v2475 = vpop.permute.xlu0 %2474
    %2476 = vrot.lane.b32.xlu0 %v819, 8
    %v2477 = vpop.permute.xlu0 %2476
    %2478 = vrot.lane.b32.xlu0 %v822, 8
    %v2479 = vpop.permute.xlu0 %2478
    %2480 = vrot.lane.b32.xlu0 %v824, 8
    %v2481 = vpop.permute.xlu0 %2480
    %2482 = vrot.lane.b32.xlu0 %v827, 8
    %v2483 = vpop.permute.xlu0 %2482
    %2484 = vrot.lane.b32.xlu0 %v829, 8
    %v2485 = vpop.permute.xlu0 %2484
    %2486 = vrot.lane.b32.xlu0 %v832, 8
    %v2487 = vpop.permute.xlu0 %2486
    %2488 = vrot.lane.b32.xlu0 %v834, 8
    %v2489 = vpop.permute.xlu0 %2488
    %2490 = vrot.lane.b32.xlu0 %v837, 8
    %v2491 = vpop.permute.xlu0 %2490
    %2492 = vrot.lane.b32.xlu0 %v839, 8
    %v2493 = vpop.permute.xlu0 %2492
    %2494 = vrot.lane.b32.xlu0 %v842, 8
    %v2495 = vpop.permute.xlu0 %2494
    %2496 = vrot.lane.b32.xlu0 %v844, 8
    %v2497 = vpop.permute.xlu0 %2496
    %2498 = vrot.lane.b32.xlu0 %v1084, 8
    %v2499 = vpop.permute.xlu0 %2498
    %2500 = vrot.lane.b32.xlu0 %v1086, 8
    %v2501 = vpop.permute.xlu0 %2500
    %2502 = vrot.lane.b32.xlu0 %v847, 8
    %v2503 = vpop.permute.xlu0 %2502
    %2504 = vrot.lane.b32.xlu0 %v849, 8
    %v2505 = vpop.permute.xlu0 %2504
    %2506 = vrot.lane.b32.xlu0 %v852, 8
    %v2507 = vpop.permute.xlu0 %2506
    %2508 = vrot.lane.b32.xlu0 %v854, 8
    %v2509 = vpop.permute.xlu0 %2508
    %2510 = vrot.lane.b32.xlu0 %v857, 8
    %v2511 = vpop.permute.xlu0 %2510
    %2512 = vrot.lane.b32.xlu0 %v859, 8
    %v2513 = vpop.permute.xlu0 %2512
    %2514 = vrot.lane.b32.xlu0 %v862, 8
    %v2515 = vpop.permute.xlu0 %2514
    %2516 = vrot.lane.b32.xlu0 %v864, 8
    %v2517 = vpop.permute.xlu0 %2516
    %2518 = vrot.lane.b32.xlu0 %v867, 8
    %v2519 = vpop.permute.xlu0 %2518
    %2520 = vrot.lane.b32.xlu0 %v869, 8
    %v2521 = vpop.permute.xlu0 %2520
    %2522 = vrot.lane.b32.xlu0 %v872, 8
    %v2523 = vpop.permute.xlu0 %2522
    %2524 = vrot.lane.b32.xlu0 %v874, 8
    %v2525 = vpop.permute.xlu0 %2524
    %2526 = vrot.lane.b32.xlu0 %v877, 8
    %v2527 = vpop.permute.xlu0 %2526
    %2528 = vrot.lane.b32.xlu0 %v879, 8
    %v2529 = vpop.permute.xlu0 %2528
    %2530 = vrot.lane.b32.xlu0 %v882, 8
    %v2531 = vpop.permute.xlu0 %2530
    %2532 = vrot.lane.b32.xlu0 %v884, 8
    %v2533 = vpop.permute.xlu0 %2532
    %2534 = vrot.lane.b32.xlu0 %v887, 8
    %v2535 = vpop.permute.xlu0 %2534
    %2536 = vrot.lane.b32.xlu0 %v889, 8
    %v2537 = vpop.permute.xlu0 %2536
    %2538 = vrot.lane.b32.xlu0 %v892, 8
    %v2539 = vpop.permute.xlu0 %2538
    %2540 = vrot.lane.b32.xlu0 %v894, 8
    %v2541 = vpop.permute.xlu0 %2540
    %2542 = vrot.lane.b32.xlu0 %v897, 8
    %v2543 = vpop.permute.xlu0 %2542
    %2544 = vrot.lane.b32.xlu0 %v899, 8
    %v2545 = vpop.permute.xlu0 %2544
    %2546 = vrot.lane.b32.xlu0 %v902, 8
    %v2547 = vpop.permute.xlu0 %2546
    %2548 = vrot.lane.b32.xlu0 %v904, 8
    %v2549 = vpop.permute.xlu0 %2548
    %2550 = vrot.lane.b32.xlu0 %v907, 8
    %v2551 = vpop.permute.xlu0 %2550
    %2552 = vrot.lane.b32.xlu0 %v909, 8
    %v2553 = vpop.permute.xlu0 %2552
    %2554 = vrot.lane.b32.xlu0 %v912, 8
    %v2555 = vpop.permute.xlu0 %2554
    %2556 = vrot.lane.b32.xlu0 %v914, 8
    %v2557 = vpop.permute.xlu0 %2556
    %2558 = vrot.lane.b32.xlu0 %v1089, 8
    %v2559 = vpop.permute.xlu0 %2558
    %2560 = vrot.lane.b32.xlu0 %v1091, 8
    %v2561 = vpop.permute.xlu0 %2560
    %2623 = vrot.lane.b32.xlu0 %v917, 9
    %v2624 = vpop.permute.xlu0 %2623
    %2625 = vrot.lane.b32.xlu0 %v920, 9
    %v2626 = vpop.permute.xlu0 %2625
    %2627 = vrot.lane.b32.xlu0 %v922, 9
    %v2628 = vpop.permute.xlu0 %2627
    %2629 = vrot.lane.b32.xlu0 %v925, 9
    %v2630 = vpop.permute.xlu0 %2629
    %2631 = vrot.lane.b32.xlu0 %v927, 9
    %v2632 = vpop.permute.xlu0 %2631
    %2633 = vrot.lane.b32.xlu0 %v930, 9
    %v2634 = vpop.permute.xlu0 %2633
    %2635 = vrot.lane.b32.xlu0 %v932, 9
    %v2636 = vpop.permute.xlu0 %2635
    %2637 = vrot.lane.b32.xlu0 %v935, 9
    %v2638 = vpop.permute.xlu0 %2637
    %2639 = vrot.lane.b32.xlu0 %v937, 9
    %v2640 = vpop.permute.xlu0 %2639
    %2641 = vrot.lane.b32.xlu0 %v940, 9
    %v2642 = vpop.permute.xlu0 %2641
    %2643 = vrot.lane.b32.xlu0 %v942, 9
    %v2644 = vpop.permute.xlu0 %2643
    %2645 = vrot.lane.b32.xlu0 %v945, 9
    %v2646 = vpop.permute.xlu0 %2645
    %2647 = vrot.lane.b32.xlu0 %v947, 9
    %v2648 = vpop.permute.xlu0 %2647
    %2649 = vrot.lane.b32.xlu0 %v950, 9
    %v2650 = vpop.permute.xlu0 %2649
    %2651 = vrot.lane.b32.xlu0 %v952, 9
    %v2652 = vpop.permute.xlu0 %2651
    %2653 = vrot.lane.b32.xlu0 %v955, 9
    %v2654 = vpop.permute.xlu0 %2653
    %2655 = vrot.lane.b32.xlu0 %v957, 9
    %v2656 = vpop.permute.xlu0 %2655
    %2657 = vrot.lane.b32.xlu0 %v960, 9
    %v2658 = vpop.permute.xlu0 %2657
    %2659 = vrot.lane.b32.xlu0 %v962, 9
    %v2660 = vpop.permute.xlu0 %2659
    %2661 = vrot.lane.b32.xlu0 %v965, 9
    %v2662 = vpop.permute.xlu0 %2661
    %2663 = vrot.lane.b32.xlu0 %v967, 9
    %v2664 = vpop.permute.xlu0 %2663
    %2665 = vrot.lane.b32.xlu0 %v970, 9
    %v2666 = vpop.permute.xlu0 %2665
    %2667 = vrot.lane.b32.xlu0 %v972, 9
    %v2668 = vpop.permute.xlu0 %2667
    %2669 = vrot.lane.b32.xlu0 %v975, 9
    %v2670 = vpop.permute.xlu0 %2669
    %2671 = vrot.lane.b32.xlu0 %v977, 9
    %v2672 = vpop.permute.xlu0 %2671
    %2673 = vrot.lane.b32.xlu0 %v980, 9
    %v2674 = vpop.permute.xlu0 %2673
    %2675 = vrot.lane.b32.xlu0 %v982, 9
    %v2676 = vpop.permute.xlu0 %2675
    %2677 = vrot.lane.b32.xlu0 %v985, 9
    %v2678 = vpop.permute.xlu0 %2677
    %2679 = vrot.lane.b32.xlu0 %v987, 9
    %v2680 = vpop.permute.xlu0 %2679
    %2681 = vrot.lane.b32.xlu0 %v1094, 9
    %v2682 = vpop.permute.xlu0 %2681
    %2683 = vrot.lane.b32.xlu0 %v1096, 9
    %v2684 = vpop.permute.xlu0 %2683
    %2685 = vrot.lane.b32.xlu0 %v990, 9
    %v2686 = vpop.permute.xlu0 %2685
    %2687 = vrot.lane.b32.xlu0 %v992, 9
    %v2688 = vpop.permute.xlu0 %2687
    %2689 = vrot.lane.b32.xlu0 %v995, 9
    %v2690 = vpop.permute.xlu0 %2689
    %2691 = vrot.lane.b32.xlu0 %v997, 9
    %v2692 = vpop.permute.xlu0 %2691
    %2693 = vrot.lane.b32.xlu0 %v1000, 9
    %v2694 = vpop.permute.xlu0 %2693
    %2695 = vrot.lane.b32.xlu0 %v1002, 9
    %v2696 = vpop.permute.xlu0 %2695
    %2697 = vrot.lane.b32.xlu0 %v1005, 9
    %v2698 = vpop.permute.xlu0 %2697
    %2699 = vrot.lane.b32.xlu0 %v1007, 9
    %v2700 = vpop.permute.xlu0 %2699
    %2701 = vrot.lane.b32.xlu0 %v1010, 9
    %v2702 = vpop.permute.xlu0 %2701
    %2703 = vrot.lane.b32.xlu0 %v1012, 9
    %v2704 = vpop.permute.xlu0 %2703
    %2705 = vrot.lane.b32.xlu0 %v1015, 9
    %v2706 = vpop.permute.xlu0 %2705
    %2707 = vrot.lane.b32.xlu0 %v1017, 9
    %v2708 = vpop.permute.xlu0 %2707
    %2709 = vrot.lane.b32.xlu0 %v1020, 9
    %v2710 = vpop.permute.xlu0 %2709
    %2711 = vrot.lane.b32.xlu0 %v1022, 9
    %v2712 = vpop.permute.xlu0 %2711
    %2713 = vrot.lane.b32.xlu0 %v1025, 9
    %v2714 = vpop.permute.xlu0 %2713
    %2715 = vrot.lane.b32.xlu0 %v1027, 9
    %v2716 = vpop.permute.xlu0 %2715
    %2717 = vrot.lane.b32.xlu0 %v1030, 9
    %v2718 = vpop.permute.xlu0 %2717
    %2719 = vrot.lane.b32.xlu0 %v1032, 9
    %v2720 = vpop.permute.xlu0 %2719
    %2721 = vrot.lane.b32.xlu0 %v1035, 9
    %v2722 = vpop.permute.xlu0 %2721
    %2723 = vrot.lane.b32.xlu0 %v1037, 9
    %v2724 = vpop.permute.xlu0 %2723
    %2725 = vrot.lane.b32.xlu0 %v1040, 9
    %v2726 = vpop.permute.xlu0 %2725
    %2727 = vrot.lane.b32.xlu0 %v1042, 9
    %v2728 = vpop.permute.xlu0 %2727
    %2729 = vrot.lane.b32.xlu0 %v1045, 9
    %v2730 = vpop.permute.xlu0 %2729
    %2731 = vrot.lane.b32.xlu0 %v1047, 9
    %v2732 = vpop.permute.xlu0 %2731
    %2733 = vrot.lane.b32.xlu0 %v1050, 9
    %v2734 = vpop.permute.xlu0 %2733
    %2735 = vrot.lane.b32.xlu0 %v1052, 9
    %v2736 = vpop.permute.xlu0 %2735
    %2737 = vrot.lane.b32.xlu0 %v1055, 9
    %v2738 = vpop.permute.xlu0 %2737
    %2739 = vrot.lane.b32.xlu0 %v1057, 9
    %v2740 = vpop.permute.xlu0 %2739
    %2741 = vrot.lane.b32.xlu0 %v1099, 9
    %v2742 = vpop.permute.xlu0 %2741
    %2743 = vrot.lane.b32.xlu0 %v1101, 9
    %v2744 = vpop.permute.xlu0 %2743
    %2806 = vrot.lane.b32.xlu0 %v365, 10
    %v2807 = vpop.permute.xlu0 %2806
    %2808 = vrot.lane.b32.xlu0 %v179, 10
    %v2809 = vpop.permute.xlu0 %2808
    %2810 = vrot.lane.b32.xlu0 %v366, 10
    %v2811 = vpop.permute.xlu0 %2810
    %2812 = vrot.lane.b32.xlu0 %v182, 10
    %v2813 = vpop.permute.xlu0 %2812
    %2814 = vrot.lane.b32.xlu0 %v367, 10
    %v2815 = vpop.permute.xlu0 %2814
    %2816 = vrot.lane.b32.xlu0 %v185, 10
    %v2817 = vpop.permute.xlu0 %2816
    %2818 = vrot.lane.b32.xlu0 %v368, 10
    %v2819 = vpop.permute.xlu0 %2818
    %2820 = vrot.lane.b32.xlu0 %v188, 10
    %v2821 = vpop.permute.xlu0 %2820
    %2822 = vrot.lane.b32.xlu0 %v369, 10
    %v2823 = vpop.permute.xlu0 %2822
    %2824 = vrot.lane.b32.xlu0 %v191, 10
    %v2825 = vpop.permute.xlu0 %2824
    %2826 = vrot.lane.b32.xlu0 %v370, 10
    %v2827 = vpop.permute.xlu0 %2826
    %2828 = vrot.lane.b32.xlu0 %v194, 10
    %v2829 = vpop.permute.xlu0 %2828
    %2830 = vrot.lane.b32.xlu0 %v371, 10
    %v2831 = vpop.permute.xlu0 %2830
    %2832 = vrot.lane.b32.xlu0 %v197, 10
    %v2833 = vpop.permute.xlu0 %2832
    %2834 = vrot.lane.b32.xlu0 %v372, 10
    %v2835 = vpop.permute.xlu0 %2834
    %2836 = vrot.lane.b32.xlu0 %v200, 10
    %v2837 = vpop.permute.xlu0 %2836
    %2838 = vrot.lane.b32.xlu0 %v373, 10
    %v2839 = vpop.permute.xlu0 %2838
    %2840 = vrot.lane.b32.xlu0 %v203, 10
    %v2841 = vpop.permute.xlu0 %2840
    %2842 = vrot.lane.b32.xlu0 %v374, 10
    %v2843 = vpop.permute.xlu0 %2842
    %2844 = vrot.lane.b32.xlu0 %v206, 10
    %v2845 = vpop.permute.xlu0 %2844
    %2846 = vrot.lane.b32.xlu0 %v375, 10
    %v2847 = vpop.permute.xlu0 %2846
    %2848 = vrot.lane.b32.xlu0 %v209, 10
    %v2849 = vpop.permute.xlu0 %2848
    %2850 = vrot.lane.b32.xlu0 %v376, 10
    %v2851 = vpop.permute.xlu0 %2850
    %2852 = vrot.lane.b32.xlu0 %v212, 10
    %v2853 = vpop.permute.xlu0 %2852
    %2854 = vrot.lane.b32.xlu0 %v377, 10
    %v2855 = vpop.permute.xlu0 %2854
    %2856 = vrot.lane.b32.xlu0 %v215, 10
    %v2857 = vpop.permute.xlu0 %2856
    %2858 = vrot.lane.b32.xlu0 %v378, 10
    %v2859 = vpop.permute.xlu0 %2858
    %2860 = vrot.lane.b32.xlu0 %v218, 10
    %v2861 = vpop.permute.xlu0 %2860
    %2862 = vrot.lane.b32.xlu0 %v379, 10
    %v2863 = vpop.permute.xlu0 %2862
    %2864 = vrot.lane.b32.xlu0 %v221, 10
    %v2865 = vpop.permute.xlu0 %2864
    %2866 = vrot.lane.b32.xlu0 %v380, 10
    %v2867 = vpop.permute.xlu0 %2866
    %2868 = vrot.lane.b32.xlu0 %v224, 10
    %v2869 = vpop.permute.xlu0 %2868
    %2870 = vrot.lane.b32.xlu0 %v381, 10
    %v2871 = vpop.permute.xlu0 %2870
    %2872 = vrot.lane.b32.xlu0 %v227, 10
    %v2873 = vpop.permute.xlu0 %2872
    %2874 = vrot.lane.b32.xlu0 %v382, 10
    %v2875 = vpop.permute.xlu0 %2874
    %2876 = vrot.lane.b32.xlu0 %v230, 10
    %v2877 = vpop.permute.xlu0 %2876
    %2878 = vrot.lane.b32.xlu0 %v383, 10
    %v2879 = vpop.permute.xlu0 %2878
    %2880 = vrot.lane.b32.xlu0 %v233, 10
    %v2881 = vpop.permute.xlu0 %2880
    %2882 = vrot.lane.b32.xlu0 %v384, 10
    %v2883 = vpop.permute.xlu0 %2882
    %2884 = vrot.lane.b32.xlu0 %v236, 10
    %v2885 = vpop.permute.xlu0 %2884
    %2886 = vrot.lane.b32.xlu0 %v385, 10
    %v2887 = vpop.permute.xlu0 %2886
    %2888 = vrot.lane.b32.xlu0 %v239, 10
    %v2889 = vpop.permute.xlu0 %2888
    %2890 = vrot.lane.b32.xlu0 %v386, 10
    %v2891 = vpop.permute.xlu0 %2890
    %2892 = vrot.lane.b32.xlu0 %v242, 10
    %v2893 = vpop.permute.xlu0 %2892
    %2894 = vrot.lane.b32.xlu0 %v387, 10
    %v2895 = vpop.permute.xlu0 %2894
    %2896 = vrot.lane.b32.xlu0 %v245, 10
    %v2897 = vpop.permute.xlu0 %2896
    %2898 = vrot.lane.b32.xlu0 %v388, 10
    %v2899 = vpop.permute.xlu0 %2898
    %2900 = vrot.lane.b32.xlu0 %v248, 10
    %v2901 = vpop.permute.xlu0 %2900
    %2902 = vrot.lane.b32.xlu0 %v389, 10
    %v2903 = vpop.permute.xlu0 %2902
    %2904 = vrot.lane.b32.xlu0 %v251, 10
    %v2905 = vpop.permute.xlu0 %2904
    %2906 = vrot.lane.b32.xlu0 %v390, 10
    %v2907 = vpop.permute.xlu0 %2906
    %2908 = vrot.lane.b32.xlu0 %v254, 10
    %v2909 = vpop.permute.xlu0 %2908
    %2910 = vrot.lane.b32.xlu0 %v391, 10
    %v2911 = vpop.permute.xlu0 %2910
    %2912 = vrot.lane.b32.xlu0 %v257, 10
    %v2913 = vpop.permute.xlu0 %2912
    %2914 = vrot.lane.b32.xlu0 %v392, 10
    %v2915 = vpop.permute.xlu0 %2914
    %2916 = vrot.lane.b32.xlu0 %v260, 10
    %v2917 = vpop.permute.xlu0 %2916
    %2918 = vrot.lane.b32.xlu0 %v393, 10
    %v2919 = vpop.permute.xlu0 %2918
    %2920 = vrot.lane.b32.xlu0 %v263, 10
    %v2921 = vpop.permute.xlu0 %2920
    %2922 = vrot.lane.b32.xlu0 %v394, 10
    %v2923 = vpop.permute.xlu0 %2922
    %2924 = vrot.lane.b32.xlu0 %v266, 10
    %v2925 = vpop.permute.xlu0 %2924
    %2926 = vrot.lane.b32.xlu0 %v395, 10
    %v2927 = vpop.permute.xlu0 %2926
    %2928 = vrot.lane.b32.xlu0 %v269, 10
    %v2929 = vpop.permute.xlu0 %2928
    %2930 = vrot.lane.b32.xlu0 %v396, 10
    %v2931 = vpop.permute.xlu0 %2930
    %2932 = vrot.lane.b32.xlu0 %v272, 10
    %v2933 = vpop.permute.xlu0 %2932
    %2998 = vrot.lane.b32.xlu0 %v491, 11
    %v2999 = vpop.permute.xlu0 %2998
    %3000 = vrot.lane.b32.xlu0 %v493, 11
    %v3001 = vpop.permute.xlu0 %3000
    %3002 = vrot.lane.b32.xlu0 %v496, 11
    %v3003 = vpop.permute.xlu0 %3002
    %3004 = vrot.lane.b32.xlu0 %v498, 11
    %v3005 = vpop.permute.xlu0 %3004
    %3006 = vrot.lane.b32.xlu0 %v501, 11
    %v3007 = vpop.permute.xlu0 %3006
    %3008 = vrot.lane.b32.xlu0 %v503, 11
    %v3009 = vpop.permute.xlu0 %3008
    %3010 = vrot.lane.b32.xlu0 %v506, 11
    %v3011 = vpop.permute.xlu0 %3010
    %3012 = vrot.lane.b32.xlu0 %v508, 11
    %v3013 = vpop.permute.xlu0 %3012
    %3014 = vrot.lane.b32.xlu0 %v511, 11
    %v3015 = vpop.permute.xlu0 %3014
    %3016 = vrot.lane.b32.xlu0 %v513, 11
    %v3017 = vpop.permute.xlu0 %3016
    %3018 = vrot.lane.b32.xlu0 %v516, 11
    %v3019 = vpop.permute.xlu0 %3018
    %3020 = vrot.lane.b32.xlu0 %v518, 11
    %v3021 = vpop.permute.xlu0 %3020
    %3022 = vrot.lane.b32.xlu0 %v521, 11
    %v3023 = vpop.permute.xlu0 %3022
    %3024 = vrot.lane.b32.xlu0 %v523, 11
    %v3025 = vpop.permute.xlu0 %3024
    %3026 = vrot.lane.b32.xlu0 %v526, 11
    %v3027 = vpop.permute.xlu0 %3026
    %3028 = vrot.lane.b32.xlu0 %v528, 11
    %v3029 = vpop.permute.xlu0 %3028
    %3030 = vrot.lane.b32.xlu0 %v531, 11
    %v3031 = vpop.permute.xlu0 %3030
    %3032 = vrot.lane.b32.xlu0 %v533, 11
    %v3033 = vpop.permute.xlu0 %3032
    %3034 = vrot.lane.b32.xlu0 %v536, 11
    %v3035 = vpop.permute.xlu0 %3034
    %3036 = vrot.lane.b32.xlu0 %v538, 11
    %v3037 = vpop.permute.xlu0 %3036
    %3038 = vrot.lane.b32.xlu0 %v541, 11
    %v3039 = vpop.permute.xlu0 %3038
    %3040 = vrot.lane.b32.xlu0 %v543, 11
    %v3041 = vpop.permute.xlu0 %3040
    %3042 = vrot.lane.b32.xlu0 %v546, 11
    %v3043 = vpop.permute.xlu0 %3042
    %3044 = vrot.lane.b32.xlu0 %v548, 11
    %v3045 = vpop.permute.xlu0 %3044
    %3046 = vrot.lane.b32.xlu0 %v551, 11
    %v3047 = vpop.permute.xlu0 %3046
    %3048 = vrot.lane.b32.xlu0 %v553, 11
    %v3049 = vpop.permute.xlu0 %3048
    %3050 = vrot.lane.b32.xlu0 %v556, 11
    %v3051 = vpop.permute.xlu0 %3050
    %3052 = vrot.lane.b32.xlu0 %v558, 11
    %v3053 = vpop.permute.xlu0 %3052
    %3054 = vrot.lane.b32.xlu0 %v1064, 11
    %v3055 = vpop.permute.xlu0 %3054
    %3056 = vrot.lane.b32.xlu0 %v1066, 11
    %v3057 = vpop.permute.xlu0 %3056
    %3058 = vrot.lane.b32.xlu0 %v1108, 11
    %v3059 = vpop.permute.xlu0 %3058
    %3060 = vrot.lane.b32.xlu0 %v1110, 11
    %v3061 = vpop.permute.xlu0 %3060
    %3062 = vrot.lane.b32.xlu0 %v561, 11
    %v3063 = vpop.permute.xlu0 %3062
    %3064 = vrot.lane.b32.xlu0 %v563, 11
    %v3065 = vpop.permute.xlu0 %3064
    %3066 = vrot.lane.b32.xlu0 %v566, 11
    %v3067 = vpop.permute.xlu0 %3066
    %3068 = vrot.lane.b32.xlu0 %v568, 11
    %v3069 = vpop.permute.xlu0 %3068
    %3070 = vrot.lane.b32.xlu0 %v571, 11
    %v3071 = vpop.permute.xlu0 %3070
    %3072 = vrot.lane.b32.xlu0 %v573, 11
    %v3073 = vpop.permute.xlu0 %3072
    %3074 = vrot.lane.b32.xlu0 %v576, 11
    %v3075 = vpop.permute.xlu0 %3074
    %3076 = vrot.lane.b32.xlu0 %v578, 11
    %v3077 = vpop.permute.xlu0 %3076
    %3078 = vrot.lane.b32.xlu0 %v581, 11
    %v3079 = vpop.permute.xlu0 %3078
    %3080 = vrot.lane.b32.xlu0 %v583, 11
    %v3081 = vpop.permute.xlu0 %3080
    %3082 = vrot.lane.b32.xlu0 %v586, 11
    %v3083 = vpop.permute.xlu0 %3082
    %3084 = vrot.lane.b32.xlu0 %v588, 11
    %v3085 = vpop.permute.xlu0 %3084
    %3086 = vrot.lane.b32.xlu0 %v591, 11
    %v3087 = vpop.permute.xlu0 %3086
    %3088 = vrot.lane.b32.xlu0 %v593, 11
    %v3089 = vpop.permute.xlu0 %3088
    %3090 = vrot.lane.b32.xlu0 %v596, 11
    %v3091 = vpop.permute.xlu0 %3090
    %3092 = vrot.lane.b32.xlu0 %v598, 11
    %v3093 = vpop.permute.xlu0 %3092
    %3094 = vrot.lane.b32.xlu0 %v601, 11
    %v3095 = vpop.permute.xlu0 %3094
    %3096 = vrot.lane.b32.xlu0 %v603, 11
    %v3097 = vpop.permute.xlu0 %3096
    %3098 = vrot.lane.b32.xlu0 %v606, 11
    %v3099 = vpop.permute.xlu0 %3098
    %3100 = vrot.lane.b32.xlu0 %v608, 11
    %v3101 = vpop.permute.xlu0 %3100
    %3102 = vrot.lane.b32.xlu0 %v611, 11
    %v3103 = vpop.permute.xlu0 %3102
    %3104 = vrot.lane.b32.xlu0 %v613, 11
    %v3105 = vpop.permute.xlu0 %3104
    %3106 = vrot.lane.b32.xlu0 %v616, 11
    %v3107 = vpop.permute.xlu0 %3106
    %3108 = vrot.lane.b32.xlu0 %v618, 11
    %v3109 = vpop.permute.xlu0 %3108
    %3110 = vrot.lane.b32.xlu0 %v621, 11
    %v3111 = vpop.permute.xlu0 %3110
    %3112 = vrot.lane.b32.xlu0 %v623, 11
    %v3113 = vpop.permute.xlu0 %3112
    %3114 = vrot.lane.b32.xlu0 %v626, 11
    %v3115 = vpop.permute.xlu0 %3114
    %3116 = vrot.lane.b32.xlu0 %v628, 11
    %v3117 = vpop.permute.xlu0 %3116
    %3118 = vrot.lane.b32.xlu0 %v1069, 11
    %v3119 = vpop.permute.xlu0 %3118
    %3120 = vrot.lane.b32.xlu0 %v1071, 11
    %v3121 = vpop.permute.xlu0 %3120
    %3122 = vrot.lane.b32.xlu0 %v1113, 11
    %v3123 = vpop.permute.xlu0 %3122
    %3124 = vrot.lane.b32.xlu0 %v1115, 11
    %v3125 = vpop.permute.xlu0 %3124
    %3190 = vrot.lane.b32.xlu0 %v634, 12
    %v3191 = vpop.permute.xlu0 %3190
    %3192 = vrot.lane.b32.xlu0 %v636, 12
    %v3193 = vpop.permute.xlu0 %3192
    %3194 = vrot.lane.b32.xlu0 %v639, 12
    %v3195 = vpop.permute.xlu0 %3194
    %3196 = vrot.lane.b32.xlu0 %v641, 12
    %v3197 = vpop.permute.xlu0 %3196
    %3198 = vrot.lane.b32.xlu0 %v644, 12
    %v3199 = vpop.permute.xlu0 %3198
    %3200 = vrot.lane.b32.xlu0 %v646, 12
    %v3201 = vpop.permute.xlu0 %3200
    %3202 = vrot.lane.b32.xlu0 %v649, 12
    %v3203 = vpop.permute.xlu0 %3202
    %3204 = vrot.lane.b32.xlu0 %v651, 12
    %v3205 = vpop.permute.xlu0 %3204
    %3206 = vrot.lane.b32.xlu0 %v654, 12
    %v3207 = vpop.permute.xlu0 %3206
    %3208 = vrot.lane.b32.xlu0 %v656, 12
    %v3209 = vpop.permute.xlu0 %3208
    %3210 = vrot.lane.b32.xlu0 %v659, 12
    %v3211 = vpop.permute.xlu0 %3210
    %3212 = vrot.lane.b32.xlu0 %v661, 12
    %v3213 = vpop.permute.xlu0 %3212
    %3214 = vrot.lane.b32.xlu0 %v664, 12
    %v3215 = vpop.permute.xlu0 %3214
    %3216 = vrot.lane.b32.xlu0 %v666, 12
    %v3217 = vpop.permute.xlu0 %3216
    %3218 = vrot.lane.b32.xlu0 %v669, 12
    %v3219 = vpop.permute.xlu0 %3218
    %3220 = vrot.lane.b32.xlu0 %v671, 12
    %v3221 = vpop.permute.xlu0 %3220
    %3222 = vrot.lane.b32.xlu0 %v674, 12
    %v3223 = vpop.permute.xlu0 %3222
    %3224 = vrot.lane.b32.xlu0 %v676, 12
    %v3225 = vpop.permute.xlu0 %3224
    %3226 = vrot.lane.b32.xlu0 %v679, 12
    %v3227 = vpop.permute.xlu0 %3226
    %3228 = vrot.lane.b32.xlu0 %v681, 12
    %v3229 = vpop.permute.xlu0 %3228
    %3230 = vrot.lane.b32.xlu0 %v684, 12
    %v3231 = vpop.permute.xlu0 %3230
    %3232 = vrot.lane.b32.xlu0 %v686, 12
    %v3233 = vpop.permute.xlu0 %3232
    %3234 = vrot.lane.b32.xlu0 %v689, 12
    %v3235 = vpop.permute.xlu0 %3234
    %3236 = vrot.lane.b32.xlu0 %v691, 12
    %v3237 = vpop.permute.xlu0 %3236
    %3238 = vrot.lane.b32.xlu0 %v694, 12
    %v3239 = vpop.permute.xlu0 %3238
    %3240 = vrot.lane.b32.xlu0 %v696, 12
    %v3241 = vpop.permute.xlu0 %3240
    %3242 = vrot.lane.b32.xlu0 %v699, 12
    %v3243 = vpop.permute.xlu0 %3242
    %3244 = vrot.lane.b32.xlu0 %v701, 12
    %v3245 = vpop.permute.xlu0 %3244
    %3246 = vrot.lane.b32.xlu0 %v1074, 12
    %v3247 = vpop.permute.xlu0 %3246
    %3248 = vrot.lane.b32.xlu0 %v1076, 12
    %v3249 = vpop.permute.xlu0 %3248
    %3250 = vrot.lane.b32.xlu0 %v1118, 12
    %v3251 = vpop.permute.xlu0 %3250
    %3252 = vrot.lane.b32.xlu0 %v1120, 12
    %v3253 = vpop.permute.xlu0 %3252
    %3254 = vrot.lane.b32.xlu0 %v704, 12
    %v3255 = vpop.permute.xlu0 %3254
    %3256 = vrot.lane.b32.xlu0 %v706, 12
    %v3257 = vpop.permute.xlu0 %3256
    %3258 = vrot.lane.b32.xlu0 %v709, 12
    %v3259 = vpop.permute.xlu0 %3258
    %3260 = vrot.lane.b32.xlu0 %v711, 12
    %v3261 = vpop.permute.xlu0 %3260
    %3262 = vrot.lane.b32.xlu0 %v714, 12
    %v3263 = vpop.permute.xlu0 %3262
    %3264 = vrot.lane.b32.xlu0 %v716, 12
    %v3265 = vpop.permute.xlu0 %3264
    %3266 = vrot.lane.b32.xlu0 %v719, 12
    %v3267 = vpop.permute.xlu0 %3266
    %3268 = vrot.lane.b32.xlu0 %v721, 12
    %v3269 = vpop.permute.xlu0 %3268
    %3270 = vrot.lane.b32.xlu0 %v724, 12
    %v3271 = vpop.permute.xlu0 %3270
    %3272 = vrot.lane.b32.xlu0 %v726, 12
    %v3273 = vpop.permute.xlu0 %3272
    %3274 = vrot.lane.b32.xlu0 %v729, 12
    %v3275 = vpop.permute.xlu0 %3274
    %3276 = vrot.lane.b32.xlu0 %v731, 12
    %v3277 = vpop.permute.xlu0 %3276
    %3278 = vrot.lane.b32.xlu0 %v734, 12
    %v3279 = vpop.permute.xlu0 %3278
    %3280 = vrot.lane.b32.xlu0 %v736, 12
    %v3281 = vpop.permute.xlu0 %3280
    %3282 = vrot.lane.b32.xlu0 %v739, 12
    %v3283 = vpop.permute.xlu0 %3282
    %3284 = vrot.lane.b32.xlu0 %v741, 12
    %v3285 = vpop.permute.xlu0 %3284
    %3286 = vrot.lane.b32.xlu0 %v744, 12
    %v3287 = vpop.permute.xlu0 %3286
    %3288 = vrot.lane.b32.xlu0 %v746, 12
    %v3289 = vpop.permute.xlu0 %3288
    %3290 = vrot.lane.b32.xlu0 %v749, 12
    %v3291 = vpop.permute.xlu0 %3290
    %3292 = vrot.lane.b32.xlu0 %v751, 12
    %v3293 = vpop.permute.xlu0 %3292
    %3294 = vrot.lane.b32.xlu0 %v754, 12
    %v3295 = vpop.permute.xlu0 %3294
    %3296 = vrot.lane.b32.xlu0 %v756, 12
    %v3297 = vpop.permute.xlu0 %3296
    %3298 = vrot.lane.b32.xlu0 %v759, 12
    %v3299 = vpop.permute.xlu0 %3298
    %3300 = vrot.lane.b32.xlu0 %v761, 12
    %v3301 = vpop.permute.xlu0 %3300
    %3302 = vrot.lane.b32.xlu0 %v764, 12
    %v3303 = vpop.permute.xlu0 %3302
    %3304 = vrot.lane.b32.xlu0 %v766, 12
    %v3305 = vpop.permute.xlu0 %3304
    %3306 = vrot.lane.b32.xlu0 %v769, 12
    %v3307 = vpop.permute.xlu0 %3306
    %3308 = vrot.lane.b32.xlu0 %v771, 12
    %v3309 = vpop.permute.xlu0 %3308
    %3310 = vrot.lane.b32.xlu0 %v1079, 12
    %v3311 = vpop.permute.xlu0 %3310
    %3312 = vrot.lane.b32.xlu0 %v1081, 12
    %v3313 = vpop.permute.xlu0 %3312
    %3314 = vrot.lane.b32.xlu0 %v1123, 12
    %v3315 = vpop.permute.xlu0 %3314
    %3316 = vrot.lane.b32.xlu0 %v1125, 12
    %v3317 = vpop.permute.xlu0 %3316
    %3382 = vrot.lane.b32.xlu0 %v777, 13
    %v3383 = vpop.permute.xlu0 %3382
    %3384 = vrot.lane.b32.xlu0 %v779, 13
    %v3385 = vpop.permute.xlu0 %3384
    %3386 = vrot.lane.b32.xlu0 %v782, 13
    %v3387 = vpop.permute.xlu0 %3386
    %3388 = vrot.lane.b32.xlu0 %v784, 13
    %v3389 = vpop.permute.xlu0 %3388
    %3390 = vrot.lane.b32.xlu0 %v787, 13
    %v3391 = vpop.permute.xlu0 %3390
    %3392 = vrot.lane.b32.xlu0 %v789, 13
    %v3393 = vpop.permute.xlu0 %3392
    %3394 = vrot.lane.b32.xlu0 %v792, 13
    %v3395 = vpop.permute.xlu0 %3394
    %3396 = vrot.lane.b32.xlu0 %v794, 13
    %v3397 = vpop.permute.xlu0 %3396
    %3398 = vrot.lane.b32.xlu0 %v797, 13
    %v3399 = vpop.permute.xlu0 %3398
    %3400 = vrot.lane.b32.xlu0 %v799, 13
    %v3401 = vpop.permute.xlu0 %3400
    %3402 = vrot.lane.b32.xlu0 %v802, 13
    %v3403 = vpop.permute.xlu0 %3402
    %3404 = vrot.lane.b32.xlu0 %v804, 13
    %v3405 = vpop.permute.xlu0 %3404
    %3406 = vrot.lane.b32.xlu0 %v807, 13
    %v3407 = vpop.permute.xlu0 %3406
    %3408 = vrot.lane.b32.xlu0 %v809, 13
    %v3409 = vpop.permute.xlu0 %3408
    %3410 = vrot.lane.b32.xlu0 %v812, 13
    %v3411 = vpop.permute.xlu0 %3410
    %3412 = vrot.lane.b32.xlu0 %v814, 13
    %v3413 = vpop.permute.xlu0 %3412
    %3414 = vrot.lane.b32.xlu0 %v817, 13
    %v3415 = vpop.permute.xlu0 %3414
    %3416 = vrot.lane.b32.xlu0 %v819, 13
    %v3417 = vpop.permute.xlu0 %3416
    %3418 = vrot.lane.b32.xlu0 %v822, 13
    %v3419 = vpop.permute.xlu0 %3418
    %3420 = vrot.lane.b32.xlu0 %v824, 13
    %v3421 = vpop.permute.xlu0 %3420
    %3422 = vrot.lane.b32.xlu0 %v827, 13
    %v3423 = vpop.permute.xlu0 %3422
    %3424 = vrot.lane.b32.xlu0 %v829, 13
    %v3425 = vpop.permute.xlu0 %3424
    %3426 = vrot.lane.b32.xlu0 %v832, 13
    %v3427 = vpop.permute.xlu0 %3426
    %3428 = vrot.lane.b32.xlu0 %v834, 13
    %v3429 = vpop.permute.xlu0 %3428
    %3430 = vrot.lane.b32.xlu0 %v837, 13
    %v3431 = vpop.permute.xlu0 %3430
    %3432 = vrot.lane.b32.xlu0 %v839, 13
    %v3433 = vpop.permute.xlu0 %3432
    %3434 = vrot.lane.b32.xlu0 %v842, 13
    %v3435 = vpop.permute.xlu0 %3434
    %3436 = vrot.lane.b32.xlu0 %v844, 13
    %v3437 = vpop.permute.xlu0 %3436
    %3438 = vrot.lane.b32.xlu0 %v1084, 13
    %v3439 = vpop.permute.xlu0 %3438
    %3440 = vrot.lane.b32.xlu0 %v1086, 13
    %v3441 = vpop.permute.xlu0 %3440
    %3442 = vrot.lane.b32.xlu0 %v1128, 13
    %v3443 = vpop.permute.xlu0 %3442
    %3444 = vrot.lane.b32.xlu0 %v1130, 13
    %v3445 = vpop.permute.xlu0 %3444
    %3446 = vrot.lane.b32.xlu0 %v847, 13
    %v3447 = vpop.permute.xlu0 %3446
    %3448 = vrot.lane.b32.xlu0 %v849, 13
    %v3449 = vpop.permute.xlu0 %3448
    %3450 = vrot.lane.b32.xlu0 %v852, 13
    %v3451 = vpop.permute.xlu0 %3450
    %3452 = vrot.lane.b32.xlu0 %v854, 13
    %v3453 = vpop.permute.xlu0 %3452
    %3454 = vrot.lane.b32.xlu0 %v857, 13
    %v3455 = vpop.permute.xlu0 %3454
    %3456 = vrot.lane.b32.xlu0 %v859, 13
    %v3457 = vpop.permute.xlu0 %3456
    %3458 = vrot.lane.b32.xlu0 %v862, 13
    %v3459 = vpop.permute.xlu0 %3458
    %3460 = vrot.lane.b32.xlu0 %v864, 13
    %v3461 = vpop.permute.xlu0 %3460
    %3462 = vrot.lane.b32.xlu0 %v867, 13
    %v3463 = vpop.permute.xlu0 %3462
    %3464 = vrot.lane.b32.xlu0 %v869, 13
    %v3465 = vpop.permute.xlu0 %3464
    %3466 = vrot.lane.b32.xlu0 %v872, 13
    %v3467 = vpop.permute.xlu0 %3466
    %3468 = vrot.lane.b32.xlu0 %v874, 13
    %v3469 = vpop.permute.xlu0 %3468
    %3470 = vrot.lane.b32.xlu0 %v877, 13
    %v3471 = vpop.permute.xlu0 %3470
    %3472 = vrot.lane.b32.xlu0 %v879, 13
    %v3473 = vpop.permute.xlu0 %3472
    %3474 = vrot.lane.b32.xlu0 %v882, 13
    %v3475 = vpop.permute.xlu0 %3474
    %3476 = vrot.lane.b32.xlu0 %v884, 13
    %v3477 = vpop.permute.xlu0 %3476
    %3478 = vrot.lane.b32.xlu0 %v887, 13
    %v3479 = vpop.permute.xlu0 %3478
    %3480 = vrot.lane.b32.xlu0 %v889, 13
    %v3481 = vpop.permute.xlu0 %3480
    %3482 = vrot.lane.b32.xlu0 %v892, 13
    %v3483 = vpop.permute.xlu0 %3482
    %3484 = vrot.lane.b32.xlu0 %v894, 13
    %v3485 = vpop.permute.xlu0 %3484
    %3486 = vrot.lane.b32.xlu0 %v897, 13
    %v3487 = vpop.permute.xlu0 %3486
    %3488 = vrot.lane.b32.xlu0 %v899, 13
    %v3489 = vpop.permute.xlu0 %3488
    %3490 = vrot.lane.b32.xlu0 %v902, 13
    %v3491 = vpop.permute.xlu0 %3490
    %3492 = vrot.lane.b32.xlu0 %v904, 13
    %v3493 = vpop.permute.xlu0 %3492
    %3494 = vrot.lane.b32.xlu0 %v907, 13
    %v3495 = vpop.permute.xlu0 %3494
    %3496 = vrot.lane.b32.xlu0 %v909, 13
    %v3497 = vpop.permute.xlu0 %3496
    %3498 = vrot.lane.b32.xlu0 %v912, 13
    %v3499 = vpop.permute.xlu0 %3498
    %3500 = vrot.lane.b32.xlu0 %v914, 13
    %v3501 = vpop.permute.xlu0 %3500
    %3502 = vrot.lane.b32.xlu0 %v1089, 13
    %v3503 = vpop.permute.xlu0 %3502
    %3504 = vrot.lane.b32.xlu0 %v1091, 13
    %v3505 = vpop.permute.xlu0 %3504
    %3506 = vrot.lane.b32.xlu0 %v1133, 13
    %v3507 = vpop.permute.xlu0 %3506
    %3508 = vrot.lane.b32.xlu0 %v1135, 13
    %v3509 = vpop.permute.xlu0 %3508
    %3574 = vrot.lane.b32.xlu0 %v920, 14
    %v3575 = vpop.permute.xlu0 %3574
    %3576 = vrot.lane.b32.xlu0 %v922, 14
    %v3577 = vpop.permute.xlu0 %3576
    %3578 = vrot.lane.b32.xlu0 %v925, 14
    %v3579 = vpop.permute.xlu0 %3578
    %3580 = vrot.lane.b32.xlu0 %v927, 14
    %v3581 = vpop.permute.xlu0 %3580
    %3582 = vrot.lane.b32.xlu0 %v930, 14
    %v3583 = vpop.permute.xlu0 %3582
    %3584 = vrot.lane.b32.xlu0 %v932, 14
    %v3585 = vpop.permute.xlu0 %3584
    %3586 = vrot.lane.b32.xlu0 %v935, 14
    %v3587 = vpop.permute.xlu0 %3586
    %3588 = vrot.lane.b32.xlu0 %v937, 14
    %v3589 = vpop.permute.xlu0 %3588
    %3590 = vrot.lane.b32.xlu0 %v940, 14
    %v3591 = vpop.permute.xlu0 %3590
    %3592 = vrot.lane.b32.xlu0 %v942, 14
    %v3593 = vpop.permute.xlu0 %3592
    %3594 = vrot.lane.b32.xlu0 %v945, 14
    %v3595 = vpop.permute.xlu0 %3594
    %3596 = vrot.lane.b32.xlu0 %v947, 14
    %v3597 = vpop.permute.xlu0 %3596
    %3598 = vrot.lane.b32.xlu0 %v950, 14
    %v3599 = vpop.permute.xlu0 %3598
    %3600 = vrot.lane.b32.xlu0 %v952, 14
    %v3601 = vpop.permute.xlu0 %3600
    %3602 = vrot.lane.b32.xlu0 %v955, 14
    %v3603 = vpop.permute.xlu0 %3602
    %3604 = vrot.lane.b32.xlu0 %v957, 14
    %v3605 = vpop.permute.xlu0 %3604
    %3606 = vrot.lane.b32.xlu0 %v960, 14
    %v3607 = vpop.permute.xlu0 %3606
    %3608 = vrot.lane.b32.xlu0 %v962, 14
    %v3609 = vpop.permute.xlu0 %3608
    %3610 = vrot.lane.b32.xlu0 %v965, 14
    %v3611 = vpop.permute.xlu0 %3610
    %3612 = vrot.lane.b32.xlu0 %v967, 14
    %v3613 = vpop.permute.xlu0 %3612
    %3614 = vrot.lane.b32.xlu0 %v970, 14
    %v3615 = vpop.permute.xlu0 %3614
    %3616 = vrot.lane.b32.xlu0 %v972, 14
    %v3617 = vpop.permute.xlu0 %3616
    %3618 = vrot.lane.b32.xlu0 %v975, 14
    %v3619 = vpop.permute.xlu0 %3618
    %3620 = vrot.lane.b32.xlu0 %v977, 14
    %v3621 = vpop.permute.xlu0 %3620
    %3622 = vrot.lane.b32.xlu0 %v980, 14
    %v3623 = vpop.permute.xlu0 %3622
    %3624 = vrot.lane.b32.xlu0 %v982, 14
    %v3625 = vpop.permute.xlu0 %3624
    %3626 = vrot.lane.b32.xlu0 %v985, 14
    %v3627 = vpop.permute.xlu0 %3626
    %3628 = vrot.lane.b32.xlu0 %v987, 14
    %v3629 = vpop.permute.xlu0 %3628
    %3630 = vrot.lane.b32.xlu0 %v1094, 14
    %v3631 = vpop.permute.xlu0 %3630
    %3632 = vrot.lane.b32.xlu0 %v1096, 14
    %v3633 = vpop.permute.xlu0 %3632
    %3634 = vrot.lane.b32.xlu0 %v1138, 14
    %v3635 = vpop.permute.xlu0 %3634
    %3636 = vrot.lane.b32.xlu0 %v1140, 14
    %v3637 = vpop.permute.xlu0 %3636
    %3638 = vrot.lane.b32.xlu0 %v990, 14
    %v3639 = vpop.permute.xlu0 %3638
    %3640 = vrot.lane.b32.xlu0 %v992, 14
    %v3641 = vpop.permute.xlu0 %3640
    %3642 = vrot.lane.b32.xlu0 %v995, 14
    %v3643 = vpop.permute.xlu0 %3642
    %3644 = vrot.lane.b32.xlu0 %v997, 14
    %v3645 = vpop.permute.xlu0 %3644
    %3646 = vrot.lane.b32.xlu0 %v1000, 14
    %v3647 = vpop.permute.xlu0 %3646
    %3648 = vrot.lane.b32.xlu0 %v1002, 14
    %v3649 = vpop.permute.xlu0 %3648
    %3650 = vrot.lane.b32.xlu0 %v1005, 14
    %v3651 = vpop.permute.xlu0 %3650
    %3652 = vrot.lane.b32.xlu0 %v1007, 14
    %v3653 = vpop.permute.xlu0 %3652
    %3654 = vrot.lane.b32.xlu0 %v1010, 14
    %v3655 = vpop.permute.xlu0 %3654
    %3656 = vrot.lane.b32.xlu0 %v1012, 14
    %v3657 = vpop.permute.xlu0 %3656
    %3658 = vrot.lane.b32.xlu0 %v1015, 14
    %v3659 = vpop.permute.xlu0 %3658
    %3660 = vrot.lane.b32.xlu0 %v1017, 14
    %v3661 = vpop.permute.xlu0 %3660
    %3662 = vrot.lane.b32.xlu0 %v1020, 14
    %v3663 = vpop.permute.xlu0 %3662
    %3664 = vrot.lane.b32.xlu0 %v1022, 14
    %v3665 = vpop.permute.xlu0 %3664
    %3666 = vrot.lane.b32.xlu0 %v1025, 14
    %v3667 = vpop.permute.xlu0 %3666
    %3668 = vrot.lane.b32.xlu0 %v1027, 14
    %v3669 = vpop.permute.xlu0 %3668
    %3670 = vrot.lane.b32.xlu0 %v1030, 14
    %v3671 = vpop.permute.xlu0 %3670
    %3672 = vrot.lane.b32.xlu0 %v1032, 14
    %v3673 = vpop.permute.xlu0 %3672
    %3674 = vrot.lane.b32.xlu0 %v1035, 14
    %v3675 = vpop.permute.xlu0 %3674
    %3676 = vrot.lane.b32.xlu0 %v1037, 14
    %v3677 = vpop.permute.xlu0 %3676
    %3678 = vrot.lane.b32.xlu0 %v1040, 14
    %v3679 = vpop.permute.xlu0 %3678
    %3680 = vrot.lane.b32.xlu0 %v1042, 14
    %v3681 = vpop.permute.xlu0 %3680
    %3682 = vrot.lane.b32.xlu0 %v1045, 14
    %v3683 = vpop.permute.xlu0 %3682
    %3684 = vrot.lane.b32.xlu0 %v1047, 14
    %v3685 = vpop.permute.xlu0 %3684
    %3686 = vrot.lane.b32.xlu0 %v1050, 14
    %v3687 = vpop.permute.xlu0 %3686
    %3688 = vrot.lane.b32.xlu0 %v1052, 14
    %v3689 = vpop.permute.xlu0 %3688
    %3690 = vrot.lane.b32.xlu0 %v1055, 14
    %v3691 = vpop.permute.xlu0 %3690
    %3692 = vrot.lane.b32.xlu0 %v1057, 14
    %v3693 = vpop.permute.xlu0 %3692
    %3694 = vrot.lane.b32.xlu0 %v1099, 14
    %v3695 = vpop.permute.xlu0 %3694
    %3696 = vrot.lane.b32.xlu0 %v1101, 14
    %v3697 = vpop.permute.xlu0 %3696
    %3698 = vrot.lane.b32.xlu0 %v1143, 14
    %v3699 = vpop.permute.xlu0 %3698
    %3700 = vrot.lane.b32.xlu0 %v1145, 14
    %v3701 = vpop.permute.xlu0 %3700
    %3766 = vrot.lane.b32.xlu0 %v366, 15
    %v3767 = vpop.permute.xlu0 %3766
    %3768 = vrot.lane.b32.xlu0 %v182, 15
    %v3769 = vpop.permute.xlu0 %3768
    %3770 = vrot.lane.b32.xlu0 %v367, 15
    %v3771 = vpop.permute.xlu0 %3770
    %3772 = vrot.lane.b32.xlu0 %v185, 15
    %v3773 = vpop.permute.xlu0 %3772
    %3774 = vrot.lane.b32.xlu0 %v368, 15
    %v3775 = vpop.permute.xlu0 %3774
    %3776 = vrot.lane.b32.xlu0 %v188, 15
    %v3777 = vpop.permute.xlu0 %3776
    %3778 = vrot.lane.b32.xlu0 %v369, 15
    %v3779 = vpop.permute.xlu0 %3778
    %3780 = vrot.lane.b32.xlu0 %v191, 15
    %v3781 = vpop.permute.xlu0 %3780
    %3782 = vrot.lane.b32.xlu0 %v370, 15
    %v3783 = vpop.permute.xlu0 %3782
    %3784 = vrot.lane.b32.xlu0 %v194, 15
    %v3785 = vpop.permute.xlu0 %3784
    %3786 = vrot.lane.b32.xlu0 %v371, 15
    %v3787 = vpop.permute.xlu0 %3786
    %3788 = vrot.lane.b32.xlu0 %v197, 15
    %v3789 = vpop.permute.xlu0 %3788
    %3790 = vrot.lane.b32.xlu0 %v372, 15
    %v3791 = vpop.permute.xlu0 %3790
    %3792 = vrot.lane.b32.xlu0 %v200, 15
    %v3793 = vpop.permute.xlu0 %3792
    %3794 = vrot.lane.b32.xlu0 %v373, 15
    %v3795 = vpop.permute.xlu0 %3794
    %3796 = vrot.lane.b32.xlu0 %v203, 15
    %v3797 = vpop.permute.xlu0 %3796
    %3798 = vrot.lane.b32.xlu0 %v374, 15
    %v3799 = vpop.permute.xlu0 %3798
    %3800 = vrot.lane.b32.xlu0 %v206, 15
    %v3801 = vpop.permute.xlu0 %3800
    %3802 = vrot.lane.b32.xlu0 %v375, 15
    %v3803 = vpop.permute.xlu0 %3802
    %3804 = vrot.lane.b32.xlu0 %v209, 15
    %v3805 = vpop.permute.xlu0 %3804
    %3806 = vrot.lane.b32.xlu0 %v376, 15
    %v3807 = vpop.permute.xlu0 %3806
    %3808 = vrot.lane.b32.xlu0 %v212, 15
    %v3809 = vpop.permute.xlu0 %3808
    %3810 = vrot.lane.b32.xlu0 %v377, 15
    %v3811 = vpop.permute.xlu0 %3810
    %3812 = vrot.lane.b32.xlu0 %v215, 15
    %v3813 = vpop.permute.xlu0 %3812
    %3814 = vrot.lane.b32.xlu0 %v378, 15
    %v3815 = vpop.permute.xlu0 %3814
    %3816 = vrot.lane.b32.xlu0 %v218, 15
    %v3817 = vpop.permute.xlu0 %3816
    %3818 = vrot.lane.b32.xlu0 %v379, 15
    %v3819 = vpop.permute.xlu0 %3818
    %3820 = vrot.lane.b32.xlu0 %v221, 15
    %v3821 = vpop.permute.xlu0 %3820
    %3822 = vrot.lane.b32.xlu0 %v380, 15
    %v3823 = vpop.permute.xlu0 %3822
    %3824 = vrot.lane.b32.xlu0 %v224, 15
    %v3825 = vpop.permute.xlu0 %3824
    %3826 = vrot.lane.b32.xlu0 0.0, 15
    %v3827 = vpop.permute.xlu0 %3826
    %3828 = vrot.lane.b32.xlu0 %v382, 15
    %v3829 = vpop.permute.xlu0 %3828
    %3830 = vrot.lane.b32.xlu0 %v230, 15
    %v3831 = vpop.permute.xlu0 %3830
    %3832 = vrot.lane.b32.xlu0 %v383, 15
    %v3833 = vpop.permute.xlu0 %3832
    %3834 = vrot.lane.b32.xlu0 %v233, 15
    %v3835 = vpop.permute.xlu0 %3834
    %3836 = vrot.lane.b32.xlu0 %v384, 15
    %v3837 = vpop.permute.xlu0 %3836
    %3838 = vrot.lane.b32.xlu0 %v236, 15
    %v3839 = vpop.permute.xlu0 %3838
    %3840 = vrot.lane.b32.xlu0 %v385, 15
    %v3841 = vpop.permute.xlu0 %3840
    %3842 = vrot.lane.b32.xlu0 %v239, 15
    %v3843 = vpop.permute.xlu0 %3842
    %3844 = vrot.lane.b32.xlu0 %v386, 15
    %v3845 = vpop.permute.xlu0 %3844
    %3846 = vrot.lane.b32.xlu0 %v242, 15
    %v3847 = vpop.permute.xlu0 %3846
    %3848 = vrot.lane.b32.xlu0 %v387, 15
    %v3849 = vpop.permute.xlu0 %3848
    %3850 = vrot.lane.b32.xlu0 %v245, 15
    %v3851 = vpop.permute.xlu0 %3850
    %3852 = vrot.lane.b32.xlu0 %v388, 15
    %v3853 = vpop.permute.xlu0 %3852
    %3854 = vrot.lane.b32.xlu0 %v248, 15
    %v3855 = vpop.permute.xlu0 %3854
    %3856 = vrot.lane.b32.xlu0 %v389, 15
    %v3857 = vpop.permute.xlu0 %3856
    %3858 = vrot.lane.b32.xlu0 %v251, 15
    %v3859 = vpop.permute.xlu0 %3858
    %3860 = vrot.lane.b32.xlu0 %v390, 15
    %v3861 = vpop.permute.xlu0 %3860
    %3862 = vrot.lane.b32.xlu0 %v254, 15
    %v3863 = vpop.permute.xlu0 %3862
    %3864 = vrot.lane.b32.xlu0 %v391, 15
    %v3865 = vpop.permute.xlu0 %3864
    %3866 = vrot.lane.b32.xlu0 %v257, 15
    %v3867 = vpop.permute.xlu0 %3866
    %3868 = vrot.lane.b32.xlu0 %v392, 15
    %v3869 = vpop.permute.xlu0 %3868
    %3870 = vrot.lane.b32.xlu0 %v260, 15
    %v3871 = vpop.permute.xlu0 %3870
    %3872 = vrot.lane.b32.xlu0 %v393, 15
    %v3873 = vpop.permute.xlu0 %3872
    %3874 = vrot.lane.b32.xlu0 %v263, 15
    %v3875 = vpop.permute.xlu0 %3874
    %3876 = vrot.lane.b32.xlu0 %v394, 15
    %v3877 = vpop.permute.xlu0 %3876
    %3878 = vrot.lane.b32.xlu0 %v266, 15
    %v3879 = vpop.permute.xlu0 %3878
    %3880 = vrot.lane.b32.xlu0 %v395, 15
    %v3881 = vpop.permute.xlu0 %3880
    %3882 = vrot.lane.b32.xlu0 %v269, 15
    %v3883 = vpop.permute.xlu0 %3882
    %3884 = vrot.lane.b32.xlu0 %v396, 15
    %v3885 = vpop.permute.xlu0 %3884
    %3886 = vrot.lane.b32.xlu0 %v272, 15
    %v3887 = vpop.permute.xlu0 %3886
    %vm3949 = vcmask 7168
    %v3950 = vsel %vm3949, 0.0, %v1208
    %v3951 = vsel %vm3949, %v365, %v1210
    %v3952 = vsel %vm3949, %v179, %v1212
    %v3953 = vsel %vm3949, %v366, %v1214
    %v3954 = vsel %vm3949, %v182, %v1216
    %v3955 = vsel %vm3949, %v367, %v1218
    %v3956 = vsel %vm3949, %v185, %v1220
    %v3957 = vsel %vm3949, %v368, %v1222
    %v3958 = vsel %vm3949, %v188, %v1224
    %v3959 = vsel %vm3949, %v369, %v1226
    %v3960 = vsel %vm3949, %v191, %v1228
    %v3961 = vsel %vm3949, %v370, %v1230
    %v3962 = vsel %vm3949, %v194, %v1232
    %v3963 = vsel %vm3949, %v371, %v1234
    %v3964 = vsel %vm3949, %v197, %v1236
    %v3965 = vsel %vm3949, %v372, %v1238
    %v3966 = vsel %vm3949, %v200, %v1240
    %v3967 = vsel %vm3949, %v373, %v1242
    %v3968 = vsel %vm3949, %v203, %v1244
    %v3969 = vsel %vm3949, %v374, %v1246
    %v3970 = vsel %vm3949, %v206, %v1248
    %v3971 = vsel %vm3949, %v375, %v1250
    %v3972 = vsel %vm3949, %v209, %v1252
    %v3973 = vsel %vm3949, %v376, %v1254
    %v3974 = vsel %vm3949, %v212, %v1256
    %v3975 = vsel %vm3949, %v377, %v1258
    %v3976 = vsel %vm3949, %v215, %v1260
    %v3977 = vsel %vm3949, %v378, %v1262
    %v3978 = vsel %vm3949, %v218, %v1264
    %v3979 = vsel %vm3949, %v381, %v1266
    %v3980 = vsel %vm3949, %v227, %v1268
    %v3981 = vsel %vm3949, %v382, %v1270
    %v3982 = vsel %vm3949, %v230, %v1272
    %v3983 = vsel %vm3949, %v383, %v1274
    %v3984 = vsel %vm3949, %v233, %v1276
    %v3985 = vsel %vm3949, %v384, %v1278
    %v3986 = vsel %vm3949, %v236, %v1280
    %v3987 = vsel %vm3949, %v385, %v1282
    %v3988 = vsel %vm3949, %v239, %v1284
    %v3989 = vsel %vm3949, %v386, %v1286
    %v3990 = vsel %vm3949, %v242, %v1288
    %v3991 = vsel %vm3949, %v387, %v1290
    %v3992 = vsel %vm3949, %v245, %v1292
    %v3993 = vsel %vm3949, %v388, %v1294
    %v3994 = vsel %vm3949, %v248, %v1296
    %v3995 = vsel %vm3949, %v389, %v1298
    %v3996 = vsel %vm3949, %v251, %v1300
    %v3997 = vsel %vm3949, %v390, %v1302
    %v3998 = vsel %vm3949, %v254, %v1304
    %v3999 = vsel %vm3949, %v391, %v1306
    %v4000 = vsel %vm3949, %v257, %v1308
    %v4001 = vsel %vm3949, %v392, %v1310
    %v4002 = vsel %vm3949, %v260, %v1312
    %v4003 = vsel %vm3949, %v393, %v1314
    %v4004 = vsel %vm3949, %v263, %v1316
    %v4005 = vsel %vm3949, %v394, %v1318
    %v4006 = vsel %vm3949, %v266, %v1320
    %vm4007 = vcmask 15360
    %v4008 = vsel %vm4007, %v3950, %v1379
    %v4009 = vsel %vm4007, %v3951, %v1381
    %v4010 = vsel %vm4007, %v3952, %v1383
    %v4011 = vsel %vm4007, %v3953, %v1385
    %v4012 = vsel %vm4007, %v3954, %v1387
    %v4013 = vsel %vm4007, %v3955, %v1389
    %v4014 = vsel %vm4007, %v3956, %v1391
    %v4015 = vsel %vm4007, %v3957, %v1393
    %v4016 = vsel %vm4007, %v3958, %v1395
    %v4017 = vsel %vm4007, %v3959, %v1397
    %v4018 = vsel %vm4007, %v3960, %v1399
    %v4019 = vsel %vm4007, %v3961, %v1401
    %v4020 = vsel %vm4007, %v3962, %v1403
    %v4021 = vsel %vm4007, %v3963, %v1405
    %v4022 = vsel %vm4007, %v3964, %v1407
    %v4023 = vsel %vm4007, %v3965, %v1409
    %v4024 = vsel %vm4007, %v3966, %v1411
    %v4025 = vsel %vm4007, %v3967, %v1413
    %v4026 = vsel %vm4007, %v3968, %v1415
    %v4027 = vsel %vm4007, %v3969, %v1417
    %v4028 = vsel %vm4007, %v3970, %v1419
    %v4029 = vsel %vm4007, %v3971, %v1421
    %v4030 = vsel %vm4007, %v3972, %v1423
    %v4031 = vsel %vm4007, %v3973, %v1425
    %v4032 = vsel %vm4007, %v3974, %v1427
    %v4033 = vsel %vm4007, %v3975, %v1429
    %v4034 = vsel %vm4007, %v3976, %v1431
    %v4035 = vsel %vm4007, %v3977, %v1433
    %v4036 = vsel %vm4007, %v3978, %v1435
    %v4037 = vsel %vm4007, %v3979, %v1437
    %v4038 = vsel %vm4007, %v3980, %v1439
    %v4039 = vsel %vm4007, %v3981, %v1441
    %v4040 = vsel %vm4007, %v3982, %v1443
    %v4041 = vsel %vm4007, %v3983, %v1445
    %v4042 = vsel %vm4007, %v3984, %v1447
    %v4043 = vsel %vm4007, %v3985, %v1449
    %v4044 = vsel %vm4007, %v3986, %v1451
    %v4045 = vsel %vm4007, %v3987, %v1453
    %v4046 = vsel %vm4007, %v3988, %v1455
    %v4047 = vsel %vm4007, %v3989, %v1457
    %v4048 = vsel %vm4007, %v3990, %v1459
    %v4049 = vsel %vm4007, %v3991, %v1461
    %v4050 = vsel %vm4007, %v3992, %v1463
    %v4051 = vsel %vm4007, %v3993, %v1465
    %v4052 = vsel %vm4007, %v3994, %v1467
    %v4053 = vsel %vm4007, %v3995, %v1469
    %v4054 = vsel %vm4007, %v3996, %v1471
    %v4055 = vsel %vm4007, %v3997, %v1473
    %v4056 = vsel %vm4007, %v3998, %v1475
    %v4057 = vsel %vm4007, %v3999, %v1477
    %v4058 = vsel %vm4007, %v4000, %v1479
    %v4059 = vsel %vm4007, %v4001, %v1481
    %v4060 = vsel %vm4007, %v4002, %v1483
    %v4061 = vsel %vm4007, %v4003, %v1485
    %v4062 = vsel %vm4007, %v4004, %v1487
    %v4063 = vsel %vm4007, %v4005, %v1489
    %v4064 = vsel %vm4007, %v4006, %v1491
    %vm4065 = vcmask 23552
    %v4066 = vsel %vm4065, %v4008, %v1550
    %v4067 = vsel %vm4065, %v4009, %v1552
    %v4068 = vsel %vm4065, %v4010, %v1554
    %v4069 = vsel %vm4065, %v4011, %v1556
    %v4070 = vsel %vm4065, %v4012, %v1558
    %v4071 = vsel %vm4065, %v4013, %v1560
    %v4072 = vsel %vm4065, %v4014, %v1562
    %v4073 = vsel %vm4065, %v4015, %v1564
    %v4074 = vsel %vm4065, %v4016, %v1566
    %v4075 = vsel %vm4065, %v4017, %v1568
    %v4076 = vsel %vm4065, %v4018, %v1570
    %v4077 = vsel %vm4065, %v4019, %v1572
    %v4078 = vsel %vm4065, %v4020, %v1574
    %v4079 = vsel %vm4065, %v4021, %v1576
    %v4080 = vsel %vm4065, %v4022, %v1578
    %v4081 = vsel %vm4065, %v4023, %v1580
    %v4082 = vsel %vm4065, %v4024, %v1582
    %v4083 = vsel %vm4065, %v4025, %v1584
    %v4084 = vsel %vm4065, %v4026, %v1586
    %v4085 = vsel %vm4065, %v4027, %v1588
    %v4086 = vsel %vm4065, %v4028, %v1590
    %v4087 = vsel %vm4065, %v4029, %v1592
    %v4088 = vsel %vm4065, %v4030, %v1594
    %v4089 = vsel %vm4065, %v4031, %v1596
    %v4090 = vsel %vm4065, %v4032, %v1598
    %v4091 = vsel %vm4065, %v4033, %v1600
    %v4092 = vsel %vm4065, %v4034, %v1602
    %v4093 = vsel %vm4065, %v4035, %v1604
    %v4094 = vsel %vm4065, %v4036, %v1606
    %v4095 = vsel %vm4065, %v4037, %v1608
    %v4096 = vsel %vm4065, %v4038, %v1610
    %v4097 = vsel %vm4065, %v4039, %v1612
    %v4098 = vsel %vm4065, %v4040, %v1614
    %v4099 = vsel %vm4065, %v4041, %v1616
    %v4100 = vsel %vm4065, %v4042, %v1618
    %v4101 = vsel %vm4065, %v4043, %v1620
    %v4102 = vsel %vm4065, %v4044, %v1622
    %v4103 = vsel %vm4065, %v4045, %v1624
    %v4104 = vsel %vm4065, %v4046, %v1626
    %v4105 = vsel %vm4065, %v4047, %v1628
    %v4106 = vsel %vm4065, %v4048, %v1630
    %v4107 = vsel %vm4065, %v4049, %v1632
    %v4108 = vsel %vm4065, %v4050, %v1634
    %v4109 = vsel %vm4065, %v4051, %v1636
    %v4110 = vsel %vm4065, %v4052, %v1638
    %v4111 = vsel %vm4065, %v4053, %v1640
    %v4112 = vsel %vm4065, %v4054, %v1642
    %v4113 = vsel %vm4065, %v4055, %v1644
    %v4114 = vsel %vm4065, %v4056, %v1646
    %v4115 = vsel %vm4065, %v4057, %v1648
    %v4116 = vsel %vm4065, %v4058, %v1650
    %v4117 = vsel %vm4065, %v4059, %v1652
    %v4118 = vsel %vm4065, %v4060, %v1654
    %v4119 = vsel %vm4065, %v4061, %v1656
    %v4120 = vsel %vm4065, %v4062, %v1658
    %v4121 = vsel %vm4065, %v4063, %v1660
    %v4122 = vsel %vm4065, %v4064, %v1662
    %vm4123 = vcmask 31744
    %v4124 = vsel %vm4123, %v4066, %v1721
    %v4125 = vsel %vm4123, %v4067, %v1723
    %v4126 = vsel %vm4123, %v4068, %v1725
    %v4127 = vsel %vm4123, %v4069, %v1727
    %v4128 = vsel %vm4123, %v4070, %v1729
    %v4129 = vsel %vm4123, %v4071, %v1731
    %v4130 = vsel %vm4123, %v4072, %v1733
    %v4131 = vsel %vm4123, %v4073, %v1735
    %v4132 = vsel %vm4123, %v4074, %v1737
    %v4133 = vsel %vm4123, %v4075, %v1739
    %v4134 = vsel %vm4123, %v4076, %v1741
    %v4135 = vsel %vm4123, %v4077, %v1743
    %v4136 = vsel %vm4123, %v4078, %v1745
    %v4137 = vsel %vm4123, %v4079, %v1747
    %v4138 = vsel %vm4123, %v4080, %v1749
    %v4139 = vsel %vm4123, %v4081, %v1751
    %v4140 = vsel %vm4123, %v4082, %v1753
    %v4141 = vsel %vm4123, %v4083, %v1755
    %v4142 = vsel %vm4123, %v4084, %v1757
    %v4143 = vsel %vm4123, %v4085, %v1759
    %v4144 = vsel %vm4123, %v4086, %v1761
    %v4145 = vsel %vm4123, %v4087, %v1763
    %v4146 = vsel %vm4123, %v4088, %v1765
    %v4147 = vsel %vm4123, %v4089, %v1767
    %v4148 = vsel %vm4123, %v4090, %v1769
    %v4149 = vsel %vm4123, %v4091, %v1771
    %v4150 = vsel %vm4123, %v4092, %v1773
    %v4151 = vsel %vm4123, %v4093, %v1775
    %v4152 = vsel %vm4123, %v4094, %v1777
    %v4153 = vsel %vm4123, %v4095, %v1779
    %v4154 = vsel %vm4123, %v4096, %v1781
    %v4155 = vsel %vm4123, %v4097, %v1783
    %v4156 = vsel %vm4123, %v4098, %v1785
    %v4157 = vsel %vm4123, %v4099, %v1787
    %v4158 = vsel %vm4123, %v4100, %v1789
    %v4159 = vsel %vm4123, %v4101, %v1791
    %v4160 = vsel %vm4123, %v4102, %v1793
    %v4161 = vsel %vm4123, %v4103, %v1795
    %v4162 = vsel %vm4123, %v4104, %v1797
    %v4163 = vsel %vm4123, %v4105, %v1799
    %v4164 = vsel %vm4123, %v4106, %v1801
    %v4165 = vsel %vm4123, %v4107, %v1803
    %v4166 = vsel %vm4123, %v4108, %v1805
    %v4167 = vsel %vm4123, %v4109, %v1807
    %v4168 = vsel %vm4123, %v4110, %v1809
    %v4169 = vsel %vm4123, %v4111, %v1811
    %v4170 = vsel %vm4123, %v4112, %v1813
    %v4171 = vsel %vm4123, %v4113, %v1815
    %v4172 = vsel %vm4123, %v4114, %v1817
    %v4173 = vsel %vm4123, %v4115, %v1819
    %v4174 = vsel %vm4123, %v4116, %v1821
    %v4175 = vsel %vm4123, %v4117, %v1823
    %v4176 = vsel %vm4123, %v4118, %v1825
    %v4177 = vsel %vm4123, %v4119, %v1827
    %v4178 = vsel %vm4123, %v4120, %v1829
    %v4179 = vsel %vm4123, %v4121, %v1831
    %v4180 = vsel %vm4123, %v4122, %v1833
    %vm4181 = vcmask 39936
    %v4182 = vsel %vm4181, %v4124, %v1892
    %v4183 = vsel %vm4181, %v4124, %v1894
    %v4184 = vsel %vm4181, %v4124, %v1896
    %v4185 = vsel %vm4181, %v4125, %v1898
    %v4186 = vsel %vm4181, %v4126, %v1900
    %v4187 = vsel %vm4181, %v4127, %v1902
    %v4188 = vsel %vm4181, %v4128, %v1904
    %v4189 = vsel %vm4181, %v4129, %v1906
    %v4190 = vsel %vm4181, %v4130, %v1908
    %v4191 = vsel %vm4181, %v4131, %v1910
    %v4192 = vsel %vm4181, %v4132, %v1912
    %v4193 = vsel %vm4181, %v4133, %v1914
    %v4194 = vsel %vm4181, %v4134, %v1916
    %v4195 = vsel %vm4181, %v4135, %v1918
    %v4196 = vsel %vm4181, %v4136, %v1920
    %v4197 = vsel %vm4181, %v4137, %v1922
    %v4198 = vsel %vm4181, %v4138, %v1924
    %v4199 = vsel %vm4181, %v4139, %v1926
    %v4200 = vsel %vm4181, %v4140, %v1928
    %v4201 = vsel %vm4181, %v4141, %v1930
    %v4202 = vsel %vm4181, %v4142, %v1932
    %v4203 = vsel %vm4181, %v4143, %v1934
    %v4204 = vsel %vm4181, %v4144, %v1936
    %v4205 = vsel %vm4181, %v4145, %v1938
    %v4206 = vsel %vm4181, %v4146, %v1940
    %v4207 = vsel %vm4181, %v4147, %v1942
    %v4208 = vsel %vm4181, %v4148, %v1944
    %v4209 = vsel %vm4181, %v4149, %v1946
    %v4210 = vsel %vm4181, %v4150, %v1948
    %v4211 = vsel %vm4181, %v4151, %v1950
    %v4212 = vsel %vm4181, %v4152, %v1952
    %v4213 = vsel %vm4181, %v4124, %v1954
    %v4214 = vsel %vm4181, %v4124, %v1956
    %v4215 = vsel %vm4181, %v4153, %v1958
    %v4216 = vsel %vm4181, %v4154, %v1960
    %v4217 = vsel %vm4181, %v4155, %v1962
    %v4218 = vsel %vm4181, %v4156, %v1964
    %v4219 = vsel %vm4181, %v4157, %v1966
    %v4220 = vsel %vm4181, %v4158, %v1968
    %v4221 = vsel %vm4181, %v4159, %v1970
    %v4222 = vsel %vm4181, %v4160, %v1972
    %v4223 = vsel %vm4181, %v4161, %v1974
    %v4224 = vsel %vm4181, %v4162, %v1976
    %v4225 = vsel %vm4181, %v4163, %v1978
    %v4226 = vsel %vm4181, %v4164, %v1980
    %v4227 = vsel %vm4181, %v4165, %v1982
    %v4228 = vsel %vm4181, %v4166, %v1984
    %v4229 = vsel %vm4181, %v4167, %v1986
    %v4230 = vsel %vm4181, %v4168, %v1988
    %v4231 = vsel %vm4181, %v4169, %v1990
    %v4232 = vsel %vm4181, %v4170, %v1992
    %v4233 = vsel %vm4181, %v4171, %v1994
    %v4234 = vsel %vm4181, %v4172, %v1996
    %v4235 = vsel %vm4181, %v4173, %v1998
    %v4236 = vsel %vm4181, %v4174, %v2000
    %v4237 = vsel %vm4181, %v4175, %v2002
    %v4238 = vsel %vm4181, %v4176, %v2004
    %v4239 = vsel %vm4181, %v4177, %v2006
    %v4240 = vsel %vm4181, %v4178, %v2008
    %v4241 = vsel %vm4181, %v4179, %v2010
    %v4242 = vsel %vm4181, %v4180, %v2012
    %vm4243 = vcmask 48128
    %v4244 = vsel %vm4243, %v4182, %v2075
    %v4245 = vsel %vm4243, %v4183, %v2077
    %v4246 = vsel %vm4243, %v4184, %v2079
    %v4247 = vsel %vm4243, %v4185, %v2081
    %v4248 = vsel %vm4243, %v4186, %v2083
    %v4249 = vsel %vm4243, %v4187, %v2085
    %v4250 = vsel %vm4243, %v4188, %v2087
    %v4251 = vsel %vm4243, %v4189, %v2089
    %v4252 = vsel %vm4243, %v4190, %v2091
    %v4253 = vsel %vm4243, %v4191, %v2093
    %v4254 = vsel %vm4243, %v4192, %v2095
    %v4255 = vsel %vm4243, %v4193, %v2097
    %v4256 = vsel %vm4243, %v4194, %v2099
    %v4257 = vsel %vm4243, %v4195, %v2101
    %v4258 = vsel %vm4243, %v4196, %v2103
    %v4259 = vsel %vm4243, %v4197, %v2105
    %v4260 = vsel %vm4243, %v4198, %v2107
    %v4261 = vsel %vm4243, %v4199, %v2109
    %v4262 = vsel %vm4243, %v4200, %v2111
    %v4263 = vsel %vm4243, %v4201, %v2113
    %v4264 = vsel %vm4243, %v4202, %v2115
    %v4265 = vsel %vm4243, %v4203, %v2117
    %v4266 = vsel %vm4243, %v4204, %v2119
    %v4267 = vsel %vm4243, %v4205, %v2121
    %v4268 = vsel %vm4243, %v4206, %v2123
    %v4269 = vsel %vm4243, %v4207, %v2125
    %v4270 = vsel %vm4243, %v4208, %v2127
    %v4271 = vsel %vm4243, %v4209, %v2129
    %v4272 = vsel %vm4243, %v4210, %v2131
    %v4273 = vsel %vm4243, %v4211, %v2133
    %v4274 = vsel %vm4243, %v4212, %v2135
    %v4275 = vsel %vm4243, %v4213, %v2137
    %v4276 = vsel %vm4243, %v4214, %v2139
    %v4277 = vsel %vm4243, %v4215, %v2141
    %v4278 = vsel %vm4243, %v4216, %v2143
    %v4279 = vsel %vm4243, %v4217, %v2145
    %v4280 = vsel %vm4243, %v4218, %v2147
    %v4281 = vsel %vm4243, %v4219, %v2149
    %v4282 = vsel %vm4243, %v4220, %v2151
    %v4283 = vsel %vm4243, %v4221, %v2153
    %v4284 = vsel %vm4243, %v4222, %v2155
    %v4285 = vsel %vm4243, %v4223, %v2157
    %v4286 = vsel %vm4243, %v4224, %v2159
    %v4287 = vsel %vm4243, %v4225, %v2161
    %v4288 = vsel %vm4243, %v4226, %v2163
    %v4289 = vsel %vm4243, %v4227, %v2165
    %v4290 = vsel %vm4243, %v4228, %v2167
    %v4291 = vsel %vm4243, %v4229, %v2169
    %v4292 = vsel %vm4243, %v4230, %v2171
    %v4293 = vsel %vm4243, %v4231, %v2173
    %v4294 = vsel %vm4243, %v4232, %v2175
    %v4295 = vsel %vm4243, %v4233, %v2177
    %v4296 = vsel %vm4243, %v4234, %v2179
    %v4297 = vsel %vm4243, %v4235, %v2181
    %v4298 = vsel %vm4243, %v4236, %v2183
    %v4299 = vsel %vm4243, %v4237, %v2185
    %v4300 = vsel %vm4243, %v4238, %v2187
    %v4301 = vsel %vm4243, %v4239, %v2189
    %v4302 = vsel %vm4243, %v4240, %v2191
    %v4303 = vsel %vm4243, %v4241, %v2193
    %v4304 = vsel %vm4243, %v4242, %v2195
    %vm4305 = vcmask 56320
    %v4306 = vsel %vm4305, %v4244, %v2258
    %v4307 = vsel %vm4305, %v4245, %v2260
    %v4308 = vsel %vm4305, %v4246, %v2262
    %v4309 = vsel %vm4305, %v4247, %v2264
    %v4310 = vsel %vm4305, %v4248, %v2266
    %v4311 = vsel %vm4305, %v4249, %v2268
    %v4312 = vsel %vm4305, %v4250, %v2270
    %v4313 = vsel %vm4305, %v4251, %v2272
    %v4314 = vsel %vm4305, %v4252, %v2274
    %v4315 = vsel %vm4305, %v4253, %v2276
    %v4316 = vsel %vm4305, %v4254, %v2278
    %v4317 = vsel %vm4305, %v4255, %v2280
    %v4318 = vsel %vm4305, %v4256, %v2282
    %v4319 = vsel %vm4305, %v4257, %v2284
    %v4320 = vsel %vm4305, %v4258, %v2286
    %v4321 = vsel %vm4305, %v4259, %v2288
    %v4322 = vsel %vm4305, %v4260, %v2290
    %v4323 = vsel %vm4305, %v4261, %v2292
    %v4324 = vsel %vm4305, %v4262, %v2294
    %v4325 = vsel %vm4305, %v4263, %v2296
    %v4326 = vsel %vm4305, %v4264, %v2298
    %v4327 = vsel %vm4305, %v4265, %v2300
    %v4328 = vsel %vm4305, %v4266, %v2302
    %v4329 = vsel %vm4305, %v4267, %v2304
    %v4330 = vsel %vm4305, %v4268, %v2306
    %v4331 = vsel %vm4305, %v4269, %v2308
    %v4332 = vsel %vm4305, %v4270, %v2310
    %v4333 = vsel %vm4305, %v4271, %v2312
    %v4334 = vsel %vm4305, %v4272, %v2314
    %v4335 = vsel %vm4305, %v4273, %v2316
    %v4336 = vsel %vm4305, %v4274, %v2318
    %v4337 = vsel %vm4305, %v4275, %v2320
    %v4338 = vsel %vm4305, %v4276, %v2322
    %v4339 = vsel %vm4305, %v4277, %v2324
    %v4340 = vsel %vm4305, %v4278, %v2326
    %v4341 = vsel %vm4305, %v4279, %v2328
    %v4342 = vsel %vm4305, %v4280, %v2330
    %v4343 = vsel %vm4305, %v4281, %v2332
    %v4344 = vsel %vm4305, %v4282, %v2334
    %v4345 = vsel %vm4305, %v4283, %v2336
    %v4346 = vsel %vm4305, %v4284, %v2338
    %v4347 = vsel %vm4305, %v4285, %v2340
    %v4348 = vsel %vm4305, %v4286, %v2342
    %v4349 = vsel %vm4305, %v4287, %v2344
    %v4350 = vsel %vm4305, %v4288, %v2346
    %v4351 = vsel %vm4305, %v4289, %v2348
    %v4352 = vsel %vm4305, %v4290, %v2350
    %v4353 = vsel %vm4305, %v4291, %v2352
    %v4354 = vsel %vm4305, %v4292, %v2354
    %v4355 = vsel %vm4305, %v4293, %v2356
    %v4356 = vsel %vm4305, %v4294, %v2358
    %v4357 = vsel %vm4305, %v4295, %v2360
    %v4358 = vsel %vm4305, %v4296, %v2362
    %v4359 = vsel %vm4305, %v4297, %v2364
    %v4360 = vsel %vm4305, %v4298, %v2366
    %v4361 = vsel %vm4305, %v4299, %v2368
    %v4362 = vsel %vm4305, %v4300, %v2370
    %v4363 = vsel %vm4305, %v4301, %v2372
    %v4364 = vsel %vm4305, %v4302, %v2374
    %v4365 = vsel %vm4305, %v4303, %v2376
    %v4366 = vsel %vm4305, %v4304, %v2378
    %vm4367 = vcmask 64512
    %v4368 = vsel %vm4367, %v4306, %v2441
    %v4369 = vsel %vm4367, %v4307, %v2443
    %v4370 = vsel %vm4367, %v4308, %v2445
    %v4371 = vsel %vm4367, %v4309, %v2447
    %v4372 = vsel %vm4367, %v4310, %v2449
    %v4373 = vsel %vm4367, %v4311, %v2451
    %v4374 = vsel %vm4367, %v4312, %v2453
    %v4375 = vsel %vm4367, %v4313, %v2455
    %v4376 = vsel %vm4367, %v4314, %v2457
    %v4377 = vsel %vm4367, %v4315, %v2459
    %v4378 = vsel %vm4367, %v4316, %v2461
    %v4379 = vsel %vm4367, %v4317, %v2463
    %v4380 = vsel %vm4367, %v4318, %v2465
    %v4381 = vsel %vm4367, %v4319, %v2467
    %v4382 = vsel %vm4367, %v4320, %v2469
    %v4383 = vsel %vm4367, %v4321, %v2471
    %v4384 = vsel %vm4367, %v4322, %v2473
    %v4385 = vsel %vm4367, %v4323, %v2475
    %v4386 = vsel %vm4367, %v4324, %v2477
    %v4387 = vsel %vm4367, %v4325, %v2479
    %v4388 = vsel %vm4367, %v4326, %v2481
    %v4389 = vsel %vm4367, %v4327, %v2483
    %v4390 = vsel %vm4367, %v4328, %v2485
    %v4391 = vsel %vm4367, %v4329, %v2487
    %v4392 = vsel %vm4367, %v4330, %v2489
    %v4393 = vsel %vm4367, %v4331, %v2491
    %v4394 = vsel %vm4367, %v4332, %v2493
    %v4395 = vsel %vm4367, %v4333, %v2495
    %v4396 = vsel %vm4367, %v4334, %v2497
    %v4397 = vsel %vm4367, %v4335, %v2499
    %v4398 = vsel %vm4367, %v4336, %v2501
    %v4399 = vsel %vm4367, %v4337, %v2503
    %v4400 = vsel %vm4367, %v4338, %v2505
    %v4401 = vsel %vm4367, %v4339, %v2507
    %v4402 = vsel %vm4367, %v4340, %v2509
    %v4403 = vsel %vm4367, %v4341, %v2511
    %v4404 = vsel %vm4367, %v4342, %v2513
    %v4405 = vsel %vm4367, %v4343, %v2515
    %v4406 = vsel %vm4367, %v4344, %v2517
    %v4407 = vsel %vm4367, %v4345, %v2519
    %v4408 = vsel %vm4367, %v4346, %v2521
    %v4409 = vsel %vm4367, %v4347, %v2523
    %v4410 = vsel %vm4367, %v4348, %v2525
    %v4411 = vsel %vm4367, %v4349, %v2527
    %v4412 = vsel %vm4367, %v4350, %v2529
    %v4413 = vsel %vm4367, %v4351, %v2531
    %v4414 = vsel %vm4367, %v4352, %v2533
    %v4415 = vsel %vm4367, %v4353, %v2535
    %v4416 = vsel %vm4367, %v4354, %v2537
    %v4417 = vsel %vm4367, %v4355, %v2539
    %v4418 = vsel %vm4367, %v4356, %v2541
    %v4419 = vsel %vm4367, %v4357, %v2543
    %v4420 = vsel %vm4367, %v4358, %v2545
    %v4421 = vsel %vm4367, %v4359, %v2547
    %v4422 = vsel %vm4367, %v4360, %v2549
    %v4423 = vsel %vm4367, %v4361, %v2551
    %v4424 = vsel %vm4367, %v4362, %v2553
    %v4425 = vsel %vm4367, %v4363, %v2555
    %v4426 = vsel %vm4367, %v4364, %v2557
    %v4427 = vsel %vm4367, %v4365, %v2559
    %v4428 = vsel %vm4367, %v4366, %v2561
    %vm4429 = vcmask 72704
    %v4430 = vsel %vm4429, %v4368, %v2624
    %v4431 = vsel %vm4429, %v4369, %v2626
    %v4432 = vsel %vm4429, %v4370, %v2628
    %v4433 = vsel %vm4429, %v4371, %v2630
    %v4434 = vsel %vm4429, %v4372, %v2632
    %v4435 = vsel %vm4429, %v4373, %v2634
    %v4436 = vsel %vm4429, %v4374, %v2636
    %v4437 = vsel %vm4429, %v4375, %v2638
    %v4438 = vsel %vm4429, %v4376, %v2640
    %v4439 = vsel %vm4429, %v4377, %v2642
    %v4440 = vsel %vm4429, %v4378, %v2644
    %v4441 = vsel %vm4429, %v4379, %v2646
    %v4442 = vsel %vm4429, %v4380, %v2648
    %v4443 = vsel %vm4429, %v4381, %v2650
    %v4444 = vsel %vm4429, %v4382, %v2652
    %v4445 = vsel %vm4429, %v4383, %v2654
    %v4446 = vsel %vm4429, %v4384, %v2656
    %v4447 = vsel %vm4429, %v4385, %v2658
    %v4448 = vsel %vm4429, %v4386, %v2660
    %v4449 = vsel %vm4429, %v4387, %v2662
    %v4450 = vsel %vm4429, %v4388, %v2664
    %v4451 = vsel %vm4429, %v4389, %v2666
    %v4452 = vsel %vm4429, %v4390, %v2668
    %v4453 = vsel %vm4429, %v4391, %v2670
    %v4454 = vsel %vm4429, %v4392, %v2672
    %v4455 = vsel %vm4429, %v4393, %v2674
    %v4456 = vsel %vm4429, %v4394, %v2676
    %v4457 = vsel %vm4429, %v4395, %v2678
    %v4458 = vsel %vm4429, %v4396, %v2680
    %v4459 = vsel %vm4429, %v4397, %v2682
    %v4460 = vsel %vm4429, %v4398, %v2684
    %v4461 = vsel %vm4429, %v4399, %v2686
    %v4462 = vsel %vm4429, %v4400, %v2688
    %v4463 = vsel %vm4429, %v4401, %v2690
    %v4464 = vsel %vm4429, %v4402, %v2692
    %v4465 = vsel %vm4429, %v4403, %v2694
    %v4466 = vsel %vm4429, %v4404, %v2696
    %v4467 = vsel %vm4429, %v4405, %v2698
    %v4468 = vsel %vm4429, %v4406, %v2700
    %v4469 = vsel %vm4429, %v4407, %v2702
    %v4470 = vsel %vm4429, %v4408, %v2704
    %v4471 = vsel %vm4429, %v4409, %v2706
    %v4472 = vsel %vm4429, %v4410, %v2708
    %v4473 = vsel %vm4429, %v4411, %v2710
    %v4474 = vsel %vm4429, %v4412, %v2712
    %v4475 = vsel %vm4429, %v4413, %v2714
    %v4476 = vsel %vm4429, %v4414, %v2716
    %v4477 = vsel %vm4429, %v4415, %v2718
    %v4478 = vsel %vm4429, %v4416, %v2720
    %v4479 = vsel %vm4429, %v4417, %v2722
    %v4480 = vsel %vm4429, %v4418, %v2724
    %v4481 = vsel %vm4429, %v4419, %v2726
    %v4482 = vsel %vm4429, %v4420, %v2728
    %v4483 = vsel %vm4429, %v4421, %v2730
    %v4484 = vsel %vm4429, %v4422, %v2732
    %v4485 = vsel %vm4429, %v4423, %v2734
    %v4486 = vsel %vm4429, %v4424, %v2736
    %v4487 = vsel %vm4429, %v4425, %v2738
    %v4488 = vsel %vm4429, %v4426, %v2740
    %v4489 = vsel %vm4429, %v4427, %v2742
    %v4490 = vsel %vm4429, %v4428, %v2744
    %vm4491 = vcmask 80896
    %v4492 = vsel %vm4491, %v4430, %v2807
    %v4493 = vsel %vm4491, %v4430, %v2809
    %v4494 = vsel %vm4491, %v4431, %v2811
    %v4495 = vsel %vm4491, %v4432, %v2813
    %v4496 = vsel %vm4491, %v4433, %v2815
    %v4497 = vsel %vm4491, %v4434, %v2817
    %v4498 = vsel %vm4491, %v4435, %v2819
    %v4499 = vsel %vm4491, %v4436, %v2821
    %v4500 = vsel %vm4491, %v4437, %v2823
    %v4501 = vsel %vm4491, %v4438, %v2825
    %v4502 = vsel %vm4491, %v4439, %v2827
    %v4503 = vsel %vm4491, %v4440, %v2829
    %v4504 = vsel %vm4491, %v4441, %v2831
    %v4505 = vsel %vm4491, %v4442, %v2833
    %v4506 = vsel %vm4491, %v4443, %v2835
    %v4507 = vsel %vm4491, %v4444, %v2837
    %v4508 = vsel %vm4491, %v4445, %v2839
    %v4509 = vsel %vm4491, %v4446, %v2841
    %v4510 = vsel %vm4491, %v4447, %v2843
    %v4511 = vsel %vm4491, %v4448, %v2845
    %v4512 = vsel %vm4491, %v4449, %v2847
    %v4513 = vsel %vm4491, %v4450, %v2849
    %v4514 = vsel %vm4491, %v4451, %v2851
    %v4515 = vsel %vm4491, %v4452, %v2853
    %v4516 = vsel %vm4491, %v4453, %v2855
    %v4517 = vsel %vm4491, %v4454, %v2857
    %v4518 = vsel %vm4491, %v4455, %v2859
    %v4519 = vsel %vm4491, %v4456, %v2861
    %v4520 = vsel %vm4491, %v4457, %v2863
    %v4521 = vsel %vm4491, %v4458, %v2865
    %v4522 = vsel %vm4491, %v4459, %v2867
    %v4523 = vsel %vm4491, %v4460, %v2869
    %v4524 = vsel %vm4491, %v4430, %v2871
    %v4525 = vsel %vm4491, %v4430, %v2873
    %v4526 = vsel %vm4491, %v4461, %v2875
    %v4527 = vsel %vm4491, %v4462, %v2877
    %v4528 = vsel %vm4491, %v4463, %v2879
    %v4529 = vsel %vm4491, %v4464, %v2881
    %v4530 = vsel %vm4491, %v4465, %v2883
    %v4531 = vsel %vm4491, %v4466, %v2885
    %v4532 = vsel %vm4491, %v4467, %v2887
    %v4533 = vsel %vm4491, %v4468, %v2889
    %v4534 = vsel %vm4491, %v4469, %v2891
    %v4535 = vsel %vm4491, %v4470, %v2893
    %v4536 = vsel %vm4491, %v4471, %v2895
    %v4537 = vsel %vm4491, %v4472, %v2897
    %v4538 = vsel %vm4491, %v4473, %v2899
    %v4539 = vsel %vm4491, %v4474, %v2901
    %v4540 = vsel %vm4491, %v4475, %v2903
    %v4541 = vsel %vm4491, %v4476, %v2905
    %v4542 = vsel %vm4491, %v4477, %v2907
    %v4543 = vsel %vm4491, %v4478, %v2909
    %v4544 = vsel %vm4491, %v4479, %v2911
    %v4545 = vsel %vm4491, %v4480, %v2913
    %v4546 = vsel %vm4491, %v4481, %v2915
    %v4547 = vsel %vm4491, %v4482, %v2917
    %v4548 = vsel %vm4491, %v4483, %v2919
    %v4549 = vsel %vm4491, %v4484, %v2921
    %v4550 = vsel %vm4491, %v4485, %v2923
    %v4551 = vsel %vm4491, %v4486, %v2925
    %v4552 = vsel %vm4491, %v4487, %v2927
    %v4553 = vsel %vm4491, %v4488, %v2929
    %v4554 = vsel %vm4491, %v4489, %v2931
    %v4555 = vsel %vm4491, %v4490, %v2933
    %vm4556 = vcmask 89088
    %v4557 = vsel %vm4556, %v4492, %v2999
    %v4558 = vsel %vm4556, %v4493, %v3001
    %v4559 = vsel %vm4556, %v4494, %v3003
    %v4560 = vsel %vm4556, %v4495, %v3005
    %v4561 = vsel %vm4556, %v4496, %v3007
    %v4562 = vsel %vm4556, %v4497, %v3009
    %v4563 = vsel %vm4556, %v4498, %v3011
    %v4564 = vsel %vm4556, %v4499, %v3013
    %v4565 = vsel %vm4556, %v4500, %v3015
    %v4566 = vsel %vm4556, %v4501, %v3017
    %v4567 = vsel %vm4556, %v4502, %v3019
    %v4568 = vsel %vm4556, %v4503, %v3021
    %v4569 = vsel %vm4556, %v4504, %v3023
    %v4570 = vsel %vm4556, %v4505, %v3025
    %v4571 = vsel %vm4556, %v4506, %v3027
    %v4572 = vsel %vm4556, %v4507, %v3029
    %v4573 = vsel %vm4556, %v4508, %v3031
    %v4574 = vsel %vm4556, %v4509, %v3033
    %v4575 = vsel %vm4556, %v4510, %v3035
    %v4576 = vsel %vm4556, %v4511, %v3037
    %v4577 = vsel %vm4556, %v4512, %v3039
    %v4578 = vsel %vm4556, %v4513, %v3041
    %v4579 = vsel %vm4556, %v4514, %v3043
    %v4580 = vsel %vm4556, %v4515, %v3045
    %v4581 = vsel %vm4556, %v4516, %v3047
    %v4582 = vsel %vm4556, %v4517, %v3049
    %v4583 = vsel %vm4556, %v4518, %v3051
    %v4584 = vsel %vm4556, %v4519, %v3053
    %v4585 = vsel %vm4556, %v4520, %v3055
    %v4586 = vsel %vm4556, %v4521, %v3057
    %v4587 = vsel %vm4556, %v4522, %v3059
    %v4588 = vsel %vm4556, %v4523, %v3061
    %v4589 = vsel %vm4556, %v4524, %v3063
    %v4590 = vsel %vm4556, %v4525, %v3065
    %v4591 = vsel %vm4556, %v4526, %v3067
    %v4592 = vsel %vm4556, %v4527, %v3069
    %v4593 = vsel %vm4556, %v4528, %v3071
    %v4594 = vsel %vm4556, %v4529, %v3073
    %v4595 = vsel %vm4556, %v4530, %v3075
    %v4596 = vsel %vm4556, %v4531, %v3077
    %v4597 = vsel %vm4556, %v4532, %v3079
    %v4598 = vsel %vm4556, %v4533, %v3081
    %v4599 = vsel %vm4556, %v4534, %v3083
    %v4600 = vsel %vm4556, %v4535, %v3085
    %v4601 = vsel %vm4556, %v4536, %v3087
    %v4602 = vsel %vm4556, %v4537, %v3089
    %v4603 = vsel %vm4556, %v4538, %v3091
    %v4604 = vsel %vm4556, %v4539, %v3093
    %v4605 = vsel %vm4556, %v4540, %v3095
    %v4606 = vsel %vm4556, %v4541, %v3097
    %v4607 = vsel %vm4556, %v4542, %v3099
    %v4608 = vsel %vm4556, %v4543, %v3101
    %v4609 = vsel %vm4556, %v4544, %v3103
    %v4610 = vsel %vm4556, %v4545, %v3105
    %v4611 = vsel %vm4556, %v4546, %v3107
    %v4612 = vsel %vm4556, %v4547, %v3109
    %v4613 = vsel %vm4556, %v4548, %v3111
    %v4614 = vsel %vm4556, %v4549, %v3113
    %v4615 = vsel %vm4556, %v4550, %v3115
    %v4616 = vsel %vm4556, %v4551, %v3117
    %v4617 = vsel %vm4556, %v4552, %v3119
    %v4618 = vsel %vm4556, %v4553, %v3121
    %v4619 = vsel %vm4556, %v4554, %v3123
    %v4620 = vsel %vm4556, %v4555, %v3125
    %vm4621 = vcmask 97280
    %v4622 = vsel %vm4621, %v4557, %v3191
    %v4623 = vsel %vm4621, %v4558, %v3193
    %v4624 = vsel %vm4621, %v4559, %v3195
    %v4625 = vsel %vm4621, %v4560, %v3197
    %v4626 = vsel %vm4621, %v4561, %v3199
    %v4627 = vsel %vm4621, %v4562, %v3201
    %v4628 = vsel %vm4621, %v4563, %v3203
    %v4629 = vsel %vm4621, %v4564, %v3205
    %v4630 = vsel %vm4621, %v4565, %v3207
    %v4631 = vsel %vm4621, %v4566, %v3209
    %v4632 = vsel %vm4621, %v4567, %v3211
    %v4633 = vsel %vm4621, %v4568, %v3213
    %v4634 = vsel %vm4621, %v4569, %v3215
    %v4635 = vsel %vm4621, %v4570, %v3217
    %v4636 = vsel %vm4621, %v4571, %v3219
    %v4637 = vsel %vm4621, %v4572, %v3221
    %v4638 = vsel %vm4621, %v4573, %v3223
    %v4639 = vsel %vm4621, %v4574, %v3225
    %v4640 = vsel %vm4621, %v4575, %v3227
    %v4641 = vsel %vm4621, %v4576, %v3229
    %v4642 = vsel %vm4621, %v4577, %v3231
    %v4643 = vsel %vm4621, %v4578, %v3233
    %v4644 = vsel %vm4621, %v4579, %v3235
    %v4645 = vsel %vm4621, %v4580, %v3237
    %v4646 = vsel %vm4621, %v4581, %v3239
    %v4647 = vsel %vm4621, %v4582, %v3241
    %v4648 = vsel %vm4621, %v4583, %v3243
    %v4649 = vsel %vm4621, %v4584, %v3245
    %v4650 = vsel %vm4621, %v4585, %v3247
    %v4651 = vsel %vm4621, %v4586, %v3249
    %v4652 = vsel %vm4621, %v4587, %v3251
    %v4653 = vsel %vm4621, %v4588, %v3253
    %v4654 = vsel %vm4621, %v4589, %v3255
    %v4655 = vsel %vm4621, %v4590, %v3257
    %v4656 = vsel %vm4621, %v4591, %v3259
    %v4657 = vsel %vm4621, %v4592, %v3261
    %v4658 = vsel %vm4621, %v4593, %v3263
    %v4659 = vsel %vm4621, %v4594, %v3265
    %v4660 = vsel %vm4621, %v4595, %v3267
    %v4661 = vsel %vm4621, %v4596, %v3269
    %v4662 = vsel %vm4621, %v4597, %v3271
    %v4663 = vsel %vm4621, %v4598, %v3273
    %v4664 = vsel %vm4621, %v4599, %v3275
    %v4665 = vsel %vm4621, %v4600, %v3277
    %v4666 = vsel %vm4621, %v4601, %v3279
    %v4667 = vsel %vm4621, %v4602, %v3281
    %v4668 = vsel %vm4621, %v4603, %v3283
    %v4669 = vsel %vm4621, %v4604, %v3285
    %v4670 = vsel %vm4621, %v4605, %v3287
    %v4671 = vsel %vm4621, %v4606, %v3289
    %v4672 = vsel %vm4621, %v4607, %v3291
    %v4673 = vsel %vm4621, %v4608, %v3293
    %v4674 = vsel %vm4621, %v4609, %v3295
    %v4675 = vsel %vm4621, %v4610, %v3297
    %v4676 = vsel %vm4621, %v4611, %v3299
    %v4677 = vsel %vm4621, %v4612, %v3301
    %v4678 = vsel %vm4621, %v4613, %v3303
    %v4679 = vsel %vm4621, %v4614, %v3305
    %v4680 = vsel %vm4621, %v4615, %v3307
    %v4681 = vsel %vm4621, %v4616, %v3309
    %v4682 = vsel %vm4621, %v4617, %v3311
    %v4683 = vsel %vm4621, %v4618, %v3313
    %v4684 = vsel %vm4621, %v4619, %v3315
    %v4685 = vsel %vm4621, %v4620, %v3317
    %vm4686 = vcmask 105472
    %v4687 = vsel %vm4686, %v4622, %v3383
    %v4688 = vsel %vm4686, %v4623, %v3385
    %v4689 = vsel %vm4686, %v4624, %v3387
    %v4690 = vsel %vm4686, %v4625, %v3389
    %v4691 = vsel %vm4686, %v4626, %v3391
    %v4692 = vsel %vm4686, %v4627, %v3393
    %v4693 = vsel %vm4686, %v4628, %v3395
    %v4694 = vsel %vm4686, %v4629, %v3397
    %v4695 = vsel %vm4686, %v4630, %v3399
    %v4696 = vsel %vm4686, %v4631, %v3401
    %v4697 = vsel %vm4686, %v4632, %v3403
    %v4698 = vsel %vm4686, %v4633, %v3405
    %v4699 = vsel %vm4686, %v4634, %v3407
    %v4700 = vsel %vm4686, %v4635, %v3409
    %v4701 = vsel %vm4686, %v4636, %v3411
    %v4702 = vsel %vm4686, %v4637, %v3413
    %v4703 = vsel %vm4686, %v4638, %v3415
    %v4704 = vsel %vm4686, %v4639, %v3417
    %v4705 = vsel %vm4686, %v4640, %v3419
    %v4706 = vsel %vm4686, %v4641, %v3421
    %v4707 = vsel %vm4686, %v4642, %v3423
    %v4708 = vsel %vm4686, %v4643, %v3425
    %v4709 = vsel %vm4686, %v4644, %v3427
    %v4710 = vsel %vm4686, %v4645, %v3429
    %v4711 = vsel %vm4686, %v4646, %v3431
    %v4712 = vsel %vm4686, %v4647, %v3433
    %v4713 = vsel %vm4686, %v4648, %v3435
    %v4714 = vsel %vm4686, %v4649, %v3437
    %v4715 = vsel %vm4686, %v4650, %v3439
    %v4716 = vsel %vm4686, %v4651, %v3441
    %v4717 = vsel %vm4686, %v4652, %v3443
    %v4718 = vsel %vm4686, %v4653, %v3445
    %v4719 = vsel %vm4686, %v4654, %v3447
    %v4720 = vsel %vm4686, %v4655, %v3449
    %v4721 = vsel %vm4686, %v4656, %v3451
    %v4722 = vsel %vm4686, %v4657, %v3453
    %v4723 = vsel %vm4686, %v4658, %v3455
    %v4724 = vsel %vm4686, %v4659, %v3457
    %v4725 = vsel %vm4686, %v4660, %v3459
    %v4726 = vsel %vm4686, %v4661, %v3461
    %v4727 = vsel %vm4686, %v4662, %v3463
    %v4728 = vsel %vm4686, %v4663, %v3465
    %v4729 = vsel %vm4686, %v4664, %v3467
    %v4730 = vsel %vm4686, %v4665, %v3469
    %v4731 = vsel %vm4686, %v4666, %v3471
    %v4732 = vsel %vm4686, %v4667, %v3473
    %v4733 = vsel %vm4686, %v4668, %v3475
    %v4734 = vsel %vm4686, %v4669, %v3477
    %v4735 = vsel %vm4686, %v4670, %v3479
    %v4736 = vsel %vm4686, %v4671, %v3481
    %v4737 = vsel %vm4686, %v4672, %v3483
    %v4738 = vsel %vm4686, %v4673, %v3485
    %v4739 = vsel %vm4686, %v4674, %v3487
    %v4740 = vsel %vm4686, %v4675, %v3489
    %v4741 = vsel %vm4686, %v4676, %v3491
    %v4742 = vsel %vm4686, %v4677, %v3493
    %v4743 = vsel %vm4686, %v4678, %v3495
    %v4744 = vsel %vm4686, %v4679, %v3497
    %v4745 = vsel %vm4686, %v4680, %v3499
    %v4746 = vsel %vm4686, %v4681, %v3501
    %v4747 = vsel %vm4686, %v4682, %v3503
    %v4748 = vsel %vm4686, %v4683, %v3505
    %v4749 = vsel %vm4686, %v4684, %v3507
    %v4750 = vsel %vm4686, %v4685, %v3509
    %vm4751 = vcmask 113664
    %v4752 = vsel %vm4751, %v4687, %v3575
    %v4753 = vsel %vm4751, %v4688, %v3577
    %v4754 = vsel %vm4751, %v4689, %v3579
    %v4755 = vsel %vm4751, %v4690, %v3581
    %v4756 = vsel %vm4751, %v4691, %v3583
    %v4757 = vsel %vm4751, %v4692, %v3585
    %v4758 = vsel %vm4751, %v4693, %v3587
    %v4759 = vsel %vm4751, %v4694, %v3589
    %v4760 = vsel %vm4751, %v4695, %v3591
    %v4761 = vsel %vm4751, %v4696, %v3593
    %v4762 = vsel %vm4751, %v4697, %v3595
    %v4763 = vsel %vm4751, %v4698, %v3597
    %v4764 = vsel %vm4751, %v4699, %v3599
    %v4765 = vsel %vm4751, %v4700, %v3601
    %v4766 = vsel %vm4751, %v4701, %v3603
    %v4767 = vsel %vm4751, %v4702, %v3605
    %v4768 = vsel %vm4751, %v4703, %v3607
    %v4769 = vsel %vm4751, %v4704, %v3609
    %v4770 = vsel %vm4751, %v4705, %v3611
    %v4771 = vsel %vm4751, %v4706, %v3613
    %v4772 = vsel %vm4751, %v4707, %v3615
    %v4773 = vsel %vm4751, %v4708, %v3617
    %v4774 = vsel %vm4751, %v4709, %v3619
    %v4775 = vsel %vm4751, %v4710, %v3621
    %v4776 = vsel %vm4751, %v4711, %v3623
    %v4777 = vsel %vm4751, %v4712, %v3625
    %v4778 = vsel %vm4751, %v4713, %v3627
    %v4779 = vsel %vm4751, %v4714, %v3629
    %v4780 = vsel %vm4751, %v4715, %v3631
    %v4781 = vsel %vm4751, %v4716, %v3633
    %v4782 = vsel %vm4751, %v4717, %v3635
    %v4783 = vsel %vm4751, %v4718, %v3637
    %v4784 = vsel %vm4751, %v4719, %v3639
    %v4785 = vsel %vm4751, %v4720, %v3641
    %v4786 = vsel %vm4751, %v4721, %v3643
    %v4787 = vsel %vm4751, %v4722, %v3645
    %v4788 = vsel %vm4751, %v4723, %v3647
    %v4789 = vsel %vm4751, %v4724, %v3649
    %v4790 = vsel %vm4751, %v4725, %v3651
    %v4791 = vsel %vm4751, %v4726, %v3653
    %v4792 = vsel %vm4751, %v4727, %v3655
    %v4793 = vsel %vm4751, %v4728, %v3657
    %v4794 = vsel %vm4751, %v4729, %v3659
    %v4795 = vsel %vm4751, %v4730, %v3661
    %v4796 = vsel %vm4751, %v4731, %v3663
    %v4797 = vsel %vm4751, %v4732, %v3665
    %v4798 = vsel %vm4751, %v4733, %v3667
    %v4799 = vsel %vm4751, %v4734, %v3669
    %v4800 = vsel %vm4751, %v4735, %v3671
    %v4801 = vsel %vm4751, %v4736, %v3673
    %v4802 = vsel %vm4751, %v4737, %v3675
    %v4803 = vsel %vm4751, %v4738, %v3677
    %v4804 = vsel %vm4751, %v4739, %v3679
    %v4805 = vsel %vm4751, %v4740, %v3681
    %v4806 = vsel %vm4751, %v4741, %v3683
    %v4807 = vsel %vm4751, %v4742, %v3685
    %v4808 = vsel %vm4751, %v4743, %v3687
    %v4809 = vsel %vm4751, %v4744, %v3689
    %v4810 = vsel %vm4751, %v4745, %v3691
    %v4811 = vsel %vm4751, %v4746, %v3693
    %v4812 = vsel %vm4751, %v4747, %v3695
    %v4813 = vsel %vm4751, %v4748, %v3697
    %v4814 = vsel %vm4751, %v4749, %v3699
    %v4815 = vsel %vm4751, %v4750, %v3701
    %vm4816 = vcmask 121856
    %v4817 = vsel %vm4816, %v4752, %v3767
    %v4818 = vsel %vm4816, %v4753, %v3769
    %v4819 = vsel %vm4816, %v4754, %v3771
    %v4820 = vsel %vm4816, %v4755, %v3773
    %v4821 = vsel %vm4816, %v4756, %v3775
    %v4822 = vsel %vm4816, %v4757, %v3777
    %v4823 = vsel %vm4816, %v4758, %v3779
    %v4824 = vsel %vm4816, %v4759, %v3781
    %v4825 = vsel %vm4816, %v4760, %v3783
    %v4826 = vsel %vm4816, %v4761, %v3785
    %v4827 = vsel %vm4816, %v4762, %v3787
    %v4828 = vsel %vm4816, %v4763, %v3789
    %v4829 = vsel %vm4816, %v4764, %v3791
    %v4830 = vsel %vm4816, %v4765, %v3793
    %v4831 = vsel %vm4816, %v4766, %v3795
    %v4832 = vsel %vm4816, %v4767, %v3797
    %v4833 = vsel %vm4816, %v4768, %v3799
    %v4834 = vsel %vm4816, %v4769, %v3801
    %v4835 = vsel %vm4816, %v4770, %v3803
    %v4836 = vsel %vm4816, %v4771, %v3805
    %v4837 = vsel %vm4816, %v4772, %v3807
    %v4838 = vsel %vm4816, %v4773, %v3809
    %v4839 = vsel %vm4816, %v4774, %v3811
    %v4840 = vsel %vm4816, %v4775, %v3813
    %v4841 = vsel %vm4816, %v4776, %v3815
    %v4842 = vsel %vm4816, %v4777, %v3817
    %v4843 = vsel %vm4816, %v4778, %v3819
    %v4844 = vsel %vm4816, %v4779, %v3821
    %v4845 = vsel %vm4816, %v4780, %v3823
    %v4846 = vsel %vm4816, %v4781, %v3825
    %v4847 = vsel %vm4816, %v4782, %v3827
    %v4848 = vsel %vm4816, %v4783, %v3827
    %v4849 = vsel %vm4816, %v4784, %v3829
    %v4850 = vsel %vm4816, %v4785, %v3831
    %v4851 = vsel %vm4816, %v4786, %v3833
    %v4852 = vsel %vm4816, %v4787, %v3835
    %v4853 = vsel %vm4816, %v4788, %v3837
    %v4854 = vsel %vm4816, %v4789, %v3839
    %v4855 = vsel %vm4816, %v4790, %v3841
    %v4856 = vsel %vm4816, %v4791, %v3843
    %v4857 = vsel %vm4816, %v4792, %v3845
    %v4858 = vsel %vm4816, %v4793, %v3847
    %v4859 = vsel %vm4816, %v4794, %v3849
    %v4860 = vsel %vm4816, %v4795, %v3851
    %v4861 = vsel %vm4816, %v4796, %v3853
    %v4862 = vsel %vm4816, %v4797, %v3855
    %v4863 = vsel %vm4816, %v4798, %v3857
    %v4864 = vsel %vm4816, %v4799, %v3859
    %v4865 = vsel %vm4816, %v4800, %v3861
    %v4866 = vsel %vm4816, %v4801, %v3863
    %v4867 = vsel %vm4816, %v4802, %v3865
    %v4868 = vsel %vm4816, %v4803, %v3867
    %v4869 = vsel %vm4816, %v4804, %v3869
    %v4870 = vsel %vm4816, %v4805, %v3871
    %v4871 = vsel %vm4816, %v4806, %v3873
    %v4872 = vsel %vm4816, %v4807, %v3875
    %v4873 = vsel %vm4816, %v4808, %v3877
    %v4874 = vsel %vm4816, %v4809, %v3879
    %v4875 = vsel %vm4816, %v4810, %v3881
    %v4876 = vsel %vm4816, %v4811, %v3883
    %v4877 = vsel %vm4816, %v4812, %v3885
    %v4878 = vsel %vm4816, %v4813, %v3887
    %v4879 = vsel %vm4816, %v4814, %v3827
    %v4880 = vsel %vm4816, %v4815, %v3827
    %4881 = vrot.lane.b32.xlu0 %v639, 1
    %v4882 = vpop.permute.xlu0 %4881
    %4883 = vrot.lane.b32.xlu0 %v641, 1
    %v4884 = vpop.permute.xlu0 %4883
    %4885 = vrot.lane.b32.xlu0 %v644, 1
    %v4886 = vpop.permute.xlu0 %4885
    %4887 = vrot.lane.b32.xlu0 %v646, 1
    %v4888 = vpop.permute.xlu0 %4887
    %4889 = vrot.lane.b32.xlu0 %v649, 1
    %v4890 = vpop.permute.xlu0 %4889
    %4891 = vrot.lane.b32.xlu0 %v651, 1
    %v4892 = vpop.permute.xlu0 %4891
    %4893 = vrot.lane.b32.xlu0 %v654, 1
    %v4894 = vpop.permute.xlu0 %4893
    %4895 = vrot.lane.b32.xlu0 %v656, 1
    %v4896 = vpop.permute.xlu0 %4895
    %4897 = vrot.lane.b32.xlu0 %v659, 1
    %v4898 = vpop.permute.xlu0 %4897
    %4899 = vrot.lane.b32.xlu0 %v661, 1
    %v4900 = vpop.permute.xlu0 %4899
    %4901 = vrot.lane.b32.xlu0 %v664, 1
    %v4902 = vpop.permute.xlu0 %4901
    %4903 = vrot.lane.b32.xlu0 %v666, 1
    %v4904 = vpop.permute.xlu0 %4903
    %4905 = vrot.lane.b32.xlu0 %v669, 1
    %v4906 = vpop.permute.xlu0 %4905
    %4907 = vrot.lane.b32.xlu0 %v671, 1
    %v4908 = vpop.permute.xlu0 %4907
    %4909 = vrot.lane.b32.xlu0 %v674, 1
    %v4910 = vpop.permute.xlu0 %4909
    %4911 = vrot.lane.b32.xlu0 %v676, 1
    %v4912 = vpop.permute.xlu0 %4911
    %4913 = vrot.lane.b32.xlu0 %v679, 1
    %v4914 = vpop.permute.xlu0 %4913
    %4915 = vrot.lane.b32.xlu0 %v681, 1
    %v4916 = vpop.permute.xlu0 %4915
    %4917 = vrot.lane.b32.xlu0 %v684, 1
    %v4918 = vpop.permute.xlu0 %4917
    %4919 = vrot.lane.b32.xlu0 %v686, 1
    %v4920 = vpop.permute.xlu0 %4919
    %4921 = vrot.lane.b32.xlu0 %v689, 1
    %v4922 = vpop.permute.xlu0 %4921
    %4923 = vrot.lane.b32.xlu0 %v691, 1
    %v4924 = vpop.permute.xlu0 %4923
    %4925 = vrot.lane.b32.xlu0 %v694, 1
    %v4926 = vpop.permute.xlu0 %4925
    %4927 = vrot.lane.b32.xlu0 %v696, 1
    %v4928 = vpop.permute.xlu0 %4927
    %4929 = vrot.lane.b32.xlu0 %v699, 1
    %v4930 = vpop.permute.xlu0 %4929
    %4931 = vrot.lane.b32.xlu0 %v701, 1
    %v4932 = vpop.permute.xlu0 %4931
    %4933 = vrot.lane.b32.xlu0 %v1074, 1
    %v4934 = vpop.permute.xlu0 %4933
    %4935 = vrot.lane.b32.xlu0 %v1076, 1
    %v4936 = vpop.permute.xlu0 %4935
    %4937 = vrot.lane.b32.xlu0 %v1118, 1
    %v4938 = vpop.permute.xlu0 %4937
    %4939 = vrot.lane.b32.xlu0 %v1120, 1
    %v4940 = vpop.permute.xlu0 %4939
    %4941 = vrot.lane.b32.xlu0 %v631, 1
    %v4942 = vpop.permute.xlu0 %4941
    %4943 = vrot.lane.b32.xlu0 %v709, 1
    %v4944 = vpop.permute.xlu0 %4943
    %4945 = vrot.lane.b32.xlu0 %v711, 1
    %v4946 = vpop.permute.xlu0 %4945
    %4947 = vrot.lane.b32.xlu0 %v714, 1
    %v4948 = vpop.permute.xlu0 %4947
    %4949 = vrot.lane.b32.xlu0 %v716, 1
    %v4950 = vpop.permute.xlu0 %4949
    %4951 = vrot.lane.b32.xlu0 %v719, 1
    %v4952 = vpop.permute.xlu0 %4951
    %4953 = vrot.lane.b32.xlu0 %v721, 1
    %v4954 = vpop.permute.xlu0 %4953
    %4955 = vrot.lane.b32.xlu0 %v724, 1
    %v4956 = vpop.permute.xlu0 %4955
    %4957 = vrot.lane.b32.xlu0 %v726, 1
    %v4958 = vpop.permute.xlu0 %4957
    %4959 = vrot.lane.b32.xlu0 %v729, 1
    %v4960 = vpop.permute.xlu0 %4959
    %4961 = vrot.lane.b32.xlu0 %v731, 1
    %v4962 = vpop.permute.xlu0 %4961
    %4963 = vrot.lane.b32.xlu0 %v734, 1
    %v4964 = vpop.permute.xlu0 %4963
    %4965 = vrot.lane.b32.xlu0 %v736, 1
    %v4966 = vpop.permute.xlu0 %4965
    %4967 = vrot.lane.b32.xlu0 %v739, 1
    %v4968 = vpop.permute.xlu0 %4967
    %4969 = vrot.lane.b32.xlu0 %v741, 1
    %v4970 = vpop.permute.xlu0 %4969
    %4971 = vrot.lane.b32.xlu0 %v744, 1
    %v4972 = vpop.permute.xlu0 %4971
    %4973 = vrot.lane.b32.xlu0 %v746, 1
    %v4974 = vpop.permute.xlu0 %4973
    %4975 = vrot.lane.b32.xlu0 %v749, 1
    %v4976 = vpop.permute.xlu0 %4975
    %4977 = vrot.lane.b32.xlu0 %v751, 1
    %v4978 = vpop.permute.xlu0 %4977
    %4979 = vrot.lane.b32.xlu0 %v754, 1
    %v4980 = vpop.permute.xlu0 %4979
    %4981 = vrot.lane.b32.xlu0 %v756, 1
    %v4982 = vpop.permute.xlu0 %4981
    %4983 = vrot.lane.b32.xlu0 %v759, 1
    %v4984 = vpop.permute.xlu0 %4983
    %4985 = vrot.lane.b32.xlu0 %v761, 1
    %v4986 = vpop.permute.xlu0 %4985
    %4987 = vrot.lane.b32.xlu0 %v764, 1
    %v4988 = vpop.permute.xlu0 %4987
    %4989 = vrot.lane.b32.xlu0 %v766, 1
    %v4990 = vpop.permute.xlu0 %4989
    %4991 = vrot.lane.b32.xlu0 %v769, 1
    %v4992 = vpop.permute.xlu0 %4991
    %4993 = vrot.lane.b32.xlu0 %v771, 1
    %v4994 = vpop.permute.xlu0 %4993
    %4995 = vrot.lane.b32.xlu0 %v1079, 1
    %v4996 = vpop.permute.xlu0 %4995
    %4997 = vrot.lane.b32.xlu0 %v1081, 1
    %v4998 = vpop.permute.xlu0 %4997
    %4999 = vrot.lane.b32.xlu0 %v1123, 1
    %v5000 = vpop.permute.xlu0 %4999
    %5001 = vrot.lane.b32.xlu0 %v1125, 1
    %v5002 = vpop.permute.xlu0 %5001
    %5064 = vrot.lane.b32.xlu0 %v782, 2
    %v5065 = vpop.permute.xlu0 %5064
    %5066 = vrot.lane.b32.xlu0 %v784, 2
    %v5067 = vpop.permute.xlu0 %5066
    %5068 = vrot.lane.b32.xlu0 %v787, 2
    %v5069 = vpop.permute.xlu0 %5068
    %5070 = vrot.lane.b32.xlu0 %v789, 2
    %v5071 = vpop.permute.xlu0 %5070
    %5072 = vrot.lane.b32.xlu0 %v792, 2
    %v5073 = vpop.permute.xlu0 %5072
    %5074 = vrot.lane.b32.xlu0 %v794, 2
    %v5075 = vpop.permute.xlu0 %5074
    %5076 = vrot.lane.b32.xlu0 %v797, 2
    %v5077 = vpop.permute.xlu0 %5076
    %5078 = vrot.lane.b32.xlu0 %v799, 2
    %v5079 = vpop.permute.xlu0 %5078
    %5080 = vrot.lane.b32.xlu0 %v802, 2
    %v5081 = vpop.permute.xlu0 %5080
    %5082 = vrot.lane.b32.xlu0 %v804, 2
    %v5083 = vpop.permute.xlu0 %5082
    %5084 = vrot.lane.b32.xlu0 %v807, 2
    %v5085 = vpop.permute.xlu0 %5084
    %5086 = vrot.lane.b32.xlu0 %v809, 2
    %v5087 = vpop.permute.xlu0 %5086
    %5088 = vrot.lane.b32.xlu0 %v812, 2
    %v5089 = vpop.permute.xlu0 %5088
    %5090 = vrot.lane.b32.xlu0 %v814, 2
    %v5091 = vpop.permute.xlu0 %5090
    %5092 = vrot.lane.b32.xlu0 %v817, 2
    %v5093 = vpop.permute.xlu0 %5092
    %5094 = vrot.lane.b32.xlu0 %v819, 2
    %v5095 = vpop.permute.xlu0 %5094
    %5096 = vrot.lane.b32.xlu0 %v822, 2
    %v5097 = vpop.permute.xlu0 %5096
    %5098 = vrot.lane.b32.xlu0 %v824, 2
    %v5099 = vpop.permute.xlu0 %5098
    %5100 = vrot.lane.b32.xlu0 %v827, 2
    %v5101 = vpop.permute.xlu0 %5100
    %5102 = vrot.lane.b32.xlu0 %v829, 2
    %v5103 = vpop.permute.xlu0 %5102
    %5104 = vrot.lane.b32.xlu0 %v832, 2
    %v5105 = vpop.permute.xlu0 %5104
    %5106 = vrot.lane.b32.xlu0 %v834, 2
    %v5107 = vpop.permute.xlu0 %5106
    %5108 = vrot.lane.b32.xlu0 %v837, 2
    %v5109 = vpop.permute.xlu0 %5108
    %5110 = vrot.lane.b32.xlu0 %v839, 2
    %v5111 = vpop.permute.xlu0 %5110
    %5112 = vrot.lane.b32.xlu0 %v842, 2
    %v5113 = vpop.permute.xlu0 %5112
    %5114 = vrot.lane.b32.xlu0 %v844, 2
    %v5115 = vpop.permute.xlu0 %5114
    %5116 = vrot.lane.b32.xlu0 %v1084, 2
    %v5117 = vpop.permute.xlu0 %5116
    %5118 = vrot.lane.b32.xlu0 %v1086, 2
    %v5119 = vpop.permute.xlu0 %5118
    %5120 = vrot.lane.b32.xlu0 %v1128, 2
    %v5121 = vpop.permute.xlu0 %5120
    %5122 = vrot.lane.b32.xlu0 %v1130, 2
    %v5123 = vpop.permute.xlu0 %5122
    %5124 = vrot.lane.b32.xlu0 %v774, 2
    %v5125 = vpop.permute.xlu0 %5124
    %5126 = vrot.lane.b32.xlu0 %v852, 2
    %v5127 = vpop.permute.xlu0 %5126
    %5128 = vrot.lane.b32.xlu0 %v854, 2
    %v5129 = vpop.permute.xlu0 %5128
    %5130 = vrot.lane.b32.xlu0 %v857, 2
    %v5131 = vpop.permute.xlu0 %5130
    %5132 = vrot.lane.b32.xlu0 %v859, 2
    %v5133 = vpop.permute.xlu0 %5132
    %5134 = vrot.lane.b32.xlu0 %v862, 2
    %v5135 = vpop.permute.xlu0 %5134
    %5136 = vrot.lane.b32.xlu0 %v864, 2
    %v5137 = vpop.permute.xlu0 %5136
    %5138 = vrot.lane.b32.xlu0 %v867, 2
    %v5139 = vpop.permute.xlu0 %5138
    %5140 = vrot.lane.b32.xlu0 %v869, 2
    %v5141 = vpop.permute.xlu0 %5140
    %5142 = vrot.lane.b32.xlu0 %v872, 2
    %v5143 = vpop.permute.xlu0 %5142
    %5144 = vrot.lane.b32.xlu0 %v874, 2
    %v5145 = vpop.permute.xlu0 %5144
    %5146 = vrot.lane.b32.xlu0 %v877, 2
    %v5147 = vpop.permute.xlu0 %5146
    %5148 = vrot.lane.b32.xlu0 %v879, 2
    %v5149 = vpop.permute.xlu0 %5148
    %5150 = vrot.lane.b32.xlu0 %v882, 2
    %v5151 = vpop.permute.xlu0 %5150
    %5152 = vrot.lane.b32.xlu0 %v884, 2
    %v5153 = vpop.permute.xlu0 %5152
    %5154 = vrot.lane.b32.xlu0 %v887, 2
    %v5155 = vpop.permute.xlu0 %5154
    %5156 = vrot.lane.b32.xlu0 %v889, 2
    %v5157 = vpop.permute.xlu0 %5156
    %5158 = vrot.lane.b32.xlu0 %v892, 2
    %v5159 = vpop.permute.xlu0 %5158
    %5160 = vrot.lane.b32.xlu0 %v894, 2
    %v5161 = vpop.permute.xlu0 %5160
    %5162 = vrot.lane.b32.xlu0 %v897, 2
    %v5163 = vpop.permute.xlu0 %5162
    %5164 = vrot.lane.b32.xlu0 %v899, 2
    %v5165 = vpop.permute.xlu0 %5164
    %5166 = vrot.lane.b32.xlu0 %v902, 2
    %v5167 = vpop.permute.xlu0 %5166
    %5168 = vrot.lane.b32.xlu0 %v904, 2
    %v5169 = vpop.permute.xlu0 %5168
    %5170 = vrot.lane.b32.xlu0 %v907, 2
    %v5171 = vpop.permute.xlu0 %5170
    %5172 = vrot.lane.b32.xlu0 %v909, 2
    %v5173 = vpop.permute.xlu0 %5172
    %5174 = vrot.lane.b32.xlu0 %v912, 2
    %v5175 = vpop.permute.xlu0 %5174
    %5176 = vrot.lane.b32.xlu0 %v914, 2
    %v5177 = vpop.permute.xlu0 %5176
    %5178 = vrot.lane.b32.xlu0 %v1089, 2
    %v5179 = vpop.permute.xlu0 %5178
    %5180 = vrot.lane.b32.xlu0 %v1091, 2
    %v5181 = vpop.permute.xlu0 %5180
    %5182 = vrot.lane.b32.xlu0 %v1133, 2
    %v5183 = vpop.permute.xlu0 %5182
    %5184 = vrot.lane.b32.xlu0 %v1135, 2
    %v5185 = vpop.permute.xlu0 %5184
    %5247 = vrot.lane.b32.xlu0 %v925, 3
    %v5248 = vpop.permute.xlu0 %5247
    %5249 = vrot.lane.b32.xlu0 %v927, 3
    %v5250 = vpop.permute.xlu0 %5249
    %5251 = vrot.lane.b32.xlu0 %v930, 3
    %v5252 = vpop.permute.xlu0 %5251
    %5253 = vrot.lane.b32.xlu0 %v932, 3
    %v5254 = vpop.permute.xlu0 %5253
    %5255 = vrot.lane.b32.xlu0 %v935, 3
    %v5256 = vpop.permute.xlu0 %5255
    %5257 = vrot.lane.b32.xlu0 %v937, 3
    %v5258 = vpop.permute.xlu0 %5257
    %5259 = vrot.lane.b32.xlu0 %v940, 3
    %v5260 = vpop.permute.xlu0 %5259
    %5261 = vrot.lane.b32.xlu0 %v942, 3
    %v5262 = vpop.permute.xlu0 %5261
    %5263 = vrot.lane.b32.xlu0 %v945, 3
    %v5264 = vpop.permute.xlu0 %5263
    %5265 = vrot.lane.b32.xlu0 %v947, 3
    %v5266 = vpop.permute.xlu0 %5265
    %5267 = vrot.lane.b32.xlu0 %v950, 3
    %v5268 = vpop.permute.xlu0 %5267
    %5269 = vrot.lane.b32.xlu0 %v952, 3
    %v5270 = vpop.permute.xlu0 %5269
    %5271 = vrot.lane.b32.xlu0 %v955, 3
    %v5272 = vpop.permute.xlu0 %5271
    %5273 = vrot.lane.b32.xlu0 %v957, 3
    %v5274 = vpop.permute.xlu0 %5273
    %5275 = vrot.lane.b32.xlu0 %v960, 3
    %v5276 = vpop.permute.xlu0 %5275
    %5277 = vrot.lane.b32.xlu0 %v962, 3
    %v5278 = vpop.permute.xlu0 %5277
    %5279 = vrot.lane.b32.xlu0 %v965, 3
    %v5280 = vpop.permute.xlu0 %5279
    %5281 = vrot.lane.b32.xlu0 %v967, 3
    %v5282 = vpop.permute.xlu0 %5281
    %5283 = vrot.lane.b32.xlu0 %v970, 3
    %v5284 = vpop.permute.xlu0 %5283
    %5285 = vrot.lane.b32.xlu0 %v972, 3
    %v5286 = vpop.permute.xlu0 %5285
    %5287 = vrot.lane.b32.xlu0 %v975, 3
    %v5288 = vpop.permute.xlu0 %5287
    %5289 = vrot.lane.b32.xlu0 %v977, 3
    %v5290 = vpop.permute.xlu0 %5289
    %5291 = vrot.lane.b32.xlu0 %v980, 3
    %v5292 = vpop.permute.xlu0 %5291
    %5293 = vrot.lane.b32.xlu0 %v982, 3
    %v5294 = vpop.permute.xlu0 %5293
    %5295 = vrot.lane.b32.xlu0 %v985, 3
    %v5296 = vpop.permute.xlu0 %5295
    %5297 = vrot.lane.b32.xlu0 %v987, 3
    %v5298 = vpop.permute.xlu0 %5297
    %5299 = vrot.lane.b32.xlu0 %v1094, 3
    %v5300 = vpop.permute.xlu0 %5299
    %5301 = vrot.lane.b32.xlu0 %v1096, 3
    %v5302 = vpop.permute.xlu0 %5301
    %5303 = vrot.lane.b32.xlu0 %v1138, 3
    %v5304 = vpop.permute.xlu0 %5303
    %5305 = vrot.lane.b32.xlu0 %v1140, 3
    %v5306 = vpop.permute.xlu0 %5305
    %5307 = vrot.lane.b32.xlu0 %v917, 3
    %v5308 = vpop.permute.xlu0 %5307
    %5309 = vrot.lane.b32.xlu0 %v995, 3
    %v5310 = vpop.permute.xlu0 %5309
    %5311 = vrot.lane.b32.xlu0 %v997, 3
    %v5312 = vpop.permute.xlu0 %5311
    %5313 = vrot.lane.b32.xlu0 %v1000, 3
    %v5314 = vpop.permute.xlu0 %5313
    %5315 = vrot.lane.b32.xlu0 %v1002, 3
    %v5316 = vpop.permute.xlu0 %5315
    %5317 = vrot.lane.b32.xlu0 %v1005, 3
    %v5318 = vpop.permute.xlu0 %5317
    %5319 = vrot.lane.b32.xlu0 %v1007, 3
    %v5320 = vpop.permute.xlu0 %5319
    %5321 = vrot.lane.b32.xlu0 %v1010, 3
    %v5322 = vpop.permute.xlu0 %5321
    %5323 = vrot.lane.b32.xlu0 %v1012, 3
    %v5324 = vpop.permute.xlu0 %5323
    %5325 = vrot.lane.b32.xlu0 %v1015, 3
    %v5326 = vpop.permute.xlu0 %5325
    %5327 = vrot.lane.b32.xlu0 %v1017, 3
    %v5328 = vpop.permute.xlu0 %5327
    %5329 = vrot.lane.b32.xlu0 %v1020, 3
    %v5330 = vpop.permute.xlu0 %5329
    %5331 = vrot.lane.b32.xlu0 %v1022, 3
    %v5332 = vpop.permute.xlu0 %5331
    %5333 = vrot.lane.b32.xlu0 %v1025, 3
    %v5334 = vpop.permute.xlu0 %5333
    %5335 = vrot.lane.b32.xlu0 %v1027, 3
    %v5336 = vpop.permute.xlu0 %5335
    %5337 = vrot.lane.b32.xlu0 %v1030, 3
    %v5338 = vpop.permute.xlu0 %5337
    %5339 = vrot.lane.b32.xlu0 %v1032, 3
    %v5340 = vpop.permute.xlu0 %5339
    %5341 = vrot.lane.b32.xlu0 %v1035, 3
    %v5342 = vpop.permute.xlu0 %5341
    %5343 = vrot.lane.b32.xlu0 %v1037, 3
    %v5344 = vpop.permute.xlu0 %5343
    %5345 = vrot.lane.b32.xlu0 %v1040, 3
    %v5346 = vpop.permute.xlu0 %5345
    %5347 = vrot.lane.b32.xlu0 %v1042, 3
    %v5348 = vpop.permute.xlu0 %5347
    %5349 = vrot.lane.b32.xlu0 %v1045, 3
    %v5350 = vpop.permute.xlu0 %5349
    %5351 = vrot.lane.b32.xlu0 %v1047, 3
    %v5352 = vpop.permute.xlu0 %5351
    %5353 = vrot.lane.b32.xlu0 %v1050, 3
    %v5354 = vpop.permute.xlu0 %5353
    %5355 = vrot.lane.b32.xlu0 %v1052, 3
    %v5356 = vpop.permute.xlu0 %5355
    %5357 = vrot.lane.b32.xlu0 %v1055, 3
    %v5358 = vpop.permute.xlu0 %5357
    %5359 = vrot.lane.b32.xlu0 %v1057, 3
    %v5360 = vpop.permute.xlu0 %5359
    %5361 = vrot.lane.b32.xlu0 %v1099, 3
    %v5362 = vpop.permute.xlu0 %5361
    %5363 = vrot.lane.b32.xlu0 %v1101, 3
    %v5364 = vpop.permute.xlu0 %5363
    %5365 = vrot.lane.b32.xlu0 %v1143, 3
    %v5366 = vpop.permute.xlu0 %5365
    %5367 = vrot.lane.b32.xlu0 %v1145, 3
    %v5368 = vpop.permute.xlu0 %5367
    %5430 = vrot.lane.b32.xlu0 %v367, 4
    %v5431 = vpop.permute.xlu0 %5430
    %5432 = vrot.lane.b32.xlu0 %v185, 4
    %v5433 = vpop.permute.xlu0 %5432
    %5434 = vrot.lane.b32.xlu0 %v368, 4
    %v5435 = vpop.permute.xlu0 %5434
    %5436 = vrot.lane.b32.xlu0 %v188, 4
    %v5437 = vpop.permute.xlu0 %5436
    %5438 = vrot.lane.b32.xlu0 %v369, 4
    %v5439 = vpop.permute.xlu0 %5438
    %5440 = vrot.lane.b32.xlu0 %v191, 4
    %v5441 = vpop.permute.xlu0 %5440
    %5442 = vrot.lane.b32.xlu0 %v370, 4
    %v5443 = vpop.permute.xlu0 %5442
    %5444 = vrot.lane.b32.xlu0 %v194, 4
    %v5445 = vpop.permute.xlu0 %5444
    %5446 = vrot.lane.b32.xlu0 %v371, 4
    %v5447 = vpop.permute.xlu0 %5446
    %5448 = vrot.lane.b32.xlu0 %v197, 4
    %v5449 = vpop.permute.xlu0 %5448
    %5450 = vrot.lane.b32.xlu0 %v372, 4
    %v5451 = vpop.permute.xlu0 %5450
    %5452 = vrot.lane.b32.xlu0 %v200, 4
    %v5453 = vpop.permute.xlu0 %5452
    %5454 = vrot.lane.b32.xlu0 %v373, 4
    %v5455 = vpop.permute.xlu0 %5454
    %5456 = vrot.lane.b32.xlu0 %v203, 4
    %v5457 = vpop.permute.xlu0 %5456
    %5458 = vrot.lane.b32.xlu0 %v374, 4
    %v5459 = vpop.permute.xlu0 %5458
    %5460 = vrot.lane.b32.xlu0 %v206, 4
    %v5461 = vpop.permute.xlu0 %5460
    %5462 = vrot.lane.b32.xlu0 %v375, 4
    %v5463 = vpop.permute.xlu0 %5462
    %5464 = vrot.lane.b32.xlu0 %v209, 4
    %v5465 = vpop.permute.xlu0 %5464
    %5466 = vrot.lane.b32.xlu0 %v376, 4
    %v5467 = vpop.permute.xlu0 %5466
    %5468 = vrot.lane.b32.xlu0 %v212, 4
    %v5469 = vpop.permute.xlu0 %5468
    %5470 = vrot.lane.b32.xlu0 %v377, 4
    %v5471 = vpop.permute.xlu0 %5470
    %5472 = vrot.lane.b32.xlu0 %v215, 4
    %v5473 = vpop.permute.xlu0 %5472
    %5474 = vrot.lane.b32.xlu0 %v378, 4
    %v5475 = vpop.permute.xlu0 %5474
    %5476 = vrot.lane.b32.xlu0 %v218, 4
    %v5477 = vpop.permute.xlu0 %5476
    %5478 = vrot.lane.b32.xlu0 %v379, 4
    %v5479 = vpop.permute.xlu0 %5478
    %5480 = vrot.lane.b32.xlu0 %v221, 4
    %v5481 = vpop.permute.xlu0 %5480
    %5482 = vrot.lane.b32.xlu0 %v380, 4
    %v5483 = vpop.permute.xlu0 %5482
    %5484 = vrot.lane.b32.xlu0 %v224, 4
    %v5485 = vpop.permute.xlu0 %5484
    %5486 = vrot.lane.b32.xlu0 0.0, 4
    %v5487 = vpop.permute.xlu0 %5486
    %5488 = vrot.lane.b32.xlu0 %v383, 4
    %v5489 = vpop.permute.xlu0 %5488
    %5490 = vrot.lane.b32.xlu0 %v233, 4
    %v5491 = vpop.permute.xlu0 %5490
    %5492 = vrot.lane.b32.xlu0 %v384, 4
    %v5493 = vpop.permute.xlu0 %5492
    %5494 = vrot.lane.b32.xlu0 %v236, 4
    %v5495 = vpop.permute.xlu0 %5494
    %5496 = vrot.lane.b32.xlu0 %v385, 4
    %v5497 = vpop.permute.xlu0 %5496
    %5498 = vrot.lane.b32.xlu0 %v239, 4
    %v5499 = vpop.permute.xlu0 %5498
    %5500 = vrot.lane.b32.xlu0 %v386, 4
    %v5501 = vpop.permute.xlu0 %5500
    %5502 = vrot.lane.b32.xlu0 %v242, 4
    %v5503 = vpop.permute.xlu0 %5502
    %5504 = vrot.lane.b32.xlu0 %v387, 4
    %v5505 = vpop.permute.xlu0 %5504
    %5506 = vrot.lane.b32.xlu0 %v245, 4
    %v5507 = vpop.permute.xlu0 %5506
    %5508 = vrot.lane.b32.xlu0 %v388, 4
    %v5509 = vpop.permute.xlu0 %5508
    %5510 = vrot.lane.b32.xlu0 %v248, 4
    %v5511 = vpop.permute.xlu0 %5510
    %5512 = vrot.lane.b32.xlu0 %v389, 4
    %v5513 = vpop.permute.xlu0 %5512
    %5514 = vrot.lane.b32.xlu0 %v251, 4
    %v5515 = vpop.permute.xlu0 %5514
    %5516 = vrot.lane.b32.xlu0 %v390, 4
    %v5517 = vpop.permute.xlu0 %5516
    %5518 = vrot.lane.b32.xlu0 %v254, 4
    %v5519 = vpop.permute.xlu0 %5518
    %5520 = vrot.lane.b32.xlu0 %v391, 4
    %v5521 = vpop.permute.xlu0 %5520
    %5522 = vrot.lane.b32.xlu0 %v257, 4
    %v5523 = vpop.permute.xlu0 %5522
    %5524 = vrot.lane.b32.xlu0 %v392, 4
    %v5525 = vpop.permute.xlu0 %5524
    %5526 = vrot.lane.b32.xlu0 %v260, 4
    %v5527 = vpop.permute.xlu0 %5526
    %5528 = vrot.lane.b32.xlu0 %v393, 4
    %v5529 = vpop.permute.xlu0 %5528
    %5530 = vrot.lane.b32.xlu0 %v263, 4
    %v5531 = vpop.permute.xlu0 %5530
    %5532 = vrot.lane.b32.xlu0 %v394, 4
    %v5533 = vpop.permute.xlu0 %5532
    %5534 = vrot.lane.b32.xlu0 %v266, 4
    %v5535 = vpop.permute.xlu0 %5534
    %5536 = vrot.lane.b32.xlu0 %v395, 4
    %v5537 = vpop.permute.xlu0 %5536
    %5538 = vrot.lane.b32.xlu0 %v269, 4
    %v5539 = vpop.permute.xlu0 %5538
    %5540 = vrot.lane.b32.xlu0 %v396, 4
    %v5541 = vpop.permute.xlu0 %5540
    %5542 = vrot.lane.b32.xlu0 %v272, 4
    %v5543 = vpop.permute.xlu0 %5542
    %5601 = vrot.lane.b32.xlu0 %v501, 5
    %v5602 = vpop.permute.xlu0 %5601
    %5603 = vrot.lane.b32.xlu0 %v503, 5
    %v5604 = vpop.permute.xlu0 %5603
    %5605 = vrot.lane.b32.xlu0 %v506, 5
    %v5606 = vpop.permute.xlu0 %5605
    %5607 = vrot.lane.b32.xlu0 %v508, 5
    %v5608 = vpop.permute.xlu0 %5607
    %5609 = vrot.lane.b32.xlu0 %v511, 5
    %v5610 = vpop.permute.xlu0 %5609
    %5611 = vrot.lane.b32.xlu0 %v513, 5
    %v5612 = vpop.permute.xlu0 %5611
    %5613 = vrot.lane.b32.xlu0 %v516, 5
    %v5614 = vpop.permute.xlu0 %5613
    %5615 = vrot.lane.b32.xlu0 %v518, 5
    %v5616 = vpop.permute.xlu0 %5615
    %5617 = vrot.lane.b32.xlu0 %v521, 5
    %v5618 = vpop.permute.xlu0 %5617
    %5619 = vrot.lane.b32.xlu0 %v523, 5
    %v5620 = vpop.permute.xlu0 %5619
    %5621 = vrot.lane.b32.xlu0 %v526, 5
    %v5622 = vpop.permute.xlu0 %5621
    %5623 = vrot.lane.b32.xlu0 %v528, 5
    %v5624 = vpop.permute.xlu0 %5623
    %5625 = vrot.lane.b32.xlu0 %v531, 5
    %v5626 = vpop.permute.xlu0 %5625
    %5627 = vrot.lane.b32.xlu0 %v533, 5
    %v5628 = vpop.permute.xlu0 %5627
    %5629 = vrot.lane.b32.xlu0 %v536, 5
    %v5630 = vpop.permute.xlu0 %5629
    %5631 = vrot.lane.b32.xlu0 %v538, 5
    %v5632 = vpop.permute.xlu0 %5631
    %5633 = vrot.lane.b32.xlu0 %v541, 5
    %v5634 = vpop.permute.xlu0 %5633
    %5635 = vrot.lane.b32.xlu0 %v543, 5
    %v5636 = vpop.permute.xlu0 %5635
    %5637 = vrot.lane.b32.xlu0 %v546, 5
    %v5638 = vpop.permute.xlu0 %5637
    %5639 = vrot.lane.b32.xlu0 %v548, 5
    %v5640 = vpop.permute.xlu0 %5639
    %5641 = vrot.lane.b32.xlu0 %v551, 5
    %v5642 = vpop.permute.xlu0 %5641
    %5643 = vrot.lane.b32.xlu0 %v553, 5
    %v5644 = vpop.permute.xlu0 %5643
    %5645 = vrot.lane.b32.xlu0 %v556, 5
    %v5646 = vpop.permute.xlu0 %5645
    %5647 = vrot.lane.b32.xlu0 %v558, 5
    %v5648 = vpop.permute.xlu0 %5647
    %5649 = vrot.lane.b32.xlu0 %v1064, 5
    %v5650 = vpop.permute.xlu0 %5649
    %5651 = vrot.lane.b32.xlu0 %v1066, 5
    %v5652 = vpop.permute.xlu0 %5651
    %5653 = vrot.lane.b32.xlu0 %v1108, 5
    %v5654 = vpop.permute.xlu0 %5653
    %5655 = vrot.lane.b32.xlu0 %v1110, 5
    %v5656 = vpop.permute.xlu0 %5655
    %5657 = vrot.lane.b32.xlu0 %v488, 5
    %v5658 = vpop.permute.xlu0 %5657
    %5659 = vrot.lane.b32.xlu0 %v571, 5
    %v5660 = vpop.permute.xlu0 %5659
    %5661 = vrot.lane.b32.xlu0 %v573, 5
    %v5662 = vpop.permute.xlu0 %5661
    %5663 = vrot.lane.b32.xlu0 %v576, 5
    %v5664 = vpop.permute.xlu0 %5663
    %5665 = vrot.lane.b32.xlu0 %v578, 5
    %v5666 = vpop.permute.xlu0 %5665
    %5667 = vrot.lane.b32.xlu0 %v581, 5
    %v5668 = vpop.permute.xlu0 %5667
    %5669 = vrot.lane.b32.xlu0 %v583, 5
    %v5670 = vpop.permute.xlu0 %5669
    %5671 = vrot.lane.b32.xlu0 %v586, 5
    %v5672 = vpop.permute.xlu0 %5671
    %5673 = vrot.lane.b32.xlu0 %v588, 5
    %v5674 = vpop.permute.xlu0 %5673
    %5675 = vrot.lane.b32.xlu0 %v591, 5
    %v5676 = vpop.permute.xlu0 %5675
    %5677 = vrot.lane.b32.xlu0 %v593, 5
    %v5678 = vpop.permute.xlu0 %5677
    %5679 = vrot.lane.b32.xlu0 %v596, 5
    %v5680 = vpop.permute.xlu0 %5679
    %5681 = vrot.lane.b32.xlu0 %v598, 5
    %v5682 = vpop.permute.xlu0 %5681
    %5683 = vrot.lane.b32.xlu0 %v601, 5
    %v5684 = vpop.permute.xlu0 %5683
    %5685 = vrot.lane.b32.xlu0 %v603, 5
    %v5686 = vpop.permute.xlu0 %5685
    %5687 = vrot.lane.b32.xlu0 %v606, 5
    %v5688 = vpop.permute.xlu0 %5687
    %5689 = vrot.lane.b32.xlu0 %v608, 5
    %v5690 = vpop.permute.xlu0 %5689
    %5691 = vrot.lane.b32.xlu0 %v611, 5
    %v5692 = vpop.permute.xlu0 %5691
    %5693 = vrot.lane.b32.xlu0 %v613, 5
    %v5694 = vpop.permute.xlu0 %5693
    %5695 = vrot.lane.b32.xlu0 %v616, 5
    %v5696 = vpop.permute.xlu0 %5695
    %5697 = vrot.lane.b32.xlu0 %v618, 5
    %v5698 = vpop.permute.xlu0 %5697
    %5699 = vrot.lane.b32.xlu0 %v621, 5
    %v5700 = vpop.permute.xlu0 %5699
    %5701 = vrot.lane.b32.xlu0 %v623, 5
    %v5702 = vpop.permute.xlu0 %5701
    %5703 = vrot.lane.b32.xlu0 %v626, 5
    %v5704 = vpop.permute.xlu0 %5703
    %5705 = vrot.lane.b32.xlu0 %v628, 5
    %v5706 = vpop.permute.xlu0 %5705
    %5707 = vrot.lane.b32.xlu0 %v1069, 5
    %v5708 = vpop.permute.xlu0 %5707
    %5709 = vrot.lane.b32.xlu0 %v1071, 5
    %v5710 = vpop.permute.xlu0 %5709
    %5711 = vrot.lane.b32.xlu0 %v1113, 5
    %v5712 = vpop.permute.xlu0 %5711
    %5713 = vrot.lane.b32.xlu0 %v1115, 5
    %v5714 = vpop.permute.xlu0 %5713
    %5772 = vrot.lane.b32.xlu0 %v644, 6
    %v5773 = vpop.permute.xlu0 %5772
    %5774 = vrot.lane.b32.xlu0 %v646, 6
    %v5775 = vpop.permute.xlu0 %5774
    %5776 = vrot.lane.b32.xlu0 %v649, 6
    %v5777 = vpop.permute.xlu0 %5776
    %5778 = vrot.lane.b32.xlu0 %v651, 6
    %v5779 = vpop.permute.xlu0 %5778
    %5780 = vrot.lane.b32.xlu0 %v654, 6
    %v5781 = vpop.permute.xlu0 %5780
    %5782 = vrot.lane.b32.xlu0 %v656, 6
    %v5783 = vpop.permute.xlu0 %5782
    %5784 = vrot.lane.b32.xlu0 %v659, 6
    %v5785 = vpop.permute.xlu0 %5784
    %5786 = vrot.lane.b32.xlu0 %v661, 6
    %v5787 = vpop.permute.xlu0 %5786
    %5788 = vrot.lane.b32.xlu0 %v664, 6
    %v5789 = vpop.permute.xlu0 %5788
    %5790 = vrot.lane.b32.xlu0 %v666, 6
    %v5791 = vpop.permute.xlu0 %5790
    %5792 = vrot.lane.b32.xlu0 %v669, 6
    %v5793 = vpop.permute.xlu0 %5792
    %5794 = vrot.lane.b32.xlu0 %v671, 6
    %v5795 = vpop.permute.xlu0 %5794
    %5796 = vrot.lane.b32.xlu0 %v674, 6
    %v5797 = vpop.permute.xlu0 %5796
    %5798 = vrot.lane.b32.xlu0 %v676, 6
    %v5799 = vpop.permute.xlu0 %5798
    %5800 = vrot.lane.b32.xlu0 %v679, 6
    %v5801 = vpop.permute.xlu0 %5800
    %5802 = vrot.lane.b32.xlu0 %v681, 6
    %v5803 = vpop.permute.xlu0 %5802
    %5804 = vrot.lane.b32.xlu0 %v684, 6
    %v5805 = vpop.permute.xlu0 %5804
    %5806 = vrot.lane.b32.xlu0 %v686, 6
    %v5807 = vpop.permute.xlu0 %5806
    %5808 = vrot.lane.b32.xlu0 %v689, 6
    %v5809 = vpop.permute.xlu0 %5808
    %5810 = vrot.lane.b32.xlu0 %v691, 6
    %v5811 = vpop.permute.xlu0 %5810
    %5812 = vrot.lane.b32.xlu0 %v694, 6
    %v5813 = vpop.permute.xlu0 %5812
    %5814 = vrot.lane.b32.xlu0 %v696, 6
    %v5815 = vpop.permute.xlu0 %5814
    %5816 = vrot.lane.b32.xlu0 %v699, 6
    %v5817 = vpop.permute.xlu0 %5816
    %5818 = vrot.lane.b32.xlu0 %v701, 6
    %v5819 = vpop.permute.xlu0 %5818
    %5820 = vrot.lane.b32.xlu0 %v1074, 6
    %v5821 = vpop.permute.xlu0 %5820
    %5822 = vrot.lane.b32.xlu0 %v1076, 6
    %v5823 = vpop.permute.xlu0 %5822
    %5824 = vrot.lane.b32.xlu0 %v1118, 6
    %v5825 = vpop.permute.xlu0 %5824
    %5826 = vrot.lane.b32.xlu0 %v1120, 6
    %v5827 = vpop.permute.xlu0 %5826
    %5828 = vrot.lane.b32.xlu0 %v631, 6
    %v5829 = vpop.permute.xlu0 %5828
    %5830 = vrot.lane.b32.xlu0 %v714, 6
    %v5831 = vpop.permute.xlu0 %5830
    %5832 = vrot.lane.b32.xlu0 %v716, 6
    %v5833 = vpop.permute.xlu0 %5832
    %5834 = vrot.lane.b32.xlu0 %v719, 6
    %v5835 = vpop.permute.xlu0 %5834
    %5836 = vrot.lane.b32.xlu0 %v721, 6
    %v5837 = vpop.permute.xlu0 %5836
    %5838 = vrot.lane.b32.xlu0 %v724, 6
    %v5839 = vpop.permute.xlu0 %5838
    %5840 = vrot.lane.b32.xlu0 %v726, 6
    %v5841 = vpop.permute.xlu0 %5840
    %5842 = vrot.lane.b32.xlu0 %v729, 6
    %v5843 = vpop.permute.xlu0 %5842
    %5844 = vrot.lane.b32.xlu0 %v731, 6
    %v5845 = vpop.permute.xlu0 %5844
    %5846 = vrot.lane.b32.xlu0 %v734, 6
    %v5847 = vpop.permute.xlu0 %5846
    %5848 = vrot.lane.b32.xlu0 %v736, 6
    %v5849 = vpop.permute.xlu0 %5848
    %5850 = vrot.lane.b32.xlu0 %v739, 6
    %v5851 = vpop.permute.xlu0 %5850
    %5852 = vrot.lane.b32.xlu0 %v741, 6
    %v5853 = vpop.permute.xlu0 %5852
    %5854 = vrot.lane.b32.xlu0 %v744, 6
    %v5855 = vpop.permute.xlu0 %5854
    %5856 = vrot.lane.b32.xlu0 %v746, 6
    %v5857 = vpop.permute.xlu0 %5856
    %5858 = vrot.lane.b32.xlu0 %v749, 6
    %v5859 = vpop.permute.xlu0 %5858
    %5860 = vrot.lane.b32.xlu0 %v751, 6
    %v5861 = vpop.permute.xlu0 %5860
    %5862 = vrot.lane.b32.xlu0 %v754, 6
    %v5863 = vpop.permute.xlu0 %5862
    %5864 = vrot.lane.b32.xlu0 %v756, 6
    %v5865 = vpop.permute.xlu0 %5864
    %5866 = vrot.lane.b32.xlu0 %v759, 6
    %v5867 = vpop.permute.xlu0 %5866
    %5868 = vrot.lane.b32.xlu0 %v761, 6
    %v5869 = vpop.permute.xlu0 %5868
    %5870 = vrot.lane.b32.xlu0 %v764, 6
    %v5871 = vpop.permute.xlu0 %5870
    %5872 = vrot.lane.b32.xlu0 %v766, 6
    %v5873 = vpop.permute.xlu0 %5872
    %5874 = vrot.lane.b32.xlu0 %v769, 6
    %v5875 = vpop.permute.xlu0 %5874
    %5876 = vrot.lane.b32.xlu0 %v771, 6
    %v5877 = vpop.permute.xlu0 %5876
    %5878 = vrot.lane.b32.xlu0 %v1079, 6
    %v5879 = vpop.permute.xlu0 %5878
    %5880 = vrot.lane.b32.xlu0 %v1081, 6
    %v5881 = vpop.permute.xlu0 %5880
    %5882 = vrot.lane.b32.xlu0 %v1123, 6
    %v5883 = vpop.permute.xlu0 %5882
    %5884 = vrot.lane.b32.xlu0 %v1125, 6
    %v5885 = vpop.permute.xlu0 %5884
    %5943 = vrot.lane.b32.xlu0 %v787, 7
    %v5944 = vpop.permute.xlu0 %5943
    %5945 = vrot.lane.b32.xlu0 %v789, 7
    %v5946 = vpop.permute.xlu0 %5945
    %5947 = vrot.lane.b32.xlu0 %v792, 7
    %v5948 = vpop.permute.xlu0 %5947
    %5949 = vrot.lane.b32.xlu0 %v794, 7
    %v5950 = vpop.permute.xlu0 %5949
    %5951 = vrot.lane.b32.xlu0 %v797, 7
    %v5952 = vpop.permute.xlu0 %5951
    %5953 = vrot.lane.b32.xlu0 %v799, 7
    %v5954 = vpop.permute.xlu0 %5953
    %5955 = vrot.lane.b32.xlu0 %v802, 7
    %v5956 = vpop.permute.xlu0 %5955
    %5957 = vrot.lane.b32.xlu0 %v804, 7
    %v5958 = vpop.permute.xlu0 %5957
    %5959 = vrot.lane.b32.xlu0 %v807, 7
    %v5960 = vpop.permute.xlu0 %5959
    %5961 = vrot.lane.b32.xlu0 %v809, 7
    %v5962 = vpop.permute.xlu0 %5961
    %5963 = vrot.lane.b32.xlu0 %v812, 7
    %v5964 = vpop.permute.xlu0 %5963
    %5965 = vrot.lane.b32.xlu0 %v814, 7
    %v5966 = vpop.permute.xlu0 %5965
    %5967 = vrot.lane.b32.xlu0 %v817, 7
    %v5968 = vpop.permute.xlu0 %5967
    %5969 = vrot.lane.b32.xlu0 %v819, 7
    %v5970 = vpop.permute.xlu0 %5969
    %5971 = vrot.lane.b32.xlu0 %v822, 7
    %v5972 = vpop.permute.xlu0 %5971
    %5973 = vrot.lane.b32.xlu0 %v824, 7
    %v5974 = vpop.permute.xlu0 %5973
    %5975 = vrot.lane.b32.xlu0 %v827, 7
    %v5976 = vpop.permute.xlu0 %5975
    %5977 = vrot.lane.b32.xlu0 %v829, 7
    %v5978 = vpop.permute.xlu0 %5977
    %5979 = vrot.lane.b32.xlu0 %v832, 7
    %v5980 = vpop.permute.xlu0 %5979
    %5981 = vrot.lane.b32.xlu0 %v834, 7
    %v5982 = vpop.permute.xlu0 %5981
    %5983 = vrot.lane.b32.xlu0 %v837, 7
    %v5984 = vpop.permute.xlu0 %5983
    %5985 = vrot.lane.b32.xlu0 %v839, 7
    %v5986 = vpop.permute.xlu0 %5985
    %5987 = vrot.lane.b32.xlu0 %v842, 7
    %v5988 = vpop.permute.xlu0 %5987
    %5989 = vrot.lane.b32.xlu0 %v844, 7
    %v5990 = vpop.permute.xlu0 %5989
    %5991 = vrot.lane.b32.xlu0 %v1084, 7
    %v5992 = vpop.permute.xlu0 %5991
    %5993 = vrot.lane.b32.xlu0 %v1086, 7
    %v5994 = vpop.permute.xlu0 %5993
    %5995 = vrot.lane.b32.xlu0 %v1128, 7
    %v5996 = vpop.permute.xlu0 %5995
    %5997 = vrot.lane.b32.xlu0 %v1130, 7
    %v5998 = vpop.permute.xlu0 %5997
    %5999 = vrot.lane.b32.xlu0 %v774, 7
    %v6000 = vpop.permute.xlu0 %5999
    %6001 = vrot.lane.b32.xlu0 %v857, 7
    %v6002 = vpop.permute.xlu0 %6001
    %6003 = vrot.lane.b32.xlu0 %v859, 7
    %v6004 = vpop.permute.xlu0 %6003
    %6005 = vrot.lane.b32.xlu0 %v862, 7
    %v6006 = vpop.permute.xlu0 %6005
    %6007 = vrot.lane.b32.xlu0 %v864, 7
    %v6008 = vpop.permute.xlu0 %6007
    %6009 = vrot.lane.b32.xlu0 %v867, 7
    %v6010 = vpop.permute.xlu0 %6009
    %6011 = vrot.lane.b32.xlu0 %v869, 7
    %v6012 = vpop.permute.xlu0 %6011
    %6013 = vrot.lane.b32.xlu0 %v872, 7
    %v6014 = vpop.permute.xlu0 %6013
    %6015 = vrot.lane.b32.xlu0 %v874, 7
    %v6016 = vpop.permute.xlu0 %6015
    %6017 = vrot.lane.b32.xlu0 %v877, 7
    %v6018 = vpop.permute.xlu0 %6017
    %6019 = vrot.lane.b32.xlu0 %v879, 7
    %v6020 = vpop.permute.xlu0 %6019
    %6021 = vrot.lane.b32.xlu0 %v882, 7
    %v6022 = vpop.permute.xlu0 %6021
    %6023 = vrot.lane.b32.xlu0 %v884, 7
    %v6024 = vpop.permute.xlu0 %6023
    %6025 = vrot.lane.b32.xlu0 %v887, 7
    %v6026 = vpop.permute.xlu0 %6025
    %6027 = vrot.lane.b32.xlu0 %v889, 7
    %v6028 = vpop.permute.xlu0 %6027
    %6029 = vrot.lane.b32.xlu0 %v892, 7
    %v6030 = vpop.permute.xlu0 %6029
    %6031 = vrot.lane.b32.xlu0 %v894, 7
    %v6032 = vpop.permute.xlu0 %6031
    %6033 = vrot.lane.b32.xlu0 %v897, 7
    %v6034 = vpop.permute.xlu0 %6033
    %6035 = vrot.lane.b32.xlu0 %v899, 7
    %v6036 = vpop.permute.xlu0 %6035
    %6037 = vrot.lane.b32.xlu0 %v902, 7
    %v6038 = vpop.permute.xlu0 %6037
    %6039 = vrot.lane.b32.xlu0 %v904, 7
    %v6040 = vpop.permute.xlu0 %6039
    %6041 = vrot.lane.b32.xlu0 %v907, 7
    %v6042 = vpop.permute.xlu0 %6041
    %6043 = vrot.lane.b32.xlu0 %v909, 7
    %v6044 = vpop.permute.xlu0 %6043
    %6045 = vrot.lane.b32.xlu0 %v912, 7
    %v6046 = vpop.permute.xlu0 %6045
    %6047 = vrot.lane.b32.xlu0 %v914, 7
    %v6048 = vpop.permute.xlu0 %6047
    %6049 = vrot.lane.b32.xlu0 %v1089, 7
    %v6050 = vpop.permute.xlu0 %6049
    %6051 = vrot.lane.b32.xlu0 %v1091, 7
    %v6052 = vpop.permute.xlu0 %6051
    %6053 = vrot.lane.b32.xlu0 %v1133, 7
    %v6054 = vpop.permute.xlu0 %6053
    %6055 = vrot.lane.b32.xlu0 %v1135, 7
    %v6056 = vpop.permute.xlu0 %6055
    %6114 = vrot.lane.b32.xlu0 %v930, 8
    %v6115 = vpop.permute.xlu0 %6114
    %6116 = vrot.lane.b32.xlu0 %v932, 8
    %v6117 = vpop.permute.xlu0 %6116
    %6118 = vrot.lane.b32.xlu0 %v935, 8
    %v6119 = vpop.permute.xlu0 %6118
    %6120 = vrot.lane.b32.xlu0 %v937, 8
    %v6121 = vpop.permute.xlu0 %6120
    %6122 = vrot.lane.b32.xlu0 %v940, 8
    %v6123 = vpop.permute.xlu0 %6122
    %6124 = vrot.lane.b32.xlu0 %v942, 8
    %v6125 = vpop.permute.xlu0 %6124
    %6126 = vrot.lane.b32.xlu0 %v945, 8
    %v6127 = vpop.permute.xlu0 %6126
    %6128 = vrot.lane.b32.xlu0 %v947, 8
    %v6129 = vpop.permute.xlu0 %6128
    %6130 = vrot.lane.b32.xlu0 %v950, 8
    %v6131 = vpop.permute.xlu0 %6130
    %6132 = vrot.lane.b32.xlu0 %v952, 8
    %v6133 = vpop.permute.xlu0 %6132
    %6134 = vrot.lane.b32.xlu0 %v955, 8
    %v6135 = vpop.permute.xlu0 %6134
    %6136 = vrot.lane.b32.xlu0 %v957, 8
    %v6137 = vpop.permute.xlu0 %6136
    %6138 = vrot.lane.b32.xlu0 %v960, 8
    %v6139 = vpop.permute.xlu0 %6138
    %6140 = vrot.lane.b32.xlu0 %v962, 8
    %v6141 = vpop.permute.xlu0 %6140
    %6142 = vrot.lane.b32.xlu0 %v965, 8
    %v6143 = vpop.permute.xlu0 %6142
    %6144 = vrot.lane.b32.xlu0 %v967, 8
    %v6145 = vpop.permute.xlu0 %6144
    %6146 = vrot.lane.b32.xlu0 %v970, 8
    %v6147 = vpop.permute.xlu0 %6146
    %6148 = vrot.lane.b32.xlu0 %v972, 8
    %v6149 = vpop.permute.xlu0 %6148
    %6150 = vrot.lane.b32.xlu0 %v975, 8
    %v6151 = vpop.permute.xlu0 %6150
    %6152 = vrot.lane.b32.xlu0 %v977, 8
    %v6153 = vpop.permute.xlu0 %6152
    %6154 = vrot.lane.b32.xlu0 %v980, 8
    %v6155 = vpop.permute.xlu0 %6154
    %6156 = vrot.lane.b32.xlu0 %v982, 8
    %v6157 = vpop.permute.xlu0 %6156
    %6158 = vrot.lane.b32.xlu0 %v985, 8
    %v6159 = vpop.permute.xlu0 %6158
    %6160 = vrot.lane.b32.xlu0 %v987, 8
    %v6161 = vpop.permute.xlu0 %6160
    %6162 = vrot.lane.b32.xlu0 %v1094, 8
    %v6163 = vpop.permute.xlu0 %6162
    %6164 = vrot.lane.b32.xlu0 %v1096, 8
    %v6165 = vpop.permute.xlu0 %6164
    %6166 = vrot.lane.b32.xlu0 %v1138, 8
    %v6167 = vpop.permute.xlu0 %6166
    %6168 = vrot.lane.b32.xlu0 %v1140, 8
    %v6169 = vpop.permute.xlu0 %6168
    %6170 = vrot.lane.b32.xlu0 %v917, 8
    %v6171 = vpop.permute.xlu0 %6170
    %6172 = vrot.lane.b32.xlu0 %v1000, 8
    %v6173 = vpop.permute.xlu0 %6172
    %6174 = vrot.lane.b32.xlu0 %v1002, 8
    %v6175 = vpop.permute.xlu0 %6174
    %6176 = vrot.lane.b32.xlu0 %v1005, 8
    %v6177 = vpop.permute.xlu0 %6176
    %6178 = vrot.lane.b32.xlu0 %v1007, 8
    %v6179 = vpop.permute.xlu0 %6178
    %6180 = vrot.lane.b32.xlu0 %v1010, 8
    %v6181 = vpop.permute.xlu0 %6180
    %6182 = vrot.lane.b32.xlu0 %v1012, 8
    %v6183 = vpop.permute.xlu0 %6182
    %6184 = vrot.lane.b32.xlu0 %v1015, 8
    %v6185 = vpop.permute.xlu0 %6184
    %6186 = vrot.lane.b32.xlu0 %v1017, 8
    %v6187 = vpop.permute.xlu0 %6186
    %6188 = vrot.lane.b32.xlu0 %v1020, 8
    %v6189 = vpop.permute.xlu0 %6188
    %6190 = vrot.lane.b32.xlu0 %v1022, 8
    %v6191 = vpop.permute.xlu0 %6190
    %6192 = vrot.lane.b32.xlu0 %v1025, 8
    %v6193 = vpop.permute.xlu0 %6192
    %6194 = vrot.lane.b32.xlu0 %v1027, 8
    %v6195 = vpop.permute.xlu0 %6194
    %6196 = vrot.lane.b32.xlu0 %v1030, 8
    %v6197 = vpop.permute.xlu0 %6196
    %6198 = vrot.lane.b32.xlu0 %v1032, 8
    %v6199 = vpop.permute.xlu0 %6198
    %6200 = vrot.lane.b32.xlu0 %v1035, 8
    %v6201 = vpop.permute.xlu0 %6200
    %6202 = vrot.lane.b32.xlu0 %v1037, 8
    %v6203 = vpop.permute.xlu0 %6202
    %6204 = vrot.lane.b32.xlu0 %v1040, 8
    %v6205 = vpop.permute.xlu0 %6204
    %6206 = vrot.lane.b32.xlu0 %v1042, 8
    %v6207 = vpop.permute.xlu0 %6206
    %6208 = vrot.lane.b32.xlu0 %v1045, 8
    %v6209 = vpop.permute.xlu0 %6208
    %6210 = vrot.lane.b32.xlu0 %v1047, 8
    %v6211 = vpop.permute.xlu0 %6210
    %6212 = vrot.lane.b32.xlu0 %v1050, 8
    %v6213 = vpop.permute.xlu0 %6212
    %6214 = vrot.lane.b32.xlu0 %v1052, 8
    %v6215 = vpop.permute.xlu0 %6214
    %6216 = vrot.lane.b32.xlu0 %v1055, 8
    %v6217 = vpop.permute.xlu0 %6216
    %6218 = vrot.lane.b32.xlu0 %v1057, 8
    %v6219 = vpop.permute.xlu0 %6218
    %6220 = vrot.lane.b32.xlu0 %v1099, 8
    %v6221 = vpop.permute.xlu0 %6220
    %6222 = vrot.lane.b32.xlu0 %v1101, 8
    %v6223 = vpop.permute.xlu0 %6222
    %6224 = vrot.lane.b32.xlu0 %v1143, 8
    %v6225 = vpop.permute.xlu0 %6224
    %6226 = vrot.lane.b32.xlu0 %v1145, 8
    %v6227 = vpop.permute.xlu0 %6226
    %v6285 = vsel %vm3949, %v496, %v4882
    %v6286 = vsel %vm3949, %v498, %v4884
    %v6287 = vsel %vm3949, %v501, %v4886
    %v6288 = vsel %vm3949, %v503, %v4888
    %v6289 = vsel %vm3949, %v506, %v4890
    %v6290 = vsel %vm3949, %v508, %v4892
    %v6291 = vsel %vm3949, %v511, %v4894
    %v6292 = vsel %vm3949, %v513, %v4896
    %v6293 = vsel %vm3949, %v516, %v4898
    %v6294 = vsel %vm3949, %v518, %v4900
    %v6295 = vsel %vm3949, %v521, %v4902
    %v6296 = vsel %vm3949, %v523, %v4904
    %v6297 = vsel %vm3949, %v526, %v4906
    %v6298 = vsel %vm3949, %v528, %v4908
    %v6299 = vsel %vm3949, %v531, %v4910
    %v6300 = vsel %vm3949, %v533, %v4912
    %v6301 = vsel %vm3949, %v536, %v4914
    %v6302 = vsel %vm3949, %v538, %v4916
    %v6303 = vsel %vm3949, %v541, %v4918
    %v6304 = vsel %vm3949, %v543, %v4920
    %v6305 = vsel %vm3949, %v546, %v4922
    %v6306 = vsel %vm3949, %v548, %v4924
    %v6307 = vsel %vm3949, %v551, %v4926
    %v6308 = vsel %vm3949, %v553, %v4928
    %v6309 = vsel %vm3949, %v556, %v4930
    %v6310 = vsel %vm3949, %v558, %v4932
    %v6311 = vsel %vm3949, %v1064, %v4934
    %v6312 = vsel %vm3949, %v1066, %v4936
    %v6313 = vsel %vm3949, %v1108, %v4938
    %v6314 = vsel %vm3949, %v1110, %v4940
    %v6315 = vsel %vm3949, %v488, %v4942
    %v6316 = vsel %vm3949, %v566, %v4944
    %v6317 = vsel %vm3949, %v568, %v4946
    %v6318 = vsel %vm3949, %v571, %v4948
    %v6319 = vsel %vm3949, %v573, %v4950
    %v6320 = vsel %vm3949, %v576, %v4952
    %v6321 = vsel %vm3949, %v578, %v4954
    %v6322 = vsel %vm3949, %v581, %v4956
    %v6323 = vsel %vm3949, %v583, %v4958
    %v6324 = vsel %vm3949, %v586, %v4960
    %v6325 = vsel %vm3949, %v588, %v4962
    %v6326 = vsel %vm3949, %v591, %v4964
    %v6327 = vsel %vm3949, %v593, %v4966
    %v6328 = vsel %vm3949, %v596, %v4968
    %v6329 = vsel %vm3949, %v598, %v4970
    %v6330 = vsel %vm3949, %v601, %v4972
    %v6331 = vsel %vm3949, %v603, %v4974
    %v6332 = vsel %vm3949, %v606, %v4976
    %v6333 = vsel %vm3949, %v608, %v4978
    %v6334 = vsel %vm3949, %v611, %v4980
    %v6335 = vsel %vm3949, %v613, %v4982
    %v6336 = vsel %vm3949, %v616, %v4984
    %v6337 = vsel %vm3949, %v618, %v4986
    %v6338 = vsel %vm3949, %v621, %v4988
    %v6339 = vsel %vm3949, %v623, %v4990
    %v6340 = vsel %vm3949, %v626, %v4992
    %v6341 = vsel %vm3949, %v628, %v4994
    %v6342 = vsel %vm3949, %v1069, %v4996
    %v6343 = vsel %vm3949, %v1071, %v4998
    %v6344 = vsel %vm3949, %v1113, %v5000
    %v6345 = vsel %vm3949, %v1115, %v5002
    %v6346 = vsel %vm4007, %v6285, %v5065
    %v6347 = vsel %vm4007, %v6286, %v5067
    %v6348 = vsel %vm4007, %v6287, %v5069
    %v6349 = vsel %vm4007, %v6288, %v5071
    %v6350 = vsel %vm4007, %v6289, %v5073
    %v6351 = vsel %vm4007, %v6290, %v5075
    %v6352 = vsel %vm4007, %v6291, %v5077
    %v6353 = vsel %vm4007, %v6292, %v5079
    %v6354 = vsel %vm4007, %v6293, %v5081
    %v6355 = vsel %vm4007, %v6294, %v5083
    %v6356 = vsel %vm4007, %v6295, %v5085
    %v6357 = vsel %vm4007, %v6296, %v5087
    %v6358 = vsel %vm4007, %v6297, %v5089
    %v6359 = vsel %vm4007, %v6298, %v5091
    %v6360 = vsel %vm4007, %v6299, %v5093
    %v6361 = vsel %vm4007, %v6300, %v5095
    %v6362 = vsel %vm4007, %v6301, %v5097
    %v6363 = vsel %vm4007, %v6302, %v5099
    %v6364 = vsel %vm4007, %v6303, %v5101
    %v6365 = vsel %vm4007, %v6304, %v5103
    %v6366 = vsel %vm4007, %v6305, %v5105
    %v6367 = vsel %vm4007, %v6306, %v5107
    %v6368 = vsel %vm4007, %v6307, %v5109
    %v6369 = vsel %vm4007, %v6308, %v5111
    %v6370 = vsel %vm4007, %v6309, %v5113
    %v6371 = vsel %vm4007, %v6310, %v5115
    %v6372 = vsel %vm4007, %v6311, %v5117
    %v6373 = vsel %vm4007, %v6312, %v5119
    %v6374 = vsel %vm4007, %v6313, %v5121
    %v6375 = vsel %vm4007, %v6314, %v5123
    %v6376 = vsel %vm4007, %v6315, %v5125
    %v6377 = vsel %vm4007, %v6316, %v5127
    %v6378 = vsel %vm4007, %v6317, %v5129
    %v6379 = vsel %vm4007, %v6318, %v5131
    %v6380 = vsel %vm4007, %v6319, %v5133
    %v6381 = vsel %vm4007, %v6320, %v5135
    %v6382 = vsel %vm4007, %v6321, %v5137
    %v6383 = vsel %vm4007, %v6322, %v5139
    %v6384 = vsel %vm4007, %v6323, %v5141
    %v6385 = vsel %vm4007, %v6324, %v5143
    %v6386 = vsel %vm4007, %v6325, %v5145
    %v6387 = vsel %vm4007, %v6326, %v5147
    %v6388 = vsel %vm4007, %v6327, %v5149
    %v6389 = vsel %vm4007, %v6328, %v5151
    %v6390 = vsel %vm4007, %v6329, %v5153
    %v6391 = vsel %vm4007, %v6330, %v5155
    %v6392 = vsel %vm4007, %v6331, %v5157
    %v6393 = vsel %vm4007, %v6332, %v5159
    %v6394 = vsel %vm4007, %v6333, %v5161
    %v6395 = vsel %vm4007, %v6334, %v5163
    %v6396 = vsel %vm4007, %v6335, %v5165
    %v6397 = vsel %vm4007, %v6336, %v5167
    %v6398 = vsel %vm4007, %v6337, %v5169
    %v6399 = vsel %vm4007, %v6338, %v5171
    %v6400 = vsel %vm4007, %v6339, %v5173
    %v6401 = vsel %vm4007, %v6340, %v5175
    %v6402 = vsel %vm4007, %v6341, %v5177
    %v6403 = vsel %vm4007, %v6342, %v5179
    %v6404 = vsel %vm4007, %v6343, %v5181
    %v6405 = vsel %vm4007, %v6344, %v5183
    %v6406 = vsel %vm4007, %v6345, %v5185
    %v6407 = vsel %vm4065, %v6346, %v5248
    %v6408 = vsel %vm4065, %v6347, %v5250
    %v6409 = vsel %vm4065, %v6348, %v5252
    %v6410 = vsel %vm4065, %v6349, %v5254
    %v6411 = vsel %vm4065, %v6350, %v5256
    %v6412 = vsel %vm4065, %v6351, %v5258
    %v6413 = vsel %vm4065, %v6352, %v5260
    %v6414 = vsel %vm4065, %v6353, %v5262
    %v6415 = vsel %vm4065, %v6354, %v5264
    %v6416 = vsel %vm4065, %v6355, %v5266
    %v6417 = vsel %vm4065, %v6356, %v5268
    %v6418 = vsel %vm4065, %v6357, %v5270
    %v6419 = vsel %vm4065, %v6358, %v5272
    %v6420 = vsel %vm4065, %v6359, %v5274
    %v6421 = vsel %vm4065, %v6360, %v5276
    %v6422 = vsel %vm4065, %v6361, %v5278
    %v6423 = vsel %vm4065, %v6362, %v5280
    %v6424 = vsel %vm4065, %v6363, %v5282
    %v6425 = vsel %vm4065, %v6364, %v5284
    %v6426 = vsel %vm4065, %v6365, %v5286
    %v6427 = vsel %vm4065, %v6366, %v5288
    %v6428 = vsel %vm4065, %v6367, %v5290
    %v6429 = vsel %vm4065, %v6368, %v5292
    %v6430 = vsel %vm4065, %v6369, %v5294
    %v6431 = vsel %vm4065, %v6370, %v5296
    %v6432 = vsel %vm4065, %v6371, %v5298
    %v6433 = vsel %vm4065, %v6372, %v5300
    %v6434 = vsel %vm4065, %v6373, %v5302
    %v6435 = vsel %vm4065, %v6374, %v5304
    %v6436 = vsel %vm4065, %v6375, %v5306
    %v6437 = vsel %vm4065, %v6376, %v5308
    %v6438 = vsel %vm4065, %v6377, %v5310
    %v6439 = vsel %vm4065, %v6378, %v5312
    %v6440 = vsel %vm4065, %v6379, %v5314
    %v6441 = vsel %vm4065, %v6380, %v5316
    %v6442 = vsel %vm4065, %v6381, %v5318
    %v6443 = vsel %vm4065, %v6382, %v5320
    %v6444 = vsel %vm4065, %v6383, %v5322
    %v6445 = vsel %vm4065, %v6384, %v5324
    %v6446 = vsel %vm4065, %v6385, %v5326
    %v6447 = vsel %vm4065, %v6386, %v5328
    %v6448 = vsel %vm4065, %v6387, %v5330
    %v6449 = vsel %vm4065, %v6388, %v5332
    %v6450 = vsel %vm4065, %v6389, %v5334
    %v6451 = vsel %vm4065, %v6390, %v5336
    %v6452 = vsel %vm4065, %v6391, %v5338
    %v6453 = vsel %vm4065, %v6392, %v5340
    %v6454 = vsel %vm4065, %v6393, %v5342
    %v6455 = vsel %vm4065, %v6394, %v5344
    %v6456 = vsel %vm4065, %v6395, %v5346
    %v6457 = vsel %vm4065, %v6396, %v5348
    %v6458 = vsel %vm4065, %v6397, %v5350
    %v6459 = vsel %vm4065, %v6398, %v5352
    %v6460 = vsel %vm4065, %v6399, %v5354
    %v6461 = vsel %vm4065, %v6400, %v5356
    %v6462 = vsel %vm4065, %v6401, %v5358
    %v6463 = vsel %vm4065, %v6402, %v5360
    %v6464 = vsel %vm4065, %v6403, %v5362
    %v6465 = vsel %vm4065, %v6404, %v5364
    %v6466 = vsel %vm4065, %v6405, %v5366
    %v6467 = vsel %vm4065, %v6406, %v5368
    %v6468 = vsel %vm4123, %v6407, %v5431
    %v6469 = vsel %vm4123, %v6408, %v5433
    %v6470 = vsel %vm4123, %v6409, %v5435
    %v6471 = vsel %vm4123, %v6410, %v5437
    %v6472 = vsel %vm4123, %v6411, %v5439
    %v6473 = vsel %vm4123, %v6412, %v5441
    %v6474 = vsel %vm4123, %v6413, %v5443
    %v6475 = vsel %vm4123, %v6414, %v5445
    %v6476 = vsel %vm4123, %v6415, %v5447
    %v6477 = vsel %vm4123, %v6416, %v5449
    %v6478 = vsel %vm4123, %v6417, %v5451
    %v6479 = vsel %vm4123, %v6418, %v5453
    %v6480 = vsel %vm4123, %v6419, %v5455
    %v6481 = vsel %vm4123, %v6420, %v5457
    %v6482 = vsel %vm4123, %v6421, %v5459
    %v6483 = vsel %vm4123, %v6422, %v5461
    %v6484 = vsel %vm4123, %v6423, %v5463
    %v6485 = vsel %vm4123, %v6424, %v5465
    %v6486 = vsel %vm4123, %v6425, %v5467
    %v6487 = vsel %vm4123, %v6426, %v5469
    %v6488 = vsel %vm4123, %v6427, %v5471
    %v6489 = vsel %vm4123, %v6428, %v5473
    %v6490 = vsel %vm4123, %v6429, %v5475
    %v6491 = vsel %vm4123, %v6430, %v5477
    %v6492 = vsel %vm4123, %v6431, %v5479
    %v6493 = vsel %vm4123, %v6432, %v5481
    %v6494 = vsel %vm4123, %v6433, %v5483
    %v6495 = vsel %vm4123, %v6434, %v5485
    %v6496 = vsel %vm4123, %v6435, %v5487
    %v6497 = vsel %vm4123, %v6436, %v5487
    %v6498 = vsel %vm4123, %v6437, %v5487
    %v6499 = vsel %vm4123, %v6438, %v5489
    %v6500 = vsel %vm4123, %v6439, %v5491
    %v6501 = vsel %vm4123, %v6440, %v5493
    %v6502 = vsel %vm4123, %v6441, %v5495
    %v6503 = vsel %vm4123, %v6442, %v5497
    %v6504 = vsel %vm4123, %v6443, %v5499
    %v6505 = vsel %vm4123, %v6444, %v5501
    %v6506 = vsel %vm4123, %v6445, %v5503
    %v6507 = vsel %vm4123, %v6446, %v5505
    %v6508 = vsel %vm4123, %v6447, %v5507
    %v6509 = vsel %vm4123, %v6448, %v5509
    %v6510 = vsel %vm4123, %v6449, %v5511
    %v6511 = vsel %vm4123, %v6450, %v5513
    %v6512 = vsel %vm4123, %v6451, %v5515
    %v6513 = vsel %vm4123, %v6452, %v5517
    %v6514 = vsel %vm4123, %v6453, %v5519
    %v6515 = vsel %vm4123, %v6454, %v5521
    %v6516 = vsel %vm4123, %v6455, %v5523
    %v6517 = vsel %vm4123, %v6456, %v5525
    %v6518 = vsel %vm4123, %v6457, %v5527
    %v6519 = vsel %vm4123, %v6458, %v5529
    %v6520 = vsel %vm4123, %v6459, %v5531
    %v6521 = vsel %vm4123, %v6460, %v5533
    %v6522 = vsel %vm4123, %v6461, %v5535
    %v6523 = vsel %vm4123, %v6462, %v5537
    %v6524 = vsel %vm4123, %v6463, %v5539
    %v6525 = vsel %vm4123, %v6464, %v5541
    %v6526 = vsel %vm4123, %v6465, %v5543
    %v6527 = vsel %vm4123, %v6466, %v5487
    %v6528 = vsel %vm4123, %v6467, %v5487
    %v6529 = vsel %vm4181, %v6468, %v5602
    %v6530 = vsel %vm4181, %v6469, %v5604
    %v6531 = vsel %vm4181, %v6470, %v5606
    %v6532 = vsel %vm4181, %v6471, %v5608
    %v6533 = vsel %vm4181, %v6472, %v5610
    %v6534 = vsel %vm4181, %v6473, %v5612
    %v6535 = vsel %vm4181, %v6474, %v5614
    %v6536 = vsel %vm4181, %v6475, %v5616
    %v6537 = vsel %vm4181, %v6476, %v5618
    %v6538 = vsel %vm4181, %v6477, %v5620
    %v6539 = vsel %vm4181, %v6478, %v5622
    %v6540 = vsel %vm4181, %v6479, %v5624
    %v6541 = vsel %vm4181, %v6480, %v5626
    %v6542 = vsel %vm4181, %v6481, %v5628
    %v6543 = vsel %vm4181, %v6482, %v5630
    %v6544 = vsel %vm4181, %v6483, %v5632
    %v6545 = vsel %vm4181, %v6484, %v5634
    %v6546 = vsel %vm4181, %v6485, %v5636
    %v6547 = vsel %vm4181, %v6486, %v5638
    %v6548 = vsel %vm4181, %v6487, %v5640
    %v6549 = vsel %vm4181, %v6488, %v5642
    %v6550 = vsel %vm4181, %v6489, %v5644
    %v6551 = vsel %vm4181, %v6490, %v5646
    %v6552 = vsel %vm4181, %v6491, %v5648
    %v6553 = vsel %vm4181, %v6492, %v5650
    %v6554 = vsel %vm4181, %v6493, %v5652
    %v6555 = vsel %vm4181, %v6494, %v5654
    %v6556 = vsel %vm4181, %v6495, %v5656
    %v6557 = vsel %vm4181, %v6496, %v5658
    %v6558 = vsel %vm4181, %v6497, %v5658
    %v6559 = vsel %vm4181, %v6498, %v5658
    %v6560 = vsel %vm4181, %v6499, %v5660
    %v6561 = vsel %vm4181, %v6500, %v5662
    %v6562 = vsel %vm4181, %v6501, %v5664
    %v6563 = vsel %vm4181, %v6502, %v5666
    %v6564 = vsel %vm4181, %v6503, %v5668
    %v6565 = vsel %vm4181, %v6504, %v5670
    %v6566 = vsel %vm4181, %v6505, %v5672
    %v6567 = vsel %vm4181, %v6506, %v5674
    %v6568 = vsel %vm4181, %v6507, %v5676
    %v6569 = vsel %vm4181, %v6508, %v5678
    %v6570 = vsel %vm4181, %v6509, %v5680
    %v6571 = vsel %vm4181, %v6510, %v5682
    %v6572 = vsel %vm4181, %v6511, %v5684
    %v6573 = vsel %vm4181, %v6512, %v5686
    %v6574 = vsel %vm4181, %v6513, %v5688
    %v6575 = vsel %vm4181, %v6514, %v5690
    %v6576 = vsel %vm4181, %v6515, %v5692
    %v6577 = vsel %vm4181, %v6516, %v5694
    %v6578 = vsel %vm4181, %v6517, %v5696
    %v6579 = vsel %vm4181, %v6518, %v5698
    %v6580 = vsel %vm4181, %v6519, %v5700
    %v6581 = vsel %vm4181, %v6520, %v5702
    %v6582 = vsel %vm4181, %v6521, %v5704
    %v6583 = vsel %vm4181, %v6522, %v5706
    %v6584 = vsel %vm4181, %v6523, %v5708
    %v6585 = vsel %vm4181, %v6524, %v5710
    %v6586 = vsel %vm4181, %v6525, %v5712
    %v6587 = vsel %vm4181, %v6526, %v5714
    %v6588 = vsel %vm4181, %v6527, %v5658
    %v6589 = vsel %vm4181, %v6528, %v5658
    %v6590 = vsel %vm4243, %v6529, %v5773
    %v6591 = vsel %vm4243, %v6530, %v5775
    %v6592 = vsel %vm4243, %v6531, %v5777
    %v6593 = vsel %vm4243, %v6532, %v5779
    %v6594 = vsel %vm4243, %v6533, %v5781
    %v6595 = vsel %vm4243, %v6534, %v5783
    %v6596 = vsel %vm4243, %v6535, %v5785
    %v6597 = vsel %vm4243, %v6536, %v5787
    %v6598 = vsel %vm4243, %v6537, %v5789
    %v6599 = vsel %vm4243, %v6538, %v5791
    %v6600 = vsel %vm4243, %v6539, %v5793
    %v6601 = vsel %vm4243, %v6540, %v5795
    %v6602 = vsel %vm4243, %v6541, %v5797
    %v6603 = vsel %vm4243, %v6542, %v5799
    %v6604 = vsel %vm4243, %v6543, %v5801
    %v6605 = vsel %vm4243, %v6544, %v5803
    %v6606 = vsel %vm4243, %v6545, %v5805
    %v6607 = vsel %vm4243, %v6546, %v5807
    %v6608 = vsel %vm4243, %v6547, %v5809
    %v6609 = vsel %vm4243, %v6548, %v5811
    %v6610 = vsel %vm4243, %v6549, %v5813
    %v6611 = vsel %vm4243, %v6550, %v5815
    %v6612 = vsel %vm4243, %v6551, %v5817
    %v6613 = vsel %vm4243, %v6552, %v5819
    %v6614 = vsel %vm4243, %v6553, %v5821
    %v6615 = vsel %vm4243, %v6554, %v5823
    %v6616 = vsel %vm4243, %v6555, %v5825
    %v6617 = vsel %vm4243, %v6556, %v5827
    %v6618 = vsel %vm4243, %v6557, %v5829
    %v6619 = vsel %vm4243, %v6558, %v5829
    %v6620 = vsel %vm4243, %v6559, %v5829
    %v6621 = vsel %vm4243, %v6560, %v5831
    %v6622 = vsel %vm4243, %v6561, %v5833
    %v6623 = vsel %vm4243, %v6562, %v5835
    %v6624 = vsel %vm4243, %v6563, %v5837
    %v6625 = vsel %vm4243, %v6564, %v5839
    %v6626 = vsel %vm4243, %v6565, %v5841
    %v6627 = vsel %vm4243, %v6566, %v5843
    %v6628 = vsel %vm4243, %v6567, %v5845
    %v6629 = vsel %vm4243, %v6568, %v5847
    %v6630 = vsel %vm4243, %v6569, %v5849
    %v6631 = vsel %vm4243, %v6570, %v5851
    %v6632 = vsel %vm4243, %v6571, %v5853
    %v6633 = vsel %vm4243, %v6572, %v5855
    %v6634 = vsel %vm4243, %v6573, %v5857
    %v6635 = vsel %vm4243, %v6574, %v5859
    %v6636 = vsel %vm4243, %v6575, %v5861
    %v6637 = vsel %vm4243, %v6576, %v5863
    %v6638 = vsel %vm4243, %v6577, %v5865
    %v6639 = vsel %vm4243, %v6578, %v5867
    %v6640 = vsel %vm4243, %v6579, %v5869
    %v6641 = vsel %vm4243, %v6580, %v5871
    %v6642 = vsel %vm4243, %v6581, %v5873
    %v6643 = vsel %vm4243, %v6582, %v5875
    %v6644 = vsel %vm4243, %v6583, %v5877
    %v6645 = vsel %vm4243, %v6584, %v5879
    %v6646 = vsel %vm4243, %v6585, %v5881
    %v6647 = vsel %vm4243, %v6586, %v5883
    %v6648 = vsel %vm4243, %v6587, %v5885
    %v6649 = vsel %vm4243, %v6588, %v5829
    %v6650 = vsel %vm4243, %v6589, %v5829
    %v6651 = vsel %vm4305, %v6590, %v5944
    %v6652 = vsel %vm4305, %v6591, %v5946
    %v6653 = vsel %vm4305, %v6592, %v5948
    %v6654 = vsel %vm4305, %v6593, %v5950
    %v6655 = vsel %vm4305, %v6594, %v5952
    %v6656 = vsel %vm4305, %v6595, %v5954
    %v6657 = vsel %vm4305, %v6596, %v5956
    %v6658 = vsel %vm4305, %v6597, %v5958
    %v6659 = vsel %vm4305, %v6598, %v5960
    %v6660 = vsel %vm4305, %v6599, %v5962
    %v6661 = vsel %vm4305, %v6600, %v5964
    %v6662 = vsel %vm4305, %v6601, %v5966
    %v6663 = vsel %vm4305, %v6602, %v5968
    %v6664 = vsel %vm4305, %v6603, %v5970
    %v6665 = vsel %vm4305, %v6604, %v5972
    %v6666 = vsel %vm4305, %v6605, %v5974
    %v6667 = vsel %vm4305, %v6606, %v5976
    %v6668 = vsel %vm4305, %v6607, %v5978
    %v6669 = vsel %vm4305, %v6608, %v5980
    %v6670 = vsel %vm4305, %v6609, %v5982
    %v6671 = vsel %vm4305, %v6610, %v5984
    %v6672 = vsel %vm4305, %v6611, %v5986
    %v6673 = vsel %vm4305, %v6612, %v5988
    %v6674 = vsel %vm4305, %v6613, %v5990
    %v6675 = vsel %vm4305, %v6614, %v5992
    %v6676 = vsel %vm4305, %v6615, %v5994
    %v6677 = vsel %vm4305, %v6616, %v5996
    %v6678 = vsel %vm4305, %v6617, %v5998
    %v6679 = vsel %vm4305, %v6618, %v6000
    %v6680 = vsel %vm4305, %v6619, %v6000
    %v6681 = vsel %vm4305, %v6620, %v6000
    %v6682 = vsel %vm4305, %v6621, %v6002
    %v6683 = vsel %vm4305, %v6622, %v6004
    %v6684 = vsel %vm4305, %v6623, %v6006
    %v6685 = vsel %vm4305, %v6624, %v6008
    %v6686 = vsel %vm4305, %v6625, %v6010
    %v6687 = vsel %vm4305, %v6626, %v6012
    %v6688 = vsel %vm4305, %v6627, %v6014
    %v6689 = vsel %vm4305, %v6628, %v6016
    %v6690 = vsel %vm4305, %v6629, %v6018
    %v6691 = vsel %vm4305, %v6630, %v6020
    %v6692 = vsel %vm4305, %v6631, %v6022
    %v6693 = vsel %vm4305, %v6632, %v6024
    %v6694 = vsel %vm4305, %v6633, %v6026
    %v6695 = vsel %vm4305, %v6634, %v6028
    %v6696 = vsel %vm4305, %v6635, %v6030
    %v6697 = vsel %vm4305, %v6636, %v6032
    %v6698 = vsel %vm4305, %v6637, %v6034
    %v6699 = vsel %vm4305, %v6638, %v6036
    %v6700 = vsel %vm4305, %v6639, %v6038
    %v6701 = vsel %vm4305, %v6640, %v6040
    %v6702 = vsel %vm4305, %v6641, %v6042
    %v6703 = vsel %vm4305, %v6642, %v6044
    %v6704 = vsel %vm4305, %v6643, %v6046
    %v6705 = vsel %vm4305, %v6644, %v6048
    %v6706 = vsel %vm4305, %v6645, %v6050
    %v6707 = vsel %vm4305, %v6646, %v6052
    %v6708 = vsel %vm4305, %v6647, %v6054
    %v6709 = vsel %vm4305, %v6648, %v6056
    %v6710 = vsel %vm4305, %v6649, %v6000
    %v6711 = vsel %vm4305, %v6650, %v6000
    %v6712 = vsel %vm4367, %v6651, %v6115
    %v6713 = vsel %vm4367, %v6652, %v6117
    %v6714 = vsel %vm4367, %v6653, %v6119
    %v6715 = vsel %vm4367, %v6654, %v6121
    %v6716 = vsel %vm4367, %v6655, %v6123
    %v6717 = vsel %vm4367, %v6656, %v6125
    %v6718 = vsel %vm4367, %v6657, %v6127
    %v6719 = vsel %vm4367, %v6658, %v6129
    %v6720 = vsel %vm4367, %v6659, %v6131
    %v6721 = vsel %vm4367, %v6660, %v6133
    %v6722 = vsel %vm4367, %v6661, %v6135
    %v6723 = vsel %vm4367, %v6662, %v6137
    %v6724 = vsel %vm4367, %v6663, %v6139
    %v6725 = vsel %vm4367, %v6664, %v6141
    %v6726 = vsel %vm4367, %v6665, %v6143
    %v6727 = vsel %vm4367, %v6666, %v6145
    %v6728 = vsel %vm4367, %v6667, %v6147
    %v6729 = vsel %vm4367, %v6668, %v6149
    %v6730 = vsel %vm4367, %v6669, %v6151
    %v6731 = vsel %vm4367, %v6670, %v6153
    %v6732 = vsel %vm4367, %v6671, %v6155
    %v6733 = vsel %vm4367, %v6672, %v6157
    %v6734 = vsel %vm4367, %v6673, %v6159
    %v6735 = vsel %vm4367, %v6674, %v6161
    %v6736 = vsel %vm4367, %v6675, %v6163
    %v6737 = vsel %vm4367, %v6676, %v6165
    %v6738 = vsel %vm4367, %v6677, %v6167
    %v6739 = vsel %vm4367, %v6678, %v6169
    %v6740 = vsel %vm4367, %v6679, %v6171
    %v6741 = vsel %vm4367, %v6680, %v6171
    %v6742 = vsel %vm4367, %v6681, %v6171
    %v6743 = vsel %vm4367, %v6682, %v6173
    %v6744 = vsel %vm4367, %v6683, %v6175
    %v6745 = vsel %vm4367, %v6684, %v6177
    %v6746 = vsel %vm4367, %v6685, %v6179
    %v6747 = vsel %vm4367, %v6686, %v6181
    %v6748 = vsel %vm4367, %v6687, %v6183
    %v6749 = vsel %vm4367, %v6688, %v6185
    %v6750 = vsel %vm4367, %v6689, %v6187
    %v6751 = vsel %vm4367, %v6690, %v6189
    %v6752 = vsel %vm4367, %v6691, %v6191
    %v6753 = vsel %vm4367, %v6692, %v6193
    %v6754 = vsel %vm4367, %v6693, %v6195
    %v6755 = vsel %vm4367, %v6694, %v6197
    %v6756 = vsel %vm4367, %v6695, %v6199
    %v6757 = vsel %vm4367, %v6696, %v6201
    %v6758 = vsel %vm4367, %v6697, %v6203
    %v6759 = vsel %vm4367, %v6698, %v6205
    %v6760 = vsel %vm4367, %v6699, %v6207
    %v6761 = vsel %vm4367, %v6700, %v6209
    %v6762 = vsel %vm4367, %v6701, %v6211
    %v6763 = vsel %vm4367, %v6702, %v6213
    %v6764 = vsel %vm4367, %v6703, %v6215
    %v6765 = vsel %vm4367, %v6704, %v6217
    %v6766 = vsel %vm4367, %v6705, %v6219
    %v6767 = vsel %vm4367, %v6706, %v6221
    %v6768 = vsel %vm4367, %v6707, %v6223
    %v6769 = vsel %vm4367, %v6708, %v6225
    %v6770 = vsel %vm4367, %v6709, %v6227
    %v6771 = vsel %vm4367, %v6710, %v6171
    %v6772 = vsel %vm4367, %v6711, %v6171
    %6834 = vrot.lane.b32.xlu0 %v6712, 16
    %v6835 = vpop.permute.xlu0 %6834
    %6836 = vrot.lane.b32.xlu0 %v6713, 16
    %v6837 = vpop.permute.xlu0 %6836
    %6838 = vrot.lane.b32.xlu0 %v6714, 16
    %v6839 = vpop.permute.xlu0 %6838
    %6840 = vrot.lane.b32.xlu0 %v6715, 16
    %v6841 = vpop.permute.xlu0 %6840
    %6842 = vrot.lane.b32.xlu0 %v6716, 16
    %v6843 = vpop.permute.xlu0 %6842
    %6844 = vrot.lane.b32.xlu0 %v6717, 16
    %v6845 = vpop.permute.xlu0 %6844
    %6846 = vrot.lane.b32.xlu0 %v6718, 16
    %v6847 = vpop.permute.xlu0 %6846
    %6848 = vrot.lane.b32.xlu0 %v6719, 16
    %v6849 = vpop.permute.xlu0 %6848
    %6850 = vrot.lane.b32.xlu0 %v6720, 16
    %v6851 = vpop.permute.xlu0 %6850
    %6852 = vrot.lane.b32.xlu0 %v6721, 16
    %v6853 = vpop.permute.xlu0 %6852
    %6854 = vrot.lane.b32.xlu0 %v6722, 16
    %v6855 = vpop.permute.xlu0 %6854
    %6856 = vrot.lane.b32.xlu0 %v6723, 16
    %v6857 = vpop.permute.xlu0 %6856
    %6858 = vrot.lane.b32.xlu0 %v6724, 16
    %v6859 = vpop.permute.xlu0 %6858
    %6860 = vrot.lane.b32.xlu0 %v6725, 16
    %v6861 = vpop.permute.xlu0 %6860
    %6862 = vrot.lane.b32.xlu0 %v6726, 16
    %v6863 = vpop.permute.xlu0 %6862
    %6864 = vrot.lane.b32.xlu0 %v6727, 16
    %v6865 = vpop.permute.xlu0 %6864
    %6866 = vrot.lane.b32.xlu0 %v6728, 16
    %v6867 = vpop.permute.xlu0 %6866
    %6868 = vrot.lane.b32.xlu0 %v6729, 16
    %v6869 = vpop.permute.xlu0 %6868
    %6870 = vrot.lane.b32.xlu0 %v6730, 16
    %v6871 = vpop.permute.xlu0 %6870
    %6872 = vrot.lane.b32.xlu0 %v6731, 16
    %v6873 = vpop.permute.xlu0 %6872
    %6874 = vrot.lane.b32.xlu0 %v6732, 16
    %v6875 = vpop.permute.xlu0 %6874
    %6876 = vrot.lane.b32.xlu0 %v6733, 16
    %v6877 = vpop.permute.xlu0 %6876
    %6878 = vrot.lane.b32.xlu0 %v6734, 16
    %v6879 = vpop.permute.xlu0 %6878
    %6880 = vrot.lane.b32.xlu0 %v6735, 16
    %v6881 = vpop.permute.xlu0 %6880
    %6882 = vrot.lane.b32.xlu0 %v6736, 16
    %v6883 = vpop.permute.xlu0 %6882
    %6884 = vrot.lane.b32.xlu0 %v6737, 16
    %v6885 = vpop.permute.xlu0 %6884
    %6886 = vrot.lane.b32.xlu0 %v6738, 16
    %v6887 = vpop.permute.xlu0 %6886
    %6888 = vrot.lane.b32.xlu0 %v6739, 16
    %v6889 = vpop.permute.xlu0 %6888
    %6890 = vrot.lane.b32.xlu0 %v6740, 16
    %v6891 = vpop.permute.xlu0 %6890
    %6892 = vrot.lane.b32.xlu0 %v6741, 16
    %v6893 = vpop.permute.xlu0 %6892
    %6894 = vrot.lane.b32.xlu0 %v6742, 16
    %v6895 = vpop.permute.xlu0 %6894
    %6896 = vrot.lane.b32.xlu0 %v6743, 16
    %v6897 = vpop.permute.xlu0 %6896
    %6898 = vrot.lane.b32.xlu0 %v6744, 16
    %v6899 = vpop.permute.xlu0 %6898
    %6900 = vrot.lane.b32.xlu0 %v6745, 16
    %v6901 = vpop.permute.xlu0 %6900
    %6902 = vrot.lane.b32.xlu0 %v6746, 16
    %v6903 = vpop.permute.xlu0 %6902
    %6904 = vrot.lane.b32.xlu0 %v6747, 16
    %v6905 = vpop.permute.xlu0 %6904
    %6906 = vrot.lane.b32.xlu0 %v6748, 16
    %v6907 = vpop.permute.xlu0 %6906
    %6908 = vrot.lane.b32.xlu0 %v6749, 16
    %v6909 = vpop.permute.xlu0 %6908
    %6910 = vrot.lane.b32.xlu0 %v6750, 16
    %v6911 = vpop.permute.xlu0 %6910
    %6912 = vrot.lane.b32.xlu0 %v6751, 16
    %v6913 = vpop.permute.xlu0 %6912
    %6914 = vrot.lane.b32.xlu0 %v6752, 16
    %v6915 = vpop.permute.xlu0 %6914
    %6916 = vrot.lane.b32.xlu0 %v6753, 16
    %v6917 = vpop.permute.xlu0 %6916
    %6918 = vrot.lane.b32.xlu0 %v6754, 16
    %v6919 = vpop.permute.xlu0 %6918
    %6920 = vrot.lane.b32.xlu0 %v6755, 16
    %v6921 = vpop.permute.xlu0 %6920
    %6922 = vrot.lane.b32.xlu0 %v6756, 16
    %v6923 = vpop.permute.xlu0 %6922
    %6924 = vrot.lane.b32.xlu0 %v6757, 16
    %v6925 = vpop.permute.xlu0 %6924
    %6926 = vrot.lane.b32.xlu0 %v6758, 16
    %v6927 = vpop.permute.xlu0 %6926
    %6928 = vrot.lane.b32.xlu0 %v6759, 16
    %v6929 = vpop.permute.xlu0 %6928
    %6930 = vrot.lane.b32.xlu0 %v6760, 16
    %v6931 = vpop.permute.xlu0 %6930
    %6932 = vrot.lane.b32.xlu0 %v6761, 16
    %v6933 = vpop.permute.xlu0 %6932
    %6934 = vrot.lane.b32.xlu0 %v6762, 16
    %v6935 = vpop.permute.xlu0 %6934
    %6936 = vrot.lane.b32.xlu0 %v6763, 16
    %v6937 = vpop.permute.xlu0 %6936
    %6938 = vrot.lane.b32.xlu0 %v6764, 16
    %v6939 = vpop.permute.xlu0 %6938
    %6940 = vrot.lane.b32.xlu0 %v6765, 16
    %v6941 = vpop.permute.xlu0 %6940
    %6942 = vrot.lane.b32.xlu0 %v6766, 16
    %v6943 = vpop.permute.xlu0 %6942
    %6944 = vrot.lane.b32.xlu0 %v6767, 16
    %v6945 = vpop.permute.xlu0 %6944
    %6946 = vrot.lane.b32.xlu0 %v6768, 16
    %v6947 = vpop.permute.xlu0 %6946
    %6948 = vrot.lane.b32.xlu0 %v6769, 16
    %v6949 = vpop.permute.xlu0 %6948
    %6950 = vrot.lane.b32.xlu0 %v6770, 16
    %v6951 = vpop.permute.xlu0 %6950
    %6952 = vrot.lane.b32.xlu0 %v6771, 16
    %v6953 = vpop.permute.xlu0 %6952
    %6954 = vrot.lane.b32.xlu0 %v6772, 16
    %v6955 = vpop.permute.xlu0 %6954
    %vm7017 = vcmask 130048
    %v7018 = vsel %vm7017, %v4817, %v6835
    %v7019 = vsel %vm7017, %v4818, %v6837
    %v7020 = vsel %vm7017, %v4819, %v6839
    %v7021 = vsel %vm7017, %v4820, %v6841
    %v7022 = vsel %vm7017, %v4821, %v6843
    %v7023 = vsel %vm7017, %v4822, %v6845
    %v7024 = vsel %vm7017, %v4823, %v6847
    %v7025 = vsel %vm7017, %v4824, %v6849
    %v7026 = vsel %vm7017, %v4825, %v6851
    %v7027 = vsel %vm7017, %v4826, %v6853
    %v7028 = vsel %vm7017, %v4827, %v6855
    %v7029 = vsel %vm7017, %v4828, %v6857
    %v7030 = vsel %vm7017, %v4829, %v6859
    %v7031 = vsel %vm7017, %v4830, %v6861
    %v7032 = vsel %vm7017, %v4831, %v6863
    %v7033 = vsel %vm7017, %v4832, %v6865
    %v7034 = vsel %vm7017, %v4833, %v6867
    %v7035 = vsel %vm7017, %v4834, %v6869
    %v7036 = vsel %vm7017, %v4835, %v6871
    %v7037 = vsel %vm7017, %v4836, %v6873
    %v7038 = vsel %vm7017, %v4837, %v6875
    %v7039 = vsel %vm7017, %v4838, %v6877
    %v7040 = vsel %vm7017, %v4839, %v6879
    %v7041 = vsel %vm7017, %v4840, %v6881
    %v7042 = vsel %vm7017, %v4841, %v6883
    %v7043 = vsel %vm7017, %v4842, %v6885
    %v7044 = vsel %vm7017, %v4843, %v6887
    %v7045 = vsel %vm7017, %v4844, %v6889
    %v7046 = vsel %vm7017, %v4845, %v6891
    %v7047 = vsel %vm7017, %v4846, %v6893
    %v7048 = vsel %vm7017, %v4847, %v6895
    %v7049 = vsel %vm7017, %v4848, %v6895
    %v7050 = vsel %vm7017, %v4849, %v6897
    %v7051 = vsel %vm7017, %v4850, %v6899
    %v7052 = vsel %vm7017, %v4851, %v6901
    %v7053 = vsel %vm7017, %v4852, %v6903
    %v7054 = vsel %vm7017, %v4853, %v6905
    %v7055 = vsel %vm7017, %v4854, %v6907
    %v7056 = vsel %vm7017, %v4855, %v6909
    %v7057 = vsel %vm7017, %v4856, %v6911
    %v7058 = vsel %vm7017, %v4857, %v6913
    %v7059 = vsel %vm7017, %v4858, %v6915
    %v7060 = vsel %vm7017, %v4859, %v6917
    %v7061 = vsel %vm7017, %v4860, %v6919
    %v7062 = vsel %vm7017, %v4861, %v6921
    %v7063 = vsel %vm7017, %v4862, %v6923
    %v7064 = vsel %vm7017, %v4863, %v6925
    %v7065 = vsel %vm7017, %v4864, %v6927
    %v7066 = vsel %vm7017, %v4865, %v6929
    %v7067 = vsel %vm7017, %v4866, %v6931
    %v7068 = vsel %vm7017, %v4867, %v6933
    %v7069 = vsel %vm7017, %v4868, %v6935
    %v7070 = vsel %vm7017, %v4869, %v6937
    %v7071 = vsel %vm7017, %v4870, %v6939
    %v7072 = vsel %vm7017, %v4871, %v6941
    %v7073 = vsel %vm7017, %v4872, %v6943
    %v7074 = vsel %vm7017, %v4873, %v6945
    %v7075 = vsel %vm7017, %v4874, %v6947
    %v7076 = vsel %vm7017, %v4875, %v6949
    %v7077 = vsel %vm7017, %v4876, %v6951
    %v7078 = vsel %vm7017, %v4877, %v6953
    %v7079 = vsel %vm7017, %v4878, %v6955
    %v7080 = vsel %vm7017, %v4879, %v6895
    %v7081 = vsel %vm7017, %v4880, %v6895
    %vm7082 = vcmask 203776
    %v7084 = vsel %vm7082, %v7018, 0
    %v7087 = vsel %vm7082, %v7019, 0
    %v7090 = vsel %vm7082, %v7020, 0
    %v7093 = vsel %vm7082, %v7021, 0
    %v7096 = vsel %vm7082, %v7022, 0
    %v7099 = vsel %vm7082, %v7023, 0
    %v7102 = vsel %vm7082, %v7024, 0
    %v7105 = vsel %vm7082, %v7025, 0
    %v7108 = vsel %vm7082, %v7026, 0
    %v7111 = vsel %vm7082, %v7027, 0
    %v7114 = vsel %vm7082, %v7028, 0
    %v7117 = vsel %vm7082, %v7029, 0
    %v7120 = vsel %vm7082, %v7030, 0
    %v7123 = vsel %vm7082, %v7031, 0
    %v7126 = vsel %vm7082, %v7032, 0
    %v7129 = vsel %vm7082, %v7033, 0
    %v7132 = vsel %vm7082, %v7034, 0
    %v7135 = vsel %vm7082, %v7035, 0
    %v7138 = vsel %vm7082, %v7036, 0
    %v7141 = vsel %vm7082, %v7037, 0
    %v7144 = vsel %vm7082, %v7038, 0
    %v7147 = vsel %vm7082, %v7039, 0
    %v7150 = vsel %vm7082, %v7040, 0
    %v7153 = vsel %vm7082, %v7041, 0
    %v7156 = vsel %vm7082, %v7042, 0
    %v7159 = vsel %vm7082, %v7043, 0
    %v7162 = vsel %vm7082, %v7044, 0
    %v7165 = vsel %vm7082, %v7045, 0
    %v7168 = vsel %vm7082, %v7046, 0
    %v7171 = vsel %vm7082, %v7047, 0
    %v7174 = vsel %vm7082, %v7048, 0
    %v7177 = vsel %vm7082, %v7049, 0
    %v7180 = vsel %vm7082, %v7050, 0
    %v7183 = vsel %vm7082, %v7051, 0
    %v7186 = vsel %vm7082, %v7052, 0
    %v7189 = vsel %vm7082, %v7053, 0
    %v7192 = vsel %vm7082, %v7054, 0
    %v7195 = vsel %vm7082, %v7055, 0
    %v7198 = vsel %vm7082, %v7056, 0
    %v7201 = vsel %vm7082, %v7057, 0
    %v7204 = vsel %vm7082, %v7058, 0
    %v7207 = vsel %vm7082, %v7059, 0
    %v7210 = vsel %vm7082, %v7060, 0
    %v7213 = vsel %vm7082, %v7061, 0
    %v7216 = vsel %vm7082, %v7062, 0
    %v7219 = vsel %vm7082, %v7063, 0
    %v7222 = vsel %vm7082, %v7064, 0
    %v7225 = vsel %vm7082, %v7065, 0
    %v7228 = vsel %vm7082, %v7066, 0
    %v7231 = vsel %vm7082, %v7067, 0
    %v7234 = vsel %vm7082, %v7068, 0
    %v7237 = vsel %vm7082, %v7069, 0
    %v7240 = vsel %vm7082, %v7070, 0
    %v7243 = vsel %vm7082, %v7071, 0
    %v7246 = vsel %vm7082, %v7072, 0
    %v7249 = vsel %vm7082, %v7073, 0
    %v7252 = vsel %vm7082, %v7074, 0
    %v7255 = vsel %vm7082, %v7075, 0
    %v7258 = vsel %vm7082, %v7076, 0
    %v7261 = vsel %vm7082, %v7077, 0
    %v7264 = vsel %vm7082, %v7078, 0
    %v7267 = vsel %vm7082, %v7079, 0
    %v7270 = vsel %vm7082, %v7080, 0
    %v7273 = vsel %vm7082, %v7081, 0
    %vm7275 = vcmask 1040384
    %v7277 = vsel %vm7275, %v109, 0
    %7279 = vmatprep.subr.mxu0 0.0
    %7280 = vmatpush1.msra.mxu0 %v106
    %7281 = vmatprep.subr.mxu0 0.0
    %7282 = vmatpush1.msra.mxu0 %v107
    %7283 = vmatprep.subr.mxu0 0.0
    %7284 = vmatpush1.msra.mxu0 %v108
    %7285 = vmatprep.subr.mxu0 0.0
    %7286 = vmatpush1.msra.mxu0 %v7277
    %7287 = vmatprep.subr.mxu0 0.0
    %7288 = vmatpush1.msra.mxu0 0.0
    %7289 = vmatprep.subr.mxu0 0.0
    %7290 = vmatpush1.msra.mxu0 0.0
    %7291 = vmatprep.subr.mxu0 0.0
    %7292 = vmatpush1.msra.mxu0 0.0
    %7293 = vmatprep.subr.mxu0 0.0
    %7294 = vmatpush1.msra.mxu0 0.0
    %7295 = vmatprep.subr.mxu0 0.0
    %7296 = vmatpush1.msra.mxu0 0.0
    %7297 = vmatprep.subr.mxu0 0.0
    %7298 = vmatpush1.msra.mxu0 0.0
    %7299 = vmatprep.subr.mxu0 0.0
    %7300 = vmatpush1.msra.mxu0 0.0
    %7301 = vmatprep.subr.mxu0 0.0
    %7302 = vmatpush1.msra.mxu0 0.0
    %7303 = vmatprep.subr.mxu0 0.0
    %7304 = vmatpush1.msra.mxu0 0.0
    %7305 = vmatprep.subr.mxu0 0.0
    %7306 = vmatpush1.msra.mxu0 0.0
    %7307 = vmatprep.subr.mxu0 0.0
    %7308 = vmatpush1.msra.mxu0 0.0
    %7309 = vmatprep.subr.mxu0 0.0
    %7310 = vmatpush1.msra.mxu0 0.0
    %7311 = vmatprep.subr.mxu0 0.0
    %7312 = vmatpush1.msra.mxu0 0.0
    %7313 = vmatprep.subr.mxu0 0.0
    %7314 = vmatpush1.msra.mxu0 0.0
    %7315 = vmatprep.subr.mxu0 0.0
    %7316 = vmatpush1.msra.mxu0 0.0
    %7317 = vmatprep.subr.mxu0 0.0
    %7318 = vmatpush1.msra.mxu0 0.0
    %7319 = vmatprep.subr.mxu0 0.0
    %7320 = vmatpush1.msra.mxu0 0.0
    %7321 = vmatprep.subr.mxu0 0.0
    %7322 = vmatpush1.msra.mxu0 0.0
    %7323 = vmatprep.subr.mxu0 0.0
    %7324 = vmatpush1.msra.mxu0 0.0
    %7325 = vmatprep.subr.mxu0 0.0
    %7326 = vmatpush1.msra.mxu0 0.0
    %7327 = vmatprep.subr.mxu0 0.0
    %7328 = vmatpush1.msra.mxu0 0.0
    %7329 = vmatprep.subr.mxu0 0.0
    %7330 = vmatpush1.msra.mxu0 0.0
    %7331 = vmatprep.subr.mxu0 0.0
    %7332 = vmatpush1.msra.mxu0 0.0
    %7333 = vmatprep.subr.mxu0 0.0
    %7334 = vmatpush1.msra.mxu0 0.0
    %7335 = vmatprep.subr.mxu0 0.0
    %7336 = vmatpush1.msra.mxu0 0.0
    %7337 = vmatprep.subr.mxu0 0.0
    %7338 = vmatpush1.msra.mxu0 0.0
    %7339 = vmatprep.subr.mxu0 0.0
    %7340 = vmatpush1.msra.mxu0 0.0
    %7341 = vmatprep.subr.mxu0 0.0
    %7342 = vmatpush1.msra.mxu0 0.0
    %7343 = vmatprep.mubr.f32.mxu0 0.0
    %7344 = vmatmul.mubr.f32.gmra.mrb[0].mxu0 %v7084
    %v7345 = vpop.f32.mrb[0].mxu0
    %v7346 = vadd.f32 0.0, %v7345
    %v7347 = vpop.f32.mrb[0].mxu0
    %7348 = vmatprep.mubr.f32.mxu0 0.0
    %7349 = vmatmul.mubr.f32.gmra.mrb[0].mxu0 %v7087
    %v7350 = vpop.f32.mrb[0].mxu0
    %v7351 = vadd.f32 0.0, %v7350
    %v7352 = vpop.f32.mrb[0].mxu0
    %7353 = vmatprep.mubr.f32.mxu0 0.0
    %7354 = vmatmul.mubr.f32.gmra.mrb[0].mxu0 %v7090
    %v7355 = vpop.f32.mrb[0].mxu0
    %v7356 = vadd.f32 0.0, %v7355
    %v7357 = vpop.f32.mrb[0].mxu0
    %7358 = vmatprep.mubr.f32.mxu0 0.0
    %7359 = vmatmul.mubr.f32.gmra.mrb[0].mxu0 %v7093
    %v7360 = vpop.f32.mrb[0].mxu0
    %v7361 = vadd.f32 0.0, %v7360
    %v7362 = vpop.f32.mrb[0].mxu0
    %7363 = vmatprep.mubr.f32.mxu0 0.0
    %7364 = vmatmul.mubr.f32.gmra.mrb[0].mxu0 %v7096
    %v7365 = vpop.f32.mrb[0].mxu0
    %v7366 = vadd.f32 0.0, %v7365
    %v7367 = vpop.f32.mrb[0].mxu0
    %7368 = vmatprep.mubr.f32.mxu0 0.0
    %7369 = vmatmul.mubr.f32.gmra.mrb[0].mxu0 %v7099
    %v7370 = vpop.f32.mrb[0].mxu0
    %v7371 = vadd.f32 0.0, %v7370
    %v7372 = vpop.f32.mrb[0].mxu0
    %7373 = vmatprep.mubr.f32.mxu0 0.0
    %7374 = vmatmul.mubr.f32.gmra.mrb[0].mxu0 %v7102
    %v7375 = vpop.f32.mrb[0].mxu0
    %v7376 = vadd.f32 0.0, %v7375
    %v7377 = vpop.f32.mrb[0].mxu0
    %7378 = vmatprep.mubr.f32.mxu0 0.0
    %7379 = vmatmul.mubr.f32.gmra.mrb[0].mxu0 %v7105
    %v7380 = vpop.f32.mrb[0].mxu0
    %v7381 = vadd.f32 0.0, %v7380
    %v7382 = vpop.f32.mrb[0].mxu0
    %7383 = vmatprep.mubr.f32.mxu0 0.0
    %7384 = vmatmul.mubr.f32.gmra.mrb[0].mxu0 %v7108
    %v7385 = vpop.f32.mrb[0].mxu0
    %v7386 = vadd.f32 0.0, %v7385
    %v7387 = vpop.f32.mrb[0].mxu0
    %7388 = vmatprep.mubr.f32.mxu0 0.0
    %7389 = vmatmul.mubr.f32.gmra.mrb[0].mxu0 %v7111
    %v7390 = vpop.f32.mrb[0].mxu0
    %v7391 = vadd.f32 0.0, %v7390
    %v7392 = vpop.f32.mrb[0].mxu0
    %7393 = vmatprep.mubr.f32.mxu0 0.0
    %7394 = vmatmul.mubr.f32.gmra.mrb[0].mxu0 %v7114
    %v7395 = vpop.f32.mrb[0].mxu0
    %v7396 = vadd.f32 0.0, %v7395
    %v7397 = vpop.f32.mrb[0].mxu0
    %7398 = vmatprep.mubr.f32.mxu0 0.0
    %7399 = vmatmul.mubr.f32.gmra.mrb[0].mxu0 %v7117
    %v7400 = vpop.f32.mrb[0].mxu0
    %v7401 = vadd.f32 0.0, %v7400
    %v7402 = vpop.f32.mrb[0].mxu0
    %7403 = vmatprep.mubr.f32.mxu0 0.0
    %7404 = vmatmul.mubr.f32.gmra.mrb[0].mxu0 %v7120
    %v7405 = vpop.f32.mrb[0].mxu0
    %v7406 = vadd.f32 0.0, %v7405
    %v7407 = vpop.f32.mrb[0].mxu0
    %7408 = vmatprep.mubr.f32.mxu0 0.0
    %7409 = vmatmul.mubr.f32.gmra.mrb[0].mxu0 %v7123
    %v7410 = vpop.f32.mrb[0].mxu0
    %v7411 = vadd.f32 0.0, %v7410
    %v7412 = vpop.f32.mrb[0].mxu0
    %7413 = vmatprep.mubr.f32.mxu0 0.0
    %7414 = vmatmul.mubr.f32.gmra.mrb[0].mxu0 %v7126
    %v7415 = vpop.f32.mrb[0].mxu0
    %v7416 = vadd.f32 0.0, %v7415
    %v7417 = vpop.f32.mrb[0].mxu0
    %7418 = vmatprep.mubr.f32.mxu0 0.0
    %7419 = vmatmul.mubr.f32.gmra.mrb[0].mxu0 %v7129
    %v7420 = vpop.f32.mrb[0].mxu0
    %v7421 = vadd.f32 0.0, %v7420
    %v7422 = vpop.f32.mrb[0].mxu0
    %7423 = vmatprep.mubr.f32.mxu0 0.0
    %7424 = vmatmul.mubr.f32.gmra.mrb[0].mxu0 %v7132
    %v7425 = vpop.f32.mrb[0].mxu0
    %v7426 = vadd.f32 0.0, %v7425
    %v7427 = vpop.f32.mrb[0].mxu0
    %7428 = vmatprep.mubr.f32.mxu0 0.0
    %7429 = vmatmul.mubr.f32.gmra.mrb[0].mxu0 %v7135
    %v7430 = vpop.f32.mrb[0].mxu0
    %v7431 = vadd.f32 0.0, %v7430
    %v7432 = vpop.f32.mrb[0].mxu0
    %7433 = vmatprep.mubr.f32.mxu0 0.0
    %7434 = vmatmul.mubr.f32.gmra.mrb[0].mxu0 %v7138
    %v7435 = vpop.f32.mrb[0].mxu0
    %v7436 = vadd.f32 0.0, %v7435
    %v7437 = vpop.f32.mrb[0].mxu0
    %7438 = vmatprep.mubr.f32.mxu0 0.0
    %7439 = vmatmul.mubr.f32.gmra.mrb[0].mxu0 %v7141
    %v7440 = vpop.f32.mrb[0].mxu0
    %v7441 = vadd.f32 0.0, %v7440
    %v7442 = vpop.f32.mrb[0].mxu0
    %7443 = vmatprep.mubr.f32.mxu0 0.0
    %7444 = vmatmul.mubr.f32.gmra.mrb[0].mxu0 %v7144
    %v7445 = vpop.f32.mrb[0].mxu0
    %v7446 = vadd.f32 0.0, %v7445
    %v7447 = vpop.f32.mrb[0].mxu0
    %7448 = vmatprep.mubr.f32.mxu0 0.0
    %7449 = vmatmul.mubr.f32.gmra.mrb[0].mxu0 %v7147
    %v7450 = vpop.f32.mrb[0].mxu0
    %v7451 = vadd.f32 0.0, %v7450
    %v7452 = vpop.f32.mrb[0].mxu0
    %7453 = vmatprep.mubr.f32.mxu0 0.0
    %7454 = vmatmul.mubr.f32.gmra.mrb[0].mxu0 %v7150
    %v7455 = vpop.f32.mrb[0].mxu0
    %v7456 = vadd.f32 0.0, %v7455
    %v7457 = vpop.f32.mrb[0].mxu0
    %7458 = vmatprep.mubr.f32.mxu0 0.0
    %7459 = vmatmul.mubr.f32.gmra.mrb[0].mxu0 %v7153
    %v7460 = vpop.f32.mrb[0].mxu0
    %v7461 = vadd.f32 0.0, %v7460
    %v7462 = vpop.f32.mrb[0].mxu0
    %7463 = vmatprep.mubr.f32.mxu0 0.0
    %7464 = vmatmul.mubr.f32.gmra.mrb[0].mxu0 %v7156
    %v7465 = vpop.f32.mrb[0].mxu0
    %v7466 = vadd.f32 0.0, %v7465
    %v7467 = vpop.f32.mrb[0].mxu0
    %7468 = vmatprep.mubr.f32.mxu0 0.0
    %7469 = vmatmul.mubr.f32.gmra.mrb[0].mxu0 %v7159
    %v7470 = vpop.f32.mrb[0].mxu0
    %v7471 = vadd.f32 0.0, %v7470
    %v7472 = vpop.f32.mrb[0].mxu0
    %7473 = vmatprep.mubr.f32.mxu0 0.0
    %7474 = vmatmul.mubr.f32.gmra.mrb[0].mxu0 %v7162
    %v7475 = vpop.f32.mrb[0].mxu0
    %v7476 = vadd.f32 0.0, %v7475
    %v7477 = vpop.f32.mrb[0].mxu0
    %7478 = vmatprep.mubr.f32.mxu0 0.0
    %7479 = vmatmul.mubr.f32.gmra.mrb[0].mxu0 %v7165
    %v7480 = vpop.f32.mrb[0].mxu0
    %v7481 = vadd.f32 0.0, %v7480
    %v7482 = vpop.f32.mrb[0].mxu0
    %7483 = vmatprep.mubr.f32.mxu0 0.0
    %7484 = vmatmul.mubr.f32.gmra.mrb[0].mxu0 %v7168
    %v7485 = vpop.f32.mrb[0].mxu0
    %v7486 = vadd.f32 0.0, %v7485
    %v7487 = vpop.f32.mrb[0].mxu0
    %7488 = vmatprep.mubr.f32.mxu0 0.0
    %7489 = vmatmul.mubr.f32.gmra.mrb[0].mxu0 %v7171
    %v7490 = vpop.f32.mrb[0].mxu0
    %v7491 = vadd.f32 0.0, %v7490
    %v7492 = vpop.f32.mrb[0].mxu0
    %7493 = vmatprep.mubr.f32.mxu0 0.0
    %7494 = vmatmul.mubr.f32.gmra.mrb[0].mxu0 %v7174
    %v7495 = vpop.f32.mrb[0].mxu0
    %v7496 = vadd.f32 0.0, %v7495
    %v7497 = vpop.f32.mrb[0].mxu0
    %7498 = vmatprep.mubr.f32.mxu0 0.0
    %7499 = vmatmul.mubr.f32.gmra.mrb[0].mxu0 %v7177
    %v7500 = vpop.f32.mrb[0].mxu0
    %v7501 = vadd.f32 0.0, %v7500
    %v7502 = vpop.f32.mrb[0].mxu0
    %7503 = vmatprep.mubr.f32.mxu0 0.0
    %7504 = vmatmul.mubr.f32.gmra.mrb[0].mxu0 %v7180
    %v7505 = vpop.f32.mrb[0].mxu0
    %v7506 = vadd.f32 0.0, %v7505
    %v7507 = vpop.f32.mrb[0].mxu0
    %7508 = vmatprep.mubr.f32.mxu0 0.0
    %7509 = vmatmul.mubr.f32.gmra.mrb[0].mxu0 %v7183
    %v7510 = vpop.f32.mrb[0].mxu0
    %v7511 = vadd.f32 0.0, %v7510
    %v7512 = vpop.f32.mrb[0].mxu0
    %7513 = vmatprep.mubr.f32.mxu0 0.0
    %7514 = vmatmul.mubr.f32.gmra.mrb[0].mxu0 %v7186
    %v7515 = vpop.f32.mrb[0].mxu0
    %v7516 = vadd.f32 0.0, %v7515
    %v7517 = vpop.f32.mrb[0].mxu0
    %7518 = vmatprep.mubr.f32.mxu0 0.0
    %7519 = vmatmul.mubr.f32.gmra.mrb[0].mxu0 %v7189
    %v7520 = vpop.f32.mrb[0].mxu0
    %v7521 = vadd.f32 0.0, %v7520
    %v7522 = vpop.f32.mrb[0].mxu0
    %7523 = vmatprep.mubr.f32.mxu0 0.0
    %7524 = vmatmul.mubr.f32.gmra.mrb[0].mxu0 %v7192
    %v7525 = vpop.f32.mrb[0].mxu0
    %v7526 = vadd.f32 0.0, %v7525
    %v7527 = vpop.f32.mrb[0].mxu0
    %7528 = vmatprep.mubr.f32.mxu0 0.0
    %7529 = vmatmul.mubr.f32.gmra.mrb[0].mxu0 %v7195
    %v7530 = vpop.f32.mrb[0].mxu0
    %v7531 = vadd.f32 0.0, %v7530
    %v7532 = vpop.f32.mrb[0].mxu0
    %7533 = vmatprep.mubr.f32.mxu0 0.0
    %7534 = vmatmul.mubr.f32.gmra.mrb[0].mxu0 %v7198
    %v7535 = vpop.f32.mrb[0].mxu0
    %v7536 = vadd.f32 0.0, %v7535
    %v7537 = vpop.f32.mrb[0].mxu0
    %7538 = vmatprep.mubr.f32.mxu0 0.0
    %7539 = vmatmul.mubr.f32.gmra.mrb[0].mxu0 %v7201
    %v7540 = vpop.f32.mrb[0].mxu0
    %v7541 = vadd.f32 0.0, %v7540
    %v7542 = vpop.f32.mrb[0].mxu0
    %7543 = vmatprep.mubr.f32.mxu0 0.0
    %7544 = vmatmul.mubr.f32.gmra.mrb[0].mxu0 %v7204
    %v7545 = vpop.f32.mrb[0].mxu0
    %v7546 = vadd.f32 0.0, %v7545
    %v7547 = vpop.f32.mrb[0].mxu0
    %7548 = vmatprep.mubr.f32.mxu0 0.0
    %7549 = vmatmul.mubr.f32.gmra.mrb[0].mxu0 %v7207
    %v7550 = vpop.f32.mrb[0].mxu0
    %v7551 = vadd.f32 0.0, %v7550
    %v7552 = vpop.f32.mrb[0].mxu0
    %7553 = vmatprep.mubr.f32.mxu0 0.0
    %7554 = vmatmul.mubr.f32.gmra.mrb[0].mxu0 %v7210
    %v7555 = vpop.f32.mrb[0].mxu0
    %v7556 = vadd.f32 0.0, %v7555
    %v7557 = vpop.f32.mrb[0].mxu0
    %7558 = vmatprep.mubr.f32.mxu0 0.0
    %7559 = vmatmul.mubr.f32.gmra.mrb[0].mxu0 %v7213
    %v7560 = vpop.f32.mrb[0].mxu0
    %v7561 = vadd.f32 0.0, %v7560
    %v7562 = vpop.f32.mrb[0].mxu0
    %7563 = vmatprep.mubr.f32.mxu0 0.0
    %7564 = vmatmul.mubr.f32.gmra.mrb[0].mxu0 %v7216
    %v7565 = vpop.f32.mrb[0].mxu0
    %v7566 = vadd.f32 0.0, %v7565
    %v7567 = vpop.f32.mrb[0].mxu0
    %7568 = vmatprep.mubr.f32.mxu0 0.0
    %7569 = vmatmul.mubr.f32.gmra.mrb[0].mxu0 %v7219
    %v7570 = vpop.f32.mrb[0].mxu0
    %v7571 = vadd.f32 0.0, %v7570
    %v7572 = vpop.f32.mrb[0].mxu0
    %7573 = vmatprep.mubr.f32.mxu0 0.0
    %7574 = vmatmul.mubr.f32.gmra.mrb[0].mxu0 %v7222
    %v7575 = vpop.f32.mrb[0].mxu0
    %v7576 = vadd.f32 0.0, %v7575
    %v7577 = vpop.f32.mrb[0].mxu0
    %7578 = vmatprep.mubr.f32.mxu0 0.0
    %7579 = vmatmul.mubr.f32.gmra.mrb[0].mxu0 %v7225
    %v7580 = vpop.f32.mrb[0].mxu0
    %v7581 = vadd.f32 0.0, %v7580
    %v7582 = vpop.f32.mrb[0].mxu0
    %7583 = vmatprep.mubr.f32.mxu0 0.0
    %7584 = vmatmul.mubr.f32.gmra.mrb[0].mxu0 %v7228
    %v7585 = vpop.f32.mrb[0].mxu0
    %v7586 = vadd.f32 0.0, %v7585
    %v7587 = vpop.f32.mrb[0].mxu0
    %7588 = vmatprep.mubr.f32.mxu0 0.0
    %7589 = vmatmul.mubr.f32.gmra.mrb[0].mxu0 %v7231
    %v7590 = vpop.f32.mrb[0].mxu0
    %v7591 = vadd.f32 0.0, %v7590
    %v7592 = vpop.f32.mrb[0].mxu0
    %7593 = vmatprep.mubr.f32.mxu0 0.0
    %7594 = vmatmul.mubr.f32.gmra.mrb[0].mxu0 %v7234
    %v7595 = vpop.f32.mrb[0].mxu0
    %v7596 = vadd.f32 0.0, %v7595
    %v7597 = vpop.f32.mrb[0].mxu0
    %7598 = vmatprep.mubr.f32.mxu0 0.0
    %7599 = vmatmul.mubr.f32.gmra.mrb[0].mxu0 %v7237
    %v7600 = vpop.f32.mrb[0].mxu0
    %v7601 = vadd.f32 0.0, %v7600
    %v7602 = vpop.f32.mrb[0].mxu0
    %7603 = vmatprep.mubr.f32.mxu0 0.0
    %7604 = vmatmul.mubr.f32.gmra.mrb[0].mxu0 %v7240
    %v7605 = vpop.f32.mrb[0].mxu0
    %v7606 = vadd.f32 0.0, %v7605
    %v7607 = vpop.f32.mrb[0].mxu0
    %7608 = vmatprep.mubr.f32.mxu0 0.0
    %7609 = vmatmul.mubr.f32.gmra.mrb[0].mxu0 %v7243
    %v7610 = vpop.f32.mrb[0].mxu0
    %v7611 = vadd.f32 0.0, %v7610
    %v7612 = vpop.f32.mrb[0].mxu0
    %7613 = vmatprep.mubr.f32.mxu0 0.0
    %7614 = vmatmul.mubr.f32.gmra.mrb[0].mxu0 %v7246
    %v7615 = vpop.f32.mrb[0].mxu0
    %v7616 = vadd.f32 0.0, %v7615
    %v7617 = vpop.f32.mrb[0].mxu0
    %7618 = vmatprep.mubr.f32.mxu0 0.0
    %7619 = vmatmul.mubr.f32.gmra.mrb[0].mxu0 %v7249
    %v7620 = vpop.f32.mrb[0].mxu0
    %v7621 = vadd.f32 0.0, %v7620
    %v7622 = vpop.f32.mrb[0].mxu0
    %7623 = vmatprep.mubr.f32.mxu0 0.0
    %7624 = vmatmul.mubr.f32.gmra.mrb[0].mxu0 %v7252
    %v7625 = vpop.f32.mrb[0].mxu0
    %v7626 = vadd.f32 0.0, %v7625
    %v7627 = vpop.f32.mrb[0].mxu0
    %7628 = vmatprep.mubr.f32.mxu0 0.0
    %7629 = vmatmul.mubr.f32.gmra.mrb[0].mxu0 %v7255
    %v7630 = vpop.f32.mrb[0].mxu0
    %v7631 = vadd.f32 0.0, %v7630
    %v7632 = vpop.f32.mrb[0].mxu0
    %7633 = vmatprep.mubr.f32.mxu0 0.0
    %7634 = vmatmul.mubr.f32.gmra.mrb[0].mxu0 %v7258
    %v7635 = vpop.f32.mrb[0].mxu0
    %v7636 = vadd.f32 0.0, %v7635
    %v7637 = vpop.f32.mrb[0].mxu0
    %7638 = vmatprep.mubr.f32.mxu0 0.0
    %7639 = vmatmul.mubr.f32.gmra.mrb[0].mxu0 %v7261
    %v7640 = vpop.f32.mrb[0].mxu0
    %v7641 = vadd.f32 0.0, %v7640
    %v7642 = vpop.f32.mrb[0].mxu0
    %7643 = vmatprep.mubr.f32.mxu0 0.0
    %7644 = vmatmul.mubr.f32.gmra.mrb[0].mxu0 %v7264
    %v7645 = vpop.f32.mrb[0].mxu0
    %v7646 = vadd.f32 0.0, %v7645
    %v7647 = vpop.f32.mrb[0].mxu0
    %7648 = vmatprep.mubr.f32.mxu0 0.0
    %7649 = vmatmul.mubr.f32.gmra.mrb[0].mxu0 %v7267
    %v7650 = vpop.f32.mrb[0].mxu0
    %v7651 = vadd.f32 0.0, %v7650
    %v7652 = vpop.f32.mrb[0].mxu0
    %7653 = vmatprep.mubr.f32.mxu0 0.0
    %7654 = vmatmul.mubr.f32.gmra.mrb[0].mxu0 %v7270
    %v7655 = vpop.f32.mrb[0].mxu0
    %v7656 = vadd.f32 0.0, %v7655
    %v7657 = vpop.f32.mrb[0].mxu0
    %7658 = vmatprep.mubr.f32.mxu0 0.0
    %7659 = vmatmul.mubr.f32.gmra.mrb[0].mxu0 %v7273
    %v7660 = vpop.f32.mrb[0].mxu0
    %v7661 = vadd.f32 0.0, %v7660
    %v7662 = vpop.f32.mrb[0].mxu0
    %7663 = vdwg.mxu0
    %v7664 = vsel %vm4243, %v7346, 0.0
    %v7665 = vsel %vm4243, %v7351, 0.0
    %v7666 = vadd.f32 %v7664, %v7665
    %v7667 = vsel %vm4243, %v7356, 0.0
    %v7668 = vadd.f32 %v7666, %v7667
    %v7669 = vsel %vm4243, %v7361, 0.0
    %v7670 = vadd.f32 %v7668, %v7669
    %v7671 = vsel %vm4243, %v7366, 0.0
    %v7672 = vadd.f32 %v7670, %v7671
    %v7673 = vsel %vm4243, %v7371, 0.0
    %v7674 = vadd.f32 %v7672, %v7673
    %v7675 = vsel %vm4243, %v7376, 0.0
    %v7676 = vadd.f32 %v7674, %v7675
    %v7677 = vsel %vm4243, %v7381, 0.0
    %v7678 = vadd.f32 %v7676, %v7677
    %v7679 = vsel %vm4243, %v7386, 0.0
    %v7680 = vadd.f32 %v7678, %v7679
    %v7681 = vsel %vm4243, %v7391, 0.0
    %v7682 = vadd.f32 %v7680, %v7681
    %v7683 = vsel %vm4243, %v7396, 0.0
    %v7684 = vadd.f32 %v7682, %v7683
    %v7685 = vsel %vm4243, %v7401, 0.0
    %v7686 = vadd.f32 %v7684, %v7685
    %v7687 = vsel %vm4243, %v7406, 0.0
    %v7688 = vadd.f32 %v7686, %v7687
    %v7689 = vsel %vm4243, %v7411, 0.0
    %v7690 = vadd.f32 %v7688, %v7689
    %v7691 = vsel %vm4243, %v7416, 0.0
    %v7692 = vadd.f32 %v7690, %v7691
    %v7693 = vsel %vm4243, %v7421, 0.0
    %v7694 = vadd.f32 %v7692, %v7693
    %v7695 = vsel %vm4243, %v7426, 0.0
    %v7696 = vadd.f32 %v7694, %v7695
    %v7697 = vsel %vm4243, %v7431, 0.0
    %v7698 = vadd.f32 %v7696, %v7697
    %v7699 = vsel %vm4243, %v7436, 0.0
    %v7700 = vadd.f32 %v7698, %v7699
    %v7701 = vsel %vm4243, %v7441, 0.0
    %v7702 = vadd.f32 %v7700, %v7701
    %v7703 = vsel %vm4243, %v7446, 0.0
    %v7704 = vadd.f32 %v7702, %v7703
    %v7705 = vsel %vm4243, %v7451, 0.0
    %v7706 = vadd.f32 %v7704, %v7705
    %v7707 = vsel %vm4243, %v7456, 0.0
    %v7708 = vadd.f32 %v7706, %v7707
    %v7709 = vsel %vm4243, %v7461, 0.0
    %v7710 = vadd.f32 %v7708, %v7709
    %v7711 = vsel %vm4243, %v7466, 0.0
    %v7712 = vadd.f32 %v7710, %v7711
    %v7713 = vsel %vm4243, %v7471, 0.0
    %v7714 = vadd.f32 %v7712, %v7713
    %v7715 = vsel %vm4243, %v7476, 0.0
    %v7716 = vadd.f32 %v7714, %v7715
    %v7717 = vsel %vm4243, %v7481, 0.0
    %v7718 = vadd.f32 %v7716, %v7717
    %v7719 = vsel %vm4243, %v7486, 0.0
    %v7720 = vadd.f32 %v7718, %v7719
    %v7721 = vsel %vm4243, %v7491, 0.0
    %v7722 = vadd.f32 %v7720, %v7721
    %v7723 = vsel %vm4243, %v7496, 0.0
    %v7724 = vadd.f32 %v7722, %v7723
    %v7725 = vsel %vm4243, %v7501, 0.0
    %v7726 = vadd.f32 %v7724, %v7725
    %v7727 = vsel %vm4243, %v7506, 0.0
    %v7728 = vadd.f32 %v7726, %v7727
    %v7729 = vsel %vm4243, %v7511, 0.0
    %v7730 = vadd.f32 %v7728, %v7729
    %v7731 = vsel %vm4243, %v7516, 0.0
    %v7732 = vadd.f32 %v7730, %v7731
    %v7733 = vsel %vm4243, %v7521, 0.0
    %v7734 = vadd.f32 %v7732, %v7733
    %v7735 = vsel %vm4243, %v7526, 0.0
    %v7736 = vadd.f32 %v7734, %v7735
    %v7737 = vsel %vm4243, %v7531, 0.0
    %v7738 = vadd.f32 %v7736, %v7737
    %v7739 = vsel %vm4243, %v7536, 0.0
    %v7740 = vadd.f32 %v7738, %v7739
    %v7741 = vsel %vm4243, %v7541, 0.0
    %v7742 = vadd.f32 %v7740, %v7741
    %v7743 = vsel %vm4243, %v7546, 0.0
    %v7744 = vadd.f32 %v7742, %v7743
    %v7745 = vsel %vm4243, %v7551, 0.0
    %v7746 = vadd.f32 %v7744, %v7745
    %v7747 = vsel %vm4243, %v7556, 0.0
    %v7748 = vadd.f32 %v7746, %v7747
    %v7749 = vsel %vm4243, %v7561, 0.0
    %v7750 = vadd.f32 %v7748, %v7749
    %v7751 = vsel %vm4243, %v7566, 0.0
    %v7752 = vadd.f32 %v7750, %v7751
    %v7753 = vsel %vm4243, %v7571, 0.0
    %v7754 = vadd.f32 %v7752, %v7753
    %v7755 = vsel %vm4243, %v7576, 0.0
    %v7756 = vadd.f32 %v7754, %v7755
    %v7757 = vsel %vm4243, %v7581, 0.0
    %v7758 = vadd.f32 %v7756, %v7757
    %v7759 = vsel %vm4243, %v7586, 0.0
    %v7760 = vadd.f32 %v7758, %v7759
    %v7761 = vsel %vm4243, %v7591, 0.0
    %v7762 = vadd.f32 %v7760, %v7761
    %v7763 = vsel %vm4243, %v7596, 0.0
    %v7764 = vadd.f32 %v7762, %v7763
    %v7765 = vsel %vm4243, %v7601, 0.0
    %v7766 = vadd.f32 %v7764, %v7765
    %v7767 = vsel %vm4243, %v7606, 0.0
    %v7768 = vadd.f32 %v7766, %v7767
    %v7769 = vsel %vm4243, %v7611, 0.0
    %v7770 = vadd.f32 %v7768, %v7769
    %v7771 = vsel %vm4243, %v7616, 0.0
    %v7772 = vadd.f32 %v7770, %v7771
    %v7773 = vsel %vm4243, %v7621, 0.0
    %v7774 = vadd.f32 %v7772, %v7773
    %v7775 = vsel %vm4243, %v7626, 0.0
    %v7776 = vadd.f32 %v7774, %v7775
    %v7777 = vsel %vm4243, %v7631, 0.0
    %v7778 = vadd.f32 %v7776, %v7777
    %v7779 = vsel %vm4243, %v7636, 0.0
    %v7780 = vadd.f32 %v7778, %v7779
    %v7781 = vsel %vm4243, %v7641, 0.0
    %v7782 = vadd.f32 %v7780, %v7781
    %v7783 = vsel %vm4243, %v7646, 0.0
    %v7784 = vadd.f32 %v7782, %v7783
    %v7785 = vsel %vm4243, %v7651, 0.0
    %v7786 = vadd.f32 %v7784, %v7785
    %v7787 = vsel %vm4243, %v7656, 0.0
    %v7788 = vadd.f32 %v7786, %v7787
    %v7789 = vsel %vm4243, %v7661, 0.0
    %v7790 = vadd.f32 %v7788, %v7789
    %v7791 = vrot.slane %v7790, 4
    %v7792 = vadd.f32 %v7790, %v7791
    %v7793 = vrot.slane %v7792, 2
    %v7794 = vadd.f32 %v7792, %v7793
    %v7795 = vrot.slane %v7794, 1
    %v7796 = vadd.f32 %v7794, %v7795
    %v7797 = vmul.f32 %v7796, 0.001953125
    %v7798 = vmul.f32 %v7346, %v7346
    %v7799 = vmul.f32 %v7351, %v7351
    %v7800 = vmul.f32 %v7356, %v7356
    %v7801 = vmul.f32 %v7361, %v7361
    %v7802 = vmul.f32 %v7366, %v7366
    %v7803 = vmul.f32 %v7371, %v7371
    %v7804 = vmul.f32 %v7376, %v7376
    %v7805 = vmul.f32 %v7381, %v7381
    %v7806 = vmul.f32 %v7386, %v7386
    %v7807 = vmul.f32 %v7391, %v7391
    %v7808 = vmul.f32 %v7396, %v7396
    %v7809 = vmul.f32 %v7401, %v7401
    %v7810 = vmul.f32 %v7406, %v7406
    %v7811 = vmul.f32 %v7411, %v7411
    %v7812 = vmul.f32 %v7416, %v7416
    %v7813 = vmul.f32 %v7421, %v7421
    %v7814 = vmul.f32 %v7426, %v7426
    %v7815 = vmul.f32 %v7431, %v7431
    %v7816 = vmul.f32 %v7436, %v7436
    %v7817 = vmul.f32 %v7441, %v7441
    %v7818 = vmul.f32 %v7446, %v7446
    %v7819 = vmul.f32 %v7451, %v7451
    %v7820 = vmul.f32 %v7456, %v7456
    %v7821 = vmul.f32 %v7461, %v7461
    %v7822 = vmul.f32 %v7466, %v7466
    %v7823 = vmul.f32 %v7471, %v7471
    %v7824 = vmul.f32 %v7476, %v7476
    %v7825 = vmul.f32 %v7481, %v7481
    %v7826 = vmul.f32 %v7486, %v7486
    %v7827 = vmul.f32 %v7491, %v7491
    %v7828 = vmul.f32 %v7496, %v7496
    %v7829 = vmul.f32 %v7501, %v7501
    %v7830 = vmul.f32 %v7506, %v7506
    %v7831 = vmul.f32 %v7511, %v7511
    %v7832 = vmul.f32 %v7516, %v7516
    %v7833 = vmul.f32 %v7521, %v7521
    %v7834 = vmul.f32 %v7526, %v7526
    %v7835 = vmul.f32 %v7531, %v7531
    %v7836 = vmul.f32 %v7536, %v7536
    %v7837 = vmul.f32 %v7541, %v7541
    %v7838 = vmul.f32 %v7546, %v7546
    %v7839 = vmul.f32 %v7551, %v7551
    %v7840 = vmul.f32 %v7556, %v7556
    %v7841 = vmul.f32 %v7561, %v7561
    %v7842 = vmul.f32 %v7566, %v7566
    %v7843 = vmul.f32 %v7571, %v7571
    %v7844 = vmul.f32 %v7576, %v7576
    %v7845 = vmul.f32 %v7581, %v7581
    %v7846 = vmul.f32 %v7586, %v7586
    %v7847 = vmul.f32 %v7591, %v7591
    %v7848 = vmul.f32 %v7596, %v7596
    %v7849 = vmul.f32 %v7601, %v7601
    %v7850 = vmul.f32 %v7606, %v7606
    %v7851 = vmul.f32 %v7611, %v7611
    %v7852 = vmul.f32 %v7616, %v7616
    %v7853 = vmul.f32 %v7621, %v7621
    %v7854 = vmul.f32 %v7626, %v7626
    %v7855 = vmul.f32 %v7631, %v7631
    %v7856 = vmul.f32 %v7636, %v7636
    %v7857 = vmul.f32 %v7641, %v7641
    %v7858 = vmul.f32 %v7646, %v7646
    %v7859 = vmul.f32 %v7651, %v7651
    %v7860 = vmul.f32 %v7656, %v7656
    %v7861 = vmul.f32 %v7661, %v7661
    %v7862 = vsel %vm4243, %v7798, 0.0
    %v7863 = vsel %vm4243, %v7799, 0.0
    %v7864 = vadd.f32 %v7862, %v7863
    %v7865 = vsel %vm4243, %v7800, 0.0
    %v7866 = vadd.f32 %v7864, %v7865
    %v7867 = vsel %vm4243, %v7801, 0.0
    %v7868 = vadd.f32 %v7866, %v7867
    %v7869 = vsel %vm4243, %v7802, 0.0
    %v7870 = vadd.f32 %v7868, %v7869
    %v7871 = vsel %vm4243, %v7803, 0.0
    %v7872 = vadd.f32 %v7870, %v7871
    %v7873 = vsel %vm4243, %v7804, 0.0
    %v7874 = vadd.f32 %v7872, %v7873
    %v7875 = vsel %vm4243, %v7805, 0.0
    %v7876 = vadd.f32 %v7874, %v7875
    %v7877 = vsel %vm4243, %v7806, 0.0
    %v7878 = vadd.f32 %v7876, %v7877
    %v7879 = vsel %vm4243, %v7807, 0.0
    %v7880 = vadd.f32 %v7878, %v7879
    %v7881 = vsel %vm4243, %v7808, 0.0
    %v7882 = vadd.f32 %v7880, %v7881
    %v7883 = vsel %vm4243, %v7809, 0.0
    %v7884 = vadd.f32 %v7882, %v7883
    %v7885 = vsel %vm4243, %v7810, 0.0
    %v7886 = vadd.f32 %v7884, %v7885
    %v7887 = vsel %vm4243, %v7811, 0.0
    %v7888 = vadd.f32 %v7886, %v7887
    %v7889 = vsel %vm4243, %v7812, 0.0
    %v7890 = vadd.f32 %v7888, %v7889
    %v7891 = vsel %vm4243, %v7813, 0.0
    %v7892 = vadd.f32 %v7890, %v7891
    %v7893 = vsel %vm4243, %v7814, 0.0
    %v7894 = vadd.f32 %v7892, %v7893
    %v7895 = vsel %vm4243, %v7815, 0.0
    %v7896 = vadd.f32 %v7894, %v7895
    %v7897 = vsel %vm4243, %v7816, 0.0
    %v7898 = vadd.f32 %v7896, %v7897
    %v7899 = vsel %vm4243, %v7817, 0.0
    %v7900 = vadd.f32 %v7898, %v7899
    %v7901 = vsel %vm4243, %v7818, 0.0
    %v7902 = vadd.f32 %v7900, %v7901
    %v7903 = vsel %vm4243, %v7819, 0.0
    %v7904 = vadd.f32 %v7902, %v7903
    %v7905 = vsel %vm4243, %v7820, 0.0
    %v7906 = vadd.f32 %v7904, %v7905
    %v7907 = vsel %vm4243, %v7821, 0.0
    %v7908 = vadd.f32 %v7906, %v7907
    %v7909 = vsel %vm4243, %v7822, 0.0
    %v7910 = vadd.f32 %v7908, %v7909
    %v7911 = vsel %vm4243, %v7823, 0.0
    %v7912 = vadd.f32 %v7910, %v7911
    %v7913 = vsel %vm4243, %v7824, 0.0
    %v7914 = vadd.f32 %v7912, %v7913
    %v7915 = vsel %vm4243, %v7825, 0.0
    %v7916 = vadd.f32 %v7914, %v7915
    %v7917 = vsel %vm4243, %v7826, 0.0
    %v7918 = vadd.f32 %v7916, %v7917
    %v7919 = vsel %vm4243, %v7827, 0.0
    %v7920 = vadd.f32 %v7918, %v7919
    %v7921 = vsel %vm4243, %v7828, 0.0
    %v7922 = vadd.f32 %v7920, %v7921
    %v7923 = vsel %vm4243, %v7829, 0.0
    %v7924 = vadd.f32 %v7922, %v7923
    %v7925 = vsel %vm4243, %v7830, 0.0
    %v7926 = vadd.f32 %v7924, %v7925
    %v7927 = vsel %vm4243, %v7831, 0.0
    %v7928 = vadd.f32 %v7926, %v7927
    %v7929 = vsel %vm4243, %v7832, 0.0
    %v7930 = vadd.f32 %v7928, %v7929
    %v7931 = vsel %vm4243, %v7833, 0.0
    %v7932 = vadd.f32 %v7930, %v7931
    %v7933 = vsel %vm4243, %v7834, 0.0
    %v7934 = vadd.f32 %v7932, %v7933
    %v7935 = vsel %vm4243, %v7835, 0.0
    %v7936 = vadd.f32 %v7934, %v7935
    %v7937 = vsel %vm4243, %v7836, 0.0
    %v7938 = vadd.f32 %v7936, %v7937
    %v7939 = vsel %vm4243, %v7837, 0.0
    %v7940 = vadd.f32 %v7938, %v7939
    %v7941 = vsel %vm4243, %v7838, 0.0
    %v7942 = vadd.f32 %v7940, %v7941
    %v7943 = vsel %vm4243, %v7839, 0.0
    %v7944 = vadd.f32 %v7942, %v7943
    %v7945 = vsel %vm4243, %v7840, 0.0
    %v7946 = vadd.f32 %v7944, %v7945
    %v7947 = vsel %vm4243, %v7841, 0.0
    %v7948 = vadd.f32 %v7946, %v7947
    %v7949 = vsel %vm4243, %v7842, 0.0
    %v7950 = vadd.f32 %v7948, %v7949
    %v7951 = vsel %vm4243, %v7843, 0.0
    %v7952 = vadd.f32 %v7950, %v7951
    %v7953 = vsel %vm4243, %v7844, 0.0
    %v7954 = vadd.f32 %v7952, %v7953
    %v7955 = vsel %vm4243, %v7845, 0.0
    %v7956 = vadd.f32 %v7954, %v7955
    %v7957 = vsel %vm4243, %v7846, 0.0
    %v7958 = vadd.f32 %v7956, %v7957
    %v7959 = vsel %vm4243, %v7847, 0.0
    %v7960 = vadd.f32 %v7958, %v7959
    %v7961 = vsel %vm4243, %v7848, 0.0
    %v7962 = vadd.f32 %v7960, %v7961
    %v7963 = vsel %vm4243, %v7849, 0.0
    %v7964 = vadd.f32 %v7962, %v7963
    %v7965 = vsel %vm4243, %v7850, 0.0
    %v7966 = vadd.f32 %v7964, %v7965
    %v7967 = vsel %vm4243, %v7851, 0.0
    %v7968 = vadd.f32 %v7966, %v7967
    %v7969 = vsel %vm4243, %v7852, 0.0
    %v7970 = vadd.f32 %v7968, %v7969
    %v7971 = vsel %vm4243, %v7853, 0.0
    %v7972 = vadd.f32 %v7970, %v7971
    %v7973 = vsel %vm4243, %v7854, 0.0
    %v7974 = vadd.f32 %v7972, %v7973
    %v7975 = vsel %vm4243, %v7855, 0.0
    %v7976 = vadd.f32 %v7974, %v7975
    %v7977 = vsel %vm4243, %v7856, 0.0
    %v7978 = vadd.f32 %v7976, %v7977
    %v7979 = vsel %vm4243, %v7857, 0.0
    %v7980 = vadd.f32 %v7978, %v7979
    %v7981 = vsel %vm4243, %v7858, 0.0
    %v7982 = vadd.f32 %v7980, %v7981
    %v7983 = vsel %vm4243, %v7859, 0.0
    %v7984 = vadd.f32 %v7982, %v7983
    %v7985 = vsel %vm4243, %v7860, 0.0
    %v7986 = vadd.f32 %v7984, %v7985
    %v7987 = vsel %vm4243, %v7861, 0.0
    %v7988 = vadd.f32 %v7986, %v7987
    %v7989 = vrot.slane %v7988, 4
    %v7990 = vadd.f32 %v7988, %v7989
    %v7991 = vrot.slane %v7990, 2
    %v7992 = vadd.f32 %v7990, %v7991
    %v7993 = vrot.slane %v7992, 1
    %v7994 = vadd.f32 %v7992, %v7993
    %v7995 = vmul.f32 %v7994, 0.001953125
    %v7996 = vmul.f32 %v7797, %v7797
    %v7997 = vsub.f32 %v7995, %v7996
    %v7998 = vmax.f32 %v7997, 0.0
    %v7999 = vadd.f32 %v7998, 1e-05
    %v8000 = vrsqrt.pop %v7999
    %v8001 = vmul.f32 %v110, %v8000
    %v8002 = vmul.f32 %v7797, %v8001
    %v8003 = vsub.f32 %v111, %v8002
    %v8005 = vlaneseq
    %v8006 = vshrl.u32 %v8005, 7
    %v8007 = vsub.s32 0, %v8006
    %v8008 = vrot.slane %v8001, %v8007
    %v8010 = vmul.f32 %v7346, %v8008
    %v8011 = vmul.f32 %v7351, %v8008
    %v8012 = vmul.f32 %v7356, %v8008
    %v8013 = vmul.f32 %v7361, %v8008
    %v8014 = vmul.f32 %v7366, %v8008
    %v8015 = vmul.f32 %v7371, %v8008
    %v8016 = vmul.f32 %v7376, %v8008
    %v8017 = vmul.f32 %v7381, %v8008
    %v8018 = vmul.f32 %v7386, %v8008
    %v8019 = vmul.f32 %v7391, %v8008
    %v8020 = vmul.f32 %v7396, %v8008
    %v8021 = vmul.f32 %v7401, %v8008
    %v8022 = vmul.f32 %v7406, %v8008
    %v8023 = vmul.f32 %v7411, %v8008
    %v8024 = vmul.f32 %v7416, %v8008
    %v8025 = vmul.f32 %v7421, %v8008
    %v8026 = vmul.f32 %v7426, %v8008
    %v8027 = vmul.f32 %v7431, %v8008
    %v8028 = vmul.f32 %v7436, %v8008
    %v8029 = vmul.f32 %v7441, %v8008
    %v8030 = vmul.f32 %v7446, %v8008
    %v8031 = vmul.f32 %v7451, %v8008
    %v8032 = vmul.f32 %v7456, %v8008
    %v8033 = vmul.f32 %v7461, %v8008
    %v8034 = vmul.f32 %v7466, %v8008
    %v8035 = vmul.f32 %v7471, %v8008
    %v8036 = vmul.f32 %v7476, %v8008
    %v8037 = vmul.f32 %v7481, %v8008
    %v8038 = vmul.f32 %v7486, %v8008
    %v8039 = vmul.f32 %v7491, %v8008
    %v8040 = vmul.f32 %v7496, %v8008
    %v8041 = vmul.f32 %v7501, %v8008
    %v8042 = vmul.f32 %v7506, %v8008
    %v8043 = vmul.f32 %v7511, %v8008
    %v8044 = vmul.f32 %v7516, %v8008
    %v8045 = vmul.f32 %v7521, %v8008
    %v8046 = vmul.f32 %v7526, %v8008
    %v8047 = vmul.f32 %v7531, %v8008
    %v8048 = vmul.f32 %v7536, %v8008
    %v8049 = vmul.f32 %v7541, %v8008
    %v8050 = vmul.f32 %v7546, %v8008
    %v8051 = vmul.f32 %v7551, %v8008
    %v8052 = vmul.f32 %v7556, %v8008
    %v8053 = vmul.f32 %v7561, %v8008
    %v8054 = vmul.f32 %v7566, %v8008
    %v8055 = vmul.f32 %v7571, %v8008
    %v8056 = vmul.f32 %v7576, %v8008
    %v8057 = vmul.f32 %v7581, %v8008
    %v8058 = vmul.f32 %v7586, %v8008
    %v8059 = vmul.f32 %v7591, %v8008
    %v8060 = vmul.f32 %v7596, %v8008
    %v8061 = vmul.f32 %v7601, %v8008
    %v8062 = vmul.f32 %v7606, %v8008
    %v8063 = vmul.f32 %v7611, %v8008
    %v8064 = vmul.f32 %v7616, %v8008
    %v8065 = vmul.f32 %v7621, %v8008
    %v8066 = vmul.f32 %v7626, %v8008
    %v8067 = vmul.f32 %v7631, %v8008
    %v8068 = vmul.f32 %v7636, %v8008
    %v8069 = vmul.f32 %v7641, %v8008
    %v8070 = vmul.f32 %v7646, %v8008
    %v8071 = vmul.f32 %v7651, %v8008
    %v8072 = vmul.f32 %v7656, %v8008
    %v8073 = vmul.f32 %v7661, %v8008
    %v8075 = vlaneseq
    %v8076 = vshrl.u32 %v8075, 7
    %v8077 = vsub.s32 0, %v8076
    %v8078 = vrot.slane %v8003, %v8077
    %v8080 = vadd.f32 %v8010, %v8078
    %v8081 = vadd.f32 %v8011, %v8078
    %v8082 = vadd.f32 %v8012, %v8078
    %v8083 = vadd.f32 %v8013, %v8078
    %v8084 = vadd.f32 %v8014, %v8078
    %v8085 = vadd.f32 %v8015, %v8078
    %v8086 = vadd.f32 %v8016, %v8078
    %v8087 = vadd.f32 %v8017, %v8078
    %v8088 = vadd.f32 %v8018, %v8078
    %v8089 = vadd.f32 %v8019, %v8078
    %v8090 = vadd.f32 %v8020, %v8078
    %v8091 = vadd.f32 %v8021, %v8078
    %v8092 = vadd.f32 %v8022, %v8078
    %v8093 = vadd.f32 %v8023, %v8078
    %v8094 = vadd.f32 %v8024, %v8078
    %v8095 = vadd.f32 %v8025, %v8078
    %v8096 = vadd.f32 %v8026, %v8078
    %v8097 = vadd.f32 %v8027, %v8078
    %v8098 = vadd.f32 %v8028, %v8078
    %v8099 = vadd.f32 %v8029, %v8078
    %v8100 = vadd.f32 %v8030, %v8078
    %v8101 = vadd.f32 %v8031, %v8078
    %v8102 = vadd.f32 %v8032, %v8078
    %v8103 = vadd.f32 %v8033, %v8078
    %v8104 = vadd.f32 %v8034, %v8078
    %v8105 = vadd.f32 %v8035, %v8078
    %v8106 = vadd.f32 %v8036, %v8078
    %v8107 = vadd.f32 %v8037, %v8078
    %v8108 = vadd.f32 %v8038, %v8078
    %v8109 = vadd.f32 %v8039, %v8078
    %v8110 = vadd.f32 %v8040, %v8078
    %v8111 = vadd.f32 %v8041, %v8078
    %v8112 = vadd.f32 %v8042, %v8078
    %v8113 = vadd.f32 %v8043, %v8078
    %v8114 = vadd.f32 %v8044, %v8078
    %v8115 = vadd.f32 %v8045, %v8078
    %v8116 = vadd.f32 %v8046, %v8078
    %v8117 = vadd.f32 %v8047, %v8078
    %v8118 = vadd.f32 %v8048, %v8078
    %v8119 = vadd.f32 %v8049, %v8078
    %v8120 = vadd.f32 %v8050, %v8078
    %v8121 = vadd.f32 %v8051, %v8078
    %v8122 = vadd.f32 %v8052, %v8078
    %v8123 = vadd.f32 %v8053, %v8078
    %v8124 = vadd.f32 %v8054, %v8078
    %v8125 = vadd.f32 %v8055, %v8078
    %v8126 = vadd.f32 %v8056, %v8078
    %v8127 = vadd.f32 %v8057, %v8078
    %v8128 = vadd.f32 %v8058, %v8078
    %v8129 = vadd.f32 %v8059, %v8078
    %v8130 = vadd.f32 %v8060, %v8078
    %v8131 = vadd.f32 %v8061, %v8078
    %v8132 = vadd.f32 %v8062, %v8078
    %v8133 = vadd.f32 %v8063, %v8078
    %v8134 = vadd.f32 %v8064, %v8078
    %v8135 = vadd.f32 %v8065, %v8078
    %v8136 = vadd.f32 %v8066, %v8078
    %v8137 = vadd.f32 %v8067, %v8078
    %v8138 = vadd.f32 %v8068, %v8078
    %v8139 = vadd.f32 %v8069, %v8078
    %v8140 = vadd.f32 %v8070, %v8078
    %v8141 = vadd.f32 %v8071, %v8078
    %v8142 = vadd.f32 %v8072, %v8078
    %v8143 = vadd.f32 %v8073, %v8078
    %v8144 = vmax.f32 %v8080, %v8082
    %v8145 = vmax.f32 %v8081, %v8083
    %v8146 = vmax.f32 %v8084, %v8086
    %v8147 = vmax.f32 %v8085, %v8087
    %v8148 = vmax.f32 %v8088, %v8090
    %v8149 = vmax.f32 %v8089, %v8091
    %v8150 = vmax.f32 %v8092, %v8094
    %v8151 = vmax.f32 %v8093, %v8095
    %v8152 = vmax.f32 %v8096, %v8098
    %v8153 = vmax.f32 %v8097, %v8099
    %v8154 = vmax.f32 %v8100, %v8102
    %v8155 = vmax.f32 %v8101, %v8103
    %v8156 = vmax.f32 %v8104, %v8106
    %v8157 = vmax.f32 %v8105, %v8107
    %v8158 = vmax.f32 %v8108, %v8110
    %v8159 = vmax.f32 %v8109, %v8111
    %v8160 = vmax.f32 %v8112, %v8114
    %v8161 = vmax.f32 %v8113, %v8115
    %v8162 = vmax.f32 %v8116, %v8118
    %v8163 = vmax.f32 %v8117, %v8119
    %v8164 = vmax.f32 %v8120, %v8122
    %v8165 = vmax.f32 %v8121, %v8123
    %v8166 = vmax.f32 %v8124, %v8126
    %v8167 = vmax.f32 %v8125, %v8127
    %v8168 = vmax.f32 %v8128, %v8130
    %v8169 = vmax.f32 %v8129, %v8131
    %v8170 = vmax.f32 %v8132, %v8134
    %v8171 = vmax.f32 %v8133, %v8135
    %v8172 = vmax.f32 %v8136, %v8138
    %v8173 = vmax.f32 %v8137, %v8139
    %v8174 = vmax.f32 %v8140, %v8142
    %v8175 = vmax.f32 %v8141, %v8143
    %8176 = vst.msk [vmem:[#allocation2] sm:$0xff] %vm4243, %v8144
    %8177 = vst.msk [vmem:[#allocation2 + $0x8] sm:$0xff] %vm4243, %v8145
    %8178 = vst.msk [vmem:[#allocation2 + $0x10] sm:$0xff] %vm4243, %v8146
    %8179 = vst.msk [vmem:[#allocation2 + $0x18] sm:$0xff] %vm4243, %v8147
    %8180 = vst.msk [vmem:[#allocation2 + $0x20] sm:$0xff] %vm4243, %v8148
    %8181 = vst.msk [vmem:[#allocation2 + $0x28] sm:$0xff] %vm4243, %v8149
    %8182 = vst.msk [vmem:[#allocation2 + $0x30] sm:$0xff] %vm4243, %v8150
    %8183 = vst.msk [vmem:[#allocation2 + $0x38] sm:$0xff] %vm4243, %v8151
    %8184 = vst.msk [vmem:[#allocation2 + $0x40] sm:$0xff] %vm4243, %v8152
    %8185 = vst.msk [vmem:[#allocation2 + $0x48] sm:$0xff] %vm4243, %v8153
    %8186 = vst.msk [vmem:[#allocation2 + $0x50] sm:$0xff] %vm4243, %v8154
    %8187 = vst.msk [vmem:[#allocation2 + $0x58] sm:$0xff] %vm4243, %v8155
    %8188 = vst.msk [vmem:[#allocation2 + $0x60] sm:$0xff] %vm4243, %v8156
    %8189 = vst.msk [vmem:[#allocation2 + $0x68] sm:$0xff] %vm4243, %v8157
    %8190 = vst.msk [vmem:[#allocation2 + $0x70] sm:$0xff] %vm4243, %v8158
    %8191 = vst.msk [vmem:[#allocation2 + $0x78] sm:$0xff] %vm4243, %v8159
    %8192 = vst.msk [vmem:[#allocation2 + $0x80] sm:$0xff] %vm4243, %v8160
    %8193 = vst.msk [vmem:[#allocation2 + $0x88] sm:$0xff] %vm4243, %v8161
    %8194 = vst.msk [vmem:[#allocation2 + $0x90] sm:$0xff] %vm4243, %v8162
    %8195 = vst.msk [vmem:[#allocation2 + $0x98] sm:$0xff] %vm4243, %v8163
    %8196 = vst.msk [vmem:[#allocation2 + $0xa0] sm:$0xff] %vm4243, %v8164
    %8197 = vst.msk [vmem:[#allocation2 + $0xa8] sm:$0xff] %vm4243, %v8165
    %8198 = vst.msk [vmem:[#allocation2 + $0xb0] sm:$0xff] %vm4243, %v8166
    %8199 = vst.msk [vmem:[#allocation2 + $0xb8] sm:$0xff] %vm4243, %v8167
    %8200 = vst.msk [vmem:[#allocation2 + $0xc0] sm:$0xff] %vm4243, %v8168
    %8201 = vst.msk [vmem:[#allocation2 + $0xc8] sm:$0xff] %vm4243, %v8169
    %8202 = vst.msk [vmem:[#allocation2 + $0xd0] sm:$0xff] %vm4243, %v8170
    %8203 = vst.msk [vmem:[#allocation2 + $0xd8] sm:$0xff] %vm4243, %v8171
    %8204 = vst.msk [vmem:[#allocation2 + $0xe0] sm:$0xff] %vm4243, %v8172
    %8205 = vst.msk [vmem:[#allocation2 + $0xe8] sm:$0xff] %vm4243, %v8173
    %8206 = vst.msk [vmem:[#allocation2 + $0xf0] sm:$0xff] %vm4243, %v8174
    %8207 = vst.msk [vmem:[#allocation2 + $0xf8] sm:$0xff] %vm4243, %v8175
    %v8208 = vld [vmem:[#allocation2] ss:$2 sm:$0xff]
    %s8209 = scalar_lea.vmem [#allocation2], 16
    %v8210 = vld [vmem:[%s8209] ss:$2 sm:$0xff]
    %s8211 = scalar_lea.vmem [#allocation2], 32
    %v8212 = vld [vmem:[%s8211] ss:$2 sm:$0xff]
    %s8213 = scalar_lea.vmem [#allocation2], 48
    %v8214 = vld [vmem:[%s8213] ss:$2 sm:$0xff]
    %s8215 = scalar_lea.vmem [#allocation2], 64
    %v8216 = vld [vmem:[%s8215] ss:$2 sm:$0xff]
    %s8217 = scalar_lea.vmem [#allocation2], 80
    %v8218 = vld [vmem:[%s8217] ss:$2 sm:$0xff]
    %s8219 = scalar_lea.vmem [#allocation2], 96
    %v8220 = vld [vmem:[%s8219] ss:$2 sm:$0xff]
    %s8221 = scalar_lea.vmem [#allocation2], 112
    %v8222 = vld [vmem:[%s8221] ss:$2 sm:$0xff]
    %s8223 = scalar_lea.vmem [#allocation2], 128
    %v8224 = vld [vmem:[%s8223] ss:$2 sm:$0xff]
    %s8225 = scalar_lea.vmem [#allocation2], 144
    %v8226 = vld [vmem:[%s8225] ss:$2 sm:$0xff]
    %s8227 = scalar_lea.vmem [#allocation2], 160
    %v8228 = vld [vmem:[%s8227] ss:$2 sm:$0xff]
    %s8229 = scalar_lea.vmem [#allocation2], 176
    %v8230 = vld [vmem:[%s8229] ss:$2 sm:$0xff]
    %s8231 = scalar_lea.vmem [#allocation2], 192
    %v8232 = vld [vmem:[%s8231] ss:$2 sm:$0xff]
    %s8233 = scalar_lea.vmem [#allocation2], 208
    %v8234 = vld [vmem:[%s8233] ss:$2 sm:$0xff]
    %s8235 = scalar_lea.vmem [#allocation2], 224
    %v8236 = vld [vmem:[%s8235] ss:$2 sm:$0xff]
    %s8237 = scalar_lea.vmem [#allocation2], 240
    %v8238 = vld [vmem:[%s8237] ss:$2 sm:$0xff]
    %s8239 = scalar_lea.vmem [#allocation2], 1
    %v8240 = vld [vmem:[%s8239] ss:$2 sm:$0xff]
    %s8241 = scalar_lea.vmem [#allocation2], 17
    %v8242 = vld [vmem:[%s8241] ss:$2 sm:$0xff]
    %s8243 = scalar_lea.vmem [#allocation2], 33
    %v8244 = vld [vmem:[%s8243] ss:$2 sm:$0xff]
    %s8245 = scalar_lea.vmem [#allocation2], 49
    %v8246 = vld [vmem:[%s8245] ss:$2 sm:$0xff]
    %s8247 = scalar_lea.vmem [#allocation2], 65
    %v8248 = vld [vmem:[%s8247] ss:$2 sm:$0xff]
    %s8249 = scalar_lea.vmem [#allocation2], 81
    %v8250 = vld [vmem:[%s8249] ss:$2 sm:$0xff]
    %s8251 = scalar_lea.vmem [#allocation2], 97
    %v8252 = vld [vmem:[%s8251] ss:$2 sm:$0xff]
    %s8253 = scalar_lea.vmem [#allocation2], 113
    %v8254 = vld [vmem:[%s8253] ss:$2 sm:$0xff]
    %s8255 = scalar_lea.vmem [#allocation2], 129
    %v8256 = vld [vmem:[%s8255] ss:$2 sm:$0xff]
    %s8257 = scalar_lea.vmem [#allocation2], 145
    %v8258 = vld [vmem:[%s8257] ss:$2 sm:$0xff]
    %s8259 = scalar_lea.vmem [#allocation2], 161
    %v8260 = vld [vmem:[%s8259] ss:$2 sm:$0xff]
    %s8261 = scalar_lea.vmem [#allocation2], 177
    %v8262 = vld [vmem:[%s8261] ss:$2 sm:$0xff]
    %s8263 = scalar_lea.vmem [#allocation2], 193
    %v8264 = vld [vmem:[%s8263] ss:$2 sm:$0xff]
    %s8265 = scalar_lea.vmem [#allocation2], 209
    %v8266 = vld [vmem:[%s8265] ss:$2 sm:$0xff]
    %s8267 = scalar_lea.vmem [#allocation2], 225
    %v8268 = vld [vmem:[%s8267] ss:$2 sm:$0xff]
    %s8269 = scalar_lea.vmem [#allocation2], 241
    %v8270 = vld [vmem:[%s8269] ss:$2 sm:$0xff]
    %v8271 = vmax.f32 %v8208, %v8240
    %v8272 = vmax.f32 %v8210, %v8242
    %v8273 = vmax.f32 %v8212, %v8244
    %v8274 = vmax.f32 %v8214, %v8246
    %v8275 = vmax.f32 %v8216, %v8248
    %v8276 = vmax.f32 %v8218, %v8250
    %v8277 = vmax.f32 %v8220, %v8252
    %v8278 = vmax.f32 %v8222, %v8254
    %v8279 = vmax.f32 %v8224, %v8256
    %v8280 = vmax.f32 %v8226, %v8258
    %v8281 = vmax.f32 %v8228, %v8260
    %v8282 = vmax.f32 %v8230, %v8262
    %v8283 = vmax.f32 %v8232, %v8264
    %v8284 = vmax.f32 %v8234, %v8266
    %v8285 = vmax.f32 %v8236, %v8268
    %v8286 = vmax.f32 %v8238, %v8270
    %v8287 = vmax.f32 %v8271, 0.0
    %v8288 = vmax.f32 %v8272, 0.0
    %v8289 = vmax.f32 %v8273, 0.0
    %v8290 = vmax.f32 %v8274, 0.0
    %v8291 = vmax.f32 %v8275, 0.0
    %v8292 = vmax.f32 %v8276, 0.0
    %v8293 = vmax.f32 %v8277, 0.0
    %v8294 = vmax.f32 %v8278, 0.0
    %v8295 = vmax.f32 %v8279, 0.0
    %v8296 = vmax.f32 %v8280, 0.0
    %v8297 = vmax.f32 %v8281, 0.0
    %v8298 = vmax.f32 %v8282, 0.0
    %v8299 = vmax.f32 %v8283, 0.0
    %v8300 = vmax.f32 %v8284, 0.0
    %v8301 = vmax.f32 %v8285, 0.0
    %v8302 = vmax.f32 %v8286, 0.0
    %v8303 = vld [vmem:[%s4] sm:$0xff]
    %v8304 = vld [vmem:[%s4 + $0x8] sm:$0xff]
    %v8305 = vld [vmem:[%s4 + $0x10] sm:$0xff]
    %v8306 = vld [vmem:[%s4 + $0x18] sm:$0xff]
    %v8307 = vld [vmem:[%s4 + $0x20] sm:$0xff]
    %v8308 = vld [vmem:[%s4 + $0x28] sm:$0xff]
    %v8309 = vld [vmem:[%s4 + $0x30] sm:$0x3f]
    %v8310 = vld [vmem:[%s5] sm:$0x1]
    %v8311 = vld [vmem:[%s6] sm:$0x1]
    %v8328 = vrot.slane %v8287, 7
    %v8329 = vrot.slane %v8288, 7
    %v8330 = vrot.slane %v8289, 7
    %v8331 = vrot.slane %v8290, 7
    %v8332 = vrot.slane %v8291, 7
    %v8333 = vrot.slane %v8292, 7
    %v8334 = vrot.slane %v8293, 7
    %v8335 = vrot.slane %v8294, 7
    %v8336 = vrot.slane %v8295, 7
    %v8337 = vrot.slane %v8296, 7
    %v8338 = vrot.slane %v8297, 7
    %v8339 = vrot.slane %v8298, 7
    %v8340 = vrot.slane %v8299, 7
    %v8341 = vrot.slane %v8300, 7
    %v8342 = vrot.slane %v8301, 7
    %v8343 = vrot.slane %v8302, 7
    %v8360 = vsel %vm7275, 0.0, %v8328
    %v8361 = vsel %vm7275, 0.0, %v8329
    %v8362 = vsel %vm7275, 0.0, %v8330
    %v8363 = vsel %vm7275, 0.0, %v8331
    %v8364 = vsel %vm7275, 0.0, %v8332
    %v8365 = vsel %vm7275, 0.0, %v8333
    %v8366 = vsel %vm7275, 0.0, %v8334
    %v8367 = vsel %vm7275, 0.0, %v8335
    %v8368 = vsel %vm7275, 0.0, %v8336
    %v8369 = vsel %vm7275, 0.0, %v8337
    %v8370 = vsel %vm7275, 0.0, %v8338
    %v8371 = vsel %vm7275, 0.0, %v8339
    %v8372 = vsel %vm7275, 0.0, %v8340
    %v8373 = vsel %vm7275, 0.0, %v8341
    %v8374 = vsel %vm7275, 0.0, %v8342
    %v8375 = vsel %vm7275, 0.0, %v8343
    %v8376 = vsel %vm7275, %v8328, 0.0
    %v8377 = vsel %vm7275, %v8329, 0.0
    %v8378 = vsel %vm7275, %v8330, 0.0
    %v8379 = vsel %vm7275, %v8331, 0.0
    %v8380 = vsel %vm7275, %v8332, 0.0
    %v8381 = vsel %vm7275, %v8333, 0.0
    %v8382 = vsel %vm7275, %v8334, 0.0
    %v8383 = vsel %vm7275, %v8335, 0.0
    %v8384 = vsel %vm7275, %v8336, 0.0
    %v8385 = vsel %vm7275, %v8337, 0.0
    %v8386 = vsel %vm7275, %v8338, 0.0
    %v8387 = vsel %vm7275, %v8339, 0.0
    %v8388 = vsel %vm7275, %v8340, 0.0
    %v8389 = vsel %vm7275, %v8341, 0.0
    %v8390 = vsel %vm7275, %v8342, 0.0
    %v8391 = vsel %vm7275, %v8343, 0.0
    %v8420 = vrot.slane %v8360, 1
    %v8421 = vrot.slane %v8376, 1
    %v8422 = vsel %vm486, %v8420, %v8421
    %v8423 = vrot.slane %v8361, 1
    %v8424 = vrot.slane %v8377, 1
    %v8425 = vsel %vm486, %v8423, %v8424
    %v8426 = vrot.slane %v8362, 1
    %v8427 = vrot.slane %v8378, 1
    %v8428 = vsel %vm486, %v8426, %v8427
    %v8429 = vrot.slane %v8363, 1
    %v8430 = vrot.slane %v8379, 1
    %v8431 = vsel %vm486, %v8429, %v8430
    %v8432 = vrot.slane %v8364, 1
    %v8433 = vrot.slane %v8380, 1
    %v8434 = vsel %vm486, %v8432, %v8433
    %v8435 = vrot.slane %v8365, 1
    %v8436 = vrot.slane %v8381, 1
    %v8437 = vsel %vm486, %v8435, %v8436
    %v8438 = vrot.slane %v8366, 1
    %v8439 = vrot.slane %v8382, 1
    %v8440 = vsel %vm486, %v8438, %v8439
    %v8441 = vrot.slane %v8368, 1
    %v8442 = vrot.slane %v8384, 1
    %v8443 = vsel %vm486, %v8441, %v8442
    %v8444 = vrot.slane %v8369, 1
    %v8445 = vrot.slane %v8385, 1
    %v8446 = vsel %vm486, %v8444, %v8445
    %v8447 = vrot.slane %v8370, 1
    %v8448 = vrot.slane %v8386, 1
    %v8449 = vsel %vm486, %v8447, %v8448
    %v8450 = vrot.slane %v8371, 1
    %v8451 = vrot.slane %v8387, 1
    %v8452 = vsel %vm486, %v8450, %v8451
    %v8453 = vrot.slane %v8372, 1
    %v8454 = vrot.slane %v8388, 1
    %v8455 = vsel %vm486, %v8453, %v8454
    %v8456 = vrot.slane %v8373, 1
    %v8457 = vrot.slane %v8389, 1
    %v8458 = vsel %vm486, %v8456, %v8457
    %v8459 = vrot.slane %v8374, 1
    %v8460 = vrot.slane %v8390, 1
    %v8461 = vsel %vm486, %v8459, %v8460
    %v8462 = vrot.slane %v8360, 2
    %v8463 = vrot.slane %v8376, 2
    %v8464 = vsel %vm629, %v8462, %v8463
    %v8465 = vrot.slane %v8361, 2
    %v8466 = vrot.slane %v8377, 2
    %v8467 = vsel %vm629, %v8465, %v8466
    %v8468 = vrot.slane %v8362, 2
    %v8469 = vrot.slane %v8378, 2
    %v8470 = vsel %vm629, %v8468, %v8469
    %v8471 = vrot.slane %v8363, 2
    %v8472 = vrot.slane %v8379, 2
    %v8473 = vsel %vm629, %v8471, %v8472
    %v8474 = vrot.slane %v8364, 2
    %v8475 = vrot.slane %v8380, 2
    %v8476 = vsel %vm629, %v8474, %v8475
    %v8477 = vrot.slane %v8365, 2
    %v8478 = vrot.slane %v8381, 2
    %v8479 = vsel %vm629, %v8477, %v8478
    %v8480 = vrot.slane %v8366, 2
    %v8481 = vrot.slane %v8382, 2
    %v8482 = vsel %vm629, %v8480, %v8481
    %v8483 = vrot.slane %v8368, 2
    %v8484 = vrot.slane %v8384, 2
    %v8485 = vsel %vm629, %v8483, %v8484
    %v8486 = vrot.slane %v8369, 2
    %v8487 = vrot.slane %v8385, 2
    %v8488 = vsel %vm629, %v8486, %v8487
    %v8489 = vrot.slane %v8370, 2
    %v8490 = vrot.slane %v8386, 2
    %v8491 = vsel %vm629, %v8489, %v8490
    %v8492 = vrot.slane %v8371, 2
    %v8493 = vrot.slane %v8387, 2
    %v8494 = vsel %vm629, %v8492, %v8493
    %v8495 = vrot.slane %v8372, 2
    %v8496 = vrot.slane %v8388, 2
    %v8497 = vsel %vm629, %v8495, %v8496
    %v8498 = vrot.slane %v8373, 2
    %v8499 = vrot.slane %v8389, 2
    %v8500 = vsel %vm629, %v8498, %v8499
    %v8501 = vrot.slane %v8374, 2
    %v8502 = vrot.slane %v8390, 2
    %v8503 = vsel %vm629, %v8501, %v8502
    %v8508 = vrot.slane %v8367, 1
    %v8509 = vrot.slane %v8383, 1
    %v8510 = vsel %vm486, %v8508, %v8509
    %v8511 = vrot.slane %v8375, 1
    %v8512 = vrot.slane %v8391, 1
    %v8513 = vsel %vm486, %v8511, %v8512
    %v8514 = vrot.slane %v8367, 2
    %v8515 = vrot.slane %v8383, 2
    %v8516 = vsel %vm629, %v8514, %v8515
    %v8517 = vrot.slane %v8375, 2
    %v8518 = vrot.slane %v8391, 2
    %v8519 = vsel %vm629, %v8517, %v8518
    %8520 = vrot.lane.b32.xlu0 %v8422, 6
    %v8521 = vpop.permute.xlu0 %8520
    %8522 = vrot.lane.b32.xlu0 %v8425, 6
    %v8523 = vpop.permute.xlu0 %8522
    %8524 = vrot.lane.b32.xlu0 %v8428, 6
    %v8525 = vpop.permute.xlu0 %8524
    %8526 = vrot.lane.b32.xlu0 %v8431, 6
    %v8527 = vpop.permute.xlu0 %8526
    %8528 = vrot.lane.b32.xlu0 %v8434, 6
    %v8529 = vpop.permute.xlu0 %8528
    %8530 = vrot.lane.b32.xlu0 %v8437, 6
    %v8531 = vpop.permute.xlu0 %8530
    %8532 = vrot.lane.b32.xlu0 %v8440, 6
    %v8533 = vpop.permute.xlu0 %8532
    %8534 = vrot.lane.b32.xlu0 %v8443, 6
    %v8535 = vpop.permute.xlu0 %8534
    %8536 = vrot.lane.b32.xlu0 %v8446, 6
    %v8537 = vpop.permute.xlu0 %8536
    %8538 = vrot.lane.b32.xlu0 %v8449, 6
    %v8539 = vpop.permute.xlu0 %8538
    %8540 = vrot.lane.b32.xlu0 %v8452, 6
    %v8541 = vpop.permute.xlu0 %8540
    %8542 = vrot.lane.b32.xlu0 %v8455, 6
    %v8543 = vpop.permute.xlu0 %8542
    %8544 = vrot.lane.b32.xlu0 %v8458, 6
    %v8545 = vpop.permute.xlu0 %8544
    %8546 = vrot.lane.b32.xlu0 %v8461, 6
    %v8547 = vpop.permute.xlu0 %8546
    %8562 = vrot.lane.b32.xlu0 %v631, 12
    %v8563 = vpop.permute.xlu0 %8562
    %8564 = vrot.lane.b32.xlu0 %v8464, 12
    %v8565 = vpop.permute.xlu0 %8564
    %8566 = vrot.lane.b32.xlu0 %v8467, 12
    %v8567 = vpop.permute.xlu0 %8566
    %8568 = vrot.lane.b32.xlu0 %v8470, 12
    %v8569 = vpop.permute.xlu0 %8568
    %8570 = vrot.lane.b32.xlu0 %v8473, 12
    %v8571 = vpop.permute.xlu0 %8570
    %8572 = vrot.lane.b32.xlu0 %v8476, 12
    %v8573 = vpop.permute.xlu0 %8572
    %8574 = vrot.lane.b32.xlu0 %v8479, 12
    %v8575 = vpop.permute.xlu0 %8574
    %8576 = vrot.lane.b32.xlu0 %v8482, 12
    %v8577 = vpop.permute.xlu0 %8576
    %8578 = vrot.lane.b32.xlu0 %v8485, 12
    %v8579 = vpop.permute.xlu0 %8578
    %8580 = vrot.lane.b32.xlu0 %v8488, 12
    %v8581 = vpop.permute.xlu0 %8580
    %8582 = vrot.lane.b32.xlu0 %v8491, 12
    %v8583 = vpop.permute.xlu0 %8582
    %8584 = vrot.lane.b32.xlu0 %v8494, 12
    %v8585 = vpop.permute.xlu0 %8584
    %8586 = vrot.lane.b32.xlu0 %v8497, 12
    %v8587 = vpop.permute.xlu0 %8586
    %8588 = vrot.lane.b32.xlu0 %v8500, 12
    %v8589 = vpop.permute.xlu0 %8588
    %8590 = vrot.lane.b32.xlu0 %v8503, 12
    %v8591 = vpop.permute.xlu0 %8590
    %8607 = vrot.lane.b32.xlu0 %v8360, 18
    %v8608 = vpop.permute.xlu0 %8607
    %8609 = vrot.lane.b32.xlu0 %v8361, 18
    %v8610 = vpop.permute.xlu0 %8609
    %8611 = vrot.lane.b32.xlu0 %v8362, 18
    %v8612 = vpop.permute.xlu0 %8611
    %8613 = vrot.lane.b32.xlu0 %v8363, 18
    %v8614 = vpop.permute.xlu0 %8613
    %8615 = vrot.lane.b32.xlu0 %v8364, 18
    %v8616 = vpop.permute.xlu0 %8615
    %8617 = vrot.lane.b32.xlu0 %v8365, 18
    %v8618 = vpop.permute.xlu0 %8617
    %8619 = vrot.lane.b32.xlu0 %v8366, 18
    %v8620 = vpop.permute.xlu0 %8619
    %8621 = vrot.lane.b32.xlu0 %v8367, 18
    %v8622 = vpop.permute.xlu0 %8621
    %8623 = vrot.lane.b32.xlu0 %v8368, 18
    %v8624 = vpop.permute.xlu0 %8623
    %8625 = vrot.lane.b32.xlu0 %v8369, 18
    %v8626 = vpop.permute.xlu0 %8625
    %8627 = vrot.lane.b32.xlu0 %v8370, 18
    %v8628 = vpop.permute.xlu0 %8627
    %8629 = vrot.lane.b32.xlu0 %v8371, 18
    %v8630 = vpop.permute.xlu0 %8629
    %8631 = vrot.lane.b32.xlu0 %v8372, 18
    %v8632 = vpop.permute.xlu0 %8631
    %8633 = vrot.lane.b32.xlu0 %v8373, 18
    %v8634 = vpop.permute.xlu0 %8633
    %8635 = vrot.lane.b32.xlu0 %v8374, 18
    %v8636 = vpop.permute.xlu0 %8635
    %8637 = vrot.lane.b32.xlu0 %v8375, 18
    %v8638 = vpop.permute.xlu0 %8637
    %8655 = vrot.lane.b32.xlu0 %v8422, 24
    %v8656 = vpop.permute.xlu0 %8655
    %8657 = vrot.lane.b32.xlu0 %v8425, 24
    %v8658 = vpop.permute.xlu0 %8657
    %8659 = vrot.lane.b32.xlu0 %v8428, 24
    %v8660 = vpop.permute.xlu0 %8659
    %8661 = vrot.lane.b32.xlu0 %v8431, 24
    %v8662 = vpop.permute.xlu0 %8661
    %8663 = vrot.lane.b32.xlu0 %v8434, 24
    %v8664 = vpop.permute.xlu0 %8663
    %8665 = vrot.lane.b32.xlu0 %v8437, 24
    %v8666 = vpop.permute.xlu0 %8665
    %8667 = vrot.lane.b32.xlu0 %v8440, 24
    %v8668 = vpop.permute.xlu0 %8667
    %8669 = vrot.lane.b32.xlu0 %v8510, 24
    %v8670 = vpop.permute.xlu0 %8669
    %8671 = vrot.lane.b32.xlu0 %v8443, 24
    %v8672 = vpop.permute.xlu0 %8671
    %8673 = vrot.lane.b32.xlu0 %v8446, 24
    %v8674 = vpop.permute.xlu0 %8673
    %8675 = vrot.lane.b32.xlu0 %v8449, 24
    %v8676 = vpop.permute.xlu0 %8675
    %8677 = vrot.lane.b32.xlu0 %v8452, 24
    %v8678 = vpop.permute.xlu0 %8677
    %8679 = vrot.lane.b32.xlu0 %v8455, 24
    %v8680 = vpop.permute.xlu0 %8679
    %8681 = vrot.lane.b32.xlu0 %v8458, 24
    %v8682 = vpop.permute.xlu0 %8681
    %8683 = vrot.lane.b32.xlu0 %v8461, 24
    %v8684 = vpop.permute.xlu0 %8683
    %8685 = vrot.lane.b32.xlu0 %v8513, 24
    %v8686 = vpop.permute.xlu0 %8685
    %8703 = vrot.lane.b32.xlu0 %v8464, 30
    %v8704 = vpop.permute.xlu0 %8703
    %8705 = vrot.lane.b32.xlu0 %v8467, 30
    %v8706 = vpop.permute.xlu0 %8705
    %8707 = vrot.lane.b32.xlu0 %v8470, 30
    %v8708 = vpop.permute.xlu0 %8707
    %8709 = vrot.lane.b32.xlu0 %v8473, 30
    %v8710 = vpop.permute.xlu0 %8709
    %8711 = vrot.lane.b32.xlu0 %v8476, 30
    %v8712 = vpop.permute.xlu0 %8711
    %8713 = vrot.lane.b32.xlu0 %v8479, 30
    %v8714 = vpop.permute.xlu0 %8713
    %8715 = vrot.lane.b32.xlu0 %v8482, 30
    %v8716 = vpop.permute.xlu0 %8715
    %8717 = vrot.lane.b32.xlu0 %v8516, 30
    %v8718 = vpop.permute.xlu0 %8717
    %8719 = vrot.lane.b32.xlu0 %v8485, 30
    %v8720 = vpop.permute.xlu0 %8719
    %8721 = vrot.lane.b32.xlu0 %v8488, 30
    %v8722 = vpop.permute.xlu0 %8721
    %8723 = vrot.lane.b32.xlu0 %v8491, 30
    %v8724 = vpop.permute.xlu0 %8723
    %8725 = vrot.lane.b32.xlu0 %v8494, 30
    %v8726 = vpop.permute.xlu0 %8725
    %8727 = vrot.lane.b32.xlu0 %v8497, 30
    %v8728 = vpop.permute.xlu0 %8727
    %8729 = vrot.lane.b32.xlu0 %v8500, 30
    %v8730 = vpop.permute.xlu0 %8729
    %8731 = vrot.lane.b32.xlu0 %v8503, 30
    %v8732 = vpop.permute.xlu0 %8731
    %8733 = vrot.lane.b32.xlu0 %v8519, 30
    %v8734 = vpop.permute.xlu0 %8733
    %8751 = vrot.lane.b32.xlu0 %v8361, 36
    %v8752 = vpop.permute.xlu0 %8751
    %8753 = vrot.lane.b32.xlu0 %v8362, 36
    %v8754 = vpop.permute.xlu0 %8753
    %8755 = vrot.lane.b32.xlu0 %v8363, 36
    %v8756 = vpop.permute.xlu0 %8755
    %8757 = vrot.lane.b32.xlu0 %v8364, 36
    %v8758 = vpop.permute.xlu0 %8757
    %8759 = vrot.lane.b32.xlu0 %v8365, 36
    %v8760 = vpop.permute.xlu0 %8759
    %8761 = vrot.lane.b32.xlu0 %v8366, 36
    %v8762 = vpop.permute.xlu0 %8761
    %8763 = vrot.lane.b32.xlu0 %v8367, 36
    %v8764 = vpop.permute.xlu0 %8763
    %8765 = vrot.lane.b32.xlu0 0.0, 36
    %v8766 = vpop.permute.xlu0 %8765
    %8767 = vrot.lane.b32.xlu0 %v8369, 36
    %v8768 = vpop.permute.xlu0 %8767
    %8769 = vrot.lane.b32.xlu0 %v8370, 36
    %v8770 = vpop.permute.xlu0 %8769
    %8771 = vrot.lane.b32.xlu0 %v8371, 36
    %v8772 = vpop.permute.xlu0 %8771
    %8773 = vrot.lane.b32.xlu0 %v8372, 36
    %v8774 = vpop.permute.xlu0 %8773
    %8775 = vrot.lane.b32.xlu0 %v8373, 36
    %v8776 = vpop.permute.xlu0 %8775
    %8777 = vrot.lane.b32.xlu0 %v8374, 36
    %v8778 = vpop.permute.xlu0 %8777
    %8779 = vrot.lane.b32.xlu0 %v8375, 36
    %v8780 = vpop.permute.xlu0 %8779
    %8796 = vrot.lane.b32.xlu0 %v8425, 42
    %v8797 = vpop.permute.xlu0 %8796
    %8798 = vrot.lane.b32.xlu0 %v8428, 42
    %v8799 = vpop.permute.xlu0 %8798
    %8800 = vrot.lane.b32.xlu0 %v8431, 42
    %v8801 = vpop.permute.xlu0 %8800
    %8802 = vrot.lane.b32.xlu0 %v8434, 42
    %v8803 = vpop.permute.xlu0 %8802
    %8804 = vrot.lane.b32.xlu0 %v8437, 42
    %v8805 = vpop.permute.xlu0 %8804
    %8806 = vrot.lane.b32.xlu0 %v8440, 42
    %v8807 = vpop.permute.xlu0 %8806
    %8808 = vrot.lane.b32.xlu0 %v8510, 42
    %v8809 = vpop.permute.xlu0 %8808
    %8810 = vrot.lane.b32.xlu0 %v488, 42
    %v8811 = vpop.permute.xlu0 %8810
    %8812 = vrot.lane.b32.xlu0 %v8446, 42
    %v8813 = vpop.permute.xlu0 %8812
    %8814 = vrot.lane.b32.xlu0 %v8449, 42
    %v8815 = vpop.permute.xlu0 %8814
    %8816 = vrot.lane.b32.xlu0 %v8452, 42
    %v8817 = vpop.permute.xlu0 %8816
    %8818 = vrot.lane.b32.xlu0 %v8455, 42
    %v8819 = vpop.permute.xlu0 %8818
    %8820 = vrot.lane.b32.xlu0 %v8458, 42
    %v8821 = vpop.permute.xlu0 %8820
    %8822 = vrot.lane.b32.xlu0 %v8461, 42
    %v8823 = vpop.permute.xlu0 %8822
    %8824 = vrot.lane.b32.xlu0 %v8513, 42
    %v8825 = vpop.permute.xlu0 %8824
    %8841 = vrot.lane.b32.xlu0 %v8467, 48
    %v8842 = vpop.permute.xlu0 %8841
    %8843 = vrot.lane.b32.xlu0 %v8470, 48
    %v8844 = vpop.permute.xlu0 %8843
    %8845 = vrot.lane.b32.xlu0 %v8473, 48
    %v8846 = vpop.permute.xlu0 %8845
    %8847 = vrot.lane.b32.xlu0 %v8476, 48
    %v8848 = vpop.permute.xlu0 %8847
    %8849 = vrot.lane.b32.xlu0 %v8479, 48
    %v8850 = vpop.permute.xlu0 %8849
    %8851 = vrot.lane.b32.xlu0 %v8482, 48
    %v8852 = vpop.permute.xlu0 %8851
    %8853 = vrot.lane.b32.xlu0 %v8516, 48
    %v8854 = vpop.permute.xlu0 %8853
    %8855 = vrot.lane.b32.xlu0 %v631, 48
    %v8856 = vpop.permute.xlu0 %8855
    %8857 = vrot.lane.b32.xlu0 %v8488, 48
    %v8858 = vpop.permute.xlu0 %8857
    %8859 = vrot.lane.b32.xlu0 %v8491, 48
    %v8860 = vpop.permute.xlu0 %8859
    %8861 = vrot.lane.b32.xlu0 %v8494, 48
    %v8862 = vpop.permute.xlu0 %8861
    %8863 = vrot.lane.b32.xlu0 %v8497, 48
    %v8864 = vpop.permute.xlu0 %8863
    %8865 = vrot.lane.b32.xlu0 %v8500, 48
    %v8866 = vpop.permute.xlu0 %8865
    %8867 = vrot.lane.b32.xlu0 %v8503, 48
    %v8868 = vpop.permute.xlu0 %8867
    %8869 = vrot.lane.b32.xlu0 %v8519, 48
    %v8870 = vpop.permute.xlu0 %8869
    %v8886 = vsel %vm4243, 0.0, %v2075
    %v8887 = vsel %vm4243, %v8360, %v8521
    %v8888 = vsel %vm4243, %v8361, %v8523
    %v8889 = vsel %vm4243, %v8362, %v8525
    %v8890 = vsel %vm4243, %v8363, %v8527
    %v8891 = vsel %vm4243, %v8364, %v8529
    %v8892 = vsel %vm4243, %v8365, %v8531
    %v8893 = vsel %vm4243, %v8366, %v8533
    %v8894 = vsel %vm4243, %v8368, %v8535
    %v8895 = vsel %vm4243, %v8369, %v8537
    %v8896 = vsel %vm4243, %v8370, %v8539
    %v8897 = vsel %vm4243, %v8371, %v8541
    %v8898 = vsel %vm4243, %v8372, %v8543
    %v8899 = vsel %vm4243, %v8373, %v8545
    %v8900 = vsel %vm4243, %v8374, %v8547
    %v8901 = vsel %vm4621, %v8886, %v8563
    %v8902 = vsel %vm4621, %v8887, %v8565
    %v8903 = vsel %vm4621, %v8888, %v8567
    %v8904 = vsel %vm4621, %v8889, %v8569
    %v8905 = vsel %vm4621, %v8890, %v8571
    %v8906 = vsel %vm4621, %v8891, %v8573
    %v8907 = vsel %vm4621, %v8892, %v8575
    %v8908 = vsel %vm4621, %v8893, %v8577
    %v8909 = vsel %vm4621, %v8894, %v8579
    %v8910 = vsel %vm4621, %v8895, %v8581
    %v8911 = vsel %vm4621, %v8896, %v8583
    %v8912 = vsel %vm4621, %v8897, %v8585
    %v8913 = vsel %vm4621, %v8898, %v8587
    %v8914 = vsel %vm4621, %v8899, %v8589
    %v8915 = vsel %vm4621, %v8900, %v8591
    %vm8916 = vcmask 146432
    %v8917 = vsel %vm8916, %v8901, %v8608
    %v8918 = vsel %vm8916, %v8902, %v8610
    %v8919 = vsel %vm8916, %v8903, %v8612
    %v8920 = vsel %vm8916, %v8904, %v8614
    %v8921 = vsel %vm8916, %v8905, %v8616
    %v8922 = vsel %vm8916, %v8906, %v8618
    %v8923 = vsel %vm8916, %v8907, %v8620
    %v8924 = vsel %vm8916, %v8908, %v8622
    %v8925 = vsel %vm8916, %v8901, %v8624
    %v8926 = vsel %vm8916, %v8909, %v8626
    %v8927 = vsel %vm8916, %v8910, %v8628
    %v8928 = vsel %vm8916, %v8911, %v8630
    %v8929 = vsel %vm8916, %v8912, %v8632
    %v8930 = vsel %vm8916, %v8913, %v8634
    %v8931 = vsel %vm8916, %v8914, %v8636
    %v8932 = vsel %vm8916, %v8915, %v8638
    %vm8933 = vcmask 195584
    %v8934 = vsel %vm8933, %v8917, %v8656
    %v8935 = vsel %vm8933, %v8918, %v8658
    %v8936 = vsel %vm8933, %v8919, %v8660
    %v8937 = vsel %vm8933, %v8920, %v8662
    %v8938 = vsel %vm8933, %v8921, %v8664
    %v8939 = vsel %vm8933, %v8922, %v8666
    %v8940 = vsel %vm8933, %v8923, %v8668
    %v8941 = vsel %vm8933, %v8924, %v8670
    %v8942 = vsel %vm8933, %v8925, %v8672
    %v8943 = vsel %vm8933, %v8926, %v8674
    %v8944 = vsel %vm8933, %v8927, %v8676
    %v8945 = vsel %vm8933, %v8928, %v8678
    %v8946 = vsel %vm8933, %v8929, %v8680
    %v8947 = vsel %vm8933, %v8930, %v8682
    %v8948 = vsel %vm8933, %v8931, %v8684
    %v8949 = vsel %vm8933, %v8932, %v8686
    %vm8950 = vcmask 244736
    %v8951 = vsel %vm8950, %v8934, %v8704
    %v8952 = vsel %vm8950, %v8935, %v8706
    %v8953 = vsel %vm8950, %v8936, %v8708
    %v8954 = vsel %vm8950, %v8937, %v8710
    %v8955 = vsel %vm8950, %v8938, %v8712
    %v8956 = vsel %vm8950, %v8939, %v8714
    %v8957 = vsel %vm8950, %v8940, %v8716
    %v8958 = vsel %vm8950, %v8941, %v8718
    %v8959 = vsel %vm8950, %v8942, %v8720
    %v8960 = vsel %vm8950, %v8943, %v8722
    %v8961 = vsel %vm8950, %v8944, %v8724
    %v8962 = vsel %vm8950, %v8945, %v8726
    %v8963 = vsel %vm8950, %v8946, %v8728
    %v8964 = vsel %vm8950, %v8947, %v8730
    %v8965 = vsel %vm8950, %v8948, %v8732
    %v8966 = vsel %vm8950, %v8949, %v8734
    %vm8967 = vcmask 293888
    %v8968 = vsel %vm8967, %v8951, %v8752
    %v8969 = vsel %vm8967, %v8952, %v8754
    %v8970 = vsel %vm8967, %v8953, %v8756
    %v8971 = vsel %vm8967, %v8954, %v8758
    %v8972 = vsel %vm8967, %v8955, %v8760
    %v8973 = vsel %vm8967, %v8956, %v8762
    %v8974 = vsel %vm8967, %v8957, %v8764
    %v8975 = vsel %vm8967, %v8958, %v8766
    %v8976 = vsel %vm8967, %v8959, %v8768
    %v8977 = vsel %vm8967, %v8960, %v8770
    %v8978 = vsel %vm8967, %v8961, %v8772
    %v8979 = vsel %vm8967, %v8962, %v8774
    %v8980 = vsel %vm8967, %v8963, %v8776
    %v8981 = vsel %vm8967, %v8964, %v8778
    %v8982 = vsel %vm8967, %v8965, %v8780
    %v8983 = vsel %vm8967, %v8966, %v8766
    %vm8984 = vcmask 343040
    %v8985 = vsel %vm8984, %v8968, %v8797
    %v8986 = vsel %vm8984, %v8969, %v8799
    %v8987 = vsel %vm8984, %v8970, %v8801
    %v8988 = vsel %vm8984, %v8971, %v8803
    %v8989 = vsel %vm8984, %v8972, %v8805
    %v8990 = vsel %vm8984, %v8973, %v8807
    %v8991 = vsel %vm8984, %v8974, %v8809
    %v8992 = vsel %vm8984, %v8975, %v8811
    %v8993 = vsel %vm8984, %v8976, %v8813
    %v8994 = vsel %vm8984, %v8977, %v8815
    %v8995 = vsel %vm8984, %v8978, %v8817
    %v8996 = vsel %vm8984, %v8979, %v8819
    %v8997 = vsel %vm8984, %v8980, %v8821
    %v8998 = vsel %vm8984, %v8981, %v8823
    %v8999 = vsel %vm8984, %v8982, %v8825
    %v9000 = vsel %vm8984, %v8983, %v8811
    %vm9001 = vcmask 392192
    %v9002 = vsel %vm9001, %v8985, %v8842
    %v9003 = vsel %vm9001, %v8986, %v8844
    %v9004 = vsel %vm9001, %v8987, %v8846
    %v9005 = vsel %vm9001, %v8988, %v8848
    %v9006 = vsel %vm9001, %v8989, %v8850
    %v9007 = vsel %vm9001, %v8990, %v8852
    %v9008 = vsel %vm9001, %v8991, %v8854
    %v9009 = vsel %vm9001, %v8992, %v8856
    %v9010 = vsel %vm9001, %v8993, %v8858
    %v9011 = vsel %vm9001, %v8994, %v8860
    %v9012 = vsel %vm9001, %v8995, %v8862
    %v9013 = vsel %vm9001, %v8996, %v8864
    %v9014 = vsel %vm9001, %v8997, %v8866
    %v9015 = vsel %vm9001, %v8998, %v8868
    %v9016 = vsel %vm9001, %v8999, %v8870
    %v9017 = vsel %vm9001, %v9000, %v8856
    %vm9018 = vcmask 441344
    %v9020 = vsel %vm9018, %v9002, 0
    %v9023 = vsel %vm9018, %v9003, 0
    %v9026 = vsel %vm9018, %v9004, 0
    %v9029 = vsel %vm9018, %v9005, 0
    %v9032 = vsel %vm9018, %v9006, 0
    %v9035 = vsel %vm9018, %v9007, 0
    %v9038 = vsel %vm9018, %v9008, 0
    %v9041 = vsel %vm9018, %v9009, 0
    %v9044 = vsel %vm9018, %v9010, 0
    %v9047 = vsel %vm9018, %v9011, 0
    %v9050 = vsel %vm9018, %v9012, 0
    %v9053 = vsel %vm9018, %v9013, 0
    %v9056 = vsel %vm9018, %v9014, 0
    %v9059 = vsel %vm9018, %v9015, 0
    %v9062 = vsel %vm9018, %v9016, 0
    %v9065 = vsel %vm9018, %v9017, 0
    %v9068 = vsel %vm629, %v8309, 0
    %9070 = vmatprep.subr.mxu0 0.0
    %9071 = vmatpush1.msra.mxu0 %v8303
    %9072 = vmatprep.subr.mxu0 0.0
    %9073 = vmatpush1.msra.mxu0 %v8304
    %9074 = vmatprep.subr.mxu0 0.0
    %9075 = vmatpush1.msra.mxu0 %v8305
    %9076 = vmatprep.subr.mxu0 0.0
    %9077 = vmatpush1.msra.mxu0 %v8306
    %9078 = vmatprep.subr.mxu0 0.0
    %9079 = vmatpush1.msra.mxu0 %v8307
    %9080 = vmatprep.subr.mxu0 0.0
    %9081 = vmatpush1.msra.mxu0 %v8308
    %9082 = vmatprep.subr.mxu0 0.0
    %9083 = vmatpush1.msra.mxu0 %v9068
    %9084 = vmatprep.subr.mxu0 0.0
    %9085 = vmatpush1.msra.mxu0 0.0
    %9086 = vmatprep.subr.mxu0 0.0
    %9087 = vmatpush1.msra.mxu0 0.0
    %9088 = vmatprep.subr.mxu0 0.0
    %9089 = vmatpush1.msra.mxu0 0.0
    %9090 = vmatprep.subr.mxu0 0.0
    %9091 = vmatpush1.msra.mxu0 0.0
    %9092 = vmatprep.subr.mxu0 0.0
    %9093 = vmatpush1.msra.mxu0 0.0
    %9094 = vmatprep.subr.mxu0 0.0
    %9095 = vmatpush1.msra.mxu0 0.0
    %9096 = vmatprep.subr.mxu0 0.0
    %9097 = vmatpush1.msra.mxu0 0.0
    %9098 = vmatprep.subr.mxu0 0.0
    %9099 = vmatpush1.msra.mxu0 0.0
    %9100 = vmatprep.subr.mxu0 0.0
    %9101 = vmatpush1.msra.mxu0 0.0
    %9102 = vmatprep.subr.mxu0 0.0
    %9103 = vmatpush1.msra.mxu0 0.0
    %9104 = vmatprep.subr.mxu0 0.0
    %9105 = vmatpush1.msra.mxu0 0.0
    %9106 = vmatprep.subr.mxu0 0.0
    %9107 = vmatpush1.msra.mxu0 0.0
    %9108 = vmatprep.subr.mxu0 0.0
    %9109 = vmatpush1.msra.mxu0 0.0
    %9110 = vmatprep.subr.mxu0 0.0
    %9111 = vmatpush1.msra.mxu0 0.0
    %9112 = vmatprep.subr.mxu0 0.0
    %9113 = vmatpush1.msra.mxu0 0.0
    %9114 = vmatprep.subr.mxu0 0.0
    %9115 = vmatpush1.msra.mxu0 0.0
    %9116 = vmatprep.subr.mxu0 0.0
    %9117 = vmatpush1.msra.mxu0 0.0
    %9118 = vmatprep.subr.mxu0 0.0
    %9119 = vmatpush1.msra.mxu0 0.0
    %9120 = vmatprep.subr.mxu0 0.0
    %9121 = vmatpush1.msra.mxu0 0.0
    %9122 = vmatprep.subr.mxu0 0.0
    %9123 = vmatpush1.msra.mxu0 0.0
    %9124 = vmatprep.subr.mxu0 0.0
    %9125 = vmatpush1.msra.mxu0 0.0
    %9126 = vmatprep.subr.mxu0 0.0
    %9127 = vmatpush1.msra.mxu0 0.0
    %9128 = vmatprep.subr.mxu0 0.0
    %9129 = vmatpush1.msra.mxu0 0.0
    %9130 = vmatprep.subr.mxu0 0.0
    %9131 = vmatpush1.msra.mxu0 0.0
    %9132 = vmatprep.subr.mxu0 0.0
    %9133 = vmatpush1.msra.mxu0 0.0
    %9134 = vmatprep.mubr.f32.mxu0 0.0
    %9135 = vmatmul.mubr.f32.gmra.mrb[0].mxu0 %v9020
    %v9136 = vpop.f32.mrb[0].mxu0
    %v9137 = vadd.f32 0.0, %v9136
    %v9138 = vpop.f32.mrb[0].mxu0
    %9139 = vmatprep.mubr.f32.mxu0 0.0
    %9140 = vmatmul.mubr.f32.gmra.mrb[0].mxu0 %v9023
    %v9141 = vpop.f32.mrb[0].mxu0
    %v9142 = vadd.f32 0.0, %v9141
    %v9143 = vpop.f32.mrb[0].mxu0
    %9144 = vmatprep.mubr.f32.mxu0 0.0
    %9145 = vmatmul.mubr.f32.gmra.mrb[0].mxu0 %v9026
    %v9146 = vpop.f32.mrb[0].mxu0
    %v9147 = vadd.f32 0.0, %v9146
    %v9148 = vpop.f32.mrb[0].mxu0
    %9149 = vmatprep.mubr.f32.mxu0 0.0
    %9150 = vmatmul.mubr.f32.gmra.mrb[0].mxu0 %v9029
    %v9151 = vpop.f32.mrb[0].mxu0
    %v9152 = vadd.f32 0.0, %v9151
    %v9153 = vpop.f32.mrb[0].mxu0
    %9154 = vmatprep.mubr.f32.mxu0 0.0
    %9155 = vmatmul.mubr.f32.gmra.mrb[0].mxu0 %v9032
    %v9156 = vpop.f32.mrb[0].mxu0
    %v9157 = vadd.f32 0.0, %v9156
    %v9158 = vpop.f32.mrb[0].mxu0
    %9159 = vmatprep.mubr.f32.mxu0 0.0
    %9160 = vmatmul.mubr.f32.gmra.mrb[0].mxu0 %v9035
    %v9161 = vpop.f32.mrb[0].mxu0
    %v9162 = vadd.f32 0.0, %v9161
    %v9163 = vpop.f32.mrb[0].mxu0
    %9164 = vmatprep.mubr.f32.mxu0 0.0
    %9165 = vmatmul.mubr.f32.gmra.mrb[0].mxu0 %v9038
    %v9166 = vpop.f32.mrb[0].mxu0
    %v9167 = vadd.f32 0.0, %v9166
    %v9168 = vpop.f32.mrb[0].mxu0
    %9169 = vmatprep.mubr.f32.mxu0 0.0
    %9170 = vmatmul.mubr.f32.gmra.mrb[0].mxu0 %v9041
    %v9171 = vpop.f32.mrb[0].mxu0
    %v9172 = vadd.f32 0.0, %v9171
    %v9173 = vpop.f32.mrb[0].mxu0
    %9174 = vmatprep.mubr.f32.mxu0 0.0
    %9175 = vmatmul.mubr.f32.gmra.mrb[0].mxu0 %v9044
    %v9176 = vpop.f32.mrb[0].mxu0
    %v9177 = vadd.f32 0.0, %v9176
    %v9178 = vpop.f32.mrb[0].mxu0
    %9179 = vmatprep.mubr.f32.mxu0 0.0
    %9180 = vmatmul.mubr.f32.gmra.mrb[0].mxu0 %v9047
    %v9181 = vpop.f32.mrb[0].mxu0
    %v9182 = vadd.f32 0.0, %v9181
    %v9183 = vpop.f32.mrb[0].mxu0
    %9184 = vmatprep.mubr.f32.mxu0 0.0
    %9185 = vmatmul.mubr.f32.gmra.mrb[0].mxu0 %v9050
    %v9186 = vpop.f32.mrb[0].mxu0
    %v9187 = vadd.f32 0.0, %v9186
    %v9188 = vpop.f32.mrb[0].mxu0
    %9189 = vmatprep.mubr.f32.mxu0 0.0
    %9190 = vmatmul.mubr.f32.gmra.mrb[0].mxu0 %v9053
    %v9191 = vpop.f32.mrb[0].mxu0
    %v9192 = vadd.f32 0.0, %v9191
    %v9193 = vpop.f32.mrb[0].mxu0
    %9194 = vmatprep.mubr.f32.mxu0 0.0
    %9195 = vmatmul.mubr.f32.gmra.mrb[0].mxu0 %v9056
    %v9196 = vpop.f32.mrb[0].mxu0
    %v9197 = vadd.f32 0.0, %v9196
    %v9198 = vpop.f32.mrb[0].mxu0
    %9199 = vmatprep.mubr.f32.mxu0 0.0
    %9200 = vmatmul.mubr.f32.gmra.mrb[0].mxu0 %v9059
    %v9201 = vpop.f32.mrb[0].mxu0
    %v9202 = vadd.f32 0.0, %v9201
    %v9203 = vpop.f32.mrb[0].mxu0
    %9204 = vmatprep.mubr.f32.mxu0 0.0
    %9205 = vmatmul.mubr.f32.gmra.mrb[0].mxu0 %v9062
    %v9206 = vpop.f32.mrb[0].mxu0
    %v9207 = vadd.f32 0.0, %v9206
    %v9208 = vpop.f32.mrb[0].mxu0
    %9209 = vmatprep.mubr.f32.mxu0 0.0
    %9210 = vmatmul.mubr.f32.gmra.mrb[0].mxu0 %v9065
    %v9211 = vpop.f32.mrb[0].mxu0
    %v9212 = vadd.f32 0.0, %v9211
    %v9213 = vpop.f32.mrb[0].mxu0
    %9214 = vdwg.mxu0
    %v9215 = vsel %vm7017, %v9137, 0.0
    %v9216 = vsel %vm7017, %v9142, 0.0
    %v9217 = vadd.f32 %v9215, %v9216
    %v9218 = vsel %vm7017, %v9147, 0.0
    %v9219 = vadd.f32 %v9217, %v9218
    %v9220 = vsel %vm7017, %v9152, 0.0
    %v9221 = vadd.f32 %v9219, %v9220
    %v9222 = vsel %vm7017, %v9157, 0.0
    %v9223 = vadd.f32 %v9221, %v9222
    %v9224 = vsel %vm7017, %v9162, 0.0
    %v9225 = vadd.f32 %v9223, %v9224
    %v9226 = vsel %vm7017, %v9167, 0.0
    %v9227 = vadd.f32 %v9225, %v9226
    %v9228 = vsel %vm7017, %v9172, 0.0
    %v9229 = vadd.f32 %v9227, %v9228
    %v9230 = vsel %vm7017, %v9177, 0.0
    %v9231 = vadd.f32 %v9229, %v9230
    %v9232 = vsel %vm7017, %v9182, 0.0
    %v9233 = vadd.f32 %v9231, %v9232
    %v9234 = vsel %vm7017, %v9187, 0.0
    %v9235 = vadd.f32 %v9233, %v9234
    %v9236 = vsel %vm7017, %v9192, 0.0
    %v9237 = vadd.f32 %v9235, %v9236
    %v9238 = vsel %vm7017, %v9197, 0.0
    %v9239 = vadd.f32 %v9237, %v9238
    %v9240 = vsel %vm7017, %v9202, 0.0
    %v9241 = vadd.f32 %v9239, %v9240
    %v9242 = vsel %vm7017, %v9207, 0.0
    %v9243 = vadd.f32 %v9241, %v9242
    %v9244 = vsel %vm7017, %v9212, 0.0
    %v9245 = vadd.f32 %v9243, %v9244
    %v9246 = vrot.slane %v9245, 4
    %v9247 = vadd.f32 %v9245, %v9246
    %v9248 = vrot.slane %v9247, 2
    %v9249 = vadd.f32 %v9247, %v9248
    %v9250 = vrot.slane %v9249, 1
    %v9251 = vadd.f32 %v9249, %v9250
    %v9252 = vmul.f32 %v9251, 0.0078125
    %v9253 = vmul.f32 %v9137, %v9137
    %v9254 = vmul.f32 %v9142, %v9142
    %v9255 = vmul.f32 %v9147, %v9147
    %v9256 = vmul.f32 %v9152, %v9152
    %v9257 = vmul.f32 %v9157, %v9157
    %v9258 = vmul.f32 %v9162, %v9162
    %v9259 = vmul.f32 %v9167, %v9167
    %v9260 = vmul.f32 %v9172, %v9172
    %v9261 = vmul.f32 %v9177, %v9177
    %v9262 = vmul.f32 %v9182, %v9182
    %v9263 = vmul.f32 %v9187, %v9187
    %v9264 = vmul.f32 %v9192, %v9192
    %v9265 = vmul.f32 %v9197, %v9197
    %v9266 = vmul.f32 %v9202, %v9202
    %v9267 = vmul.f32 %v9207, %v9207
    %v9268 = vmul.f32 %v9212, %v9212
    %v9269 = vsel %vm7017, %v9253, 0.0
    %v9270 = vsel %vm7017, %v9254, 0.0
    %v9271 = vadd.f32 %v9269, %v9270
    %v9272 = vsel %vm7017, %v9255, 0.0
    %v9273 = vadd.f32 %v9271, %v9272
    %v9274 = vsel %vm7017, %v9256, 0.0
    %v9275 = vadd.f32 %v9273, %v9274
    %v9276 = vsel %vm7017, %v9257, 0.0
    %v9277 = vadd.f32 %v9275, %v9276
    %v9278 = vsel %vm7017, %v9258, 0.0
    %v9279 = vadd.f32 %v9277, %v9278
    %v9280 = vsel %vm7017, %v9259, 0.0
    %v9281 = vadd.f32 %v9279, %v9280
    %v9282 = vsel %vm7017, %v9260, 0.0
    %v9283 = vadd.f32 %v9281, %v9282
    %v9284 = vsel %vm7017, %v9261, 0.0
    %v9285 = vadd.f32 %v9283, %v9284
    %v9286 = vsel %vm7017, %v9262, 0.0
    %v9287 = vadd.f32 %v9285, %v9286
    %v9288 = vsel %vm7017, %v9263, 0.0
    %v9289 = vadd.f32 %v9287, %v9288
    %v9290 = vsel %vm7017, %v9264, 0.0
    %v9291 = vadd.f32 %v9289, %v9290
    %v9292 = vsel %vm7017, %v9265, 0.0
    %v9293 = vadd.f32 %v9291, %v9292
    %v9294 = vsel %vm7017, %v9266, 0.0
    %v9295 = vadd.f32 %v9293, %v9294
    %v9296 = vsel %vm7017, %v9267, 0.0
    %v9297 = vadd.f32 %v9295, %v9296
    %v9298 = vsel %vm7017, %v9268, 0.0
    %v9299 = vadd.f32 %v9297, %v9298
    %v9300 = vrot.slane %v9299, 4
    %v9301 = vadd.f32 %v9299, %v9300
    %v9302 = vrot.slane %v9301, 2
    %v9303 = vadd.f32 %v9301, %v9302
    %v9304 = vrot.slane %v9303, 1
    %v9305 = vadd.f32 %v9303, %v9304
    %v9306 = vmul.f32 %v9305, 0.0078125
    %v9307 = vmul.f32 %v9252, %v9252
    %v9308 = vsub.f32 %v9306, %v9307
    %v9309 = vmax.f32 %v9308, 0.0
    %v9310 = vadd.f32 %v9309, 1e-05
    %v9311 = vrsqrt.pop %v9310
    %v9312 = vmul.f32 %v8310, %v9311
    %v9313 = vmul.f32 %v9252, %v9312
    %v9314 = vsub.f32 %v8311, %v9313
    %v9316 = vlaneseq
    %v9317 = vshrl.u32 %v9316, 7
    %v9318 = vsub.s32 0, %v9317
    %v9319 = vrot.slane %v9312, %v9318
    %v9321 = vmul.f32 %v9137, %v9319
    %v9322 = vmul.f32 %v9142, %v9319
    %v9323 = vmul.f32 %v9147, %v9319
    %v9324 = vmul.f32 %v9152, %v9319
    %v9325 = vmul.f32 %v9157, %v9319
    %v9326 = vmul.f32 %v9162, %v9319
    %v9327 = vmul.f32 %v9167, %v9319
    %v9328 = vmul.f32 %v9172, %v9319
    %v9329 = vmul.f32 %v9177, %v9319
    %v9330 = vmul.f32 %v9182, %v9319
    %v9331 = vmul.f32 %v9187, %v9319
    %v9332 = vmul.f32 %v9192, %v9319
    %v9333 = vmul.f32 %v9197, %v9319
    %v9334 = vmul.f32 %v9202, %v9319
    %v9335 = vmul.f32 %v9207, %v9319
    %v9336 = vmul.f32 %v9212, %v9319
    %v9338 = vlaneseq
    %v9339 = vshrl.u32 %v9338, 7
    %v9340 = vsub.s32 0, %v9339
    %v9341 = vrot.slane %v9314, %v9340
    %v9343 = vadd.f32 %v9321, %v9341
    %v9344 = vadd.f32 %v9322, %v9341
    %v9345 = vadd.f32 %v9323, %v9341
    %v9346 = vadd.f32 %v9324, %v9341
    %v9347 = vadd.f32 %v9325, %v9341
    %v9348 = vadd.f32 %v9326, %v9341
    %v9349 = vadd.f32 %v9327, %v9341
    %v9350 = vadd.f32 %v9328, %v9341
    %v9351 = vadd.f32 %v9329, %v9341
    %v9352 = vadd.f32 %v9330, %v9341
    %v9353 = vadd.f32 %v9331, %v9341
    %v9354 = vadd.f32 %v9332, %v9341
    %v9355 = vadd.f32 %v9333, %v9341
    %v9356 = vadd.f32 %v9334, %v9341
    %v9357 = vadd.f32 %v9335, %v9341
    %v9358 = vadd.f32 %v9336, %v9341
    %v9359 = vmax.f32 %v9343, %v9344
    %v9360 = vmax.f32 %v9345, %v9346
    %v9361 = vmax.f32 %v9347, %v9348
    %v9362 = vmax.f32 %v9349, %v9350
    %v9363 = vmax.f32 %v9351, %v9352
    %v9364 = vmax.f32 %v9353, %v9354
    %v9365 = vmax.f32 %v9355, %v9356
    %v9366 = vmax.f32 %v9357, %v9358
    %9367 = vst.msk [vmem:[#allocation3] sm:$0xff] %vm7017, %v9359
    %9368 = vst.msk [vmem:[#allocation3 + $0x8] sm:$0xff] %vm7017, %v9360
    %9369 = vst.msk [vmem:[#allocation3 + $0x10] sm:$0xff] %vm7017, %v9361
    %9370 = vst.msk [vmem:[#allocation3 + $0x18] sm:$0xff] %vm7017, %v9362
    %9371 = vst.msk [vmem:[#allocation3 + $0x20] sm:$0xff] %vm7017, %v9363
    %9372 = vst.msk [vmem:[#allocation3 + $0x28] sm:$0xff] %vm7017, %v9364
    %9373 = vst.msk [vmem:[#allocation3 + $0x30] sm:$0xff] %vm7017, %v9365
    %9374 = vst.msk [vmem:[#allocation3 + $0x38] sm:$0xff] %vm7017, %v9366
    %v9375 = vld [vmem:[#allocation3] ss:$32 sm:$0x1]
    %v9376 = vld [vmem:[#allocation3] ss:$32 sm:$0x2]
    %v9377 = vor.u32 %v9375, %v9376
    %s9378 = scalar_lea.vmem [#allocation3], 1
    %v9379 = vld [vmem:[%s9378] ss:$32 sm:$0x1]
    %v9380 = vld [vmem:[%s9378] ss:$32 sm:$0x2]
    %v9381 = vor.u32 %v9379, %v9380
    %v9382 = vmax.f32 %v9377, %v9381
    %s9383 = scalar_lea.vmem [#allocation3], 2
    %v9384 = vld [vmem:[%s9383] ss:$32 sm:$0x1]
    %v9385 = vld [vmem:[%s9383] ss:$32 sm:$0x2]
    %v9386 = vor.u32 %v9384, %v9385
    %s9387 = scalar_lea.vmem [#allocation3], 3
    %v9388 = vld [vmem:[%s9387] ss:$32 sm:$0x1]
    %v9389 = vld [vmem:[%s9387] ss:$32 sm:$0x2]
    %v9390 = vor.u32 %v9388, %v9389
    %v9391 = vmax.f32 %v9386, %v9390
    %s9392 = scalar_lea.vmem [#allocation3], 4
    %v9393 = vld [vmem:[%s9392] ss:$32 sm:$0x1]
    %v9394 = vld [vmem:[%s9392] ss:$32 sm:$0x2]
    %v9395 = vor.u32 %v9393, %v9394
    %s9396 = scalar_lea.vmem [#allocation3], 5
    %v9397 = vld [vmem:[%s9396] ss:$32 sm:$0x1]
    %v9398 = vld [vmem:[%s9396] ss:$32 sm:$0x2]
    %v9399 = vor.u32 %v9397, %v9398
    %v9400 = vmax.f32 %v9395, %v9399
    %s9401 = scalar_lea.vmem [#allocation3], 6
    %v9402 = vld [vmem:[%s9401] ss:$32 sm:$0x1]
    %v9403 = vld [vmem:[%s9401] ss:$32 sm:$0x2]
    %v9404 = vor.u32 %v9402, %v9403
    %s9405 = scalar_lea.vmem [#allocation3], 7
    %v9406 = vld [vmem:[%s9405] ss:$32 sm:$0x1]
    %v9407 = vld [vmem:[%s9405] ss:$32 sm:$0x2]
    %v9408 = vor.u32 %v9406, %v9407
    %v9409 = vmax.f32 %v9404, %v9408
    %s9410 = scalar_lea.vmem [#allocation3], 8
    %v9411 = vld [vmem:[%s9410] ss:$32 sm:$0x1]
    %v9412 = vld [vmem:[%s9410] ss:$32 sm:$0x2]
    %v9413 = vor.u32 %v9411, %v9412
    %s9414 = scalar_lea.vmem [#allocation3], 9
    %v9415 = vld [vmem:[%s9414] ss:$32 sm:$0x1]
    %v9416 = vld [vmem:[%s9414] ss:$32 sm:$0x2]
    %v9417 = vor.u32 %v9415, %v9416
    %v9418 = vmax.f32 %v9413, %v9417
    %s9419 = scalar_lea.vmem [#allocation3], 10
    %v9420 = vld [vmem:[%s9419] ss:$32 sm:$0x1]
    %v9421 = vld [vmem:[%s9419] ss:$32 sm:$0x2]
    %v9422 = vor.u32 %v9420, %v9421
    %s9423 = scalar_lea.vmem [#allocation3], 11
    %v9424 = vld [vmem:[%s9423] ss:$32 sm:$0x1]
    %v9425 = vld [vmem:[%s9423] ss:$32 sm:$0x2]
    %v9426 = vor.u32 %v9424, %v9425
    %v9427 = vmax.f32 %v9422, %v9426
    %s9428 = scalar_lea.vmem [#allocation3], 12
    %v9429 = vld [vmem:[%s9428] ss:$32 sm:$0x1]
    %v9430 = vld [vmem:[%s9428] ss:$32 sm:$0x2]
    %v9431 = vor.u32 %v9429, %v9430
    %s9432 = scalar_lea.vmem [#allocation3], 13
    %v9433 = vld [vmem:[%s9432] ss:$32 sm:$0x1]
    %v9434 = vld [vmem:[%s9432] ss:$32 sm:$0x2]
    %v9435 = vor.u32 %v9433, %v9434
    %v9436 = vmax.f32 %v9431, %v9435
    %s9437 = scalar_lea.vmem [#allocation3], 14
    %v9438 = vld [vmem:[%s9437] ss:$32 sm:$0x1]
    %v9439 = vld [vmem:[%s9437] ss:$32 sm:$0x2]
    %v9440 = vor.u32 %v9438, %v9439
    %s9441 = scalar_lea.vmem [#allocation3], 15
    %v9442 = vld [vmem:[%s9441] ss:$32 sm:$0x1]
    %v9443 = vld [vmem:[%s9441] ss:$32 sm:$0x2]
    %v9444 = vor.u32 %v9442, %v9443
    %v9445 = vmax.f32 %v9440, %v9444
    %s9446 = scalar_lea.vmem [#allocation3], 16
    %v9447 = vld [vmem:[%s9446] ss:$32 sm:$0x1]
    %v9448 = vld [vmem:[%s9446] ss:$32 sm:$0x2]
    %v9449 = vor.u32 %v9447, %v9448
    %s9450 = scalar_lea.vmem [#allocation3], 17
    %v9451 = vld [vmem:[%s9450] ss:$32 sm:$0x1]
    %v9452 = vld [vmem:[%s9450] ss:$32 sm:$0x2]
    %v9453 = vor.u32 %v9451, %v9452
    %v9454 = vmax.f32 %v9449, %v9453
    %s9455 = scalar_lea.vmem [#allocation3], 18
    %v9456 = vld [vmem:[%s9455] ss:$32 sm:$0x1]
    %v9457 = vld [vmem:[%s9455] ss:$32 sm:$0x2]
    %v9458 = vor.u32 %v9456, %v9457
    %s9459 = scalar_lea.vmem [#allocation3], 19
    %v9460 = vld [vmem:[%s9459] ss:$32 sm:$0x1]
    %v9461 = vld [vmem:[%s9459] ss:$32 sm:$0x2]
    %v9462 = vor.u32 %v9460, %v9461
    %v9463 = vmax.f32 %v9458, %v9462
    %s9464 = scalar_lea.vmem [#allocation3], 20
    %v9465 = vld [vmem:[%s9464] ss:$32 sm:$0x1]
    %v9466 = vld [vmem:[%s9464] ss:$32 sm:$0x2]
    %v9467 = vor.u32 %v9465, %v9466
    %s9468 = scalar_lea.vmem [#allocation3], 21
    %v9469 = vld [vmem:[%s9468] ss:$32 sm:$0x1]
    %v9470 = vld [vmem:[%s9468] ss:$32 sm:$0x2]
    %v9471 = vor.u32 %v9469, %v9470
    %v9472 = vmax.f32 %v9467, %v9471
    %s9473 = scalar_lea.vmem [#allocation3], 22
    %v9474 = vld [vmem:[%s9473] ss:$32 sm:$0x1]
    %v9475 = vld [vmem:[%s9473] ss:$32 sm:$0x2]
    %v9476 = vor.u32 %v9474, %v9475
    %s9477 = scalar_lea.vmem [#allocation3], 23
    %v9478 = vld [vmem:[%s9477] ss:$32 sm:$0x1]
    %v9479 = vld [vmem:[%s9477] ss:$32 sm:$0x2]
    %v9480 = vor.u32 %v9478, %v9479
    %v9481 = vmax.f32 %v9476, %v9480
    %s9482 = scalar_lea.vmem [#allocation3], 24
    %v9483 = vld [vmem:[%s9482] ss:$32 sm:$0x1]
    %v9484 = vld [vmem:[%s9482] ss:$32 sm:$0x2]
    %v9485 = vor.u32 %v9483, %v9484
    %s9486 = scalar_lea.vmem [#allocation3], 25
    %v9487 = vld [vmem:[%s9486] ss:$32 sm:$0x1]
    %v9488 = vld [vmem:[%s9486] ss:$32 sm:$0x2]
    %v9489 = vor.u32 %v9487, %v9488
    %v9490 = vmax.f32 %v9485, %v9489
    %s9491 = scalar_lea.vmem [#allocation3], 26
    %v9492 = vld [vmem:[%s9491] ss:$32 sm:$0x1]
    %v9493 = vld [vmem:[%s9491] ss:$32 sm:$0x2]
    %v9494 = vor.u32 %v9492, %v9493
    %s9495 = scalar_lea.vmem [#allocation3], 27
    %v9496 = vld [vmem:[%s9495] ss:$32 sm:$0x1]
    %v9497 = vld [vmem:[%s9495] ss:$32 sm:$0x2]
    %v9498 = vor.u32 %v9496, %v9497
    %v9499 = vmax.f32 %v9494, %v9498
    %s9500 = scalar_lea.vmem [#allocation3], 28
    %v9501 = vld [vmem:[%s9500] ss:$32 sm:$0x1]
    %v9502 = vld [vmem:[%s9500] ss:$32 sm:$0x2]
    %v9503 = vor.u32 %v9501, %v9502
    %s9504 = scalar_lea.vmem [#allocation3], 29
    %v9505 = vld [vmem:[%s9504] ss:$32 sm:$0x1]
    %v9506 = vld [vmem:[%s9504] ss:$32 sm:$0x2]
    %v9507 = vor.u32 %v9505, %v9506
    %v9508 = vmax.f32 %v9503, %v9507
    %s9509 = scalar_lea.vmem [#allocation3], 30
    %v9510 = vld [vmem:[%s9509] ss:$32 sm:$0x1]
    %v9511 = vld [vmem:[%s9509] ss:$32 sm:$0x2]
    %v9512 = vor.u32 %v9510, %v9511
    %s9513 = scalar_lea.vmem [#allocation3], 31
    %v9514 = vld [vmem:[%s9513] ss:$32 sm:$0x1]
    %v9515 = vld [vmem:[%s9513] ss:$32 sm:$0x2]
    %v9516 = vor.u32 %v9514, %v9515
    %v9517 = vmax.f32 %v9512, %v9516
    %9519 = vrot.lane.b32.xlu0 %v9391, 16
    %v9520 = vpop.permute.xlu0 %9519
    %9523 = vrot.lane.b32.xlu0 %v9400, 32
    %v9524 = vpop.permute.xlu0 %9523
    %9527 = vrot.lane.b32.xlu0 %v9409, 48
    %v9528 = vpop.permute.xlu0 %9527
    %9531 = vrot.lane.b32.xlu0 %v9418, 64
    %v9532 = vpop.permute.xlu0 %9531
    %9535 = vrot.lane.b32.xlu0 %v9427, 80
    %v9536 = vpop.permute.xlu0 %9535
    %9539 = vrot.lane.b32.xlu0 %v9436, 96
    %v9540 = vpop.permute.xlu0 %9539
    %9543 = vrot.lane.b32.xlu0 %v9445, 112
    %v9544 = vpop.permute.xlu0 %9543
    %9547 = vrot.lane.b32.xlu0 %v9463, 16
    %v9548 = vpop.permute.xlu0 %9547
    %9551 = vrot.lane.b32.xlu0 %v9472, 32
    %v9552 = vpop.permute.xlu0 %9551
    %9555 = vrot.lane.b32.xlu0 %v9481, 48
    %v9556 = vpop.permute.xlu0 %9555
    %9559 = vrot.lane.b32.xlu0 %v9490, 64
    %v9560 = vpop.permute.xlu0 %9559
    %9563 = vrot.lane.b32.xlu0 %v9499, 80
    %v9564 = vpop.permute.xlu0 %9563
    %9567 = vrot.lane.b32.xlu0 %v9508, 96
    %v9568 = vpop.permute.xlu0 %9567
    %9571 = vrot.lane.b32.xlu0 %v9517, 112
    %v9572 = vpop.permute.xlu0 %9571
    %v9574 = vsel %vm7017, %v9382, %v9520
    %vm9575 = vcmask 261120
    %v9576 = vsel %vm9575, %v9574, %v9524
    %v9577 = vsel %vm9001, %v9576, %v9528
    %vm9578 = vcmask 523264
    %v9579 = vsel %vm9578, %v9577, %v9532
    %vm9580 = vcmask 654336
    %v9581 = vsel %vm9580, %v9579, %v9536
    %vm9582 = vcmask 785408
    %v9583 = vsel %vm9582, %v9581, %v9540
    %vm9584 = vcmask 916480
    %v9585 = vsel %vm9584, %v9583, %v9544
    %v9586 = vsel %vm7017, %v9454, %v9548
    %v9587 = vsel %vm9575, %v9586, %v9552
    %v9588 = vsel %vm9001, %v9587, %v9556
    %v9589 = vsel %vm9578, %v9588, %v9560
    %v9590 = vsel %vm9580, %v9589, %v9564
    %v9591 = vsel %vm9582, %v9590, %v9568
    %v9592 = vsel %vm9584, %v9591, %v9572
    %v9593 = vmax.f32 %v9585, 0.0
    %v9594 = vmax.f32 %v9592, 0.0
    %v9595 = vld [vmem:[%s7] sm:$0xff]
    %v9596 = vld [vmem:[%s7 + $0x8] sm:$0xff]
    %v9597 = vld [vmem:[%s7 + $0x10] sm:$0xff]
    %v9598 = vld [vmem:[%s7 + $0x18] sm:$0xff]
    %v9599 = vld [vmem:[%s7 + $0x20] sm:$0xff]
    %v9600 = vld [vmem:[%s7 + $0x28] sm:$0xff]
    %v9601 = vld [vmem:[%s7 + $0x30] sm:$0xff]
    %v9602 = vld [vmem:[%s7 + $0x38] sm:$0xff]
    %v9603 = vld [vmem:[%s7 + $0x40] sm:$0xff]
    %v9604 = vld [vmem:[%s7 + $0x48] sm:$0xff]
    %v9605 = vld [vmem:[%s7 + $0x50] sm:$0xff]
    %v9606 = vld [vmem:[%s7 + $0x58] sm:$0xff]
    %v9607 = vld [vmem:[%s7 + $0x60] sm:$0xff]
    %v9608 = vld [vmem:[%s7 + $0x68] sm:$0xff]
    %v9609 = vld [vmem:[%s7 + $0x70] sm:$0xff]
    %v9610 = vld [vmem:[%s7 + $0x78] sm:$0xff]
    %v9611 = vld [vmem:[%s7 + $0x80] sm:$0xff]
    %v9612 = vld [vmem:[%s7 + $0x88] sm:$0xff]
    %v9613 = vld [vmem:[%s7 + $0x90] sm:$0xff]
    %v9614 = vld [vmem:[%s7 + $0x98] sm:$0xff]
    %v9615 = vld [vmem:[%s7 + $0xa0] sm:$0xff]
    %v9616 = vld [vmem:[%s7 + $0xa8] sm:$0xff]
    %v9617 = vld [vmem:[%s7 + $0xb0] sm:$0xff]
    %v9618 = vld [vmem:[%s7 + $0xb8] sm:$0xff]
    %v9619 = vld [vmem:[%s7 + $0xc0] sm:$0xff]
    %v9620 = vld [vmem:[%s7 + $0xc8] sm:$0xff]
    %v9621 = vld [vmem:[%s7 + $0xd0] sm:$0xff]
    %v9622 = vld [vmem:[%s7 + $0xd8] sm:$0xff]
    %v9623 = vld [vmem:[%s7 + $0xe0] sm:$0xff]
    %v9624 = vld [vmem:[%s7 + $0xe8] sm:$0xff]
    %v9625 = vld [vmem:[%s7 + $0xf0] sm:$0xff]
    %v9626 = vld [vmem:[%s7 + $0xf8] sm:$0xff]
    %9627 = vmatprep.subr.mxu0 0.0
    %9628 = vmatpush1.msra.mxu0 %v9595
    %9629 = vmatprep.subr.mxu0 0.0
    %9630 = vmatpush1.msra.mxu0 %v9596
    %9631 = vmatprep.subr.mxu0 0.0
    %9632 = vmatpush1.msra.mxu0 %v9597
    %9633 = vmatprep.subr.mxu0 0.0
    %9634 = vmatpush1.msra.mxu0 %v9598
    %9635 = vmatprep.subr.mxu0 0.0
    %9636 = vmatpush1.msra.mxu0 %v9599
    %9637 = vmatprep.subr.mxu0 0.0
    %9638 = vmatpush1.msra.mxu0 %v9600
    %9639 = vmatprep.subr.mxu0 0.0
    %9640 = vmatpush1.msra.mxu0 %v9601
    %9641 = vmatprep.subr.mxu0 0.0
    %9642 = vmatpush1.msra.mxu0 %v9602
    %9643 = vmatprep.subr.mxu0 0.0
    %9644 = vmatpush1.msra.mxu0 %v9603
    %9645 = vmatprep.subr.mxu0 0.0
    %9646 = vmatpush1.msra.mxu0 %v9604
    %9647 = vmatprep.subr.mxu0 0.0
    %9648 = vmatpush1.msra.mxu0 %v9605
    %9649 = vmatprep.subr.mxu0 0.0
    %9650 = vmatpush1.msra.mxu0 %v9606
    %9651 = vmatprep.subr.mxu0 0.0
    %9652 = vmatpush1.msra.mxu0 %v9607
    %9653 = vmatprep.subr.mxu0 0.0
    %9654 = vmatpush1.msra.mxu0 %v9608
    %9655 = vmatprep.subr.mxu0 0.0
    %9656 = vmatpush1.msra.mxu0 %v9609
    %9657 = vmatprep.subr.mxu0 0.0
    %9658 = vmatpush1.msra.mxu0 %v9610
    %9659 = vmatprep.subr.mxu0 0.0
    %9660 = vmatpush1.msra.mxu0 %v9611
    %9661 = vmatprep.subr.mxu0 0.0
    %9662 = vmatpush1.msra.mxu0 %v9612
    %9663 = vmatprep.subr.mxu0 0.0
    %9664 = vmatpush1.msra.mxu0 %v9613
    %9665 = vmatprep.subr.mxu0 0.0
    %9666 = vmatpush1.msra.mxu0 %v9614
    %9667 = vmatprep.subr.mxu0 0.0
    %9668 = vmatpush1.msra.mxu0 %v9615
    %9669 = vmatprep.subr.mxu0 0.0
    %9670 = vmatpush1.msra.mxu0 %v9616
    %9671 = vmatprep.subr.mxu0 0.0
    %9672 = vmatpush1.msra.mxu0 %v9617
    %9673 = vmatprep.subr.mxu0 0.0
    %9674 = vmatpush1.msra.mxu0 %v9618
    %9675 = vmatprep.subr.mxu0 0.0
    %9676 = vmatpush1.msra.mxu0 %v9619
    %9677 = vmatprep.subr.mxu0 0.0
    %9678 = vmatpush1.msra.mxu0 %v9620
    %9679 = vmatprep.subr.mxu0 0.0
    %9680 = vmatpush1.msra.mxu0 %v9621
    %9681 = vmatprep.subr.mxu0 0.0
    %9682 = vmatpush1.msra.mxu0 %v9622
    %9683 = vmatprep.subr.mxu0 0.0
    %9684 = vmatpush1.msra.mxu0 %v9623
    %9685 = vmatprep.subr.mxu0 0.0
    %9686 = vmatpush1.msra.mxu0 %v9624
    %9687 = vmatprep.subr.mxu0 0.0
    %9688 = vmatpush1.msra.mxu0 %v9625
    %9689 = vmatprep.subr.mxu0 0.0
    %9690 = vmatpush1.msra.mxu0 %v9626
    %9691 = vmatprep.mubr.f32.mxu0 %v9594
    %9692 = vmatmul.mubr.f32.gmra.mrb[0].mxu0 %v9593
    %v9693 = vpop.f32.mrb[0].mxu0
    %v9694 = vadd.f32 0.0, %v9693
    %v9695 = vpop.f32.mrb[0].mxu0
    %9696 = vdwg.mxu0
    %v9697 = vld [vmem:[%s8] sm:$0x1]
    %v9698 = vld [vmem:[%s9] sm:$0x1]
    %vm9699 = vcmask 254976
    %v9700 = vsel %vm9699, %v9694, 0.0
    %v9701 = vrot.slane %v9700, 4
    %v9702 = vadd.f32 %v9700, %v9701
    %v9703 = vrot.slane %v9702, 2
    %v9704 = vadd.f32 %v9702, %v9703
    %v9705 = vrot.slane %v9704, 1
    %v9706 = vadd.f32 %v9704, %v9705
    %v9707 = vmul.f32 %v9706, 0.5
    %v9708 = vmul.f32 %v9694, %v9694
    %v9709 = vsel %vm9699, %v9708, 0.0
    %v9710 = vrot.slane %v9709, 4
    %v9711 = vadd.f32 %v9709, %v9710
    %v9712 = vrot.slane %v9711, 2
    %v9713 = vadd.f32 %v9711, %v9712
    %v9714 = vrot.slane %v9713, 1
    %v9715 = vadd.f32 %v9713, %v9714
    %v9716 = vmul.f32 %v9715, 0.5
    %v9717 = vmul.f32 %v9707, %v9707
    %v9718 = vsub.f32 %v9716, %v9717
    %v9719 = vmax.f32 %v9718, 0.0
    %v9720 = vadd.f32 %v9719, 1e-05
    %v9721 = vrsqrt.pop %v9720
    %v9722 = vmul.f32 %v9697, %v9721
    %v9723 = vmul.f32 %v9707, %v9722
    %v9724 = vsub.f32 %v9698, %v9723
    %v9726 = vlaneseq
    %v9727 = vshrl.u32 %v9726, 7
    %v9728 = vsub.s32 0, %v9727
    %v9729 = vrot.slane %v9722, %v9728
    %v9731 = vmul.f32 %v9694, %v9729
    %v9733 = vlaneseq
    %v9734 = vshrl.u32 %v9733, 7
    %v9735 = vsub.s32 0, %v9734
    %v9736 = vrot.slane %v9724, %v9735
    %v9738 = vadd.f32 %v9731, %v9736
    %v9739 = vmax.f32 %v9738, 0.0
    %v9740 = vld [vmem:[%s10] sm:$0xff]
    %v9741 = vld [vmem:[%s10 + $0x8] sm:$0xff]
    %v9742 = vld [vmem:[%s10 + $0x10] sm:$0xff]
    %v9743 = vld [vmem:[%s10 + $0x18] sm:$0xff]
    %v9744 = vld [vmem:[%s11] sm:$0x1]
    %v9746 = vlaneseq
    %v9747 = vshrl.u32 %v9746, 7
    %v9748 = vsub.s32 0, %v9747
    %v9749 = vrot.slane %v9744, %v9748
    %v9752 = vsel %vm9575, %v9739, 0
    %9754 = vmatprep.subr.mxu0 0.0
    %9755 = vmatpush1.msra.mxu0 %v9740
    %9756 = vmatprep.subr.mxu0 0.0
    %9757 = vmatpush1.msra.mxu0 %v9741
    %9758 = vmatprep.subr.mxu0 0.0
    %9759 = vmatpush1.msra.mxu0 %v9742
    %9760 = vmatprep.subr.mxu0 0.0
    %9761 = vmatpush1.msra.mxu0 %v9743
    %9762 = vmatprep.subr.mxu0 0.0
    %9763 = vmatpush1.msra.mxu0 0.0
    %9764 = vmatprep.subr.mxu0 0.0
    %9765 = vmatpush1.msra.mxu0 0.0
    %9766 = vmatprep.subr.mxu0 0.0
    %9767 = vmatpush1.msra.mxu0 0.0
    %9768 = vmatprep.subr.mxu0 0.0
    %9769 = vmatpush1.msra.mxu0 0.0
    %9770 = vmatprep.subr.mxu0 0.0
    %9771 = vmatpush1.msra.mxu0 0.0
    %9772 = vmatprep.subr.mxu0 0.0
    %9773 = vmatpush1.msra.mxu0 0.0
    %9774 = vmatprep.subr.mxu0 0.0
    %9775 = vmatpush1.msra.mxu0 0.0
    %9776 = vmatprep.subr.mxu0 0.0
    %9777 = vmatpush1.msra.mxu0 0.0
    %9778 = vmatprep.subr.mxu0 0.0
    %9779 = vmatpush1.msra.mxu0 0.0
    %9780 = vmatprep.subr.mxu0 0.0
    %9781 = vmatpush1.msra.mxu0 0.0
    %9782 = vmatprep.subr.mxu0 0.0
    %9783 = vmatpush1.msra.mxu0 0.0
    %9784 = vmatprep.subr.mxu0 0.0
    %9785 = vmatpush1.msra.mxu0 0.0
    %9786 = vmatprep.subr.mxu0 0.0
    %9787 = vmatpush1.msra.mxu0 0.0
    %9788 = vmatprep.subr.mxu0 0.0
    %9789 = vmatpush1.msra.mxu0 0.0
    %9790 = vmatprep.subr.mxu0 0.0
    %9791 = vmatpush1.msra.mxu0 0.0
    %9792 = vmatprep.subr.mxu0 0.0
    %9793 = vmatpush1.msra.mxu0 0.0
    %9794 = vmatprep.subr.mxu0 0.0
    %9795 = vmatpush1.msra.mxu0 0.0
    %9796 = vmatprep.subr.mxu0 0.0
    %9797 = vmatpush1.msra.mxu0 0.0
    %9798 = vmatprep.subr.mxu0 0.0
    %9799 = vmatpush1.msra.mxu0 0.0
    %9800 = vmatprep.subr.mxu0 0.0
    %9801 = vmatpush1.msra.mxu0 0.0
    %9802 = vmatprep.subr.mxu0 0.0
    %9803 = vmatpush1.msra.mxu0 0.0
    %9804 = vmatprep.subr.mxu0 0.0
    %9805 = vmatpush1.msra.mxu0 0.0
    %9806 = vmatprep.subr.mxu0 0.0
    %9807 = vmatpush1.msra.mxu0 0.0
    %9808 = vmatprep.subr.mxu0 0.0
    %9809 = vmatpush1.msra.mxu0 0.0
    %9810 = vmatprep.subr.mxu0 0.0
    %9811 = vmatpush1.msra.mxu0 0.0
    %9812 = vmatprep.subr.mxu0 0.0
    %9813 = vmatpush1.msra.mxu0 0.0
    %9814 = vmatprep.subr.mxu0 0.0
    %9815 = vmatpush1.msra.mxu0 0.0
    %9816 = vmatprep.subr.mxu0 0.0
    %9817 = vmatpush1.msra.mxu0 0.0
    %9818 = vmatprep.mubr.f32.mxu0 0.0
    %9819 = vmatmul.mubr.f32.gmra.mrb[0].mxu0 %v9752
    %v9820 = vpop.f32.mrb[0].mxu0
    %v9821 = vadd.f32 %v9749, %v9820
    %v9822 = vpop.f32.mrb[0].mxu0
    %9823 = vdwg.mxu0
    %9824 = vst [vmem:[#allocation4] sm:$0x3] %v9821
    // Predicated region
    $region50: #{cnn_digits4_forward.1} parent=1 // pred_check
      _
    $region51: #{cnn_digits4_forward.1} parent=1 // pred_check_branch
      %9826 = sbr.rel (0) target = $region53
    $region52: #{cnn_digits4_forward.1} parent=1 // pred_region
      %s9828 = ssub.s32 32, 32
      %9829 = vsyncadd [#allocation5], %s9828
      %s9831 = sshll.u32 [#allocation4], 4
      %s9832 = int_to_ptr.vmem [resolvable:$true] %s9831
      %9834 = dma.vmem_to_hbm [thread:$0]  %s9832, 32, %s12, [#allocation5]
    $region53: #{cnn_digits4_forward.1} parent=1 // pred_fallthru
      _
    // Predicated region
    $region54: #{cnn_digits4_forward.1} parent=1 // pred_check
      _
    $region55: #{cnn_digits4_forward.1} parent=1 // pred_check_branch
      %9836 = sbr.rel (0) target = $region57
    $region56: #{cnn_digits4_forward.1} parent=1 // pred_region
      %9837 = dma.done [#allocation5], 32
    $region57: #{cnn_digits4_forward.1} parent=1 // pred_fallthru
      _
    %9838 = vsyncpa [#allocation5], 1

</llo_original>
